<compile_context>
chip_gen: v7x
topology: tpu7x:2x2x1
jax: 0.10.0
libtpu: 0.0.40
codegen_flags: <defaults>
</compile_context>

<pallas_src>
import functools

import jax
import jax.numpy as jnp
from jax.experimental import pallas as pl
from jax.experimental.pallas import tpu as pltpu


# ---------------------------------------------------------------------------
# Fused kernel: one grid step == one image of the batch.
# ---------------------------------------------------------------------------
def _rdb5c_kernel(x_ref, t_ref,
                  w1_ref, b1_ref, w2_ref, b2_ref, w3_ref, b3_ref,
                  w4_ref, b4_ref, w5_ref, b5_ref,
                  o_ref, act_ref, *, H, W, nf, gc, tc):
    C = nf + 4 * gc + tc          # dense-concat channel count
    Hp, Wp = H + 2, W + 2         # spatial size incl. 1-pixel zero halo

    # (Re)build the VMEM-resident dense-concat buffer for this image:
    # zero everything (halo + not-yet-computed channels), then drop x into
    # channels [0, nf) and text_emb into channels [nf+4*gc, C).
    act_ref[...] = jnp.zeros((Hp, Wp, C), jnp.float32)
    act_ref[1:H + 1, 1:W + 1, 0:nf] = x_ref[0].astype(jnp.float32)
    act_ref[1:H + 1, 1:W + 1, nf + 4 * gc:C] = t_ref[0].astype(jnp.float32)

    def conv3x3(w_ref, b_ref):
        """3x3 conv over the full dense buffer via one fat MXU matmul.

        w_ref: (C, 9*Cout) with tap index t = dy*3+dx folded into lanes.
        Unwritten channels have zero weights, so the zero-initialized /
        text channels never contribute to convs that should not see them.
        """
        cout = b_ref.shape[-1]
        a = act_ref[...].reshape(Hp * Wp, C)                  # (Hp*Wp, C)
        r = jnp.dot(a, w_ref[...], preferred_element_type=jnp.float32)
        r = r.reshape(Hp, Wp, 9 * cout)                       # taps in lanes
        acc = jnp.zeros((H, W, cout), jnp.float32) + b_ref[0][None, None, :]
        for dy in range(3):
            for dx in range(3):
                t = dy * 3 + dx
                acc += r[dy:dy + H, dx:dx + W, t * cout:(t + 1) * cout]
        return acc

    # conv1..conv4: bias + LeakyReLU(0.2); write output slice straight into
    # the dense buffer so the growing "concat" stays lane-dense in VMEM.
    for i, (w_ref, b_ref) in enumerate(
            ((w1_ref, b1_ref), (w2_ref, b2_ref),
             (w3_ref, b3_ref), (w4_ref, b4_ref))):
        y = conv3x3(w_ref, b_ref)
        y = jnp.where(y >= 0, y, 0.2 * y)
        c0 = nf + i * gc
        act_ref[1:H + 1, 1:W + 1, c0:c0 + gc] = y

    # conv5 (no activation) fused with the residual: out = conv5(...)*0.166 + x
    y5 = conv3x3(w5_ref, b5_ref)
    o_ref[0] = (y5 * 0.166
                + act_ref[1:H + 1, 1:W + 1, 0:nf]).astype(o_ref.dtype)


# ---------------------------------------------------------------------------
# Host-side parameter handling
# ---------------------------------------------------------------------------
def init_params(key, nf, gc, tc):
    """Deterministic synthetic params; weights HWIO (3,3,Cin,Cout), biases (Cout,)."""
    dims = [
        (nf, gc),                   # conv1
        (nf + gc, gc),              # conv2
        (nf + 2 * gc, gc),          # conv3
        (nf + 3 * gc, gc),          # conv4
        (nf + 4 * gc + tc, nf),     # conv5
    ]
    params = {}
    for i, (cin, cout) in enumerate(dims, start=1):
        key, kw, kb = jax.random.split(key, 3)
        params[f"w{i}"] = 0.05 * jax.random.normal(kw, (3, 3, cin, cout), jnp.float32)
        params[f"b{i}"] = 0.05 * jax.random.normal(kb, (cout,), jnp.float32)
    return params


def pack_params(params, nf, gc, tc):
    """Pack each conv weight to (Ctot, 9*Cout): Cin zero-padded to Ctot
    (channels the conv must not see get zero weights) and the 3x3 taps folded
    into the output-lane axis.  Done once, outside the kernel."""
    C = nf + 4 * gc + tc
    packed = []
    for i in range(1, 6):
        w = params[f"w{i}"]                              # (3, 3, Cin_i, Cout_i)
        cin, cout = w.shape[2], w.shape[3]
        wp = jnp.zeros((3, 3, C, cout), w.dtype).at[:, :, :cin, :].set(w)
        wp = wp.transpose(2, 0, 1, 3).reshape(C, 9 * cout)   # [c, t*Cout + o]
        packed.append(wp)
        packed.append(params[f"b{i}"].reshape(1, cout).astype(jnp.float32))
    return packed


def rdb5c_tl_forward(packed, x, text_emb, *, nf, gc, tc):
    """x: (N,H,W,nf) f32, text_emb: (N,H,W,tc) f32 -> (N,H,W,nf)."""
    N, H, W, _ = x.shape
    C = nf + 4 * gc + tc

    kernel = functools.partial(_rdb5c_kernel, H=H, W=W, nf=nf, gc=gc, tc=tc)

    in_specs = [
        pl.BlockSpec((1, H, W, nf), lambda n: (n, 0, 0, 0)),
        pl.BlockSpec((1, H, W, tc), lambda n: (n, 0, 0, 0)),
    ]
    for arr in packed:                                   # weights & biases (2D)
        in_specs.append(pl.BlockSpec(arr.shape, lambda n: (0, 0)))

    return pl.pallas_call(
        kernel,
        out_shape=jax.ShapeDtypeStruct((N, H, W, nf), x.dtype),
        grid=(N,),
        in_specs=in_specs,
        out_specs=pl.BlockSpec((1, H, W, nf), lambda n: (n, 0, 0, 0)),
        scratch_shapes=[pltpu.VMEM((H + 2, W + 2, C), jnp.float32)],
        compiler_params=pltpu.CompilerParams(
            dimension_semantics=("parallel",)),
    )(x, text_emb, *packed)


# ---------------------------------------------------------------------------
# Pure-JAX reference (lax.conv) for verification.
# ---------------------------------------------------------------------------
def _ref_conv(x, w, b):
    y = jax.lax.conv_general_dilated(
        x, w, window_strides=(1, 1), padding="SAME",
        dimension_numbers=("NHWC", "HWIO", "NHWC"))
    return y + b[None, None, None, :]


def _lrelu(v):
    return jnp.where(v >= 0, v, 0.2 * v)


def rdb5c_tl_reference(params, x, text_emb):
    x1 = _lrelu(_ref_conv(x, params["w1"], params["b1"]))
    x2 = _lrelu(_ref_conv(jnp.concatenate([x, x1], -1), params["w2"], params["b2"]))
    x3 = _lrelu(_ref_conv(jnp.concatenate([x, x1, x2], -1), params["w3"], params["b3"]))
    x4 = _lrelu(_ref_conv(jnp.concatenate([x, x1, x2, x3], -1), params["w4"], params["b4"]))
    x5 = _ref_conv(jnp.concatenate([x, x1, x2, x3, x4, text_emb], -1),
                   params["w5"], params["b5"])
    return x5 * 0.166 + x


if __name__ == "__main__":
    # Small, forward-consistent shapes: nf=16, gc=8, out_text_channels=8.
    # H=W=14 -> padded spatial (16,16) keeps the matmul M dim sublane-aligned.
    N, H, W = 2, 14, 14
    nf, gc, tc = 16, 8, 8

    key = jax.random.PRNGKey(0)
    kx, kt, kp = jax.random.split(key, 3)
    x = jax.random.normal(kx, (N, H, W, nf), jnp.float32)          # NHWC
    text_emb = jax.random.normal(kt, (N, H, W, tc), jnp.float32)   # NHWC
    params = init_params(kp, nf, gc, tc)
    packed = pack_params(params, nf, gc, tc)

    out = jax.block_until_ready(
        rdb5c_tl_forward(packed, x, text_emb, nf=nf, gc=gc, tc=tc))
    ref = jax.block_until_ready(rdb5c_tl_reference(params, x, text_emb))

    assert out.shape == (N, H, W, nf)
    err = float(jnp.max(jnp.abs(out - ref)))
    assert err < 1e-3, f"Pallas output mismatch vs reference: {err}"

    print("KERNEL_OK")
</pallas_src>

<mosaic_0001>
module attributes {stable_mosaic.version = 11 : i64} {
  func.func @_rdb5c_kernel(%arg0: i32, %arg1: memref<1x14x14x16xf32, #tpu.memory_space<vmem>>, %arg2: memref<1x14x14x8xf32, #tpu.memory_space<vmem>>, %arg3: memref<56x72xf32, #tpu.memory_space<vmem>>, %arg4: memref<1x8xf32, #tpu.memory_space<vmem>>, %arg5: memref<56x72xf32, #tpu.memory_space<vmem>>, %arg6: memref<1x8xf32, #tpu.memory_space<vmem>>, %arg7: memref<56x72xf32, #tpu.memory_space<vmem>>, %arg8: memref<1x8xf32, #tpu.memory_space<vmem>>, %arg9: memref<56x72xf32, #tpu.memory_space<vmem>>, %arg10: memref<1x8xf32, #tpu.memory_space<vmem>>, %arg11: memref<56x144xf32, #tpu.memory_space<vmem>>, %arg12: memref<1x16xf32, #tpu.memory_space<vmem>>, %arg13: memref<1x14x14x16xf32, #tpu.memory_space<vmem>>, %arg14: memref<16x16x56xf32, #tpu.memory_space<vmem>>) attributes {dimension_semantics = [#tpu.dimension_semantics<parallel>], iteration_bounds = array<i64: 2>, scalar_prefetch = 0 : i64, scratch_operands = 1 : i64, tpu.core_type = #tpu.core_type<tc>, window_params = [{transform_indices = @transform_0, window_bounds = array<i64: 1, 14, 14, 16>}, {transform_indices = @transform_1, window_bounds = array<i64: 1, 14, 14, 8>}, {pipeline_mode = #tpu.pipeline_mode<synchronous>, transform_indices = @transform_2, window_bounds = array<i64: 56, 72>}, {pipeline_mode = #tpu.pipeline_mode<synchronous>, transform_indices = @transform_3, window_bounds = array<i64: 1, 8>}, {pipeline_mode = #tpu.pipeline_mode<synchronous>, transform_indices = @transform_4, window_bounds = array<i64: 56, 72>}, {pipeline_mode = #tpu.pipeline_mode<synchronous>, transform_indices = @transform_5, window_bounds = array<i64: 1, 8>}, {pipeline_mode = #tpu.pipeline_mode<synchronous>, transform_indices = @transform_6, window_bounds = array<i64: 56, 72>}, {pipeline_mode = #tpu.pipeline_mode<synchronous>, transform_indices = @transform_7, window_bounds = array<i64: 1, 8>}, {pipeline_mode = #tpu.pipeline_mode<synchronous>, transform_indices = @transform_8, window_bounds = array<i64: 56, 72>}, {pipeline_mode = #tpu.pipeline_mode<synchronous>, transform_indices = @transform_9, window_bounds = array<i64: 1, 8>}, {pipeline_mode = #tpu.pipeline_mode<synchronous>, transform_indices = @transform_10, window_bounds = array<i64: 56, 144>}, {pipeline_mode = #tpu.pipeline_mode<synchronous>, transform_indices = @transform_11, window_bounds = array<i64: 1, 16>}, {transform_indices = @transform_12, window_bounds = array<i64: 1, 14, 14, 16>}]} {
    %cst = arith.constant 0.000000e+00 : f32
    %0 = vector.broadcast %cst : f32 to vector<16x16x56xf32>
    %c0 = arith.constant 0 : index
    %c0_0 = arith.constant 0 : index
    %c0_1 = arith.constant 0 : index
    %1 = vector.load %arg14[%c0, %c0_0, %c0_1] : memref<16x16x56xf32, #tpu.memory_space<vmem>>, vector<16x16x56xf32>
    tpu.vector_store %arg14[%c0, %c0_0, %c0_1], %0 {strides = array<i32>} : memref<16x16x56xf32, #tpu.memory_space<vmem>>, vector<16x16x56xf32>,
    %c0_2 = arith.constant 0 : index
    %c0_3 = arith.constant 0 : index
    %c0_4 = arith.constant 0 : index
    %c0_5 = arith.constant 0 : index
    %2 = vector.load %arg1[%c0_2, %c0_3, %c0_4, %c0_5] : memref<1x14x14x16xf32, #tpu.memory_space<vmem>>, vector<1x14x14x16xf32>
    %3 = vector.shape_cast %2 : vector<1x14x14x16xf32> to vector<14x14x16xf32>
    %c1 = arith.constant 1 : index
    %c1_6 = arith.constant 1 : index
    %c0_7 = arith.constant 0 : index
    %4 = vector.load %arg14[%c1, %c1_6, %c0_7] : memref<16x16x56xf32, #tpu.memory_space<vmem>>, vector<14x14x16xf32>
    tpu.vector_store %arg14[%c1, %c1_6, %c0_7], %3 {strides = array<i32>} : memref<16x16x56xf32, #tpu.memory_space<vmem>>, vector<14x14x16xf32>,
    %c0_8 = arith.constant 0 : index
    %c0_9 = arith.constant 0 : index
    %c0_10 = arith.constant 0 : index
    %c0_11 = arith.constant 0 : index
    %5 = vector.load %arg2[%c0_8, %c0_9, %c0_10, %c0_11] : memref<1x14x14x8xf32, #tpu.memory_space<vmem>>, vector<1x14x14x8xf32>
    %6 = vector.shape_cast %5 : vector<1x14x14x8xf32> to vector<14x14x8xf32>
    %c1_12 = arith.constant 1 : index
    %c1_13 = arith.constant 1 : index
    %c48 = arith.constant 48 : index
    %7 = vector.load %arg14[%c1_12, %c1_13, %c48] : memref<16x16x56xf32, #tpu.memory_space<vmem>>, vector<14x14x8xf32>
    tpu.vector_store %arg14[%c1_12, %c1_13, %c48], %6 {strides = array<i32>} : memref<16x16x56xf32, #tpu.memory_space<vmem>>, vector<14x14x8xf32>,
    %c0_14 = arith.constant 0 : index
    %c0_15 = arith.constant 0 : index
    %c0_16 = arith.constant 0 : index
    %8 = vector.load %arg14[%c0_14, %c0_15, %c0_16] : memref<16x16x56xf32, #tpu.memory_space<vmem>>, vector<16x16x56xf32>
    %9 = vector.shape_cast %8 : vector<16x16x56xf32> to vector<256x56xf32>
    %c0_17 = arith.constant 0 : index
    %c0_18 = arith.constant 0 : index
    %10 = vector.load %arg3[%c0_17, %c0_18] : memref<56x72xf32, #tpu.memory_space<vmem>>, vector<56x72xf32>
    %cst_19 = arith.constant dense<0.000000e+00> : vector<256x72xf32>
    %11 = tpu.matmul %9, %10, %cst_19 {dimension_numbers = #tpu.dot_dimension_numbers<[1], [0], [0], [1], [0, 0, 1, 1], [], []>} : vector<256x56xf32>, vector<56x72xf32>, vector<256x72xf32> -> vector<256x72xf32>
    %12 = vector.shape_cast %11 : vector<256x72xf32> to vector<16x16x72xf32>
    %cst_20 = arith.constant 0.000000e+00 : f32
    %13 = vector.broadcast %cst_20 : f32 to vector<14x14x8xf32>
    %c0_21 = arith.constant 0 : index
    %c0_22 = arith.constant 0 : index
    %14 = vector.load %arg4[%c0_21, %c0_22] : memref<1x8xf32, #tpu.memory_space<vmem>>, vector<1x8xf32>
    %15 = vector.shape_cast %14 : vector<1x8xf32> to vector<8xf32>
    %16 = vector.shape_cast %15 : vector<8xf32> to vector<1x1x8xf32>
    %17 = vector.broadcast %16 : vector<1x1x8xf32> to vector<14x14x8xf32>
    %18 = arith.addf %13, %17 : vector<14x14x8xf32>
    %19 = vector.extract_strided_slice %12 {offsets = [0, 0, 0], sizes = [14, 14, 8], strides = [1, 1, 1]} : vector<16x16x72xf32> to vector<14x14x8xf32>
    %20 = arith.addf %18, %19 : vector<14x14x8xf32>
    %21 = vector.extract_strided_slice %12 {offsets = [0, 1, 8], sizes = [14, 14, 8], strides = [1, 1, 1]} : vector<16x16x72xf32> to vector<14x14x8xf32>
    %22 = arith.addf %20, %21 : vector<14x14x8xf32>
    %23 = vector.extract_strided_slice %12 {offsets = [0, 2, 16], sizes = [14, 14, 8], strides = [1, 1, 1]} : vector<16x16x72xf32> to vector<14x14x8xf32>
    %24 = arith.addf %22, %23 : vector<14x14x8xf32>
    %25 = vector.extract_strided_slice %12 {offsets = [1, 0, 24], sizes = [14, 14, 8], strides = [1, 1, 1]} : vector<16x16x72xf32> to vector<14x14x8xf32>
    %26 = arith.addf %24, %25 : vector<14x14x8xf32>
    %27 = vector.extract_strided_slice %12 {offsets = [1, 1, 32], sizes = [14, 14, 8], strides = [1, 1, 1]} : vector<16x16x72xf32> to vector<14x14x8xf32>
    %28 = arith.addf %26, %27 : vector<14x14x8xf32>
    %29 = vector.extract_strided_slice %12 {offsets = [1, 2, 40], sizes = [14, 14, 8], strides = [1, 1, 1]} : vector<16x16x72xf32> to vector<14x14x8xf32>
    %30 = arith.addf %28, %29 : vector<14x14x8xf32>
    %31 = vector.extract_strided_slice %12 {offsets = [2, 0, 48], sizes = [14, 14, 8], strides = [1, 1, 1]} : vector<16x16x72xf32> to vector<14x14x8xf32>
    %32 = arith.addf %30, %31 : vector<14x14x8xf32>
    %33 = vector.extract_strided_slice %12 {offsets = [2, 1, 56], sizes = [14, 14, 8], strides = [1, 1, 1]} : vector<16x16x72xf32> to vector<14x14x8xf32>
    %34 = arith.addf %32, %33 : vector<14x14x8xf32>
    %35 = vector.extract_strided_slice %12 {offsets = [2, 2, 64], sizes = [14, 14, 8], strides = [1, 1, 1]} : vector<16x16x72xf32> to vector<14x14x8xf32>
    %36 = arith.addf %34, %35 : vector<14x14x8xf32>
    %cst_23 = arith.constant 0.000000e+00 : f32
    %37 = vector.broadcast %cst_23 : f32 to vector<14x14x8xf32>
    %38 = arith.cmpf oge, %36, %37 : vector<14x14x8xf32>
    %cst_24 = arith.constant 2.000000e-01 : f32
    %39 = vector.broadcast %cst_24 : f32 to vector<14x14x8xf32>
    %40 = arith.mulf %39, %36 : vector<14x14x8xf32>
    %41 = arith.select %38, %36, %40 : vector<14x14x8xi1>, vector<14x14x8xf32>
    %c1_25 = arith.constant 1 : index
    %c1_26 = arith.constant 1 : index
    %c16 = arith.constant 16 : index
    %42 = vector.load %arg14[%c1_25, %c1_26, %c16] : memref<16x16x56xf32, #tpu.memory_space<vmem>>, vector<14x14x8xf32>
    tpu.vector_store %arg14[%c1_25, %c1_26, %c16], %41 {strides = array<i32>} : memref<16x16x56xf32, #tpu.memory_space<vmem>>, vector<14x14x8xf32>,
    %c0_27 = arith.constant 0 : index
    %c0_28 = arith.constant 0 : index
    %c0_29 = arith.constant 0 : index
    %43 = vector.load %arg14[%c0_27, %c0_28, %c0_29] : memref<16x16x56xf32, #tpu.memory_space<vmem>>, vector<16x16x56xf32>
    %44 = vector.shape_cast %43 : vector<16x16x56xf32> to vector<256x56xf32>
    %c0_30 = arith.constant 0 : index
    %c0_31 = arith.constant 0 : index
    %45 = vector.load %arg5[%c0_30, %c0_31] : memref<56x72xf32, #tpu.memory_space<vmem>>, vector<56x72xf32>
    %cst_32 = arith.constant dense<0.000000e+00> : vector<256x72xf32>
    %46 = tpu.matmul %44, %45, %cst_32 {dimension_numbers = #tpu.dot_dimension_numbers<[1], [0], [0], [1], [0, 0, 1, 1], [], []>} : vector<256x56xf32>, vector<56x72xf32>, vector<256x72xf32> -> vector<256x72xf32>
    %47 = vector.shape_cast %46 : vector<256x72xf32> to vector<16x16x72xf32>
    %cst_33 = arith.constant 0.000000e+00 : f32
    %48 = vector.broadcast %cst_33 : f32 to vector<14x14x8xf32>
    %c0_34 = arith.constant 0 : index
    %c0_35 = arith.constant 0 : index
    %49 = vector.load %arg6[%c0_34, %c0_35] : memref<1x8xf32, #tpu.memory_space<vmem>>, vector<1x8xf32>
    %50 = vector.shape_cast %49 : vector<1x8xf32> to vector<8xf32>
    %51 = vector.shape_cast %50 : vector<8xf32> to vector<1x1x8xf32>
    %52 = vector.broadcast %51 : vector<1x1x8xf32> to vector<14x14x8xf32>
    %53 = arith.addf %48, %52 : vector<14x14x8xf32>
    %54 = vector.extract_strided_slice %47 {offsets = [0, 0, 0], sizes = [14, 14, 8], strides = [1, 1, 1]} : vector<16x16x72xf32> to vector<14x14x8xf32>
    %55 = arith.addf %53, %54 : vector<14x14x8xf32>
    %56 = vector.extract_strided_slice %47 {offsets = [0, 1, 8], sizes = [14, 14, 8], strides = [1, 1, 1]} : vector<16x16x72xf32> to vector<14x14x8xf32>
    %57 = arith.addf %55, %56 : vector<14x14x8xf32>
    %58 = vector.extract_strided_slice %47 {offsets = [0, 2, 16], sizes = [14, 14, 8], strides = [1, 1, 1]} : vector<16x16x72xf32> to vector<14x14x8xf32>
    %59 = arith.addf %57, %58 : vector<14x14x8xf32>
    %60 = vector.extract_strided_slice %47 {offsets = [1, 0, 24], sizes = [14, 14, 8], strides = [1, 1, 1]} : vector<16x16x72xf32> to vector<14x14x8xf32>
    %61 = arith.addf %59, %60 : vector<14x14x8xf32>
    %62 = vector.extract_strided_slice %47 {offsets = [1, 1, 32], sizes = [14, 14, 8], strides = [1, 1, 1]} : vector<16x16x72xf32> to vector<14x14x8xf32>
    %63 = arith.addf %61, %62 : vector<14x14x8xf32>
    %64 = vector.extract_strided_slice %47 {offsets = [1, 2, 40], sizes = [14, 14, 8], strides = [1, 1, 1]} : vector<16x16x72xf32> to vector<14x14x8xf32>
    %65 = arith.addf %63, %64 : vector<14x14x8xf32>
    %66 = vector.extract_strided_slice %47 {offsets = [2, 0, 48], sizes = [14, 14, 8], strides = [1, 1, 1]} : vector<16x16x72xf32> to vector<14x14x8xf32>
    %67 = arith.addf %65, %66 : vector<14x14x8xf32>
    %68 = vector.extract_strided_slice %47 {offsets = [2, 1, 56], sizes = [14, 14, 8], strides = [1, 1, 1]} : vector<16x16x72xf32> to vector<14x14x8xf32>
    %69 = arith.addf %67, %68 : vector<14x14x8xf32>
    %70 = vector.extract_strided_slice %47 {offsets = [2, 2, 64], sizes = [14, 14, 8], strides = [1, 1, 1]} : vector<16x16x72xf32> to vector<14x14x8xf32>
    %71 = arith.addf %69, %70 : vector<14x14x8xf32>
    %cst_36 = arith.constant 0.000000e+00 : f32
    %72 = vector.broadcast %cst_36 : f32 to vector<14x14x8xf32>
    %73 = arith.cmpf oge, %71, %72 : vector<14x14x8xf32>
    %cst_37 = arith.constant 2.000000e-01 : f32
    %74 = vector.broadcast %cst_37 : f32 to vector<14x14x8xf32>
    %75 = arith.mulf %74, %71 : vector<14x14x8xf32>
    %76 = arith.select %73, %71, %75 : vector<14x14x8xi1>, vector<14x14x8xf32>
    %c1_38 = arith.constant 1 : index
    %c1_39 = arith.constant 1 : index
    %c24 = arith.constant 24 : index
    %77 = vector.load %arg14[%c1_38, %c1_39, %c24] : memref<16x16x56xf32, #tpu.memory_space<vmem>>, vector<14x14x8xf32>
    tpu.vector_store %arg14[%c1_38, %c1_39, %c24], %76 {strides = array<i32>} : memref<16x16x56xf32, #tpu.memory_space<vmem>>, vector<14x14x8xf32>,
    %c0_40 = arith.constant 0 : index
    %c0_41 = arith.constant 0 : index
    %c0_42 = arith.constant 0 : index
    %78 = vector.load %arg14[%c0_40, %c0_41, %c0_42] : memref<16x16x56xf32, #tpu.memory_space<vmem>>, vector<16x16x56xf32>
    %79 = vector.shape_cast %78 : vector<16x16x56xf32> to vector<256x56xf32>
    %c0_43 = arith.constant 0 : index
    %c0_44 = arith.constant 0 : index
    %80 = vector.load %arg7[%c0_43, %c0_44] : memref<56x72xf32, #tpu.memory_space<vmem>>, vector<56x72xf32>
    %cst_45 = arith.constant dense<0.000000e+00> : vector<256x72xf32>
    %81 = tpu.matmul %79, %80, %cst_45 {dimension_numbers = #tpu.dot_dimension_numbers<[1], [0], [0], [1], [0, 0, 1, 1], [], []>} : vector<256x56xf32>, vector<56x72xf32>, vector<256x72xf32> -> vector<256x72xf32>
    %82 = vector.shape_cast %81 : vector<256x72xf32> to vector<16x16x72xf32>
    %cst_46 = arith.constant 0.000000e+00 : f32
    %83 = vector.broadcast %cst_46 : f32 to vector<14x14x8xf32>
    %c0_47 = arith.constant 0 : index
    %c0_48 = arith.constant 0 : index
    %84 = vector.load %arg8[%c0_47, %c0_48] : memref<1x8xf32, #tpu.memory_space<vmem>>, vector<1x8xf32>
    %85 = vector.shape_cast %84 : vector<1x8xf32> to vector<8xf32>
    %86 = vector.shape_cast %85 : vector<8xf32> to vector<1x1x8xf32>
    %87 = vector.broadcast %86 : vector<1x1x8xf32> to vector<14x14x8xf32>
    %88 = arith.addf %83, %87 : vector<14x14x8xf32>
    %89 = vector.extract_strided_slice %82 {offsets = [0, 0, 0], sizes = [14, 14, 8], strides = [1, 1, 1]} : vector<16x16x72xf32> to vector<14x14x8xf32>
    %90 = arith.addf %88, %89 : vector<14x14x8xf32>
    %91 = vector.extract_strided_slice %82 {offsets = [0, 1, 8], sizes = [14, 14, 8], strides = [1, 1, 1]} : vector<16x16x72xf32> to vector<14x14x8xf32>
    %92 = arith.addf %90, %91 : vector<14x14x8xf32>
    %93 = vector.extract_strided_slice %82 {offsets = [0, 2, 16], sizes = [14, 14, 8], strides = [1, 1, 1]} : vector<16x16x72xf32> to vector<14x14x8xf32>
    %94 = arith.addf %92, %93 : vector<14x14x8xf32>
    %95 = vector.extract_strided_slice %82 {offsets = [1, 0, 24], sizes = [14, 14, 8], strides = [1, 1, 1]} : vector<16x16x72xf32> to vector<14x14x8xf32>
    %96 = arith.addf %94, %95 : vector<14x14x8xf32>
    %97 = vector.extract_strided_slice %82 {offsets = [1, 1, 32], sizes = [14, 14, 8], strides = [1, 1, 1]} : vector<16x16x72xf32> to vector<14x14x8xf32>
    %98 = arith.addf %96, %97 : vector<14x14x8xf32>
    %99 = vector.extract_strided_slice %82 {offsets = [1, 2, 40], sizes = [14, 14, 8], strides = [1, 1, 1]} : vector<16x16x72xf32> to vector<14x14x8xf32>
    %100 = arith.addf %98, %99 : vector<14x14x8xf32>
    %101 = vector.extract_strided_slice %82 {offsets = [2, 0, 48], sizes = [14, 14, 8], strides = [1, 1, 1]} : vector<16x16x72xf32> to vector<14x14x8xf32>
    %102 = arith.addf %100, %101 : vector<14x14x8xf32>
    %103 = vector.extract_strided_slice %82 {offsets = [2, 1, 56], sizes = [14, 14, 8], strides = [1, 1, 1]} : vector<16x16x72xf32> to vector<14x14x8xf32>
    %104 = arith.addf %102, %103 : vector<14x14x8xf32>
    %105 = vector.extract_strided_slice %82 {offsets = [2, 2, 64], sizes = [14, 14, 8], strides = [1, 1, 1]} : vector<16x16x72xf32> to vector<14x14x8xf32>
    %106 = arith.addf %104, %105 : vector<14x14x8xf32>
    %cst_49 = arith.constant 0.000000e+00 : f32
    %107 = vector.broadcast %cst_49 : f32 to vector<14x14x8xf32>
    %108 = arith.cmpf oge, %106, %107 : vector<14x14x8xf32>
    %cst_50 = arith.constant 2.000000e-01 : f32
    %109 = vector.broadcast %cst_50 : f32 to vector<14x14x8xf32>
    %110 = arith.mulf %109, %106 : vector<14x14x8xf32>
    %111 = arith.select %108, %106, %110 : vector<14x14x8xi1>, vector<14x14x8xf32>
    %c1_51 = arith.constant 1 : index
    %c1_52 = arith.constant 1 : index
    %c32 = arith.constant 32 : index
    %112 = vector.load %arg14[%c1_51, %c1_52, %c32] : memref<16x16x56xf32, #tpu.memory_space<vmem>>, vector<14x14x8xf32>
    tpu.vector_store %arg14[%c1_51, %c1_52, %c32], %111 {strides = array<i32>} : memref<16x16x56xf32, #tpu.memory_space<vmem>>, vector<14x14x8xf32>,
    %c0_53 = arith.constant 0 : index
    %c0_54 = arith.constant 0 : index
    %c0_55 = arith.constant 0 : index
    %113 = vector.load %arg14[%c0_53, %c0_54, %c0_55] : memref<16x16x56xf32, #tpu.memory_space<vmem>>, vector<16x16x56xf32>
    %114 = vector.shape_cast %113 : vector<16x16x56xf32> to vector<256x56xf32>
    %c0_56 = arith.constant 0 : index
    %c0_57 = arith.constant 0 : index
    %115 = vector.load %arg9[%c0_56, %c0_57] : memref<56x72xf32, #tpu.memory_space<vmem>>, vector<56x72xf32>
    %cst_58 = arith.constant dense<0.000000e+00> : vector<256x72xf32>
    %116 = tpu.matmul %114, %115, %cst_58 {dimension_numbers = #tpu.dot_dimension_numbers<[1], [0], [0], [1], [0, 0, 1, 1], [], []>} : vector<256x56xf32>, vector<56x72xf32>, vector<256x72xf32> -> vector<256x72xf32>
    %117 = vector.shape_cast %116 : vector<256x72xf32> to vector<16x16x72xf32>
    %cst_59 = arith.constant 0.000000e+00 : f32
    %118 = vector.broadcast %cst_59 : f32 to vector<14x14x8xf32>
    %c0_60 = arith.constant 0 : index
    %c0_61 = arith.constant 0 : index
    %119 = vector.load %arg10[%c0_60, %c0_61] : memref<1x8xf32, #tpu.memory_space<vmem>>, vector<1x8xf32>
    %120 = vector.shape_cast %119 : vector<1x8xf32> to vector<8xf32>
    %121 = vector.shape_cast %120 : vector<8xf32> to vector<1x1x8xf32>
    %122 = vector.broadcast %121 : vector<1x1x8xf32> to vector<14x14x8xf32>
    %123 = arith.addf %118, %122 : vector<14x14x8xf32>
    %124 = vector.extract_strided_slice %117 {offsets = [0, 0, 0], sizes = [14, 14, 8], strides = [1, 1, 1]} : vector<16x16x72xf32> to vector<14x14x8xf32>
    %125 = arith.addf %123, %124 : vector<14x14x8xf32>
    %126 = vector.extract_strided_slice %117 {offsets = [0, 1, 8], sizes = [14, 14, 8], strides = [1, 1, 1]} : vector<16x16x72xf32> to vector<14x14x8xf32>
    %127 = arith.addf %125, %126 : vector<14x14x8xf32>
    %128 = vector.extract_strided_slice %117 {offsets = [0, 2, 16], sizes = [14, 14, 8], strides = [1, 1, 1]} : vector<16x16x72xf32> to vector<14x14x8xf32>
    %129 = arith.addf %127, %128 : vector<14x14x8xf32>
    %130 = vector.extract_strided_slice %117 {offsets = [1, 0, 24], sizes = [14, 14, 8], strides = [1, 1, 1]} : vector<16x16x72xf32> to vector<14x14x8xf32>
    %131 = arith.addf %129, %130 : vector<14x14x8xf32>
    %132 = vector.extract_strided_slice %117 {offsets = [1, 1, 32], sizes = [14, 14, 8], strides = [1, 1, 1]} : vector<16x16x72xf32> to vector<14x14x8xf32>
    %133 = arith.addf %131, %132 : vector<14x14x8xf32>
    %134 = vector.extract_strided_slice %117 {offsets = [1, 2, 40], sizes = [14, 14, 8], strides = [1, 1, 1]} : vector<16x16x72xf32> to vector<14x14x8xf32>
    %135 = arith.addf %133, %134 : vector<14x14x8xf32>
    %136 = vector.extract_strided_slice %117 {offsets = [2, 0, 48], sizes = [14, 14, 8], strides = [1, 1, 1]} : vector<16x16x72xf32> to vector<14x14x8xf32>
    %137 = arith.addf %135, %136 : vector<14x14x8xf32>
    %138 = vector.extract_strided_slice %117 {offsets = [2, 1, 56], sizes = [14, 14, 8], strides = [1, 1, 1]} : vector<16x16x72xf32> to vector<14x14x8xf32>
    %139 = arith.addf %137, %138 : vector<14x14x8xf32>
    %140 = vector.extract_strided_slice %117 {offsets = [2, 2, 64], sizes = [14, 14, 8], strides = [1, 1, 1]} : vector<16x16x72xf32> to vector<14x14x8xf32>
    %141 = arith.addf %139, %140 : vector<14x14x8xf32>
    %cst_62 = arith.constant 0.000000e+00 : f32
    %142 = vector.broadcast %cst_62 : f32 to vector<14x14x8xf32>
    %143 = arith.cmpf oge, %141, %142 : vector<14x14x8xf32>
    %cst_63 = arith.constant 2.000000e-01 : f32
    %144 = vector.broadcast %cst_63 : f32 to vector<14x14x8xf32>
    %145 = arith.mulf %144, %141 : vector<14x14x8xf32>
    %146 = arith.select %143, %141, %145 : vector<14x14x8xi1>, vector<14x14x8xf32>
    %c1_64 = arith.constant 1 : index
    %c1_65 = arith.constant 1 : index
    %c40 = arith.constant 40 : index
    %147 = vector.load %arg14[%c1_64, %c1_65, %c40] : memref<16x16x56xf32, #tpu.memory_space<vmem>>, vector<14x14x8xf32>
    tpu.vector_store %arg14[%c1_64, %c1_65, %c40], %146 {strides = array<i32>} : memref<16x16x56xf32, #tpu.memory_space<vmem>>, vector<14x14x8xf32>,
    %c0_66 = arith.constant 0 : index
    %c0_67 = arith.constant 0 : index
    %c0_68 = arith.constant 0 : index
    %148 = vector.load %arg14[%c0_66, %c0_67, %c0_68] : memref<16x16x56xf32, #tpu.memory_space<vmem>>, vector<16x16x56xf32>
    %149 = vector.shape_cast %148 : vector<16x16x56xf32> to vector<256x56xf32>
    %c0_69 = arith.constant 0 : index
    %c0_70 = arith.constant 0 : index
    %150 = vector.load %arg11[%c0_69, %c0_70] : memref<56x144xf32, #tpu.memory_space<vmem>>, vector<56x144xf32>
    %cst_71 = arith.constant dense<0.000000e+00> : vector<256x144xf32>
    %151 = tpu.matmul %149, %150, %cst_71 {dimension_numbers = #tpu.dot_dimension_numbers<[1], [0], [0], [1], [0, 0, 1, 1], [], []>} : vector<256x56xf32>, vector<56x144xf32>, vector<256x144xf32> -> vector<256x144xf32>
    %152 = vector.shape_cast %151 : vector<256x144xf32> to vector<16x16x144xf32>
    %cst_72 = arith.constant 0.000000e+00 : f32
    %153 = vector.broadcast %cst_72 : f32 to vector<14x14x16xf32>
    %c0_73 = arith.constant 0 : index
    %c0_74 = arith.constant 0 : index
    %154 = vector.load %arg12[%c0_73, %c0_74] : memref<1x16xf32, #tpu.memory_space<vmem>>, vector<1x16xf32>
    %155 = vector.shape_cast %154 : vector<1x16xf32> to vector<16xf32>
    %156 = vector.shape_cast %155 : vector<16xf32> to vector<1x1x16xf32>
    %157 = vector.broadcast %156 : vector<1x1x16xf32> to vector<14x14x16xf32>
    %158 = arith.addf %153, %157 : vector<14x14x16xf32>
    %159 = vector.extract_strided_slice %152 {offsets = [0, 0, 0], sizes = [14, 14, 16], strides = [1, 1, 1]} : vector<16x16x144xf32> to vector<14x14x16xf32>
    %160 = arith.addf %158, %159 : vector<14x14x16xf32>
    %161 = vector.extract_strided_slice %152 {offsets = [0, 1, 16], sizes = [14, 14, 16], strides = [1, 1, 1]} : vector<16x16x144xf32> to vector<14x14x16xf32>
    %162 = arith.addf %160, %161 : vector<14x14x16xf32>
    %163 = vector.extract_strided_slice %152 {offsets = [0, 2, 32], sizes = [14, 14, 16], strides = [1, 1, 1]} : vector<16x16x144xf32> to vector<14x14x16xf32>
    %164 = arith.addf %162, %163 : vector<14x14x16xf32>
    %165 = vector.extract_strided_slice %152 {offsets = [1, 0, 48], sizes = [14, 14, 16], strides = [1, 1, 1]} : vector<16x16x144xf32> to vector<14x14x16xf32>
    %166 = arith.addf %164, %165 : vector<14x14x16xf32>
    %167 = vector.extract_strided_slice %152 {offsets = [1, 1, 64], sizes = [14, 14, 16], strides = [1, 1, 1]} : vector<16x16x144xf32> to vector<14x14x16xf32>
    %168 = arith.addf %166, %167 : vector<14x14x16xf32>
    %169 = vector.extract_strided_slice %152 {offsets = [1, 2, 80], sizes = [14, 14, 16], strides = [1, 1, 1]} : vector<16x16x144xf32> to vector<14x14x16xf32>
    %170 = arith.addf %168, %169 : vector<14x14x16xf32>
    %171 = vector.extract_strided_slice %152 {offsets = [2, 0, 96], sizes = [14, 14, 16], strides = [1, 1, 1]} : vector<16x16x144xf32> to vector<14x14x16xf32>
    %172 = arith.addf %170, %171 : vector<14x14x16xf32>
    %173 = vector.extract_strided_slice %152 {offsets = [2, 1, 112], sizes = [14, 14, 16], strides = [1, 1, 1]} : vector<16x16x144xf32> to vector<14x14x16xf32>
    %174 = arith.addf %172, %173 : vector<14x14x16xf32>
    %175 = vector.extract_strided_slice %152 {offsets = [2, 2, 128], sizes = [14, 14, 16], strides = [1, 1, 1]} : vector<16x16x144xf32> to vector<14x14x16xf32>
    %176 = arith.addf %174, %175 : vector<14x14x16xf32>
    %cst_75 = arith.constant 1.660000e-01 : f32
    %177 = vector.broadcast %cst_75 : f32 to vector<14x14x16xf32>
    %178 = arith.mulf %176, %177 : vector<14x14x16xf32>
    %c1_76 = arith.constant 1 : index
    %c1_77 = arith.constant 1 : index
    %c0_78 = arith.constant 0 : index
    %179 = vector.load %arg14[%c1_76, %c1_77, %c0_78] : memref<16x16x56xf32, #tpu.memory_space<vmem>>, vector<14x14x16xf32>
    %180 = arith.addf %178, %179 : vector<14x14x16xf32>
    %c0_79 = arith.constant 0 : index
    %c0_80 = arith.constant 0 : index
    %c0_81 = arith.constant 0 : index
    %c0_82 = arith.constant 0 : index
    %181 = vector.load %arg13[%c0_79, %c0_80, %c0_81, %c0_82] : memref<1x14x14x16xf32, #tpu.memory_space<vmem>>, vector<1x14x14x16xf32>
    %182 = vector.shape_cast %181 : vector<1x14x14x16xf32> to vector<14x14x16xf32>
    %183 = vector.shape_cast %180 : vector<14x14x16xf32> to vector<1x14x14x16xf32>
    tpu.vector_store %arg13[%c0_79, %c0_80, %c0_81, %c0_82], %183 {strides = array<i32>} : memref<1x14x14x16xf32, #tpu.memory_space<vmem>>, vector<1x14x14x16xf32>,
    return
  }
  func.func @transform_0(%arg0: i32) -> (i32, i32, i32, i32) {
    %c0_i32 = arith.constant 0 : i32
    %c0_i32_0 = arith.constant 0 : i32
    %c0_i32_1 = arith.constant 0 : i32
    %c0_i32_2 = arith.constant 0 : i32
    return %arg0, %c0_i32, %c0_i32_0, %c0_i32_1 : i32, i32, i32, i32
  }
  func.func @transform_1(%arg0: i32) -> (i32, i32, i32, i32) {
    %c0_i32 = arith.constant 0 : i32
    %c0_i32_0 = arith.constant 0 : i32
    %c0_i32_1 = arith.constant 0 : i32
    %c0_i32_2 = arith.constant 0 : i32
    return %arg0, %c0_i32, %c0_i32_0, %c0_i32_1 : i32, i32, i32, i32
  }
  func.func @transform_2(%arg0: i32) -> (i32, i32) {
    %c0_i32 = arith.constant 0 : i32
    %c0_i32_0 = arith.constant 0 : i32
    %c0_i32_1 = arith.constant 0 : i32
    return %c0_i32, %c0_i32_0 : i32, i32
  }
  func.func @transform_3(%arg0: i32) -> (i32, i32) {
    %c0_i32 = arith.constant 0 : i32
    %c0_i32_0 = arith.constant 0 : i32
    %c0_i32_1 = arith.constant 0 : i32
    return %c0_i32, %c0_i32_0 : i32, i32
  }
  func.func @transform_4(%arg0: i32) -> (i32, i32) {
    %c0_i32 = arith.constant 0 : i32
    %c0_i32_0 = arith.constant 0 : i32
    %c0_i32_1 = arith.constant 0 : i32
    return %c0_i32, %c0_i32_0 : i32, i32
  }
  func.func @transform_5(%arg0: i32) -> (i32, i32) {
    %c0_i32 = arith.constant 0 : i32
    %c0_i32_0 = arith.constant 0 : i32
    %c0_i32_1 = arith.constant 0 : i32
    return %c0_i32, %c0_i32_0 : i32, i32
  }
  func.func @transform_6(%arg0: i32) -> (i32, i32) {
    %c0_i32 = arith.constant 0 : i32
    %c0_i32_0 = arith.constant 0 : i32
    %c0_i32_1 = arith.constant 0 : i32
    return %c0_i32, %c0_i32_0 : i32, i32
  }
  func.func @transform_7(%arg0: i32) -> (i32, i32) {
    %c0_i32 = arith.constant 0 : i32
    %c0_i32_0 = arith.constant 0 : i32
    %c0_i32_1 = arith.constant 0 : i32
    return %c0_i32, %c0_i32_0 : i32, i32
  }
  func.func @transform_8(%arg0: i32) -> (i32, i32) {
    %c0_i32 = arith.constant 0 : i32
    %c0_i32_0 = arith.constant 0 : i32
    %c0_i32_1 = arith.constant 0 : i32
    return %c0_i32, %c0_i32_0 : i32, i32
  }
  func.func @transform_9(%arg0: i32) -> (i32, i32) {
    %c0_i32 = arith.constant 0 : i32
    %c0_i32_0 = arith.constant 0 : i32
    %c0_i32_1 = arith.constant 0 : i32
    return %c0_i32, %c0_i32_0 : i32, i32
  }
  func.func @transform_10(%arg0: i32) -> (i32, i32) {
    %c0_i32 = arith.constant 0 : i32
    %c0_i32_0 = arith.constant 0 : i32
    %c0_i32_1 = arith.constant 0 : i32
    return %c0_i32, %c0_i32_0 : i32, i32
  }
  func.func @transform_11(%arg0: i32) -> (i32, i32) {
    %c0_i32 = arith.constant 0 : i32
    %c0_i32_0 = arith.constant 0 : i32
    %c0_i32_1 = arith.constant 0 : i32
    return %c0_i32, %c0_i32_0 : i32, i32
  }
  func.func @transform_12(%arg0: i32) -> (i32, i32, i32, i32) {
    %c0_i32 = arith.constant 0 : i32
    %c0_i32_0 = arith.constant 0 : i32
    %c0_i32_1 = arith.constant 0 : i32
    %c0_i32_2 = arith.constant 0 : i32
    return %arg0, %c0_i32, %c0_i32_0, %c0_i32_1 : i32, i32, i32, i32
  }
}

</mosaic_0001>

<llo_original>
// kernel: tpu_custom_call.1
$region0: #{tpu_custom_call.1}
  #allocation0 [shape = 'u32[]', space=smem, size = 0x4, offset = 0x4, fixed_abs, tag = 'smem constant byte address 0x4 - core index']
  #allocation1 [shape = 'u32[144,128]{1,0:T(1,128)}', space=vmem, size = 0x12000, scoped, tag = 'internal scratch']
  #allocation2 [shape = 'f32[16,16,56]{2,1,0:T(8,128)}', space=vmem, size = 0x20000, scoped, tag = 'scratch operand']
  %s0 = inlined_call_operand.vmem [shape: f32[2,14,14,16], index: 0, kind: input, shape index: {}]
  %s1 = inlined_call_operand.vmem [shape: f32[2,14,14,8], index: 1, kind: input, shape index: {}]
  %s2 = inlined_call_operand.vmem [shape: f32[56,72], index: 2, kind: input, shape index: {}]
  %s3 = inlined_call_operand.vmem [shape: f32[1,8], index: 3, kind: input, shape index: {}]
  %s4 = inlined_call_operand.vmem [shape: f32[56,72], index: 4, kind: input, shape index: {}]
  %s5 = inlined_call_operand.vmem [shape: f32[1,8], index: 5, kind: input, shape index: {}]
  %s6 = inlined_call_operand.vmem [shape: f32[56,72], index: 6, kind: input, shape index: {}]
  %s7 = inlined_call_operand.vmem [shape: f32[1,8], index: 7, kind: input, shape index: {}]
  %s8 = inlined_call_operand.vmem [shape: f32[56,72], index: 8, kind: input, shape index: {}]
  %s9 = inlined_call_operand.vmem [shape: f32[1,8], index: 9, kind: input, shape index: {}]
  %s10 = inlined_call_operand.vmem [shape: f32[56,144], index: 10, kind: input, shape index: {}]
  %s11 = inlined_call_operand.vmem [shape: f32[1,16], index: 11, kind: input, shape index: {}]
  %s12 = inlined_call_operand.vmem [shape: f32[2,14,14,16], index: 12, kind: output, shape index: {}]
  %s13 = sld [smem:[#allocation0]]
  $region81: #{tpu_custom_call.1} parent=0
    _
  %s15 = ssub.s32 1, %s13
  %s16 = scalar_select 0, %s15, %s13
  loop: start=0, step=1, limit=4
  $region2: #{tpu_custom_call.1} parent=0 // loop_pre_header
    _
  $region3: #{tpu_custom_call.1} parent=0 // loop_header
    %s18 = sphi 0, %s22
    %p19 = scmp.ge.s32.totalorder %s18, 4
    %s28 = sphi 0, %s30
    %s31 = sphi 0, %s28
    %s32 = sphi 0, %s31
    %s48 = sphi 0, %s32
    %s54 = sphi 0, %s56
    %s57 = sphi 0, %s54
    %s58 = sphi 0, %s57
    %s74 = sphi 0, %s58
    %s78 = sphi 0, %s78
    %s80 = sphi 0, %s78
    %s81 = sphi 0, %s80
    %s95 = sphi 0, %s81
    %s99 = sphi 0, %s99
    %s101 = sphi 0, %s99
    %s102 = sphi 0, %s101
    %s116 = sphi 0, %s102
    %s120 = sphi 0, %s120
    %s122 = sphi 0, %s120
    %s123 = sphi 0, %s122
    %s137 = sphi 0, %s123
    %s141 = sphi 0, %s141
    %s143 = sphi 0, %s141
    %s144 = sphi 0, %s143
    %s158 = sphi 0, %s144
    %s162 = sphi 0, %s162
    %s164 = sphi 0, %s162
    %s165 = sphi 0, %s164
    %s179 = sphi 0, %s165
    %s183 = sphi 0, %s183
    %s185 = sphi 0, %s183
    %s186 = sphi 0, %s185
    %s200 = sphi 0, %s186
    %s204 = sphi 0, %s204
    %s206 = sphi 0, %s204
    %s207 = sphi 0, %s206
    %s221 = sphi 0, %s207
    %s225 = sphi 0, %s225
    %s227 = sphi 0, %s225
    %s228 = sphi 0, %s227
    %s242 = sphi 0, %s228
    %s246 = sphi 0, %s246
    %s248 = sphi 0, %s246
    %s249 = sphi 0, %s248
    %s263 = sphi 0, %s249
    %s267 = sphi 0, %s267
    %s269 = sphi 0, %s267
    %s270 = sphi 0, %s269
    %s284 = sphi 0, %s270
    %s290 = sphi 0, %s292
    %s293 = sphi 0, %s290
    %s294 = sphi 0, %s293
    %s310 = sphi 0, %s294
  $region4: #{tpu_custom_call.1} parent=0 // loop_header_branch
    %21 = sbr.rel (%p19) target = $region8
  $region5: #{tpu_custom_call.1} parent=0 // loop_body
    %s23 = ssub.s32 %s18, 1
    %s24 = ssub.s32 %s18, 2
    %s25 = sadd.s32 %s18, 1
    %s26 = ssub.s32 %s18, %s25
    %p27 = scmp.eq.s32.totalorder %s26, 0
    %s29 = sadd.s32 %s28, 1
    %s30 = scalar_select %p27, %s28, %s29
    %p33 = pneg %p27
    %p34 = scmp.eq.s32.totalorder %s18, 1
    %p35 = por %p33, %p34
    %p36 = scmp.ne.s32.totalorder %s28, %s31
    %p37 = scmp.eq.s32.totalorder %s18, 0
    %p38 = por %p36, %p37
    %p39 = scmp.ne.s32.totalorder %s28, %s31
    %p40 = scmp.eq.s32.totalorder %s23, 1
    %p41 = por %p39, %p40
    %p42 = scmp.ne.s32.totalorder %s31, %s32
    %p43 = scmp.eq.s32.totalorder %s23, 0
    %p44 = por %p42, %p43
    %p45 = scmp.ne.s32.totalorder %s31, %s32
    %p46 = scmp.eq.s32.totalorder %s24, 1
    %p47 = por %p45, %p46
    %p49 = scmp.ne.s32.totalorder %s32, %s48
    %p50 = scmp.eq.s32.totalorder %s24, 0
    %p51 = por %p49, %p50
    %s52 = ssub.s32 %s18, %s25
    %p53 = scmp.eq.s32.totalorder %s52, 0
    %s55 = sadd.s32 %s54, 1
    %s56 = scalar_select %p53, %s54, %s55
    %p59 = pneg %p53
    %p60 = scmp.eq.s32.totalorder %s18, 1
    %p61 = por %p59, %p60
    %p62 = scmp.ne.s32.totalorder %s54, %s57
    %p63 = scmp.eq.s32.totalorder %s18, 0
    %p64 = por %p62, %p63
    %p65 = scmp.ne.s32.totalorder %s54, %s57
    %p66 = scmp.eq.s32.totalorder %s23, 1
    %p67 = por %p65, %p66
    %p68 = scmp.ne.s32.totalorder %s57, %s58
    %p69 = scmp.eq.s32.totalorder %s23, 0
    %p70 = por %p68, %p69
    %p71 = scmp.ne.s32.totalorder %s57, %s58
    %p72 = scmp.eq.s32.totalorder %s24, 1
    %p73 = por %p71, %p72
    %p75 = scmp.ne.s32.totalorder %s58, %s74
    %p76 = scmp.eq.s32.totalorder %s24, 0
    %p77 = por %p75, %p76
    %s79 = sadd.s32 %s78, 1
    %p82 = scmp.eq.s32.totalorder %s18, 1
    %p83 = scmp.ne.s32.totalorder %s78, %s80
    %p84 = scmp.eq.s32.totalorder %s18, 0
    %p85 = por %p83, %p84
    %p86 = scmp.ne.s32.totalorder %s78, %s80
    %p87 = scmp.eq.s32.totalorder %s23, 1
    %p88 = por %p86, %p87
    %p89 = scmp.ne.s32.totalorder %s80, %s81
    %p90 = scmp.eq.s32.totalorder %s23, 0
    %p91 = por %p89, %p90
    %p92 = scmp.ne.s32.totalorder %s80, %s81
    %p93 = scmp.eq.s32.totalorder %s24, 1
    %p94 = por %p92, %p93
    %p96 = scmp.ne.s32.totalorder %s81, %s95
    %p97 = scmp.eq.s32.totalorder %s24, 0
    %p98 = por %p96, %p97
    %s100 = sadd.s32 %s99, 1
    %p103 = scmp.eq.s32.totalorder %s18, 1
    %p104 = scmp.ne.s32.totalorder %s99, %s101
    %p105 = scmp.eq.s32.totalorder %s18, 0
    %p106 = por %p104, %p105
    %p107 = scmp.ne.s32.totalorder %s99, %s101
    %p108 = scmp.eq.s32.totalorder %s23, 1
    %p109 = por %p107, %p108
    %p110 = scmp.ne.s32.totalorder %s101, %s102
    %p111 = scmp.eq.s32.totalorder %s23, 0
    %p112 = por %p110, %p111
    %p113 = scmp.ne.s32.totalorder %s101, %s102
    %p114 = scmp.eq.s32.totalorder %s24, 1
    %p115 = por %p113, %p114
    %p117 = scmp.ne.s32.totalorder %s102, %s116
    %p118 = scmp.eq.s32.totalorder %s24, 0
    %p119 = por %p117, %p118
    %s121 = sadd.s32 %s120, 1
    %p124 = scmp.eq.s32.totalorder %s18, 1
    %p125 = scmp.ne.s32.totalorder %s120, %s122
    %p126 = scmp.eq.s32.totalorder %s18, 0
    %p127 = por %p125, %p126
    %p128 = scmp.ne.s32.totalorder %s120, %s122
    %p129 = scmp.eq.s32.totalorder %s23, 1
    %p130 = por %p128, %p129
    %p131 = scmp.ne.s32.totalorder %s122, %s123
    %p132 = scmp.eq.s32.totalorder %s23, 0
    %p133 = por %p131, %p132
    %p134 = scmp.ne.s32.totalorder %s122, %s123
    %p135 = scmp.eq.s32.totalorder %s24, 1
    %p136 = por %p134, %p135
    %p138 = scmp.ne.s32.totalorder %s123, %s137
    %p139 = scmp.eq.s32.totalorder %s24, 0
    %p140 = por %p138, %p139
    %s142 = sadd.s32 %s141, 1
    %p145 = scmp.eq.s32.totalorder %s18, 1
    %p146 = scmp.ne.s32.totalorder %s141, %s143
    %p147 = scmp.eq.s32.totalorder %s18, 0
    %p148 = por %p146, %p147
    %p149 = scmp.ne.s32.totalorder %s141, %s143
    %p150 = scmp.eq.s32.totalorder %s23, 1
    %p151 = por %p149, %p150
    %p152 = scmp.ne.s32.totalorder %s143, %s144
    %p153 = scmp.eq.s32.totalorder %s23, 0
    %p154 = por %p152, %p153
    %p155 = scmp.ne.s32.totalorder %s143, %s144
    %p156 = scmp.eq.s32.totalorder %s24, 1
    %p157 = por %p155, %p156
    %p159 = scmp.ne.s32.totalorder %s144, %s158
    %p160 = scmp.eq.s32.totalorder %s24, 0
    %p161 = por %p159, %p160
    %s163 = sadd.s32 %s162, 1
    %p166 = scmp.eq.s32.totalorder %s18, 1
    %p167 = scmp.ne.s32.totalorder %s162, %s164
    %p168 = scmp.eq.s32.totalorder %s18, 0
    %p169 = por %p167, %p168
    %p170 = scmp.ne.s32.totalorder %s162, %s164
    %p171 = scmp.eq.s32.totalorder %s23, 1
    %p172 = por %p170, %p171
    %p173 = scmp.ne.s32.totalorder %s164, %s165
    %p174 = scmp.eq.s32.totalorder %s23, 0
    %p175 = por %p173, %p174
    %p176 = scmp.ne.s32.totalorder %s164, %s165
    %p177 = scmp.eq.s32.totalorder %s24, 1
    %p178 = por %p176, %p177
    %p180 = scmp.ne.s32.totalorder %s165, %s179
    %p181 = scmp.eq.s32.totalorder %s24, 0
    %p182 = por %p180, %p181
    %s184 = sadd.s32 %s183, 1
    %p187 = scmp.eq.s32.totalorder %s18, 1
    %p188 = scmp.ne.s32.totalorder %s183, %s185
    %p189 = scmp.eq.s32.totalorder %s18, 0
    %p190 = por %p188, %p189
    %p191 = scmp.ne.s32.totalorder %s183, %s185
    %p192 = scmp.eq.s32.totalorder %s23, 1
    %p193 = por %p191, %p192
    %p194 = scmp.ne.s32.totalorder %s185, %s186
    %p195 = scmp.eq.s32.totalorder %s23, 0
    %p196 = por %p194, %p195
    %p197 = scmp.ne.s32.totalorder %s185, %s186
    %p198 = scmp.eq.s32.totalorder %s24, 1
    %p199 = por %p197, %p198
    %p201 = scmp.ne.s32.totalorder %s186, %s200
    %p202 = scmp.eq.s32.totalorder %s24, 0
    %p203 = por %p201, %p202
    %s205 = sadd.s32 %s204, 1
    %p208 = scmp.eq.s32.totalorder %s18, 1
    %p209 = scmp.ne.s32.totalorder %s204, %s206
    %p210 = scmp.eq.s32.totalorder %s18, 0
    %p211 = por %p209, %p210
    %p212 = scmp.ne.s32.totalorder %s204, %s206
    %p213 = scmp.eq.s32.totalorder %s23, 1
    %p214 = por %p212, %p213
    %p215 = scmp.ne.s32.totalorder %s206, %s207
    %p216 = scmp.eq.s32.totalorder %s23, 0
    %p217 = por %p215, %p216
    %p218 = scmp.ne.s32.totalorder %s206, %s207
    %p219 = scmp.eq.s32.totalorder %s24, 1
    %p220 = por %p218, %p219
    %p222 = scmp.ne.s32.totalorder %s207, %s221
    %p223 = scmp.eq.s32.totalorder %s24, 0
    %p224 = por %p222, %p223
    %s226 = sadd.s32 %s225, 1
    %p229 = scmp.eq.s32.totalorder %s18, 1
    %p230 = scmp.ne.s32.totalorder %s225, %s227
    %p231 = scmp.eq.s32.totalorder %s18, 0
    %p232 = por %p230, %p231
    %p233 = scmp.ne.s32.totalorder %s225, %s227
    %p234 = scmp.eq.s32.totalorder %s23, 1
    %p235 = por %p233, %p234
    %p236 = scmp.ne.s32.totalorder %s227, %s228
    %p237 = scmp.eq.s32.totalorder %s23, 0
    %p238 = por %p236, %p237
    %p239 = scmp.ne.s32.totalorder %s227, %s228
    %p240 = scmp.eq.s32.totalorder %s24, 1
    %p241 = por %p239, %p240
    %p243 = scmp.ne.s32.totalorder %s228, %s242
    %p244 = scmp.eq.s32.totalorder %s24, 0
    %p245 = por %p243, %p244
    %s247 = sadd.s32 %s246, 1
    %p250 = scmp.eq.s32.totalorder %s18, 1
    %p251 = scmp.ne.s32.totalorder %s246, %s248
    %p252 = scmp.eq.s32.totalorder %s18, 0
    %p253 = por %p251, %p252
    %p254 = scmp.ne.s32.totalorder %s246, %s248
    %p255 = scmp.eq.s32.totalorder %s23, 1
    %p256 = por %p254, %p255
    %p257 = scmp.ne.s32.totalorder %s248, %s249
    %p258 = scmp.eq.s32.totalorder %s23, 0
    %p259 = por %p257, %p258
    %p260 = scmp.ne.s32.totalorder %s248, %s249
    %p261 = scmp.eq.s32.totalorder %s24, 1
    %p262 = por %p260, %p261
    %p264 = scmp.ne.s32.totalorder %s249, %s263
    %p265 = scmp.eq.s32.totalorder %s24, 0
    %p266 = por %p264, %p265
    %s268 = sadd.s32 %s267, 1
    %p271 = scmp.eq.s32.totalorder %s18, 1
    %p272 = scmp.ne.s32.totalorder %s267, %s269
    %p273 = scmp.eq.s32.totalorder %s18, 0
    %p274 = por %p272, %p273
    %p275 = scmp.ne.s32.totalorder %s267, %s269
    %p276 = scmp.eq.s32.totalorder %s23, 1
    %p277 = por %p275, %p276
    %p278 = scmp.ne.s32.totalorder %s269, %s270
    %p279 = scmp.eq.s32.totalorder %s23, 0
    %p280 = por %p278, %p279
    %p281 = scmp.ne.s32.totalorder %s269, %s270
    %p282 = scmp.eq.s32.totalorder %s24, 1
    %p283 = por %p281, %p282
    %p285 = scmp.ne.s32.totalorder %s270, %s284
    %p286 = scmp.eq.s32.totalorder %s24, 0
    %p287 = por %p285, %p286
    %s288 = ssub.s32 %s18, %s25
    %p289 = scmp.eq.s32.totalorder %s288, 0
    %s291 = sadd.s32 %s290, 1
    %s292 = scalar_select %p289, %s290, %s291
    %p295 = pneg %p289
    %p296 = scmp.eq.s32.totalorder %s18, 1
    %p297 = por %p295, %p296
    %p298 = scmp.ne.s32.totalorder %s290, %s293
    %p299 = scmp.eq.s32.totalorder %s18, 0
    %p300 = por %p298, %p299
    %p301 = scmp.ne.s32.totalorder %s290, %s293
    %p302 = scmp.eq.s32.totalorder %s23, 1
    %p303 = por %p301, %p302
    %p304 = scmp.ne.s32.totalorder %s293, %s294
    %p305 = scmp.eq.s32.totalorder %s23, 0
    %p306 = por %p304, %p305
    %p307 = scmp.ne.s32.totalorder %s293, %s294
    %p308 = scmp.eq.s32.totalorder %s24, 1
    %p309 = por %p307, %p308
    %p311 = scmp.ne.s32.totalorder %s294, %s310
    %p312 = scmp.eq.s32.totalorder %s24, 0
    %p313 = por %p311, %p312
    %p314 = scmp.le.s32.totalorder 1, %s18
    %p315 = scmp.lt.s32.totalorder %s18, 3
    %p316 = pnand %p314, %p315
    %p317 = pneg %p316
    // Predicated region
    $region9: #{tpu_custom_call.1} parent=5 // pred_check
      _
    $region10: #{tpu_custom_call.1} parent=5 // pred_check_branch
      %319 = sbr.rel (%p316) target = $region12
    $region11: #{tpu_custom_call.1} parent=5 // pred_region
      %s320 = ssub.s32 %s18, 1
      // Predicated region
      $region13: #{tpu_custom_call.1} parent=11 // pred_check
        %p321 = pneg %p91
      $region14: #{tpu_custom_call.1} parent=11 // pred_check_branch
        %323 = sbr.rel (%p321) target = $region16
      $region15: #{tpu_custom_call.1} parent=11 // pred_region
        _
      $region16: #{tpu_custom_call.1} parent=11 // pred_fallthru
        _
      // Predicated region
      $region17: #{tpu_custom_call.1} parent=11 // pred_check
        %p324 = pneg %p112
      $region18: #{tpu_custom_call.1} parent=11 // pred_check_branch
        %326 = sbr.rel (%p324) target = $region20
      $region19: #{tpu_custom_call.1} parent=11 // pred_region
        _
      $region20: #{tpu_custom_call.1} parent=11 // pred_fallthru
        _
      // Predicated region
      $region21: #{tpu_custom_call.1} parent=11 // pred_check
        %p327 = pneg %p133
      $region22: #{tpu_custom_call.1} parent=11 // pred_check_branch
        %329 = sbr.rel (%p327) target = $region24
      $region23: #{tpu_custom_call.1} parent=11 // pred_region
        _
      $region24: #{tpu_custom_call.1} parent=11 // pred_fallthru
        _
      // Predicated region
      $region25: #{tpu_custom_call.1} parent=11 // pred_check
        %p330 = pneg %p154
      $region26: #{tpu_custom_call.1} parent=11 // pred_check_branch
        %332 = sbr.rel (%p330) target = $region28
      $region27: #{tpu_custom_call.1} parent=11 // pred_region
        _
      $region28: #{tpu_custom_call.1} parent=11 // pred_fallthru
        _
      // Predicated region
      $region29: #{tpu_custom_call.1} parent=11 // pred_check
        %p333 = pneg %p175
      $region30: #{tpu_custom_call.1} parent=11 // pred_check_branch
        %335 = sbr.rel (%p333) target = $region32
      $region31: #{tpu_custom_call.1} parent=11 // pred_region
        _
      $region32: #{tpu_custom_call.1} parent=11 // pred_fallthru
        _
      // Predicated region
      $region33: #{tpu_custom_call.1} parent=11 // pred_check
        %p336 = pneg %p196
      $region34: #{tpu_custom_call.1} parent=11 // pred_check_branch
        %338 = sbr.rel (%p336) target = $region36
      $region35: #{tpu_custom_call.1} parent=11 // pred_region
        _
      $region36: #{tpu_custom_call.1} parent=11 // pred_fallthru
        _
      // Predicated region
      $region37: #{tpu_custom_call.1} parent=11 // pred_check
        %p339 = pneg %p217
      $region38: #{tpu_custom_call.1} parent=11 // pred_check_branch
        %341 = sbr.rel (%p339) target = $region40
      $region39: #{tpu_custom_call.1} parent=11 // pred_region
        _
      $region40: #{tpu_custom_call.1} parent=11 // pred_fallthru
        _
      // Predicated region
      $region41: #{tpu_custom_call.1} parent=11 // pred_check
        %p342 = pneg %p238
      $region42: #{tpu_custom_call.1} parent=11 // pred_check_branch
        %344 = sbr.rel (%p342) target = $region44
      $region43: #{tpu_custom_call.1} parent=11 // pred_region
        _
      $region44: #{tpu_custom_call.1} parent=11 // pred_fallthru
        _
      // Predicated region
      $region45: #{tpu_custom_call.1} parent=11 // pred_check
        %p345 = pneg %p259
      $region46: #{tpu_custom_call.1} parent=11 // pred_check_branch
        %347 = sbr.rel (%p345) target = $region48
      $region47: #{tpu_custom_call.1} parent=11 // pred_region
        _
      $region48: #{tpu_custom_call.1} parent=11 // pred_fallthru
        _
      // Predicated region
      $region49: #{tpu_custom_call.1} parent=11 // pred_check
        %p348 = pneg %p280
      $region50: #{tpu_custom_call.1} parent=11 // pred_check_branch
        %350 = sbr.rel (%p348) target = $region52
      $region51: #{tpu_custom_call.1} parent=11 // pred_region
        _
      $region52: #{tpu_custom_call.1} parent=11 // pred_fallthru
        _
    $region12: #{tpu_custom_call.1} parent=5 // pred_fallthru
      _
    %p351 = scmp.lt.s32.totalorder %s18, 2
    // Predicated region
    $region53: #{tpu_custom_call.1} parent=5 // pred_check
      %p352 = pneg %p351
    $region54: #{tpu_custom_call.1} parent=5 // pred_check_branch
      %354 = sbr.rel (%p352) target = $region56
    $region55: #{tpu_custom_call.1} parent=5 // pred_region
      // Predicated region
      $region57: #{tpu_custom_call.1} parent=55 // pred_check
        %p355 = pneg %p38
      $region58: #{tpu_custom_call.1} parent=55 // pred_check_branch
        %357 = sbr.rel (%p355) target = $region60
      $region59: #{tpu_custom_call.1} parent=55 // pred_region
        %p358 = scmp.lt.s32.totalorder %s18, 1
        %s359 = scalar_select %p358, %s18, 1
        %s360 = smul.addr %s359, 28
        %s361 = smul.addr %s360, 8
        %s362 = scalar_lea.vmem %s0, %s361
      $region60: #{tpu_custom_call.1} parent=55 // pred_fallthru
        _
      // Predicated region
      $region61: #{tpu_custom_call.1} parent=55 // pred_check
        %p363 = pneg %p64
      $region62: #{tpu_custom_call.1} parent=55 // pred_check_branch
        %365 = sbr.rel (%p363) target = $region64
      $region63: #{tpu_custom_call.1} parent=55 // pred_region
        %p366 = scmp.lt.s32.totalorder %s18, 1
        %s367 = scalar_select %p366, %s18, 1
        %s368 = smul.addr %s367, 28
        %s369 = smul.addr %s368, 8
        %s370 = scalar_lea.vmem %s1, %s369
      $region64: #{tpu_custom_call.1} parent=55 // pred_fallthru
        _
    $region56: #{tpu_custom_call.1} parent=5 // pred_fallthru
      _
    %p371 = scmp.le.s32.totalorder 1, %s18
    %p372 = scmp.lt.s32.totalorder %s18, 3
    %p373 = pnand %p371, %p372
    %p374 = pneg %p373
    // Predicated region
    $region65: #{tpu_custom_call.1} parent=5 // pred_check
      _
    $region66: #{tpu_custom_call.1} parent=5 // pred_check_branch
      %376 = sbr.rel (%p373) target = $region68
    $region67: #{tpu_custom_call.1} parent=5 // pred_region
      %s377 = ssub.s32 %s18, 1
      %p378 = scmp.lt.s32.totalorder %s23, 1
      %s379 = scalar_select %p378, %s23, 1
      %s380 = smul.addr %s379, 28
      %s381 = smul.addr %s380, 8
      %s382 = scalar_lea.vmem %s0, %s381
      %p383 = pneg %p44
      %p384 = pneg %p41
      %p385 = scmp.lt.s32.totalorder %s23, 1
      %s386 = scalar_select %p385, %s23, 1
      %s387 = smul.addr %s386, 28
      %s388 = smul.addr %s387, 8
      %s389 = scalar_lea.vmem %s1, %s388
      %p390 = pneg %p70
      %p391 = pneg %p67
      %p392 = pneg %p91
      %p393 = pneg %p88
      %p394 = pneg %p112
      %p395 = pneg %p109
      %p396 = pneg %p133
      %p397 = pneg %p130
      %p398 = pneg %p154
      %p399 = pneg %p151
      %p400 = pneg %p175
      %p401 = pneg %p172
      %p402 = pneg %p196
      %p403 = pneg %p193
      %p404 = pneg %p217
      %p405 = pneg %p214
      %p406 = pneg %p238
      %p407 = pneg %p235
      %p408 = pneg %p259
      %p409 = pneg %p256
      %p410 = pneg %p280
      %p411 = pneg %p277
      %p412 = pneg %p306
      %p413 = pneg %p303
      %p414 = scmp.lt.s32.totalorder %s23, 1
      %s415 = scalar_select %p414, %s23, 1
      %s416 = smul.addr %s415, 28
      %s417 = smul.addr %s416, 8
      %s418 = scalar_lea.vmem %s12, %s417
      %p419 = scmp.lt.s32.totalorder %s23, 1
      %s420 = scalar_select %p419, %s23, 1
      %s421 = smul.addr %s420, 28
      %s422 = smul.addr %s421, 8
      %s423 = scalar_lea.vmem %s0, %s422
      %p424 = scmp.lt.s32.totalorder %s23, 1
      %s425 = scalar_select %p424, %s23, 1
      %s426 = smul.addr %s425, 28
      %s427 = smul.addr %s426, 8
      %s428 = scalar_lea.vmem %s1, %s427
      %p429 = scmp.lt.s32.totalorder %s23, 1
      %s430 = scalar_select %p429, %s23, 1
      %s431 = smul.addr %s430, 28
      %s432 = smul.addr %s431, 8
      %s433 = scalar_lea.vmem %s12, %s432
      %vm434 = vcmask 457728
      %435 = vst.msk [vmem:[#allocation2] sm:$0xff] %vm434, 0.0
      %436 = vst.msk [vmem:[#allocation2 + $0x8] sm:$0xff] %vm434, 0.0
      %437 = vst.msk [vmem:[#allocation2 + $0x10] sm:$0xff] %vm434, 0.0
      %438 = vst.msk [vmem:[#allocation2 + $0x18] sm:$0xff] %vm434, 0.0
      %439 = vst.msk [vmem:[#allocation2 + $0x20] sm:$0xff] %vm434, 0.0
      %440 = vst.msk [vmem:[#allocation2 + $0x28] sm:$0xff] %vm434, 0.0
      %441 = vst.msk [vmem:[#allocation2 + $0x30] sm:$0xff] %vm434, 0.0
      %442 = vst.msk [vmem:[#allocation2 + $0x38] sm:$0xff] %vm434, 0.0
      %443 = vst.msk [vmem:[#allocation2 + $0x40] sm:$0xff] %vm434, 0.0
      %444 = vst.msk [vmem:[#allocation2 + $0x48] sm:$0xff] %vm434, 0.0
      %445 = vst.msk [vmem:[#allocation2 + $0x50] sm:$0xff] %vm434, 0.0
      %446 = vst.msk [vmem:[#allocation2 + $0x58] sm:$0xff] %vm434, 0.0
      %447 = vst.msk [vmem:[#allocation2 + $0x60] sm:$0xff] %vm434, 0.0
      %448 = vst.msk [vmem:[#allocation2 + $0x68] sm:$0xff] %vm434, 0.0
      %449 = vst.msk [vmem:[#allocation2 + $0x70] sm:$0xff] %vm434, 0.0
      %450 = vst.msk [vmem:[#allocation2 + $0x78] sm:$0xff] %vm434, 0.0
      %451 = vst.msk [vmem:[#allocation2 + $0x80] sm:$0xff] %vm434, 0.0
      %452 = vst.msk [vmem:[#allocation2 + $0x88] sm:$0xff] %vm434, 0.0
      %453 = vst.msk [vmem:[#allocation2 + $0x90] sm:$0xff] %vm434, 0.0
      %454 = vst.msk [vmem:[#allocation2 + $0x98] sm:$0xff] %vm434, 0.0
      %455 = vst.msk [vmem:[#allocation2 + $0xa0] sm:$0xff] %vm434, 0.0
      %456 = vst.msk [vmem:[#allocation2 + $0xa8] sm:$0xff] %vm434, 0.0
      %457 = vst.msk [vmem:[#allocation2 + $0xb0] sm:$0xff] %vm434, 0.0
      %458 = vst.msk [vmem:[#allocation2 + $0xb8] sm:$0xff] %vm434, 0.0
      %459 = vst.msk [vmem:[#allocation2 + $0xc0] sm:$0xff] %vm434, 0.0
      %460 = vst.msk [vmem:[#allocation2 + $0xc8] sm:$0xff] %vm434, 0.0
      %461 = vst.msk [vmem:[#allocation2 + $0xd0] sm:$0xff] %vm434, 0.0
      %462 = vst.msk [vmem:[#allocation2 + $0xd8] sm:$0xff] %vm434, 0.0
      %463 = vst.msk [vmem:[#allocation2 + $0xe0] sm:$0xff] %vm434, 0.0
      %464 = vst.msk [vmem:[#allocation2 + $0xe8] sm:$0xff] %vm434, 0.0
      %465 = vst.msk [vmem:[#allocation2 + $0xf0] sm:$0xff] %vm434, 0.0
      %466 = vst.msk [vmem:[#allocation2 + $0xf8] sm:$0xff] %vm434, 0.0
      %v467 = vld [vmem:[%s423] sm:$0xff]
      %v468 = vld [vmem:[%s423 + $0x8] sm:$0x3f]
      %v469 = vld [vmem:[%s423 + $0x10] sm:$0xff]
      %v470 = vld [vmem:[%s423 + $0x18] sm:$0x3f]
      %v471 = vld [vmem:[%s423 + $0x20] sm:$0xff]
      %v472 = vld [vmem:[%s423 + $0x28] sm:$0x3f]
      %v473 = vld [vmem:[%s423 + $0x30] sm:$0xff]
      %v474 = vld [vmem:[%s423 + $0x38] sm:$0x3f]
      %v475 = vld [vmem:[%s423 + $0x40] sm:$0xff]
      %v476 = vld [vmem:[%s423 + $0x48] sm:$0x3f]
      %v477 = vld [vmem:[%s423 + $0x50] sm:$0xff]
      %v478 = vld [vmem:[%s423 + $0x58] sm:$0x3f]
      %v479 = vld [vmem:[%s423 + $0x60] sm:$0xff]
      %v480 = vld [vmem:[%s423 + $0x68] sm:$0x3f]
      %v481 = vld [vmem:[%s423 + $0x70] sm:$0xff]
      %v482 = vld [vmem:[%s423 + $0x78] sm:$0x3f]
      %v483 = vld [vmem:[%s423 + $0x80] sm:$0xff]
      %v484 = vld [vmem:[%s423 + $0x88] sm:$0x3f]
      %v485 = vld [vmem:[%s423 + $0x90] sm:$0xff]
      %v486 = vld [vmem:[%s423 + $0x98] sm:$0x3f]
      %v487 = vld [vmem:[%s423 + $0xa0] sm:$0xff]
      %v488 = vld [vmem:[%s423 + $0xa8] sm:$0x3f]
      %v489 = vld [vmem:[%s423 + $0xb0] sm:$0xff]
      %v490 = vld [vmem:[%s423 + $0xb8] sm:$0x3f]
      %v491 = vld [vmem:[%s423 + $0xc0] sm:$0xff]
      %v492 = vld [vmem:[%s423 + $0xc8] sm:$0x3f]
      %v493 = vld [vmem:[%s423 + $0xd0] sm:$0xff]
      %v494 = vld [vmem:[%s423 + $0xd8] sm:$0x3f]
      %s495 = scalar_lea.vmem [#allocation2], 16
      %vm496 = vcmask 130048
      %497 = vst.msk [vmem:[%s495 + $0x1] sm:$0xff] %vm496, %v467
      %vm498 = vcmask 128000
      %499 = vst.msk [vmem:[%s495 + $0x9] sm:$0x3f] %vm498, %v468
      %500 = vst.msk [vmem:[%s495 + $0x11] sm:$0xff] %vm496, %v469
      %501 = vst.msk [vmem:[%s495 + $0x19] sm:$0x3f] %vm498, %v470
      %502 = vst.msk [vmem:[%s495 + $0x21] sm:$0xff] %vm496, %v471
      %503 = vst.msk [vmem:[%s495 + $0x29] sm:$0x3f] %vm498, %v472
      %504 = vst.msk [vmem:[%s495 + $0x31] sm:$0xff] %vm496, %v473
      %505 = vst.msk [vmem:[%s495 + $0x39] sm:$0x3f] %vm498, %v474
      %506 = vst.msk [vmem:[%s495 + $0x41] sm:$0xff] %vm496, %v475
      %507 = vst.msk [vmem:[%s495 + $0x49] sm:$0x3f] %vm498, %v476
      %508 = vst.msk [vmem:[%s495 + $0x51] sm:$0xff] %vm496, %v477
      %509 = vst.msk [vmem:[%s495 + $0x59] sm:$0x3f] %vm498, %v478
      %510 = vst.msk [vmem:[%s495 + $0x61] sm:$0xff] %vm496, %v479
      %511 = vst.msk [vmem:[%s495 + $0x69] sm:$0x3f] %vm498, %v480
      %512 = vst.msk [vmem:[%s495 + $0x71] sm:$0xff] %vm496, %v481
      %513 = vst.msk [vmem:[%s495 + $0x79] sm:$0x3f] %vm498, %v482
      %514 = vst.msk [vmem:[%s495 + $0x81] sm:$0xff] %vm496, %v483
      %515 = vst.msk [vmem:[%s495 + $0x89] sm:$0x3f] %vm498, %v484
      %516 = vst.msk [vmem:[%s495 + $0x91] sm:$0xff] %vm496, %v485
      %517 = vst.msk [vmem:[%s495 + $0x99] sm:$0x3f] %vm498, %v486
      %518 = vst.msk [vmem:[%s495 + $0xa1] sm:$0xff] %vm496, %v487
      %519 = vst.msk [vmem:[%s495 + $0xa9] sm:$0x3f] %vm498, %v488
      %520 = vst.msk [vmem:[%s495 + $0xb1] sm:$0xff] %vm496, %v489
      %521 = vst.msk [vmem:[%s495 + $0xb9] sm:$0x3f] %vm498, %v490
      %522 = vst.msk [vmem:[%s495 + $0xc1] sm:$0xff] %vm496, %v491
      %523 = vst.msk [vmem:[%s495 + $0xc9] sm:$0x3f] %vm498, %v492
      %524 = vst.msk [vmem:[%s495 + $0xd1] sm:$0xff] %vm496, %v493
      %525 = vst.msk [vmem:[%s495 + $0xd9] sm:$0x3f] %vm498, %v494
      %v526 = vld [vmem:[%s428] sm:$0xff]
      %v527 = vld [vmem:[%s428 + $0x8] sm:$0x3f]
      %v528 = vld [vmem:[%s428 + $0x10] sm:$0xff]
      %v529 = vld [vmem:[%s428 + $0x18] sm:$0x3f]
      %v530 = vld [vmem:[%s428 + $0x20] sm:$0xff]
      %v531 = vld [vmem:[%s428 + $0x28] sm:$0x3f]
      %v532 = vld [vmem:[%s428 + $0x30] sm:$0xff]
      %v533 = vld [vmem:[%s428 + $0x38] sm:$0x3f]
      %v534 = vld [vmem:[%s428 + $0x40] sm:$0xff]
      %v535 = vld [vmem:[%s428 + $0x48] sm:$0x3f]
      %v536 = vld [vmem:[%s428 + $0x50] sm:$0xff]
      %v537 = vld [vmem:[%s428 + $0x58] sm:$0x3f]
      %v538 = vld [vmem:[%s428 + $0x60] sm:$0xff]
      %v539 = vld [vmem:[%s428 + $0x68] sm:$0x3f]
      %v540 = vld [vmem:[%s428 + $0x70] sm:$0xff]
      %v541 = vld [vmem:[%s428 + $0x78] sm:$0x3f]
      %v542 = vld [vmem:[%s428 + $0x80] sm:$0xff]
      %v543 = vld [vmem:[%s428 + $0x88] sm:$0x3f]
      %v544 = vld [vmem:[%s428 + $0x90] sm:$0xff]
      %v545 = vld [vmem:[%s428 + $0x98] sm:$0x3f]
      %v546 = vld [vmem:[%s428 + $0xa0] sm:$0xff]
      %v547 = vld [vmem:[%s428 + $0xa8] sm:$0x3f]
      %v548 = vld [vmem:[%s428 + $0xb0] sm:$0xff]
      %v549 = vld [vmem:[%s428 + $0xb8] sm:$0x3f]
      %v550 = vld [vmem:[%s428 + $0xc0] sm:$0xff]
      %v551 = vld [vmem:[%s428 + $0xc8] sm:$0x3f]
      %v552 = vld [vmem:[%s428 + $0xd0] sm:$0xff]
      %v553 = vld [vmem:[%s428 + $0xd8] sm:$0x3f]
      %582 = vrot.lane.b32.xlu0 %v526, 48
      %v583 = vpop.permute.xlu0 %582
      %584 = vrot.lane.b32.xlu0 %v527, 48
      %v585 = vpop.permute.xlu0 %584
      %586 = vrot.lane.b32.xlu0 %v528, 48
      %v587 = vpop.permute.xlu0 %586
      %588 = vrot.lane.b32.xlu0 %v529, 48
      %v589 = vpop.permute.xlu0 %588
      %590 = vrot.lane.b32.xlu0 %v530, 48
      %v591 = vpop.permute.xlu0 %590
      %592 = vrot.lane.b32.xlu0 %v531, 48
      %v593 = vpop.permute.xlu0 %592
      %594 = vrot.lane.b32.xlu0 %v532, 48
      %v595 = vpop.permute.xlu0 %594
      %596 = vrot.lane.b32.xlu0 %v533, 48
      %v597 = vpop.permute.xlu0 %596
      %598 = vrot.lane.b32.xlu0 %v534, 48
      %v599 = vpop.permute.xlu0 %598
      %600 = vrot.lane.b32.xlu0 %v535, 48
      %v601 = vpop.permute.xlu0 %600
      %602 = vrot.lane.b32.xlu0 %v536, 48
      %v603 = vpop.permute.xlu0 %602
      %604 = vrot.lane.b32.xlu0 %v537, 48
      %v605 = vpop.permute.xlu0 %604
      %606 = vrot.lane.b32.xlu0 %v538, 48
      %v607 = vpop.permute.xlu0 %606
      %608 = vrot.lane.b32.xlu0 %v539, 48
      %v609 = vpop.permute.xlu0 %608
      %610 = vrot.lane.b32.xlu0 %v540, 48
      %v611 = vpop.permute.xlu0 %610
      %612 = vrot.lane.b32.xlu0 %v541, 48
      %v613 = vpop.permute.xlu0 %612
      %614 = vrot.lane.b32.xlu0 %v542, 48
      %v615 = vpop.permute.xlu0 %614
      %616 = vrot.lane.b32.xlu0 %v543, 48
      %v617 = vpop.permute.xlu0 %616
      %618 = vrot.lane.b32.xlu0 %v544, 48
      %v619 = vpop.permute.xlu0 %618
      %620 = vrot.lane.b32.xlu0 %v545, 48
      %v621 = vpop.permute.xlu0 %620
      %622 = vrot.lane.b32.xlu0 %v546, 48
      %v623 = vpop.permute.xlu0 %622
      %624 = vrot.lane.b32.xlu0 %v547, 48
      %v625 = vpop.permute.xlu0 %624
      %626 = vrot.lane.b32.xlu0 %v548, 48
      %v627 = vpop.permute.xlu0 %626
      %628 = vrot.lane.b32.xlu0 %v549, 48
      %v629 = vpop.permute.xlu0 %628
      %630 = vrot.lane.b32.xlu0 %v550, 48
      %v631 = vpop.permute.xlu0 %630
      %632 = vrot.lane.b32.xlu0 %v551, 48
      %v633 = vpop.permute.xlu0 %632
      %634 = vrot.lane.b32.xlu0 %v552, 48
      %v635 = vpop.permute.xlu0 %634
      %636 = vrot.lane.b32.xlu0 %v553, 48
      %v637 = vpop.permute.xlu0 %636
      %vm666 = vcmask 458112
      %667 = vst.msk [vmem:[%s495 + $0x1] sm:$0xff] %vm666, %v583
      %vm668 = vcmask 456064
      %669 = vst.msk [vmem:[%s495 + $0x9] sm:$0x3f] %vm668, %v585
      %670 = vst.msk [vmem:[%s495 + $0x11] sm:$0xff] %vm666, %v587
      %671 = vst.msk [vmem:[%s495 + $0x19] sm:$0x3f] %vm668, %v589
      %672 = vst.msk [vmem:[%s495 + $0x21] sm:$0xff] %vm666, %v591
      %673 = vst.msk [vmem:[%s495 + $0x29] sm:$0x3f] %vm668, %v593
      %674 = vst.msk [vmem:[%s495 + $0x31] sm:$0xff] %vm666, %v595
      %675 = vst.msk [vmem:[%s495 + $0x39] sm:$0x3f] %vm668, %v597
      %676 = vst.msk [vmem:[%s495 + $0x41] sm:$0xff] %vm666, %v599
      %677 = vst.msk [vmem:[%s495 + $0x49] sm:$0x3f] %vm668, %v601
      %678 = vst.msk [vmem:[%s495 + $0x51] sm:$0xff] %vm666, %v603
      %679 = vst.msk [vmem:[%s495 + $0x59] sm:$0x3f] %vm668, %v605
      %680 = vst.msk [vmem:[%s495 + $0x61] sm:$0xff] %vm666, %v607
      %681 = vst.msk [vmem:[%s495 + $0x69] sm:$0x3f] %vm668, %v609
      %682 = vst.msk [vmem:[%s495 + $0x71] sm:$0xff] %vm666, %v611
      %683 = vst.msk [vmem:[%s495 + $0x79] sm:$0x3f] %vm668, %v613
      %684 = vst.msk [vmem:[%s495 + $0x81] sm:$0xff] %vm666, %v615
      %685 = vst.msk [vmem:[%s495 + $0x89] sm:$0x3f] %vm668, %v617
      %686 = vst.msk [vmem:[%s495 + $0x91] sm:$0xff] %vm666, %v619
      %687 = vst.msk [vmem:[%s495 + $0x99] sm:$0x3f] %vm668, %v621
      %688 = vst.msk [vmem:[%s495 + $0xa1] sm:$0xff] %vm666, %v623
      %689 = vst.msk [vmem:[%s495 + $0xa9] sm:$0x3f] %vm668, %v625
      %690 = vst.msk [vmem:[%s495 + $0xb1] sm:$0xff] %vm666, %v627
      %691 = vst.msk [vmem:[%s495 + $0xb9] sm:$0x3f] %vm668, %v629
      %692 = vst.msk [vmem:[%s495 + $0xc1] sm:$0xff] %vm666, %v631
      %693 = vst.msk [vmem:[%s495 + $0xc9] sm:$0x3f] %vm668, %v633
      %694 = vst.msk [vmem:[%s495 + $0xd1] sm:$0xff] %vm666, %v635
      %695 = vst.msk [vmem:[%s495 + $0xd9] sm:$0x3f] %vm668, %v637
      %v696 = vld [vmem:[#allocation2] sm:$0xff]
      %v697 = vld [vmem:[#allocation2 + $0x8] sm:$0xff]
      %v698 = vld [vmem:[#allocation2 + $0x10] sm:$0xff]
      %v699 = vld [vmem:[#allocation2 + $0x18] sm:$0xff]
      %v700 = vld [vmem:[#allocation2 + $0x20] sm:$0xff]
      %v701 = vld [vmem:[#allocation2 + $0x28] sm:$0xff]
      %v702 = vld [vmem:[#allocation2 + $0x30] sm:$0xff]
      %v703 = vld [vmem:[#allocation2 + $0x38] sm:$0xff]
      %v704 = vld [vmem:[#allocation2 + $0x40] sm:$0xff]
      %v705 = vld [vmem:[#allocation2 + $0x48] sm:$0xff]
      %v706 = vld [vmem:[#allocation2 + $0x50] sm:$0xff]
      %v707 = vld [vmem:[#allocation2 + $0x58] sm:$0xff]
      %v708 = vld [vmem:[#allocation2 + $0x60] sm:$0xff]
      %v709 = vld [vmem:[#allocation2 + $0x68] sm:$0xff]
      %v710 = vld [vmem:[#allocation2 + $0x70] sm:$0xff]
      %v711 = vld [vmem:[#allocation2 + $0x78] sm:$0xff]
      %v712 = vld [vmem:[#allocation2 + $0x80] sm:$0xff]
      %v713 = vld [vmem:[#allocation2 + $0x88] sm:$0xff]
      %v714 = vld [vmem:[#allocation2 + $0x90] sm:$0xff]
      %v715 = vld [vmem:[#allocation2 + $0x98] sm:$0xff]
      %v716 = vld [vmem:[#allocation2 + $0xa0] sm:$0xff]
      %v717 = vld [vmem:[#allocation2 + $0xa8] sm:$0xff]
      %v718 = vld [vmem:[#allocation2 + $0xb0] sm:$0xff]
      %v719 = vld [vmem:[#allocation2 + $0xb8] sm:$0xff]
      %v720 = vld [vmem:[#allocation2 + $0xc0] sm:$0xff]
      %v721 = vld [vmem:[#allocation2 + $0xc8] sm:$0xff]
      %v722 = vld [vmem:[#allocation2 + $0xd0] sm:$0xff]
      %v723 = vld [vmem:[#allocation2 + $0xd8] sm:$0xff]
      %v724 = vld [vmem:[#allocation2 + $0xe0] sm:$0xff]
      %v725 = vld [vmem:[#allocation2 + $0xe8] sm:$0xff]
      %v726 = vld [vmem:[#allocation2 + $0xf0] sm:$0xff]
      %v727 = vld [vmem:[#allocation2 + $0xf8] sm:$0xff]
      %v728 = vld [vmem:[%s2] sm:$0xff]
      %v729 = vld [vmem:[%s2 + $0x8] sm:$0xff]
      %v730 = vld [vmem:[%s2 + $0x10] sm:$0xff]
      %v731 = vld [vmem:[%s2 + $0x18] sm:$0xff]
      %v732 = vld [vmem:[%s2 + $0x20] sm:$0xff]
      %v733 = vld [vmem:[%s2 + $0x28] sm:$0xff]
      %v734 = vld [vmem:[%s2 + $0x30] sm:$0xff]
      %v736 = vsel %vm434, %v696, 0
      %v739 = vsel %vm434, %v697, 0
      %v742 = vsel %vm434, %v698, 0
      %v745 = vsel %vm434, %v699, 0
      %v748 = vsel %vm434, %v700, 0
      %v751 = vsel %vm434, %v701, 0
      %v754 = vsel %vm434, %v702, 0
      %v757 = vsel %vm434, %v703, 0
      %v760 = vsel %vm434, %v704, 0
      %v763 = vsel %vm434, %v705, 0
      %v766 = vsel %vm434, %v706, 0
      %v769 = vsel %vm434, %v707, 0
      %v772 = vsel %vm434, %v708, 0
      %v775 = vsel %vm434, %v709, 0
      %v778 = vsel %vm434, %v710, 0
      %v781 = vsel %vm434, %v711, 0
      %v784 = vsel %vm434, %v712, 0
      %v787 = vsel %vm434, %v713, 0
      %v790 = vsel %vm434, %v714, 0
      %v793 = vsel %vm434, %v715, 0
      %v796 = vsel %vm434, %v716, 0
      %v799 = vsel %vm434, %v717, 0
      %v802 = vsel %vm434, %v718, 0
      %v805 = vsel %vm434, %v719, 0
      %v808 = vsel %vm434, %v720, 0
      %v811 = vsel %vm434, %v721, 0
      %v814 = vsel %vm434, %v722, 0
      %v817 = vsel %vm434, %v723, 0
      %v820 = vsel %vm434, %v724, 0
      %v823 = vsel %vm434, %v725, 0
      %v826 = vsel %vm434, %v726, 0
      %v829 = vsel %vm434, %v727, 0
      %831 = vmatprep.subr.mxu0 0.0
      %832 = vmatpush1.msra.mxu0 %v728
      %833 = vmatprep.subr.mxu0 0.0
      %834 = vmatpush1.msra.mxu0 %v729
      %835 = vmatprep.subr.mxu0 0.0
      %836 = vmatpush1.msra.mxu0 %v730
      %837 = vmatprep.subr.mxu0 0.0
      %838 = vmatpush1.msra.mxu0 %v731
      %839 = vmatprep.subr.mxu0 0.0
      %840 = vmatpush1.msra.mxu0 %v732
      %841 = vmatprep.subr.mxu0 0.0
      %842 = vmatpush1.msra.mxu0 %v733
      %843 = vmatprep.subr.mxu0 0.0
      %844 = vmatpush1.msra.mxu0 %v734
      %845 = vmatprep.subr.mxu0 0.0
      %846 = vmatpush1.msra.mxu0 0.0
      %847 = vmatprep.subr.mxu0 0.0
      %848 = vmatpush1.msra.mxu0 0.0
      %849 = vmatprep.subr.mxu0 0.0
      %850 = vmatpush1.msra.mxu0 0.0
      %851 = vmatprep.subr.mxu0 0.0
      %852 = vmatpush1.msra.mxu0 0.0
      %853 = vmatprep.subr.mxu0 0.0
      %854 = vmatpush1.msra.mxu0 0.0
      %855 = vmatprep.subr.mxu0 0.0
      %856 = vmatpush1.msra.mxu0 0.0
      %857 = vmatprep.subr.mxu0 0.0
      %858 = vmatpush1.msra.mxu0 0.0
      %859 = vmatprep.subr.mxu0 0.0
      %860 = vmatpush1.msra.mxu0 0.0
      %861 = vmatprep.subr.mxu0 0.0
      %862 = vmatpush1.msra.mxu0 0.0
      %863 = vmatprep.subr.mxu0 0.0
      %864 = vmatpush1.msra.mxu0 0.0
      %865 = vmatprep.subr.mxu0 0.0
      %866 = vmatpush1.msra.mxu0 0.0
      %867 = vmatprep.subr.mxu0 0.0
      %868 = vmatpush1.msra.mxu0 0.0
      %869 = vmatprep.subr.mxu0 0.0
      %870 = vmatpush1.msra.mxu0 0.0
      %871 = vmatprep.subr.mxu0 0.0
      %872 = vmatpush1.msra.mxu0 0.0
      %873 = vmatprep.subr.mxu0 0.0
      %874 = vmatpush1.msra.mxu0 0.0
      %875 = vmatprep.subr.mxu0 0.0
      %876 = vmatpush1.msra.mxu0 0.0
      %877 = vmatprep.subr.mxu0 0.0
      %878 = vmatpush1.msra.mxu0 0.0
      %879 = vmatprep.subr.mxu0 0.0
      %880 = vmatpush1.msra.mxu0 0.0
      %881 = vmatprep.subr.mxu0 0.0
      %882 = vmatpush1.msra.mxu0 0.0
      %883 = vmatprep.subr.mxu0 0.0
      %884 = vmatpush1.msra.mxu0 0.0
      %885 = vmatprep.subr.mxu0 0.0
      %886 = vmatpush1.msra.mxu0 0.0
      %887 = vmatprep.subr.mxu0 0.0
      %888 = vmatpush1.msra.mxu0 0.0
      %889 = vmatprep.subr.mxu0 0.0
      %890 = vmatpush1.msra.mxu0 0.0
      %891 = vmatprep.subr.mxu0 0.0
      %892 = vmatpush1.msra.mxu0 0.0
      %893 = vmatprep.subr.mxu0 0.0
      %894 = vmatpush1.msra.mxu0 0.0
      %895 = vmatprep.mubr.f32.mxu0 0.0
      %896 = vmatmul.mubr.f32.gmra.mrb[0].mxu0 %v736
      %v897 = vpop.f32.mrb[0].mxu0
      %v898 = vadd.f32 0.0, %v897
      %v899 = vpop.f32.mrb[0].mxu0
      %900 = vmatprep.mubr.f32.mxu0 0.0
      %901 = vmatmul.mubr.f32.gmra.mrb[0].mxu0 %v739
      %v902 = vpop.f32.mrb[0].mxu0
      %v903 = vadd.f32 0.0, %v902
      %v904 = vpop.f32.mrb[0].mxu0
      %905 = vmatprep.mubr.f32.mxu0 0.0
      %906 = vmatmul.mubr.f32.gmra.mrb[0].mxu0 %v742
      %v907 = vpop.f32.mrb[0].mxu0
      %v908 = vadd.f32 0.0, %v907
      %v909 = vpop.f32.mrb[0].mxu0
      %910 = vmatprep.mubr.f32.mxu0 0.0
      %911 = vmatmul.mubr.f32.gmra.mrb[0].mxu0 %v745
      %v912 = vpop.f32.mrb[0].mxu0
      %v913 = vadd.f32 0.0, %v912
      %v914 = vpop.f32.mrb[0].mxu0
      %915 = vmatprep.mubr.f32.mxu0 0.0
      %916 = vmatmul.mubr.f32.gmra.mrb[0].mxu0 %v748
      %v917 = vpop.f32.mrb[0].mxu0
      %v918 = vadd.f32 0.0, %v917
      %v919 = vpop.f32.mrb[0].mxu0
      %920 = vmatprep.mubr.f32.mxu0 0.0
      %921 = vmatmul.mubr.f32.gmra.mrb[0].mxu0 %v751
      %v922 = vpop.f32.mrb[0].mxu0
      %v923 = vadd.f32 0.0, %v922
      %v924 = vpop.f32.mrb[0].mxu0
      %925 = vmatprep.mubr.f32.mxu0 0.0
      %926 = vmatmul.mubr.f32.gmra.mrb[0].mxu0 %v754
      %v927 = vpop.f32.mrb[0].mxu0
      %v928 = vadd.f32 0.0, %v927
      %v929 = vpop.f32.mrb[0].mxu0
      %930 = vmatprep.mubr.f32.mxu0 0.0
      %931 = vmatmul.mubr.f32.gmra.mrb[0].mxu0 %v757
      %v932 = vpop.f32.mrb[0].mxu0
      %v933 = vadd.f32 0.0, %v932
      %v934 = vpop.f32.mrb[0].mxu0
      %935 = vmatprep.mubr.f32.mxu0 0.0
      %936 = vmatmul.mubr.f32.gmra.mrb[0].mxu0 %v760
      %v937 = vpop.f32.mrb[0].mxu0
      %v938 = vadd.f32 0.0, %v937
      %v939 = vpop.f32.mrb[0].mxu0
      %940 = vmatprep.mubr.f32.mxu0 0.0
      %941 = vmatmul.mubr.f32.gmra.mrb[0].mxu0 %v763
      %v942 = vpop.f32.mrb[0].mxu0
      %v943 = vadd.f32 0.0, %v942
      %v944 = vpop.f32.mrb[0].mxu0
      %945 = vmatprep.mubr.f32.mxu0 0.0
      %946 = vmatmul.mubr.f32.gmra.mrb[0].mxu0 %v766
      %v947 = vpop.f32.mrb[0].mxu0
      %v948 = vadd.f32 0.0, %v947
      %v949 = vpop.f32.mrb[0].mxu0
      %950 = vmatprep.mubr.f32.mxu0 0.0
      %951 = vmatmul.mubr.f32.gmra.mrb[0].mxu0 %v769
      %v952 = vpop.f32.mrb[0].mxu0
      %v953 = vadd.f32 0.0, %v952
      %v954 = vpop.f32.mrb[0].mxu0
      %955 = vmatprep.mubr.f32.mxu0 0.0
      %956 = vmatmul.mubr.f32.gmra.mrb[0].mxu0 %v772
      %v957 = vpop.f32.mrb[0].mxu0
      %v958 = vadd.f32 0.0, %v957
      %v959 = vpop.f32.mrb[0].mxu0
      %960 = vmatprep.mubr.f32.mxu0 0.0
      %961 = vmatmul.mubr.f32.gmra.mrb[0].mxu0 %v775
      %v962 = vpop.f32.mrb[0].mxu0
      %v963 = vadd.f32 0.0, %v962
      %v964 = vpop.f32.mrb[0].mxu0
      %965 = vmatprep.mubr.f32.mxu0 0.0
      %966 = vmatmul.mubr.f32.gmra.mrb[0].mxu0 %v778
      %v967 = vpop.f32.mrb[0].mxu0
      %v968 = vadd.f32 0.0, %v967
      %v969 = vpop.f32.mrb[0].mxu0
      %970 = vmatprep.mubr.f32.mxu0 0.0
      %971 = vmatmul.mubr.f32.gmra.mrb[0].mxu0 %v781
      %v972 = vpop.f32.mrb[0].mxu0
      %v973 = vadd.f32 0.0, %v972
      %v974 = vpop.f32.mrb[0].mxu0
      %975 = vmatprep.mubr.f32.mxu0 0.0
      %976 = vmatmul.mubr.f32.gmra.mrb[0].mxu0 %v784
      %v977 = vpop.f32.mrb[0].mxu0
      %v978 = vadd.f32 0.0, %v977
      %v979 = vpop.f32.mrb[0].mxu0
      %980 = vmatprep.mubr.f32.mxu0 0.0
      %981 = vmatmul.mubr.f32.gmra.mrb[0].mxu0 %v787
      %v982 = vpop.f32.mrb[0].mxu0
      %v983 = vadd.f32 0.0, %v982
      %v984 = vpop.f32.mrb[0].mxu0
      %985 = vmatprep.mubr.f32.mxu0 0.0
      %986 = vmatmul.mubr.f32.gmra.mrb[0].mxu0 %v790
      %v987 = vpop.f32.mrb[0].mxu0
      %v988 = vadd.f32 0.0, %v987
      %v989 = vpop.f32.mrb[0].mxu0
      %990 = vmatprep.mubr.f32.mxu0 0.0
      %991 = vmatmul.mubr.f32.gmra.mrb[0].mxu0 %v793
      %v992 = vpop.f32.mrb[0].mxu0
      %v993 = vadd.f32 0.0, %v992
      %v994 = vpop.f32.mrb[0].mxu0
      %995 = vmatprep.mubr.f32.mxu0 0.0
      %996 = vmatmul.mubr.f32.gmra.mrb[0].mxu0 %v796
      %v997 = vpop.f32.mrb[0].mxu0
      %v998 = vadd.f32 0.0, %v997
      %v999 = vpop.f32.mrb[0].mxu0
      %1000 = vmatprep.mubr.f32.mxu0 0.0
      %1001 = vmatmul.mubr.f32.gmra.mrb[0].mxu0 %v799
      %v1002 = vpop.f32.mrb[0].mxu0
      %v1003 = vadd.f32 0.0, %v1002
      %v1004 = vpop.f32.mrb[0].mxu0
      %1005 = vmatprep.mubr.f32.mxu0 0.0
      %1006 = vmatmul.mubr.f32.gmra.mrb[0].mxu0 %v802
      %v1007 = vpop.f32.mrb[0].mxu0
      %v1008 = vadd.f32 0.0, %v1007
      %v1009 = vpop.f32.mrb[0].mxu0
      %1010 = vmatprep.mubr.f32.mxu0 0.0
      %1011 = vmatmul.mubr.f32.gmra.mrb[0].mxu0 %v805
      %v1012 = vpop.f32.mrb[0].mxu0
      %v1013 = vadd.f32 0.0, %v1012
      %v1014 = vpop.f32.mrb[0].mxu0
      %1015 = vmatprep.mubr.f32.mxu0 0.0
      %1016 = vmatmul.mubr.f32.gmra.mrb[0].mxu0 %v808
      %v1017 = vpop.f32.mrb[0].mxu0
      %v1018 = vadd.f32 0.0, %v1017
      %v1019 = vpop.f32.mrb[0].mxu0
      %1020 = vmatprep.mubr.f32.mxu0 0.0
      %1021 = vmatmul.mubr.f32.gmra.mrb[0].mxu0 %v811
      %v1022 = vpop.f32.mrb[0].mxu0
      %v1023 = vadd.f32 0.0, %v1022
      %v1024 = vpop.f32.mrb[0].mxu0
      %1025 = vmatprep.mubr.f32.mxu0 0.0
      %1026 = vmatmul.mubr.f32.gmra.mrb[0].mxu0 %v814
      %v1027 = vpop.f32.mrb[0].mxu0
      %v1028 = vadd.f32 0.0, %v1027
      %v1029 = vpop.f32.mrb[0].mxu0
      %1030 = vmatprep.mubr.f32.mxu0 0.0
      %1031 = vmatmul.mubr.f32.gmra.mrb[0].mxu0 %v817
      %v1032 = vpop.f32.mrb[0].mxu0
      %v1033 = vadd.f32 0.0, %v1032
      %v1034 = vpop.f32.mrb[0].mxu0
      %1035 = vmatprep.mubr.f32.mxu0 0.0
      %1036 = vmatmul.mubr.f32.gmra.mrb[0].mxu0 %v820
      %v1037 = vpop.f32.mrb[0].mxu0
      %v1038 = vadd.f32 0.0, %v1037
      %v1039 = vpop.f32.mrb[0].mxu0
      %1040 = vmatprep.mubr.f32.mxu0 0.0
      %1041 = vmatmul.mubr.f32.gmra.mrb[0].mxu0 %v823
      %v1042 = vpop.f32.mrb[0].mxu0
      %v1043 = vadd.f32 0.0, %v1042
      %v1044 = vpop.f32.mrb[0].mxu0
      %1045 = vmatprep.mubr.f32.mxu0 0.0
      %1046 = vmatmul.mubr.f32.gmra.mrb[0].mxu0 %v826
      %v1047 = vpop.f32.mrb[0].mxu0
      %v1048 = vadd.f32 0.0, %v1047
      %v1049 = vpop.f32.mrb[0].mxu0
      %1050 = vmatprep.mubr.f32.mxu0 0.0
      %1051 = vmatmul.mubr.f32.gmra.mrb[0].mxu0 %v829
      %v1052 = vpop.f32.mrb[0].mxu0
      %v1053 = vadd.f32 0.0, %v1052
      %v1054 = vpop.f32.mrb[0].mxu0
      %1055 = vdwg.mxu0
      %v1056 = vld [vmem:[%s3] sm:$0x1]
      %v1058 = vlaneseq
      %v1059 = vshrl.u32 %v1058, 7
      %v1060 = vsub.s32 0, %v1059
      %v1061 = vrot.slane %v1056, %v1060
      %v1063 = vadd.f32 %v1061, 0.0
      %v1064 = vadd.f32 %v1063, %v898
      %v1065 = vadd.f32 %v1063, %v903
      %v1066 = vadd.f32 %v1063, %v908
      %v1067 = vadd.f32 %v1063, %v913
      %v1068 = vadd.f32 %v1063, %v918
      %v1069 = vadd.f32 %v1063, %v923
      %v1070 = vadd.f32 %v1063, %v928
      %v1071 = vadd.f32 %v1063, %v933
      %v1072 = vadd.f32 %v1063, %v938
      %v1073 = vadd.f32 %v1063, %v943
      %v1074 = vadd.f32 %v1063, %v948
      %v1075 = vadd.f32 %v1063, %v953
      %v1076 = vadd.f32 %v1063, %v958
      %v1077 = vadd.f32 %v1063, %v963
      %v1078 = vadd.f32 %v1063, %v968
      %v1079 = vadd.f32 %v1063, %v973
      %v1080 = vadd.f32 %v1063, %v978
      %v1081 = vadd.f32 %v1063, %v983
      %v1082 = vadd.f32 %v1063, %v988
      %v1083 = vadd.f32 %v1063, %v993
      %v1084 = vadd.f32 %v1063, %v998
      %v1085 = vadd.f32 %v1063, %v1003
      %v1086 = vadd.f32 %v1063, %v1008
      %v1087 = vadd.f32 %v1063, %v1013
      %v1088 = vadd.f32 %v1063, %v1018
      %v1089 = vadd.f32 %v1063, %v1023
      %v1090 = vadd.f32 %v1063, %v1028
      %v1091 = vadd.f32 %v1063, %v1033
      %vm1120 = vcmask 1046528
      %v1121 = vrot.slane %v898, 1
      %v1122 = vrot.slane %v903, 1
      %v1123 = vsel %vm1120, %v1121, %v1122
      %v1124 = vrot.slane %v908, 1
      %v1125 = vrot.slane %v913, 1
      %v1126 = vsel %vm1120, %v1124, %v1125
      %v1127 = vrot.slane %v918, 1
      %v1128 = vrot.slane %v923, 1
      %v1129 = vsel %vm1120, %v1127, %v1128
      %v1130 = vrot.slane %v928, 1
      %v1131 = vrot.slane %v933, 1
      %v1132 = vsel %vm1120, %v1130, %v1131
      %v1133 = vrot.slane %v938, 1
      %v1134 = vrot.slane %v943, 1
      %v1135 = vsel %vm1120, %v1133, %v1134
      %v1136 = vrot.slane %v948, 1
      %v1137 = vrot.slane %v953, 1
      %v1138 = vsel %vm1120, %v1136, %v1137
      %v1139 = vrot.slane %v958, 1
      %v1140 = vrot.slane %v963, 1
      %v1141 = vsel %vm1120, %v1139, %v1140
      %v1142 = vrot.slane %v968, 1
      %v1143 = vrot.slane %v973, 1
      %v1144 = vsel %vm1120, %v1142, %v1143
      %v1145 = vrot.slane %v978, 1
      %v1146 = vrot.slane %v983, 1
      %v1147 = vsel %vm1120, %v1145, %v1146
      %v1148 = vrot.slane %v988, 1
      %v1149 = vrot.slane %v993, 1
      %v1150 = vsel %vm1120, %v1148, %v1149
      %v1151 = vrot.slane %v998, 1
      %v1152 = vrot.slane %v1003, 1
      %v1153 = vsel %vm1120, %v1151, %v1152
      %v1154 = vrot.slane %v1008, 1
      %v1155 = vrot.slane %v1013, 1
      %v1156 = vsel %vm1120, %v1154, %v1155
      %v1157 = vrot.slane %v1018, 1
      %v1158 = vrot.slane %v1023, 1
      %v1159 = vsel %vm1120, %v1157, %v1158
      %v1160 = vrot.slane %v1028, 1
      %v1161 = vrot.slane %v1033, 1
      %v1162 = vsel %vm1120, %v1160, %v1161
      %1163 = vrot.lane.b32.xlu0 %v1123, 120
      %v1164 = vpop.permute.xlu0 %1163
      %1165 = vrot.lane.b32.xlu0 %v1122, 120
      %v1166 = vpop.permute.xlu0 %1165
      %1167 = vrot.lane.b32.xlu0 %v1126, 120
      %v1168 = vpop.permute.xlu0 %1167
      %1169 = vrot.lane.b32.xlu0 %v1125, 120
      %v1170 = vpop.permute.xlu0 %1169
      %1171 = vrot.lane.b32.xlu0 %v1129, 120
      %v1172 = vpop.permute.xlu0 %1171
      %1173 = vrot.lane.b32.xlu0 %v1128, 120
      %v1174 = vpop.permute.xlu0 %1173
      %1175 = vrot.lane.b32.xlu0 %v1132, 120
      %v1176 = vpop.permute.xlu0 %1175
      %1177 = vrot.lane.b32.xlu0 %v1131, 120
      %v1178 = vpop.permute.xlu0 %1177
      %1179 = vrot.lane.b32.xlu0 %v1135, 120
      %v1180 = vpop.permute.xlu0 %1179
      %1181 = vrot.lane.b32.xlu0 %v1134, 120
      %v1182 = vpop.permute.xlu0 %1181
      %1183 = vrot.lane.b32.xlu0 %v1138, 120
      %v1184 = vpop.permute.xlu0 %1183
      %1185 = vrot.lane.b32.xlu0 %v1137, 120
      %v1186 = vpop.permute.xlu0 %1185
      %1187 = vrot.lane.b32.xlu0 %v1141, 120
      %v1188 = vpop.permute.xlu0 %1187
      %1189 = vrot.lane.b32.xlu0 %v1140, 120
      %v1190 = vpop.permute.xlu0 %1189
      %1191 = vrot.lane.b32.xlu0 %v1144, 120
      %v1192 = vpop.permute.xlu0 %1191
      %1193 = vrot.lane.b32.xlu0 %v1143, 120
      %v1194 = vpop.permute.xlu0 %1193
      %1195 = vrot.lane.b32.xlu0 %v1147, 120
      %v1196 = vpop.permute.xlu0 %1195
      %1197 = vrot.lane.b32.xlu0 %v1146, 120
      %v1198 = vpop.permute.xlu0 %1197
      %1199 = vrot.lane.b32.xlu0 %v1150, 120
      %v1200 = vpop.permute.xlu0 %1199
      %1201 = vrot.lane.b32.xlu0 %v1149, 120
      %v1202 = vpop.permute.xlu0 %1201
      %1203 = vrot.lane.b32.xlu0 %v1153, 120
      %v1204 = vpop.permute.xlu0 %1203
      %1205 = vrot.lane.b32.xlu0 %v1152, 120
      %v1206 = vpop.permute.xlu0 %1205
      %1207 = vrot.lane.b32.xlu0 %v1156, 120
      %v1208 = vpop.permute.xlu0 %1207
      %1209 = vrot.lane.b32.xlu0 %v1155, 120
      %v1210 = vpop.permute.xlu0 %1209
      %1211 = vrot.lane.b32.xlu0 %v1159, 120
      %v1212 = vpop.permute.xlu0 %1211
      %1213 = vrot.lane.b32.xlu0 %v1158, 120
      %v1214 = vpop.permute.xlu0 %1213
      %1215 = vrot.lane.b32.xlu0 %v1162, 120
      %v1216 = vpop.permute.xlu0 %1215
      %1217 = vrot.lane.b32.xlu0 %v1161, 120
      %v1218 = vpop.permute.xlu0 %1217
      %v1247 = vadd.f32 %v1064, %v1164
      %v1248 = vadd.f32 %v1065, %v1166
      %v1249 = vadd.f32 %v1066, %v1168
      %v1250 = vadd.f32 %v1067, %v1170
      %v1251 = vadd.f32 %v1068, %v1172
      %v1252 = vadd.f32 %v1069, %v1174
      %v1253 = vadd.f32 %v1070, %v1176
      %v1254 = vadd.f32 %v1071, %v1178
      %v1255 = vadd.f32 %v1072, %v1180
      %v1256 = vadd.f32 %v1073, %v1182
      %v1257 = vadd.f32 %v1074, %v1184
      %v1258 = vadd.f32 %v1075, %v1186
      %v1259 = vadd.f32 %v1076, %v1188
      %v1260 = vadd.f32 %v1077, %v1190
      %v1261 = vadd.f32 %v1078, %v1192
      %v1262 = vadd.f32 %v1079, %v1194
      %v1263 = vadd.f32 %v1080, %v1196
      %v1264 = vadd.f32 %v1081, %v1198
      %v1265 = vadd.f32 %v1082, %v1200
      %v1266 = vadd.f32 %v1083, %v1202
      %v1267 = vadd.f32 %v1084, %v1204
      %v1268 = vadd.f32 %v1085, %v1206
      %v1269 = vadd.f32 %v1086, %v1208
      %v1270 = vadd.f32 %v1087, %v1210
      %v1271 = vadd.f32 %v1088, %v1212
      %v1272 = vadd.f32 %v1089, %v1214
      %v1273 = vadd.f32 %v1090, %v1216
      %v1274 = vadd.f32 %v1091, %v1218
      %vm1275 = vcmask 1045504
      %v1276 = vrot.slane %v898, 2
      %v1277 = vrot.slane %v903, 2
      %v1278 = vsel %vm1275, %v1276, %v1277
      %v1279 = vrot.slane %v908, 2
      %v1280 = vrot.slane %v913, 2
      %v1281 = vsel %vm1275, %v1279, %v1280
      %v1282 = vrot.slane %v918, 2
      %v1283 = vrot.slane %v923, 2
      %v1284 = vsel %vm1275, %v1282, %v1283
      %v1285 = vrot.slane %v928, 2
      %v1286 = vrot.slane %v933, 2
      %v1287 = vsel %vm1275, %v1285, %v1286
      %v1288 = vrot.slane %v938, 2
      %v1289 = vrot.slane %v943, 2
      %v1290 = vsel %vm1275, %v1288, %v1289
      %v1291 = vrot.slane %v948, 2
      %v1292 = vrot.slane %v953, 2
      %v1293 = vsel %vm1275, %v1291, %v1292
      %v1294 = vrot.slane %v958, 2
      %v1295 = vrot.slane %v963, 2
      %v1296 = vsel %vm1275, %v1294, %v1295
      %v1297 = vrot.slane %v968, 2
      %v1298 = vrot.slane %v973, 2
      %v1299 = vsel %vm1275, %v1297, %v1298
      %v1300 = vrot.slane %v978, 2
      %v1301 = vrot.slane %v983, 2
      %v1302 = vsel %vm1275, %v1300, %v1301
      %v1303 = vrot.slane %v988, 2
      %v1304 = vrot.slane %v993, 2
      %v1305 = vsel %vm1275, %v1303, %v1304
      %v1306 = vrot.slane %v998, 2
      %v1307 = vrot.slane %v1003, 2
      %v1308 = vsel %vm1275, %v1306, %v1307
      %v1309 = vrot.slane %v1008, 2
      %v1310 = vrot.slane %v1013, 2
      %v1311 = vsel %vm1275, %v1309, %v1310
      %v1312 = vrot.slane %v1018, 2
      %v1313 = vrot.slane %v1023, 2
      %v1314 = vsel %vm1275, %v1312, %v1313
      %v1315 = vrot.slane %v1028, 2
      %v1316 = vrot.slane %v1033, 2
      %v1317 = vsel %vm1275, %v1315, %v1316
      %1318 = vrot.lane.b32.xlu0 %v1278, 112
      %v1319 = vpop.permute.xlu0 %1318
      %1320 = vrot.lane.b32.xlu0 %v1277, 112
      %v1321 = vpop.permute.xlu0 %1320
      %1322 = vrot.lane.b32.xlu0 %v1281, 112
      %v1323 = vpop.permute.xlu0 %1322
      %1324 = vrot.lane.b32.xlu0 %v1280, 112
      %v1325 = vpop.permute.xlu0 %1324
      %1326 = vrot.lane.b32.xlu0 %v1284, 112
      %v1327 = vpop.permute.xlu0 %1326
      %1328 = vrot.lane.b32.xlu0 %v1283, 112
      %v1329 = vpop.permute.xlu0 %1328
      %1330 = vrot.lane.b32.xlu0 %v1287, 112
      %v1331 = vpop.permute.xlu0 %1330
      %1332 = vrot.lane.b32.xlu0 %v1286, 112
      %v1333 = vpop.permute.xlu0 %1332
      %1334 = vrot.lane.b32.xlu0 %v1290, 112
      %v1335 = vpop.permute.xlu0 %1334
      %1336 = vrot.lane.b32.xlu0 %v1289, 112
      %v1337 = vpop.permute.xlu0 %1336
      %1338 = vrot.lane.b32.xlu0 %v1293, 112
      %v1339 = vpop.permute.xlu0 %1338
      %1340 = vrot.lane.b32.xlu0 %v1292, 112
      %v1341 = vpop.permute.xlu0 %1340
      %1342 = vrot.lane.b32.xlu0 %v1296, 112
      %v1343 = vpop.permute.xlu0 %1342
      %1344 = vrot.lane.b32.xlu0 %v1295, 112
      %v1345 = vpop.permute.xlu0 %1344
      %1346 = vrot.lane.b32.xlu0 %v1299, 112
      %v1347 = vpop.permute.xlu0 %1346
      %1348 = vrot.lane.b32.xlu0 %v1298, 112
      %v1349 = vpop.permute.xlu0 %1348
      %1350 = vrot.lane.b32.xlu0 %v1302, 112
      %v1351 = vpop.permute.xlu0 %1350
      %1352 = vrot.lane.b32.xlu0 %v1301, 112
      %v1353 = vpop.permute.xlu0 %1352
      %1354 = vrot.lane.b32.xlu0 %v1305, 112
      %v1355 = vpop.permute.xlu0 %1354
      %1356 = vrot.lane.b32.xlu0 %v1304, 112
      %v1357 = vpop.permute.xlu0 %1356
      %1358 = vrot.lane.b32.xlu0 %v1308, 112
      %v1359 = vpop.permute.xlu0 %1358
      %1360 = vrot.lane.b32.xlu0 %v1307, 112
      %v1361 = vpop.permute.xlu0 %1360
      %1362 = vrot.lane.b32.xlu0 %v1311, 112
      %v1363 = vpop.permute.xlu0 %1362
      %1364 = vrot.lane.b32.xlu0 %v1310, 112
      %v1365 = vpop.permute.xlu0 %1364
      %1366 = vrot.lane.b32.xlu0 %v1314, 112
      %v1367 = vpop.permute.xlu0 %1366
      %1368 = vrot.lane.b32.xlu0 %v1313, 112
      %v1369 = vpop.permute.xlu0 %1368
      %1370 = vrot.lane.b32.xlu0 %v1317, 112
      %v1371 = vpop.permute.xlu0 %1370
      %1372 = vrot.lane.b32.xlu0 %v1316, 112
      %v1373 = vpop.permute.xlu0 %1372
      %v1402 = vadd.f32 %v1247, %v1319
      %v1403 = vadd.f32 %v1248, %v1321
      %v1404 = vadd.f32 %v1249, %v1323
      %v1405 = vadd.f32 %v1250, %v1325
      %v1406 = vadd.f32 %v1251, %v1327
      %v1407 = vadd.f32 %v1252, %v1329
      %v1408 = vadd.f32 %v1253, %v1331
      %v1409 = vadd.f32 %v1254, %v1333
      %v1410 = vadd.f32 %v1255, %v1335
      %v1411 = vadd.f32 %v1256, %v1337
      %v1412 = vadd.f32 %v1257, %v1339
      %v1413 = vadd.f32 %v1258, %v1341
      %v1414 = vadd.f32 %v1259, %v1343
      %v1415 = vadd.f32 %v1260, %v1345
      %v1416 = vadd.f32 %v1261, %v1347
      %v1417 = vadd.f32 %v1262, %v1349
      %v1418 = vadd.f32 %v1263, %v1351
      %v1419 = vadd.f32 %v1264, %v1353
      %v1420 = vadd.f32 %v1265, %v1355
      %v1421 = vadd.f32 %v1266, %v1357
      %v1422 = vadd.f32 %v1267, %v1359
      %v1423 = vadd.f32 %v1268, %v1361
      %v1424 = vadd.f32 %v1269, %v1363
      %v1425 = vadd.f32 %v1270, %v1365
      %v1426 = vadd.f32 %v1271, %v1367
      %v1427 = vadd.f32 %v1272, %v1369
      %v1428 = vadd.f32 %v1273, %v1371
      %v1429 = vadd.f32 %v1274, %v1373
      %1432 = vrot.lane.b32.xlu0 %v908, 104
      %v1433 = vpop.permute.xlu0 %1432
      %1434 = vrot.lane.b32.xlu0 %v913, 104
      %v1435 = vpop.permute.xlu0 %1434
      %1436 = vrot.lane.b32.xlu0 %v918, 104
      %v1437 = vpop.permute.xlu0 %1436
      %1438 = vrot.lane.b32.xlu0 %v923, 104
      %v1439 = vpop.permute.xlu0 %1438
      %1440 = vrot.lane.b32.xlu0 %v928, 104
      %v1441 = vpop.permute.xlu0 %1440
      %1442 = vrot.lane.b32.xlu0 %v933, 104
      %v1443 = vpop.permute.xlu0 %1442
      %1444 = vrot.lane.b32.xlu0 %v938, 104
      %v1445 = vpop.permute.xlu0 %1444
      %1446 = vrot.lane.b32.xlu0 %v943, 104
      %v1447 = vpop.permute.xlu0 %1446
      %1448 = vrot.lane.b32.xlu0 %v948, 104
      %v1449 = vpop.permute.xlu0 %1448
      %1450 = vrot.lane.b32.xlu0 %v953, 104
      %v1451 = vpop.permute.xlu0 %1450
      %1452 = vrot.lane.b32.xlu0 %v958, 104
      %v1453 = vpop.permute.xlu0 %1452
      %1454 = vrot.lane.b32.xlu0 %v963, 104
      %v1455 = vpop.permute.xlu0 %1454
      %1456 = vrot.lane.b32.xlu0 %v968, 104
      %v1457 = vpop.permute.xlu0 %1456
      %1458 = vrot.lane.b32.xlu0 %v973, 104
      %v1459 = vpop.permute.xlu0 %1458
      %1460 = vrot.lane.b32.xlu0 %v978, 104
      %v1461 = vpop.permute.xlu0 %1460
      %1462 = vrot.lane.b32.xlu0 %v983, 104
      %v1463 = vpop.permute.xlu0 %1462
      %1464 = vrot.lane.b32.xlu0 %v988, 104
      %v1465 = vpop.permute.xlu0 %1464
      %1466 = vrot.lane.b32.xlu0 %v993, 104
      %v1467 = vpop.permute.xlu0 %1466
      %1468 = vrot.lane.b32.xlu0 %v998, 104
      %v1469 = vpop.permute.xlu0 %1468
      %1470 = vrot.lane.b32.xlu0 %v1003, 104
      %v1471 = vpop.permute.xlu0 %1470
      %1472 = vrot.lane.b32.xlu0 %v1008, 104
      %v1473 = vpop.permute.xlu0 %1472
      %1474 = vrot.lane.b32.xlu0 %v1013, 104
      %v1475 = vpop.permute.xlu0 %1474
      %1476 = vrot.lane.b32.xlu0 %v1018, 104
      %v1477 = vpop.permute.xlu0 %1476
      %1478 = vrot.lane.b32.xlu0 %v1023, 104
      %v1479 = vpop.permute.xlu0 %1478
      %1480 = vrot.lane.b32.xlu0 %v1028, 104
      %v1481 = vpop.permute.xlu0 %1480
      %1482 = vrot.lane.b32.xlu0 %v1033, 104
      %v1483 = vpop.permute.xlu0 %1482
      %1484 = vrot.lane.b32.xlu0 %v1038, 104
      %v1485 = vpop.permute.xlu0 %1484
      %1486 = vrot.lane.b32.xlu0 %v1043, 104
      %v1487 = vpop.permute.xlu0 %1486
      %v1516 = vadd.f32 %v1402, %v1433
      %v1517 = vadd.f32 %v1403, %v1435
      %v1518 = vadd.f32 %v1404, %v1437
      %v1519 = vadd.f32 %v1405, %v1439
      %v1520 = vadd.f32 %v1406, %v1441
      %v1521 = vadd.f32 %v1407, %v1443
      %v1522 = vadd.f32 %v1408, %v1445
      %v1523 = vadd.f32 %v1409, %v1447
      %v1524 = vadd.f32 %v1410, %v1449
      %v1525 = vadd.f32 %v1411, %v1451
      %v1526 = vadd.f32 %v1412, %v1453
      %v1527 = vadd.f32 %v1413, %v1455
      %v1528 = vadd.f32 %v1414, %v1457
      %v1529 = vadd.f32 %v1415, %v1459
      %v1530 = vadd.f32 %v1416, %v1461
      %v1531 = vadd.f32 %v1417, %v1463
      %v1532 = vadd.f32 %v1418, %v1465
      %v1533 = vadd.f32 %v1419, %v1467
      %v1534 = vadd.f32 %v1420, %v1469
      %v1535 = vadd.f32 %v1421, %v1471
      %v1536 = vadd.f32 %v1422, %v1473
      %v1537 = vadd.f32 %v1423, %v1475
      %v1538 = vadd.f32 %v1424, %v1477
      %v1539 = vadd.f32 %v1425, %v1479
      %v1540 = vadd.f32 %v1426, %v1481
      %v1541 = vadd.f32 %v1427, %v1483
      %v1542 = vadd.f32 %v1428, %v1485
      %v1543 = vadd.f32 %v1429, %v1487
      %v1544 = vrot.slane %v1038, 1
      %v1545 = vrot.slane %v1043, 1
      %v1546 = vsel %vm1120, %v1544, %v1545
      %1547 = vrot.lane.b32.xlu0 %v1126, 96
      %v1548 = vpop.permute.xlu0 %1547
      %1549 = vrot.lane.b32.xlu0 %v1125, 96
      %v1550 = vpop.permute.xlu0 %1549
      %1551 = vrot.lane.b32.xlu0 %v1129, 96
      %v1552 = vpop.permute.xlu0 %1551
      %1553 = vrot.lane.b32.xlu0 %v1128, 96
      %v1554 = vpop.permute.xlu0 %1553
      %1555 = vrot.lane.b32.xlu0 %v1132, 96
      %v1556 = vpop.permute.xlu0 %1555
      %1557 = vrot.lane.b32.xlu0 %v1131, 96
      %v1558 = vpop.permute.xlu0 %1557
      %1559 = vrot.lane.b32.xlu0 %v1135, 96
      %v1560 = vpop.permute.xlu0 %1559
      %1561 = vrot.lane.b32.xlu0 %v1134, 96
      %v1562 = vpop.permute.xlu0 %1561
      %1563 = vrot.lane.b32.xlu0 %v1138, 96
      %v1564 = vpop.permute.xlu0 %1563
      %1565 = vrot.lane.b32.xlu0 %v1137, 96
      %v1566 = vpop.permute.xlu0 %1565
      %1567 = vrot.lane.b32.xlu0 %v1141, 96
      %v1568 = vpop.permute.xlu0 %1567
      %1569 = vrot.lane.b32.xlu0 %v1140, 96
      %v1570 = vpop.permute.xlu0 %1569
      %1571 = vrot.lane.b32.xlu0 %v1144, 96
      %v1572 = vpop.permute.xlu0 %1571
      %1573 = vrot.lane.b32.xlu0 %v1143, 96
      %v1574 = vpop.permute.xlu0 %1573
      %1575 = vrot.lane.b32.xlu0 %v1147, 96
      %v1576 = vpop.permute.xlu0 %1575
      %1577 = vrot.lane.b32.xlu0 %v1146, 96
      %v1578 = vpop.permute.xlu0 %1577
      %1579 = vrot.lane.b32.xlu0 %v1150, 96
      %v1580 = vpop.permute.xlu0 %1579
      %1581 = vrot.lane.b32.xlu0 %v1149, 96
      %v1582 = vpop.permute.xlu0 %1581
      %1583 = vrot.lane.b32.xlu0 %v1153, 96
      %v1584 = vpop.permute.xlu0 %1583
      %1585 = vrot.lane.b32.xlu0 %v1152, 96
      %v1586 = vpop.permute.xlu0 %1585
      %1587 = vrot.lane.b32.xlu0 %v1156, 96
      %v1588 = vpop.permute.xlu0 %1587
      %1589 = vrot.lane.b32.xlu0 %v1155, 96
      %v1590 = vpop.permute.xlu0 %1589
      %1591 = vrot.lane.b32.xlu0 %v1159, 96
      %v1592 = vpop.permute.xlu0 %1591
      %1593 = vrot.lane.b32.xlu0 %v1158, 96
      %v1594 = vpop.permute.xlu0 %1593
      %1595 = vrot.lane.b32.xlu0 %v1162, 96
      %v1596 = vpop.permute.xlu0 %1595
      %1597 = vrot.lane.b32.xlu0 %v1161, 96
      %v1598 = vpop.permute.xlu0 %1597
      %1599 = vrot.lane.b32.xlu0 %v1546, 96
      %v1600 = vpop.permute.xlu0 %1599
      %1601 = vrot.lane.b32.xlu0 %v1545, 96
      %v1602 = vpop.permute.xlu0 %1601
      %v1631 = vadd.f32 %v1516, %v1548
      %v1632 = vadd.f32 %v1517, %v1550
      %v1633 = vadd.f32 %v1518, %v1552
      %v1634 = vadd.f32 %v1519, %v1554
      %v1635 = vadd.f32 %v1520, %v1556
      %v1636 = vadd.f32 %v1521, %v1558
      %v1637 = vadd.f32 %v1522, %v1560
      %v1638 = vadd.f32 %v1523, %v1562
      %v1639 = vadd.f32 %v1524, %v1564
      %v1640 = vadd.f32 %v1525, %v1566
      %v1641 = vadd.f32 %v1526, %v1568
      %v1642 = vadd.f32 %v1527, %v1570
      %v1643 = vadd.f32 %v1528, %v1572
      %v1644 = vadd.f32 %v1529, %v1574
      %v1645 = vadd.f32 %v1530, %v1576
      %v1646 = vadd.f32 %v1531, %v1578
      %v1647 = vadd.f32 %v1532, %v1580
      %v1648 = vadd.f32 %v1533, %v1582
      %v1649 = vadd.f32 %v1534, %v1584
      %v1650 = vadd.f32 %v1535, %v1586
      %v1651 = vadd.f32 %v1536, %v1588
      %v1652 = vadd.f32 %v1537, %v1590
      %v1653 = vadd.f32 %v1538, %v1592
      %v1654 = vadd.f32 %v1539, %v1594
      %v1655 = vadd.f32 %v1540, %v1596
      %v1656 = vadd.f32 %v1541, %v1598
      %v1657 = vadd.f32 %v1542, %v1600
      %v1658 = vadd.f32 %v1543, %v1602
      %v1659 = vrot.slane %v1038, 2
      %v1660 = vrot.slane %v1043, 2
      %v1661 = vsel %vm1275, %v1659, %v1660
      %1662 = vrot.lane.b32.xlu0 %v1281, 88
      %v1663 = vpop.permute.xlu0 %1662
      %1664 = vrot.lane.b32.xlu0 %v1280, 88
      %v1665 = vpop.permute.xlu0 %1664
      %1666 = vrot.lane.b32.xlu0 %v1284, 88
      %v1667 = vpop.permute.xlu0 %1666
      %1668 = vrot.lane.b32.xlu0 %v1283, 88
      %v1669 = vpop.permute.xlu0 %1668
      %1670 = vrot.lane.b32.xlu0 %v1287, 88
      %v1671 = vpop.permute.xlu0 %1670
      %1672 = vrot.lane.b32.xlu0 %v1286, 88
      %v1673 = vpop.permute.xlu0 %1672
      %1674 = vrot.lane.b32.xlu0 %v1290, 88
      %v1675 = vpop.permute.xlu0 %1674
      %1676 = vrot.lane.b32.xlu0 %v1289, 88
      %v1677 = vpop.permute.xlu0 %1676
      %1678 = vrot.lane.b32.xlu0 %v1293, 88
      %v1679 = vpop.permute.xlu0 %1678
      %1680 = vrot.lane.b32.xlu0 %v1292, 88
      %v1681 = vpop.permute.xlu0 %1680
      %1682 = vrot.lane.b32.xlu0 %v1296, 88
      %v1683 = vpop.permute.xlu0 %1682
      %1684 = vrot.lane.b32.xlu0 %v1295, 88
      %v1685 = vpop.permute.xlu0 %1684
      %1686 = vrot.lane.b32.xlu0 %v1299, 88
      %v1687 = vpop.permute.xlu0 %1686
      %1688 = vrot.lane.b32.xlu0 %v1298, 88
      %v1689 = vpop.permute.xlu0 %1688
      %1690 = vrot.lane.b32.xlu0 %v1302, 88
      %v1691 = vpop.permute.xlu0 %1690
      %1692 = vrot.lane.b32.xlu0 %v1301, 88
      %v1693 = vpop.permute.xlu0 %1692
      %1694 = vrot.lane.b32.xlu0 %v1305, 88
      %v1695 = vpop.permute.xlu0 %1694
      %1696 = vrot.lane.b32.xlu0 %v1304, 88
      %v1697 = vpop.permute.xlu0 %1696
      %1698 = vrot.lane.b32.xlu0 %v1308, 88
      %v1699 = vpop.permute.xlu0 %1698
      %1700 = vrot.lane.b32.xlu0 %v1307, 88
      %v1701 = vpop.permute.xlu0 %1700
      %1702 = vrot.lane.b32.xlu0 %v1311, 88
      %v1703 = vpop.permute.xlu0 %1702
      %1704 = vrot.lane.b32.xlu0 %v1310, 88
      %v1705 = vpop.permute.xlu0 %1704
      %1706 = vrot.lane.b32.xlu0 %v1314, 88
      %v1707 = vpop.permute.xlu0 %1706
      %1708 = vrot.lane.b32.xlu0 %v1313, 88
      %v1709 = vpop.permute.xlu0 %1708
      %1710 = vrot.lane.b32.xlu0 %v1317, 88
      %v1711 = vpop.permute.xlu0 %1710
      %1712 = vrot.lane.b32.xlu0 %v1316, 88
      %v1713 = vpop.permute.xlu0 %1712
      %1714 = vrot.lane.b32.xlu0 %v1661, 88
      %v1715 = vpop.permute.xlu0 %1714
      %1716 = vrot.lane.b32.xlu0 %v1660, 88
      %v1717 = vpop.permute.xlu0 %1716
      %v1746 = vadd.f32 %v1631, %v1663
      %v1747 = vadd.f32 %v1632, %v1665
      %v1748 = vadd.f32 %v1633, %v1667
      %v1749 = vadd.f32 %v1634, %v1669
      %v1750 = vadd.f32 %v1635, %v1671
      %v1751 = vadd.f32 %v1636, %v1673
      %v1752 = vadd.f32 %v1637, %v1675
      %v1753 = vadd.f32 %v1638, %v1677
      %v1754 = vadd.f32 %v1639, %v1679
      %v1755 = vadd.f32 %v1640, %v1681
      %v1756 = vadd.f32 %v1641, %v1683
      %v1757 = vadd.f32 %v1642, %v1685
      %v1758 = vadd.f32 %v1643, %v1687
      %v1759 = vadd.f32 %v1644, %v1689
      %v1760 = vadd.f32 %v1645, %v1691
      %v1761 = vadd.f32 %v1646, %v1693
      %v1762 = vadd.f32 %v1647, %v1695
      %v1763 = vadd.f32 %v1648, %v1697
      %v1764 = vadd.f32 %v1649, %v1699
      %v1765 = vadd.f32 %v1650, %v1701
      %v1766 = vadd.f32 %v1651, %v1703
      %v1767 = vadd.f32 %v1652, %v1705
      %v1768 = vadd.f32 %v1653, %v1707
      %v1769 = vadd.f32 %v1654, %v1709
      %v1770 = vadd.f32 %v1655, %v1711
      %v1771 = vadd.f32 %v1656, %v1713
      %v1772 = vadd.f32 %v1657, %v1715
      %v1773 = vadd.f32 %v1658, %v1717
      %1776 = vrot.lane.b32.xlu0 %v918, 80
      %v1777 = vpop.permute.xlu0 %1776
      %1778 = vrot.lane.b32.xlu0 %v923, 80
      %v1779 = vpop.permute.xlu0 %1778
      %1780 = vrot.lane.b32.xlu0 %v928, 80
      %v1781 = vpop.permute.xlu0 %1780
      %1782 = vrot.lane.b32.xlu0 %v933, 80
      %v1783 = vpop.permute.xlu0 %1782
      %1784 = vrot.lane.b32.xlu0 %v938, 80
      %v1785 = vpop.permute.xlu0 %1784
      %1786 = vrot.lane.b32.xlu0 %v943, 80
      %v1787 = vpop.permute.xlu0 %1786
      %1788 = vrot.lane.b32.xlu0 %v948, 80
      %v1789 = vpop.permute.xlu0 %1788
      %1790 = vrot.lane.b32.xlu0 %v953, 80
      %v1791 = vpop.permute.xlu0 %1790
      %1792 = vrot.lane.b32.xlu0 %v958, 80
      %v1793 = vpop.permute.xlu0 %1792
      %1794 = vrot.lane.b32.xlu0 %v963, 80
      %v1795 = vpop.permute.xlu0 %1794
      %1796 = vrot.lane.b32.xlu0 %v968, 80
      %v1797 = vpop.permute.xlu0 %1796
      %1798 = vrot.lane.b32.xlu0 %v973, 80
      %v1799 = vpop.permute.xlu0 %1798
      %1800 = vrot.lane.b32.xlu0 %v978, 80
      %v1801 = vpop.permute.xlu0 %1800
      %1802 = vrot.lane.b32.xlu0 %v983, 80
      %v1803 = vpop.permute.xlu0 %1802
      %1804 = vrot.lane.b32.xlu0 %v988, 80
      %v1805 = vpop.permute.xlu0 %1804
      %1806 = vrot.lane.b32.xlu0 %v993, 80
      %v1807 = vpop.permute.xlu0 %1806
      %1808 = vrot.lane.b32.xlu0 %v998, 80
      %v1809 = vpop.permute.xlu0 %1808
      %1810 = vrot.lane.b32.xlu0 %v1003, 80
      %v1811 = vpop.permute.xlu0 %1810
      %1812 = vrot.lane.b32.xlu0 %v1008, 80
      %v1813 = vpop.permute.xlu0 %1812
      %1814 = vrot.lane.b32.xlu0 %v1013, 80
      %v1815 = vpop.permute.xlu0 %1814
      %1816 = vrot.lane.b32.xlu0 %v1018, 80
      %v1817 = vpop.permute.xlu0 %1816
      %1818 = vrot.lane.b32.xlu0 %v1023, 80
      %v1819 = vpop.permute.xlu0 %1818
      %1820 = vrot.lane.b32.xlu0 %v1028, 80
      %v1821 = vpop.permute.xlu0 %1820
      %1822 = vrot.lane.b32.xlu0 %v1033, 80
      %v1823 = vpop.permute.xlu0 %1822
      %1824 = vrot.lane.b32.xlu0 %v1038, 80
      %v1825 = vpop.permute.xlu0 %1824
      %1826 = vrot.lane.b32.xlu0 %v1043, 80
      %v1827 = vpop.permute.xlu0 %1826
      %1828 = vrot.lane.b32.xlu0 %v1048, 80
      %v1829 = vpop.permute.xlu0 %1828
      %1830 = vrot.lane.b32.xlu0 %v1053, 80
      %v1831 = vpop.permute.xlu0 %1830
      %v1860 = vadd.f32 %v1746, %v1777
      %v1861 = vadd.f32 %v1747, %v1779
      %v1862 = vadd.f32 %v1748, %v1781
      %v1863 = vadd.f32 %v1749, %v1783
      %v1864 = vadd.f32 %v1750, %v1785
      %v1865 = vadd.f32 %v1751, %v1787
      %v1866 = vadd.f32 %v1752, %v1789
      %v1867 = vadd.f32 %v1753, %v1791
      %v1868 = vadd.f32 %v1754, %v1793
      %v1869 = vadd.f32 %v1755, %v1795
      %v1870 = vadd.f32 %v1756, %v1797
      %v1871 = vadd.f32 %v1757, %v1799
      %v1872 = vadd.f32 %v1758, %v1801
      %v1873 = vadd.f32 %v1759, %v1803
      %v1874 = vadd.f32 %v1760, %v1805
      %v1875 = vadd.f32 %v1761, %v1807
      %v1876 = vadd.f32 %v1762, %v1809
      %v1877 = vadd.f32 %v1763, %v1811
      %v1878 = vadd.f32 %v1764, %v1813
      %v1879 = vadd.f32 %v1765, %v1815
      %v1880 = vadd.f32 %v1766, %v1817
      %v1881 = vadd.f32 %v1767, %v1819
      %v1882 = vadd.f32 %v1768, %v1821
      %v1883 = vadd.f32 %v1769, %v1823
      %v1884 = vadd.f32 %v1770, %v1825
      %v1885 = vadd.f32 %v1771, %v1827
      %v1886 = vadd.f32 %v1772, %v1829
      %v1887 = vadd.f32 %v1773, %v1831
      %v1888 = vrot.slane %v1048, 1
      %v1889 = vrot.slane %v1053, 1
      %v1890 = vsel %vm1120, %v1888, %v1889
      %1891 = vrot.lane.b32.xlu0 %v1129, 72
      %v1892 = vpop.permute.xlu0 %1891
      %1893 = vrot.lane.b32.xlu0 %v1128, 72
      %v1894 = vpop.permute.xlu0 %1893
      %1895 = vrot.lane.b32.xlu0 %v1132, 72
      %v1896 = vpop.permute.xlu0 %1895
      %1897 = vrot.lane.b32.xlu0 %v1131, 72
      %v1898 = vpop.permute.xlu0 %1897
      %1899 = vrot.lane.b32.xlu0 %v1135, 72
      %v1900 = vpop.permute.xlu0 %1899
      %1901 = vrot.lane.b32.xlu0 %v1134, 72
      %v1902 = vpop.permute.xlu0 %1901
      %1903 = vrot.lane.b32.xlu0 %v1138, 72
      %v1904 = vpop.permute.xlu0 %1903
      %1905 = vrot.lane.b32.xlu0 %v1137, 72
      %v1906 = vpop.permute.xlu0 %1905
      %1907 = vrot.lane.b32.xlu0 %v1141, 72
      %v1908 = vpop.permute.xlu0 %1907
      %1909 = vrot.lane.b32.xlu0 %v1140, 72
      %v1910 = vpop.permute.xlu0 %1909
      %1911 = vrot.lane.b32.xlu0 %v1144, 72
      %v1912 = vpop.permute.xlu0 %1911
      %1913 = vrot.lane.b32.xlu0 %v1143, 72
      %v1914 = vpop.permute.xlu0 %1913
      %1915 = vrot.lane.b32.xlu0 %v1147, 72
      %v1916 = vpop.permute.xlu0 %1915
      %1917 = vrot.lane.b32.xlu0 %v1146, 72
      %v1918 = vpop.permute.xlu0 %1917
      %1919 = vrot.lane.b32.xlu0 %v1150, 72
      %v1920 = vpop.permute.xlu0 %1919
      %1921 = vrot.lane.b32.xlu0 %v1149, 72
      %v1922 = vpop.permute.xlu0 %1921
      %1923 = vrot.lane.b32.xlu0 %v1153, 72
      %v1924 = vpop.permute.xlu0 %1923
      %1925 = vrot.lane.b32.xlu0 %v1152, 72
      %v1926 = vpop.permute.xlu0 %1925
      %1927 = vrot.lane.b32.xlu0 %v1156, 72
      %v1928 = vpop.permute.xlu0 %1927
      %1929 = vrot.lane.b32.xlu0 %v1155, 72
      %v1930 = vpop.permute.xlu0 %1929
      %1931 = vrot.lane.b32.xlu0 %v1159, 72
      %v1932 = vpop.permute.xlu0 %1931
      %1933 = vrot.lane.b32.xlu0 %v1158, 72
      %v1934 = vpop.permute.xlu0 %1933
      %1935 = vrot.lane.b32.xlu0 %v1162, 72
      %v1936 = vpop.permute.xlu0 %1935
      %1937 = vrot.lane.b32.xlu0 %v1161, 72
      %v1938 = vpop.permute.xlu0 %1937
      %1939 = vrot.lane.b32.xlu0 %v1546, 72
      %v1940 = vpop.permute.xlu0 %1939
      %1941 = vrot.lane.b32.xlu0 %v1545, 72
      %v1942 = vpop.permute.xlu0 %1941
      %1943 = vrot.lane.b32.xlu0 %v1890, 72
      %v1944 = vpop.permute.xlu0 %1943
      %1945 = vrot.lane.b32.xlu0 %v1889, 72
      %v1946 = vpop.permute.xlu0 %1945
      %v1975 = vadd.f32 %v1860, %v1892
      %v1976 = vadd.f32 %v1861, %v1894
      %v1977 = vadd.f32 %v1862, %v1896
      %v1978 = vadd.f32 %v1863, %v1898
      %v1979 = vadd.f32 %v1864, %v1900
      %v1980 = vadd.f32 %v1865, %v1902
      %v1981 = vadd.f32 %v1866, %v1904
      %v1982 = vadd.f32 %v1867, %v1906
      %v1983 = vadd.f32 %v1868, %v1908
      %v1984 = vadd.f32 %v1869, %v1910
      %v1985 = vadd.f32 %v1870, %v1912
      %v1986 = vadd.f32 %v1871, %v1914
      %v1987 = vadd.f32 %v1872, %v1916
      %v1988 = vadd.f32 %v1873, %v1918
      %v1989 = vadd.f32 %v1874, %v1920
      %v1990 = vadd.f32 %v1875, %v1922
      %v1991 = vadd.f32 %v1876, %v1924
      %v1992 = vadd.f32 %v1877, %v1926
      %v1993 = vadd.f32 %v1878, %v1928
      %v1994 = vadd.f32 %v1879, %v1930
      %v1995 = vadd.f32 %v1880, %v1932
      %v1996 = vadd.f32 %v1881, %v1934
      %v1997 = vadd.f32 %v1882, %v1936
      %v1998 = vadd.f32 %v1883, %v1938
      %v1999 = vadd.f32 %v1884, %v1940
      %v2000 = vadd.f32 %v1885, %v1942
      %v2001 = vadd.f32 %v1886, %v1944
      %v2002 = vadd.f32 %v1887, %v1946
      %v2003 = vrot.slane %v1048, 2
      %v2004 = vrot.slane %v1053, 2
      %v2005 = vsel %vm1275, %v2003, %v2004
      %2006 = vrot.lane.b32.xlu0 %v1284, 64
      %v2007 = vpop.permute.xlu0 %2006
      %2008 = vrot.lane.b32.xlu0 %v1283, 64
      %v2009 = vpop.permute.xlu0 %2008
      %2010 = vrot.lane.b32.xlu0 %v1287, 64
      %v2011 = vpop.permute.xlu0 %2010
      %2012 = vrot.lane.b32.xlu0 %v1286, 64
      %v2013 = vpop.permute.xlu0 %2012
      %2014 = vrot.lane.b32.xlu0 %v1290, 64
      %v2015 = vpop.permute.xlu0 %2014
      %2016 = vrot.lane.b32.xlu0 %v1289, 64
      %v2017 = vpop.permute.xlu0 %2016
      %2018 = vrot.lane.b32.xlu0 %v1293, 64
      %v2019 = vpop.permute.xlu0 %2018
      %2020 = vrot.lane.b32.xlu0 %v1292, 64
      %v2021 = vpop.permute.xlu0 %2020
      %2022 = vrot.lane.b32.xlu0 %v1296, 64
      %v2023 = vpop.permute.xlu0 %2022
      %2024 = vrot.lane.b32.xlu0 %v1295, 64
      %v2025 = vpop.permute.xlu0 %2024
      %2026 = vrot.lane.b32.xlu0 %v1299, 64
      %v2027 = vpop.permute.xlu0 %2026
      %2028 = vrot.lane.b32.xlu0 %v1298, 64
      %v2029 = vpop.permute.xlu0 %2028
      %2030 = vrot.lane.b32.xlu0 %v1302, 64
      %v2031 = vpop.permute.xlu0 %2030
      %2032 = vrot.lane.b32.xlu0 %v1301, 64
      %v2033 = vpop.permute.xlu0 %2032
      %2034 = vrot.lane.b32.xlu0 %v1305, 64
      %v2035 = vpop.permute.xlu0 %2034
      %2036 = vrot.lane.b32.xlu0 %v1304, 64
      %v2037 = vpop.permute.xlu0 %2036
      %2038 = vrot.lane.b32.xlu0 %v1308, 64
      %v2039 = vpop.permute.xlu0 %2038
      %2040 = vrot.lane.b32.xlu0 %v1307, 64
      %v2041 = vpop.permute.xlu0 %2040
      %2042 = vrot.lane.b32.xlu0 %v1311, 64
      %v2043 = vpop.permute.xlu0 %2042
      %2044 = vrot.lane.b32.xlu0 %v1310, 64
      %v2045 = vpop.permute.xlu0 %2044
      %2046 = vrot.lane.b32.xlu0 %v1314, 64
      %v2047 = vpop.permute.xlu0 %2046
      %2048 = vrot.lane.b32.xlu0 %v1313, 64
      %v2049 = vpop.permute.xlu0 %2048
      %2050 = vrot.lane.b32.xlu0 %v1317, 64
      %v2051 = vpop.permute.xlu0 %2050
      %2052 = vrot.lane.b32.xlu0 %v1316, 64
      %v2053 = vpop.permute.xlu0 %2052
      %2054 = vrot.lane.b32.xlu0 %v1661, 64
      %v2055 = vpop.permute.xlu0 %2054
      %2056 = vrot.lane.b32.xlu0 %v1660, 64
      %v2057 = vpop.permute.xlu0 %2056
      %2058 = vrot.lane.b32.xlu0 %v2005, 64
      %v2059 = vpop.permute.xlu0 %2058
      %2060 = vrot.lane.b32.xlu0 %v2004, 64
      %v2061 = vpop.permute.xlu0 %2060
      %v2090 = vadd.f32 %v1975, %v2007
      %v2091 = vadd.f32 %v1976, %v2009
      %v2092 = vadd.f32 %v1977, %v2011
      %v2093 = vadd.f32 %v1978, %v2013
      %v2094 = vadd.f32 %v1979, %v2015
      %v2095 = vadd.f32 %v1980, %v2017
      %v2096 = vadd.f32 %v1981, %v2019
      %v2097 = vadd.f32 %v1982, %v2021
      %v2098 = vadd.f32 %v1983, %v2023
      %v2099 = vadd.f32 %v1984, %v2025
      %v2100 = vadd.f32 %v1985, %v2027
      %v2101 = vadd.f32 %v1986, %v2029
      %v2102 = vadd.f32 %v1987, %v2031
      %v2103 = vadd.f32 %v1988, %v2033
      %v2104 = vadd.f32 %v1989, %v2035
      %v2105 = vadd.f32 %v1990, %v2037
      %v2106 = vadd.f32 %v1991, %v2039
      %v2107 = vadd.f32 %v1992, %v2041
      %v2108 = vadd.f32 %v1993, %v2043
      %v2109 = vadd.f32 %v1994, %v2045
      %v2110 = vadd.f32 %v1995, %v2047
      %v2111 = vadd.f32 %v1996, %v2049
      %v2112 = vadd.f32 %v1997, %v2051
      %v2113 = vadd.f32 %v1998, %v2053
      %v2114 = vadd.f32 %v1999, %v2055
      %v2115 = vadd.f32 %v2000, %v2057
      %v2116 = vadd.f32 %v2001, %v2059
      %v2117 = vadd.f32 %v2002, %v2061
      %vm2118 = vcmp.ge.f32.partialorder %v2090, 0.0
      %vm2119 = vcmp.ge.f32.partialorder %v2091, 0.0
      %vm2120 = vcmp.ge.f32.partialorder %v2092, 0.0
      %vm2121 = vcmp.ge.f32.partialorder %v2093, 0.0
      %vm2122 = vcmp.ge.f32.partialorder %v2094, 0.0
      %vm2123 = vcmp.ge.f32.partialorder %v2095, 0.0
      %vm2124 = vcmp.ge.f32.partialorder %v2096, 0.0
      %vm2125 = vcmp.ge.f32.partialorder %v2097, 0.0
      %vm2126 = vcmp.ge.f32.partialorder %v2098, 0.0
      %vm2127 = vcmp.ge.f32.partialorder %v2099, 0.0
      %vm2128 = vcmp.ge.f32.partialorder %v2100, 0.0
      %vm2129 = vcmp.ge.f32.partialorder %v2101, 0.0
      %vm2130 = vcmp.ge.f32.partialorder %v2102, 0.0
      %vm2131 = vcmp.ge.f32.partialorder %v2103, 0.0
      %vm2132 = vcmp.ge.f32.partialorder %v2104, 0.0
      %vm2133 = vcmp.ge.f32.partialorder %v2105, 0.0
      %vm2134 = vcmp.ge.f32.partialorder %v2106, 0.0
      %vm2135 = vcmp.ge.f32.partialorder %v2107, 0.0
      %vm2136 = vcmp.ge.f32.partialorder %v2108, 0.0
      %vm2137 = vcmp.ge.f32.partialorder %v2109, 0.0
      %vm2138 = vcmp.ge.f32.partialorder %v2110, 0.0
      %vm2139 = vcmp.ge.f32.partialorder %v2111, 0.0
      %vm2140 = vcmp.ge.f32.partialorder %v2112, 0.0
      %vm2141 = vcmp.ge.f32.partialorder %v2113, 0.0
      %vm2142 = vcmp.ge.f32.partialorder %v2114, 0.0
      %vm2143 = vcmp.ge.f32.partialorder %v2115, 0.0
      %vm2144 = vcmp.ge.f32.partialorder %v2116, 0.0
      %vm2145 = vcmp.ge.f32.partialorder %v2117, 0.0
      %v2146 = vmul.f32 %v2090, 0.2
      %v2147 = vmul.f32 %v2091, 0.2
      %v2148 = vmul.f32 %v2092, 0.2
      %v2149 = vmul.f32 %v2093, 0.2
      %v2150 = vmul.f32 %v2094, 0.2
      %v2151 = vmul.f32 %v2095, 0.2
      %v2152 = vmul.f32 %v2096, 0.2
      %v2153 = vmul.f32 %v2097, 0.2
      %v2154 = vmul.f32 %v2098, 0.2
      %v2155 = vmul.f32 %v2099, 0.2
      %v2156 = vmul.f32 %v2100, 0.2
      %v2157 = vmul.f32 %v2101, 0.2
      %v2158 = vmul.f32 %v2102, 0.2
      %v2159 = vmul.f32 %v2103, 0.2
      %v2160 = vmul.f32 %v2104, 0.2
      %v2161 = vmul.f32 %v2105, 0.2
      %v2162 = vmul.f32 %v2106, 0.2
      %v2163 = vmul.f32 %v2107, 0.2
      %v2164 = vmul.f32 %v2108, 0.2
      %v2165 = vmul.f32 %v2109, 0.2
      %v2166 = vmul.f32 %v2110, 0.2
      %v2167 = vmul.f32 %v2111, 0.2
      %v2168 = vmul.f32 %v2112, 0.2
      %v2169 = vmul.f32 %v2113, 0.2
      %v2170 = vmul.f32 %v2114, 0.2
      %v2171 = vmul.f32 %v2115, 0.2
      %v2172 = vmul.f32 %v2116, 0.2
      %v2173 = vmul.f32 %v2117, 0.2
      %v2174 = vsel %vm2118, %v2090, %v2146
      %v2175 = vsel %vm2119, %v2091, %v2147
      %v2176 = vsel %vm2120, %v2092, %v2148
      %v2177 = vsel %vm2121, %v2093, %v2149
      %v2178 = vsel %vm2122, %v2094, %v2150
      %v2179 = vsel %vm2123, %v2095, %v2151
      %v2180 = vsel %vm2124, %v2096, %v2152
      %v2181 = vsel %vm2125, %v2097, %v2153
      %v2182 = vsel %vm2126, %v2098, %v2154
      %v2183 = vsel %vm2127, %v2099, %v2155
      %v2184 = vsel %vm2128, %v2100, %v2156
      %v2185 = vsel %vm2129, %v2101, %v2157
      %v2186 = vsel %vm2130, %v2102, %v2158
      %v2187 = vsel %vm2131, %v2103, %v2159
      %v2188 = vsel %vm2132, %v2104, %v2160
      %v2189 = vsel %vm2133, %v2105, %v2161
      %v2190 = vsel %vm2134, %v2106, %v2162
      %v2191 = vsel %vm2135, %v2107, %v2163
      %v2192 = vsel %vm2136, %v2108, %v2164
      %v2193 = vsel %vm2137, %v2109, %v2165
      %v2194 = vsel %vm2138, %v2110, %v2166
      %v2195 = vsel %vm2139, %v2111, %v2167
      %v2196 = vsel %vm2140, %v2112, %v2168
      %v2197 = vsel %vm2141, %v2113, %v2169
      %v2198 = vsel %vm2142, %v2114, %v2170
      %v2199 = vsel %vm2143, %v2115, %v2171
      %v2200 = vsel %vm2144, %v2116, %v2172
      %v2201 = vsel %vm2145, %v2117, %v2173
      %2230 = vrot.lane.b32.xlu0 %v2174, 16
      %v2231 = vpop.permute.xlu0 %2230
      %2232 = vrot.lane.b32.xlu0 %v2175, 16
      %v2233 = vpop.permute.xlu0 %2232
      %2234 = vrot.lane.b32.xlu0 %v2176, 16
      %v2235 = vpop.permute.xlu0 %2234
      %2236 = vrot.lane.b32.xlu0 %v2177, 16
      %v2237 = vpop.permute.xlu0 %2236
      %2238 = vrot.lane.b32.xlu0 %v2178, 16
      %v2239 = vpop.permute.xlu0 %2238
      %2240 = vrot.lane.b32.xlu0 %v2179, 16
      %v2241 = vpop.permute.xlu0 %2240
      %2242 = vrot.lane.b32.xlu0 %v2180, 16
      %v2243 = vpop.permute.xlu0 %2242
      %2244 = vrot.lane.b32.xlu0 %v2181, 16
      %v2245 = vpop.permute.xlu0 %2244
      %2246 = vrot.lane.b32.xlu0 %v2182, 16
      %v2247 = vpop.permute.xlu0 %2246
      %2248 = vrot.lane.b32.xlu0 %v2183, 16
      %v2249 = vpop.permute.xlu0 %2248
      %2250 = vrot.lane.b32.xlu0 %v2184, 16
      %v2251 = vpop.permute.xlu0 %2250
      %2252 = vrot.lane.b32.xlu0 %v2185, 16
      %v2253 = vpop.permute.xlu0 %2252
      %2254 = vrot.lane.b32.xlu0 %v2186, 16
      %v2255 = vpop.permute.xlu0 %2254
      %2256 = vrot.lane.b32.xlu0 %v2187, 16
      %v2257 = vpop.permute.xlu0 %2256
      %2258 = vrot.lane.b32.xlu0 %v2188, 16
      %v2259 = vpop.permute.xlu0 %2258
      %2260 = vrot.lane.b32.xlu0 %v2189, 16
      %v2261 = vpop.permute.xlu0 %2260
      %2262 = vrot.lane.b32.xlu0 %v2190, 16
      %v2263 = vpop.permute.xlu0 %2262
      %2264 = vrot.lane.b32.xlu0 %v2191, 16
      %v2265 = vpop.permute.xlu0 %2264
      %2266 = vrot.lane.b32.xlu0 %v2192, 16
      %v2267 = vpop.permute.xlu0 %2266
      %2268 = vrot.lane.b32.xlu0 %v2193, 16
      %v2269 = vpop.permute.xlu0 %2268
      %2270 = vrot.lane.b32.xlu0 %v2194, 16
      %v2271 = vpop.permute.xlu0 %2270
      %2272 = vrot.lane.b32.xlu0 %v2195, 16
      %v2273 = vpop.permute.xlu0 %2272
      %2274 = vrot.lane.b32.xlu0 %v2196, 16
      %v2275 = vpop.permute.xlu0 %2274
      %2276 = vrot.lane.b32.xlu0 %v2197, 16
      %v2277 = vpop.permute.xlu0 %2276
      %2278 = vrot.lane.b32.xlu0 %v2198, 16
      %v2279 = vpop.permute.xlu0 %2278
      %2280 = vrot.lane.b32.xlu0 %v2199, 16
      %v2281 = vpop.permute.xlu0 %2280
      %2282 = vrot.lane.b32.xlu0 %v2200, 16
      %v2283 = vpop.permute.xlu0 %2282
      %2284 = vrot.lane.b32.xlu0 %v2201, 16
      %v2285 = vpop.permute.xlu0 %2284
      %vm2314 = vcmask 195712
      %2315 = vst.msk [vmem:[%s495 + $0x1] sm:$0xff] %vm2314, %v2231
      %vm2316 = vcmask 193664
      %2317 = vst.msk [vmem:[%s495 + $0x9] sm:$0x3f] %vm2316, %v2233
      %2318 = vst.msk [vmem:[%s495 + $0x11] sm:$0xff] %vm2314, %v2235
      %2319 = vst.msk [vmem:[%s495 + $0x19] sm:$0x3f] %vm2316, %v2237
      %2320 = vst.msk [vmem:[%s495 + $0x21] sm:$0xff] %vm2314, %v2239
      %2321 = vst.msk [vmem:[%s495 + $0x29] sm:$0x3f] %vm2316, %v2241
      %2322 = vst.msk [vmem:[%s495 + $0x31] sm:$0xff] %vm2314, %v2243
      %2323 = vst.msk [vmem:[%s495 + $0x39] sm:$0x3f] %vm2316, %v2245
      %2324 = vst.msk [vmem:[%s495 + $0x41] sm:$0xff] %vm2314, %v2247
      %2325 = vst.msk [vmem:[%s495 + $0x49] sm:$0x3f] %vm2316, %v2249
      %2326 = vst.msk [vmem:[%s495 + $0x51] sm:$0xff] %vm2314, %v2251
      %2327 = vst.msk [vmem:[%s495 + $0x59] sm:$0x3f] %vm2316, %v2253
      %2328 = vst.msk [vmem:[%s495 + $0x61] sm:$0xff] %vm2314, %v2255
      %2329 = vst.msk [vmem:[%s495 + $0x69] sm:$0x3f] %vm2316, %v2257
      %2330 = vst.msk [vmem:[%s495 + $0x71] sm:$0xff] %vm2314, %v2259
      %2331 = vst.msk [vmem:[%s495 + $0x79] sm:$0x3f] %vm2316, %v2261
      %2332 = vst.msk [vmem:[%s495 + $0x81] sm:$0xff] %vm2314, %v2263
      %2333 = vst.msk [vmem:[%s495 + $0x89] sm:$0x3f] %vm2316, %v2265
      %2334 = vst.msk [vmem:[%s495 + $0x91] sm:$0xff] %vm2314, %v2267
      %2335 = vst.msk [vmem:[%s495 + $0x99] sm:$0x3f] %vm2316, %v2269
      %2336 = vst.msk [vmem:[%s495 + $0xa1] sm:$0xff] %vm2314, %v2271
      %2337 = vst.msk [vmem:[%s495 + $0xa9] sm:$0x3f] %vm2316, %v2273
      %2338 = vst.msk [vmem:[%s495 + $0xb1] sm:$0xff] %vm2314, %v2275
      %2339 = vst.msk [vmem:[%s495 + $0xb9] sm:$0x3f] %vm2316, %v2277
      %2340 = vst.msk [vmem:[%s495 + $0xc1] sm:$0xff] %vm2314, %v2279
      %2341 = vst.msk [vmem:[%s495 + $0xc9] sm:$0x3f] %vm2316, %v2281
      %2342 = vst.msk [vmem:[%s495 + $0xd1] sm:$0xff] %vm2314, %v2283
      %2343 = vst.msk [vmem:[%s495 + $0xd9] sm:$0x3f] %vm2316, %v2285
      %v2344 = vld [vmem:[#allocation2] sm:$0xff]
      %v2345 = vld [vmem:[#allocation2 + $0x8] sm:$0xff]
      %v2346 = vld [vmem:[#allocation2 + $0x10] sm:$0xff]
      %v2347 = vld [vmem:[#allocation2 + $0x18] sm:$0xff]
      %v2348 = vld [vmem:[#allocation2 + $0x20] sm:$0xff]
      %v2349 = vld [vmem:[#allocation2 + $0x28] sm:$0xff]
      %v2350 = vld [vmem:[#allocation2 + $0x30] sm:$0xff]
      %v2351 = vld [vmem:[#allocation2 + $0x38] sm:$0xff]
      %v2352 = vld [vmem:[#allocation2 + $0x40] sm:$0xff]
      %v2353 = vld [vmem:[#allocation2 + $0x48] sm:$0xff]
      %v2354 = vld [vmem:[#allocation2 + $0x50] sm:$0xff]
      %v2355 = vld [vmem:[#allocation2 + $0x58] sm:$0xff]
      %v2356 = vld [vmem:[#allocation2 + $0x60] sm:$0xff]
      %v2357 = vld [vmem:[#allocation2 + $0x68] sm:$0xff]
      %v2358 = vld [vmem:[#allocation2 + $0x70] sm:$0xff]
      %v2359 = vld [vmem:[#allocation2 + $0x78] sm:$0xff]
      %v2360 = vld [vmem:[#allocation2 + $0x80] sm:$0xff]
      %v2361 = vld [vmem:[#allocation2 + $0x88] sm:$0xff]
      %v2362 = vld [vmem:[#allocation2 + $0x90] sm:$0xff]
      %v2363 = vld [vmem:[#allocation2 + $0x98] sm:$0xff]
      %v2364 = vld [vmem:[#allocation2 + $0xa0] sm:$0xff]
      %v2365 = vld [vmem:[#allocation2 + $0xa8] sm:$0xff]
      %v2366 = vld [vmem:[#allocation2 + $0xb0] sm:$0xff]
      %v2367 = vld [vmem:[#allocation2 + $0xb8] sm:$0xff]
      %v2368 = vld [vmem:[#allocation2 + $0xc0] sm:$0xff]
      %v2369 = vld [vmem:[#allocation2 + $0xc8] sm:$0xff]
      %v2370 = vld [vmem:[#allocation2 + $0xd0] sm:$0xff]
      %v2371 = vld [vmem:[#allocation2 + $0xd8] sm:$0xff]
      %v2372 = vld [vmem:[#allocation2 + $0xe0] sm:$0xff]
      %v2373 = vld [vmem:[#allocation2 + $0xe8] sm:$0xff]
      %v2374 = vld [vmem:[#allocation2 + $0xf0] sm:$0xff]
      %v2375 = vld [vmem:[#allocation2 + $0xf8] sm:$0xff]
      %v2376 = vld [vmem:[%s4] sm:$0xff]
      %v2377 = vld [vmem:[%s4 + $0x8] sm:$0xff]
      %v2378 = vld [vmem:[%s4 + $0x10] sm:$0xff]
      %v2379 = vld [vmem:[%s4 + $0x18] sm:$0xff]
      %v2380 = vld [vmem:[%s4 + $0x20] sm:$0xff]
      %v2381 = vld [vmem:[%s4 + $0x28] sm:$0xff]
      %v2382 = vld [vmem:[%s4 + $0x30] sm:$0xff]
      %v2384 = vsel %vm434, %v2344, 0
      %v2387 = vsel %vm434, %v2345, 0
      %v2390 = vsel %vm434, %v2346, 0
      %v2393 = vsel %vm434, %v2347, 0
      %v2396 = vsel %vm434, %v2348, 0
      %v2399 = vsel %vm434, %v2349, 0
      %v2402 = vsel %vm434, %v2350, 0
      %v2405 = vsel %vm434, %v2351, 0
      %v2408 = vsel %vm434, %v2352, 0
      %v2411 = vsel %vm434, %v2353, 0
      %v2414 = vsel %vm434, %v2354, 0
      %v2417 = vsel %vm434, %v2355, 0
      %v2420 = vsel %vm434, %v2356, 0
      %v2423 = vsel %vm434, %v2357, 0
      %v2426 = vsel %vm434, %v2358, 0
      %v2429 = vsel %vm434, %v2359, 0
      %v2432 = vsel %vm434, %v2360, 0
      %v2435 = vsel %vm434, %v2361, 0
      %v2438 = vsel %vm434, %v2362, 0
      %v2441 = vsel %vm434, %v2363, 0
      %v2444 = vsel %vm434, %v2364, 0
      %v2447 = vsel %vm434, %v2365, 0
      %v2450 = vsel %vm434, %v2366, 0
      %v2453 = vsel %vm434, %v2367, 0
      %v2456 = vsel %vm434, %v2368, 0
      %v2459 = vsel %vm434, %v2369, 0
      %v2462 = vsel %vm434, %v2370, 0
      %v2465 = vsel %vm434, %v2371, 0
      %v2468 = vsel %vm434, %v2372, 0
      %v2471 = vsel %vm434, %v2373, 0
      %v2474 = vsel %vm434, %v2374, 0
      %v2477 = vsel %vm434, %v2375, 0
      %2479 = vmatprep.subr.mxu0 0.0
      %2480 = vmatpush1.msra.mxu0 %v2376
      %2481 = vmatprep.subr.mxu0 0.0
      %2482 = vmatpush1.msra.mxu0 %v2377
      %2483 = vmatprep.subr.mxu0 0.0
      %2484 = vmatpush1.msra.mxu0 %v2378
      %2485 = vmatprep.subr.mxu0 0.0
      %2486 = vmatpush1.msra.mxu0 %v2379
      %2487 = vmatprep.subr.mxu0 0.0
      %2488 = vmatpush1.msra.mxu0 %v2380
      %2489 = vmatprep.subr.mxu0 0.0
      %2490 = vmatpush1.msra.mxu0 %v2381
      %2491 = vmatprep.subr.mxu0 0.0
      %2492 = vmatpush1.msra.mxu0 %v2382
      %2493 = vmatprep.subr.mxu0 0.0
      %2494 = vmatpush1.msra.mxu0 0.0
      %2495 = vmatprep.subr.mxu0 0.0
      %2496 = vmatpush1.msra.mxu0 0.0
      %2497 = vmatprep.subr.mxu0 0.0
      %2498 = vmatpush1.msra.mxu0 0.0
      %2499 = vmatprep.subr.mxu0 0.0
      %2500 = vmatpush1.msra.mxu0 0.0
      %2501 = vmatprep.subr.mxu0 0.0
      %2502 = vmatpush1.msra.mxu0 0.0
      %2503 = vmatprep.subr.mxu0 0.0
      %2504 = vmatpush1.msra.mxu0 0.0
      %2505 = vmatprep.subr.mxu0 0.0
      %2506 = vmatpush1.msra.mxu0 0.0
      %2507 = vmatprep.subr.mxu0 0.0
      %2508 = vmatpush1.msra.mxu0 0.0
      %2509 = vmatprep.subr.mxu0 0.0
      %2510 = vmatpush1.msra.mxu0 0.0
      %2511 = vmatprep.subr.mxu0 0.0
      %2512 = vmatpush1.msra.mxu0 0.0
      %2513 = vmatprep.subr.mxu0 0.0
      %2514 = vmatpush1.msra.mxu0 0.0
      %2515 = vmatprep.subr.mxu0 0.0
      %2516 = vmatpush1.msra.mxu0 0.0
      %2517 = vmatprep.subr.mxu0 0.0
      %2518 = vmatpush1.msra.mxu0 0.0
      %2519 = vmatprep.subr.mxu0 0.0
      %2520 = vmatpush1.msra.mxu0 0.0
      %2521 = vmatprep.subr.mxu0 0.0
      %2522 = vmatpush1.msra.mxu0 0.0
      %2523 = vmatprep.subr.mxu0 0.0
      %2524 = vmatpush1.msra.mxu0 0.0
      %2525 = vmatprep.subr.mxu0 0.0
      %2526 = vmatpush1.msra.mxu0 0.0
      %2527 = vmatprep.subr.mxu0 0.0
      %2528 = vmatpush1.msra.mxu0 0.0
      %2529 = vmatprep.subr.mxu0 0.0
      %2530 = vmatpush1.msra.mxu0 0.0
      %2531 = vmatprep.subr.mxu0 0.0
      %2532 = vmatpush1.msra.mxu0 0.0
      %2533 = vmatprep.subr.mxu0 0.0
      %2534 = vmatpush1.msra.mxu0 0.0
      %2535 = vmatprep.subr.mxu0 0.0
      %2536 = vmatpush1.msra.mxu0 0.0
      %2537 = vmatprep.subr.mxu0 0.0
      %2538 = vmatpush1.msra.mxu0 0.0
      %2539 = vmatprep.subr.mxu0 0.0
      %2540 = vmatpush1.msra.mxu0 0.0
      %2541 = vmatprep.subr.mxu0 0.0
      %2542 = vmatpush1.msra.mxu0 0.0
      %2543 = vmatprep.mubr.f32.mxu0 0.0
      %2544 = vmatmul.mubr.f32.gmra.mrb[0].mxu0 %v2384
      %v2545 = vpop.f32.mrb[0].mxu0
      %v2546 = vadd.f32 0.0, %v2545
      %v2547 = vpop.f32.mrb[0].mxu0
      %2548 = vmatprep.mubr.f32.mxu0 0.0
      %2549 = vmatmul.mubr.f32.gmra.mrb[0].mxu0 %v2387
      %v2550 = vpop.f32.mrb[0].mxu0
      %v2551 = vadd.f32 0.0, %v2550
      %v2552 = vpop.f32.mrb[0].mxu0
      %2553 = vmatprep.mubr.f32.mxu0 0.0
      %2554 = vmatmul.mubr.f32.gmra.mrb[0].mxu0 %v2390
      %v2555 = vpop.f32.mrb[0].mxu0
      %v2556 = vadd.f32 0.0, %v2555
      %v2557 = vpop.f32.mrb[0].mxu0
      %2558 = vmatprep.mubr.f32.mxu0 0.0
      %2559 = vmatmul.mubr.f32.gmra.mrb[0].mxu0 %v2393
      %v2560 = vpop.f32.mrb[0].mxu0
      %v2561 = vadd.f32 0.0, %v2560
      %v2562 = vpop.f32.mrb[0].mxu0
      %2563 = vmatprep.mubr.f32.mxu0 0.0
      %2564 = vmatmul.mubr.f32.gmra.mrb[0].mxu0 %v2396
      %v2565 = vpop.f32.mrb[0].mxu0
      %v2566 = vadd.f32 0.0, %v2565
      %v2567 = vpop.f32.mrb[0].mxu0
      %2568 = vmatprep.mubr.f32.mxu0 0.0
      %2569 = vmatmul.mubr.f32.gmra.mrb[0].mxu0 %v2399
      %v2570 = vpop.f32.mrb[0].mxu0
      %v2571 = vadd.f32 0.0, %v2570
      %v2572 = vpop.f32.mrb[0].mxu0
      %2573 = vmatprep.mubr.f32.mxu0 0.0
      %2574 = vmatmul.mubr.f32.gmra.mrb[0].mxu0 %v2402
      %v2575 = vpop.f32.mrb[0].mxu0
      %v2576 = vadd.f32 0.0, %v2575
      %v2577 = vpop.f32.mrb[0].mxu0
      %2578 = vmatprep.mubr.f32.mxu0 0.0
      %2579 = vmatmul.mubr.f32.gmra.mrb[0].mxu0 %v2405
      %v2580 = vpop.f32.mrb[0].mxu0
      %v2581 = vadd.f32 0.0, %v2580
      %v2582 = vpop.f32.mrb[0].mxu0
      %2583 = vmatprep.mubr.f32.mxu0 0.0
      %2584 = vmatmul.mubr.f32.gmra.mrb[0].mxu0 %v2408
      %v2585 = vpop.f32.mrb[0].mxu0
      %v2586 = vadd.f32 0.0, %v2585
      %v2587 = vpop.f32.mrb[0].mxu0
      %2588 = vmatprep.mubr.f32.mxu0 0.0
      %2589 = vmatmul.mubr.f32.gmra.mrb[0].mxu0 %v2411
      %v2590 = vpop.f32.mrb[0].mxu0
      %v2591 = vadd.f32 0.0, %v2590
      %v2592 = vpop.f32.mrb[0].mxu0
      %2593 = vmatprep.mubr.f32.mxu0 0.0
      %2594 = vmatmul.mubr.f32.gmra.mrb[0].mxu0 %v2414
      %v2595 = vpop.f32.mrb[0].mxu0
      %v2596 = vadd.f32 0.0, %v2595
      %v2597 = vpop.f32.mrb[0].mxu0
      %2598 = vmatprep.mubr.f32.mxu0 0.0
      %2599 = vmatmul.mubr.f32.gmra.mrb[0].mxu0 %v2417
      %v2600 = vpop.f32.mrb[0].mxu0
      %v2601 = vadd.f32 0.0, %v2600
      %v2602 = vpop.f32.mrb[0].mxu0
      %2603 = vmatprep.mubr.f32.mxu0 0.0
      %2604 = vmatmul.mubr.f32.gmra.mrb[0].mxu0 %v2420
      %v2605 = vpop.f32.mrb[0].mxu0
      %v2606 = vadd.f32 0.0, %v2605
      %v2607 = vpop.f32.mrb[0].mxu0
      %2608 = vmatprep.mubr.f32.mxu0 0.0
      %2609 = vmatmul.mubr.f32.gmra.mrb[0].mxu0 %v2423
      %v2610 = vpop.f32.mrb[0].mxu0
      %v2611 = vadd.f32 0.0, %v2610
      %v2612 = vpop.f32.mrb[0].mxu0
      %2613 = vmatprep.mubr.f32.mxu0 0.0
      %2614 = vmatmul.mubr.f32.gmra.mrb[0].mxu0 %v2426
      %v2615 = vpop.f32.mrb[0].mxu0
      %v2616 = vadd.f32 0.0, %v2615
      %v2617 = vpop.f32.mrb[0].mxu0
      %2618 = vmatprep.mubr.f32.mxu0 0.0
      %2619 = vmatmul.mubr.f32.gmra.mrb[0].mxu0 %v2429
      %v2620 = vpop.f32.mrb[0].mxu0
      %v2621 = vadd.f32 0.0, %v2620
      %v2622 = vpop.f32.mrb[0].mxu0
      %2623 = vmatprep.mubr.f32.mxu0 0.0
      %2624 = vmatmul.mubr.f32.gmra.mrb[0].mxu0 %v2432
      %v2625 = vpop.f32.mrb[0].mxu0
      %v2626 = vadd.f32 0.0, %v2625
      %v2627 = vpop.f32.mrb[0].mxu0
      %2628 = vmatprep.mubr.f32.mxu0 0.0
      %2629 = vmatmul.mubr.f32.gmra.mrb[0].mxu0 %v2435
      %v2630 = vpop.f32.mrb[0].mxu0
      %v2631 = vadd.f32 0.0, %v2630
      %v2632 = vpop.f32.mrb[0].mxu0
      %2633 = vmatprep.mubr.f32.mxu0 0.0
      %2634 = vmatmul.mubr.f32.gmra.mrb[0].mxu0 %v2438
      %v2635 = vpop.f32.mrb[0].mxu0
      %v2636 = vadd.f32 0.0, %v2635
      %v2637 = vpop.f32.mrb[0].mxu0
      %2638 = vmatprep.mubr.f32.mxu0 0.0
      %2639 = vmatmul.mubr.f32.gmra.mrb[0].mxu0 %v2441
      %v2640 = vpop.f32.mrb[0].mxu0
      %v2641 = vadd.f32 0.0, %v2640
      %v2642 = vpop.f32.mrb[0].mxu0
      %2643 = vmatprep.mubr.f32.mxu0 0.0
      %2644 = vmatmul.mubr.f32.gmra.mrb[0].mxu0 %v2444
      %v2645 = vpop.f32.mrb[0].mxu0
      %v2646 = vadd.f32 0.0, %v2645
      %v2647 = vpop.f32.mrb[0].mxu0
      %2648 = vmatprep.mubr.f32.mxu0 0.0
      %2649 = vmatmul.mubr.f32.gmra.mrb[0].mxu0 %v2447
      %v2650 = vpop.f32.mrb[0].mxu0
      %v2651 = vadd.f32 0.0, %v2650
      %v2652 = vpop.f32.mrb[0].mxu0
      %2653 = vmatprep.mubr.f32.mxu0 0.0
      %2654 = vmatmul.mubr.f32.gmra.mrb[0].mxu0 %v2450
      %v2655 = vpop.f32.mrb[0].mxu0
      %v2656 = vadd.f32 0.0, %v2655
      %v2657 = vpop.f32.mrb[0].mxu0
      %2658 = vmatprep.mubr.f32.mxu0 0.0
      %2659 = vmatmul.mubr.f32.gmra.mrb[0].mxu0 %v2453
      %v2660 = vpop.f32.mrb[0].mxu0
      %v2661 = vadd.f32 0.0, %v2660
      %v2662 = vpop.f32.mrb[0].mxu0
      %2663 = vmatprep.mubr.f32.mxu0 0.0
      %2664 = vmatmul.mubr.f32.gmra.mrb[0].mxu0 %v2456
      %v2665 = vpop.f32.mrb[0].mxu0
      %v2666 = vadd.f32 0.0, %v2665
      %v2667 = vpop.f32.mrb[0].mxu0
      %2668 = vmatprep.mubr.f32.mxu0 0.0
      %2669 = vmatmul.mubr.f32.gmra.mrb[0].mxu0 %v2459
      %v2670 = vpop.f32.mrb[0].mxu0
      %v2671 = vadd.f32 0.0, %v2670
      %v2672 = vpop.f32.mrb[0].mxu0
      %2673 = vmatprep.mubr.f32.mxu0 0.0
      %2674 = vmatmul.mubr.f32.gmra.mrb[0].mxu0 %v2462
      %v2675 = vpop.f32.mrb[0].mxu0
      %v2676 = vadd.f32 0.0, %v2675
      %v2677 = vpop.f32.mrb[0].mxu0
      %2678 = vmatprep.mubr.f32.mxu0 0.0
      %2679 = vmatmul.mubr.f32.gmra.mrb[0].mxu0 %v2465
      %v2680 = vpop.f32.mrb[0].mxu0
      %v2681 = vadd.f32 0.0, %v2680
      %v2682 = vpop.f32.mrb[0].mxu0
      %2683 = vmatprep.mubr.f32.mxu0 0.0
      %2684 = vmatmul.mubr.f32.gmra.mrb[0].mxu0 %v2468
      %v2685 = vpop.f32.mrb[0].mxu0
      %v2686 = vadd.f32 0.0, %v2685
      %v2687 = vpop.f32.mrb[0].mxu0
      %2688 = vmatprep.mubr.f32.mxu0 0.0
      %2689 = vmatmul.mubr.f32.gmra.mrb[0].mxu0 %v2471
      %v2690 = vpop.f32.mrb[0].mxu0
      %v2691 = vadd.f32 0.0, %v2690
      %v2692 = vpop.f32.mrb[0].mxu0
      %2693 = vmatprep.mubr.f32.mxu0 0.0
      %2694 = vmatmul.mubr.f32.gmra.mrb[0].mxu0 %v2474
      %v2695 = vpop.f32.mrb[0].mxu0
      %v2696 = vadd.f32 0.0, %v2695
      %v2697 = vpop.f32.mrb[0].mxu0
      %2698 = vmatprep.mubr.f32.mxu0 0.0
      %2699 = vmatmul.mubr.f32.gmra.mrb[0].mxu0 %v2477
      %v2700 = vpop.f32.mrb[0].mxu0
      %v2701 = vadd.f32 0.0, %v2700
      %v2702 = vpop.f32.mrb[0].mxu0
      %2703 = vdwg.mxu0
      %v2704 = vld [vmem:[%s5] sm:$0x1]
      %v2706 = vlaneseq
      %v2707 = vshrl.u32 %v2706, 7
      %v2708 = vsub.s32 0, %v2707
      %v2709 = vrot.slane %v2704, %v2708
      %v2711 = vadd.f32 %v2709, 0.0
      %v2712 = vadd.f32 %v2711, %v2546
      %v2713 = vadd.f32 %v2711, %v2551
      %v2714 = vadd.f32 %v2711, %v2556
      %v2715 = vadd.f32 %v2711, %v2561
      %v2716 = vadd.f32 %v2711, %v2566
      %v2717 = vadd.f32 %v2711, %v2571
      %v2718 = vadd.f32 %v2711, %v2576
      %v2719 = vadd.f32 %v2711, %v2581
      %v2720 = vadd.f32 %v2711, %v2586
      %v2721 = vadd.f32 %v2711, %v2591
      %v2722 = vadd.f32 %v2711, %v2596
      %v2723 = vadd.f32 %v2711, %v2601
      %v2724 = vadd.f32 %v2711, %v2606
      %v2725 = vadd.f32 %v2711, %v2611
      %v2726 = vadd.f32 %v2711, %v2616
      %v2727 = vadd.f32 %v2711, %v2621
      %v2728 = vadd.f32 %v2711, %v2626
      %v2729 = vadd.f32 %v2711, %v2631
      %v2730 = vadd.f32 %v2711, %v2636
      %v2731 = vadd.f32 %v2711, %v2641
      %v2732 = vadd.f32 %v2711, %v2646
      %v2733 = vadd.f32 %v2711, %v2651
      %v2734 = vadd.f32 %v2711, %v2656
      %v2735 = vadd.f32 %v2711, %v2661
      %v2736 = vadd.f32 %v2711, %v2666
      %v2737 = vadd.f32 %v2711, %v2671
      %v2738 = vadd.f32 %v2711, %v2676
      %v2739 = vadd.f32 %v2711, %v2681
      %v2768 = vrot.slane %v2546, 1
      %v2769 = vrot.slane %v2551, 1
      %v2770 = vsel %vm1120, %v2768, %v2769
      %v2771 = vrot.slane %v2556, 1
      %v2772 = vrot.slane %v2561, 1
      %v2773 = vsel %vm1120, %v2771, %v2772
      %v2774 = vrot.slane %v2566, 1
      %v2775 = vrot.slane %v2571, 1
      %v2776 = vsel %vm1120, %v2774, %v2775
      %v2777 = vrot.slane %v2576, 1
      %v2778 = vrot.slane %v2581, 1
      %v2779 = vsel %vm1120, %v2777, %v2778
      %v2780 = vrot.slane %v2586, 1
      %v2781 = vrot.slane %v2591, 1
      %v2782 = vsel %vm1120, %v2780, %v2781
      %v2783 = vrot.slane %v2596, 1
      %v2784 = vrot.slane %v2601, 1
      %v2785 = vsel %vm1120, %v2783, %v2784
      %v2786 = vrot.slane %v2606, 1
      %v2787 = vrot.slane %v2611, 1
      %v2788 = vsel %vm1120, %v2786, %v2787
      %v2789 = vrot.slane %v2616, 1
      %v2790 = vrot.slane %v2621, 1
      %v2791 = vsel %vm1120, %v2789, %v2790
      %v2792 = vrot.slane %v2626, 1
      %v2793 = vrot.slane %v2631, 1
      %v2794 = vsel %vm1120, %v2792, %v2793
      %v2795 = vrot.slane %v2636, 1
      %v2796 = vrot.slane %v2641, 1
      %v2797 = vsel %vm1120, %v2795, %v2796
      %v2798 = vrot.slane %v2646, 1
      %v2799 = vrot.slane %v2651, 1
      %v2800 = vsel %vm1120, %v2798, %v2799
      %v2801 = vrot.slane %v2656, 1
      %v2802 = vrot.slane %v2661, 1
      %v2803 = vsel %vm1120, %v2801, %v2802
      %v2804 = vrot.slane %v2666, 1
      %v2805 = vrot.slane %v2671, 1
      %v2806 = vsel %vm1120, %v2804, %v2805
      %v2807 = vrot.slane %v2676, 1
      %v2808 = vrot.slane %v2681, 1
      %v2809 = vsel %vm1120, %v2807, %v2808
      %2810 = vrot.lane.b32.xlu0 %v2770, 120
      %v2811 = vpop.permute.xlu0 %2810
      %2812 = vrot.lane.b32.xlu0 %v2769, 120
      %v2813 = vpop.permute.xlu0 %2812
      %2814 = vrot.lane.b32.xlu0 %v2773, 120
      %v2815 = vpop.permute.xlu0 %2814
      %2816 = vrot.lane.b32.xlu0 %v2772, 120
      %v2817 = vpop.permute.xlu0 %2816
      %2818 = vrot.lane.b32.xlu0 %v2776, 120
      %v2819 = vpop.permute.xlu0 %2818
      %2820 = vrot.lane.b32.xlu0 %v2775, 120
      %v2821 = vpop.permute.xlu0 %2820
      %2822 = vrot.lane.b32.xlu0 %v2779, 120
      %v2823 = vpop.permute.xlu0 %2822
      %2824 = vrot.lane.b32.xlu0 %v2778, 120
      %v2825 = vpop.permute.xlu0 %2824
      %2826 = vrot.lane.b32.xlu0 %v2782, 120
      %v2827 = vpop.permute.xlu0 %2826
      %2828 = vrot.lane.b32.xlu0 %v2781, 120
      %v2829 = vpop.permute.xlu0 %2828
      %2830 = vrot.lane.b32.xlu0 %v2785, 120
      %v2831 = vpop.permute.xlu0 %2830
      %2832 = vrot.lane.b32.xlu0 %v2784, 120
      %v2833 = vpop.permute.xlu0 %2832
      %2834 = vrot.lane.b32.xlu0 %v2788, 120
      %v2835 = vpop.permute.xlu0 %2834
      %2836 = vrot.lane.b32.xlu0 %v2787, 120
      %v2837 = vpop.permute.xlu0 %2836
      %2838 = vrot.lane.b32.xlu0 %v2791, 120
      %v2839 = vpop.permute.xlu0 %2838
      %2840 = vrot.lane.b32.xlu0 %v2790, 120
      %v2841 = vpop.permute.xlu0 %2840
      %2842 = vrot.lane.b32.xlu0 %v2794, 120
      %v2843 = vpop.permute.xlu0 %2842
      %2844 = vrot.lane.b32.xlu0 %v2793, 120
      %v2845 = vpop.permute.xlu0 %2844
      %2846 = vrot.lane.b32.xlu0 %v2797, 120
      %v2847 = vpop.permute.xlu0 %2846
      %2848 = vrot.lane.b32.xlu0 %v2796, 120
      %v2849 = vpop.permute.xlu0 %2848
      %2850 = vrot.lane.b32.xlu0 %v2800, 120
      %v2851 = vpop.permute.xlu0 %2850
      %2852 = vrot.lane.b32.xlu0 %v2799, 120
      %v2853 = vpop.permute.xlu0 %2852
      %2854 = vrot.lane.b32.xlu0 %v2803, 120
      %v2855 = vpop.permute.xlu0 %2854
      %2856 = vrot.lane.b32.xlu0 %v2802, 120
      %v2857 = vpop.permute.xlu0 %2856
      %2858 = vrot.lane.b32.xlu0 %v2806, 120
      %v2859 = vpop.permute.xlu0 %2858
      %2860 = vrot.lane.b32.xlu0 %v2805, 120
      %v2861 = vpop.permute.xlu0 %2860
      %2862 = vrot.lane.b32.xlu0 %v2809, 120
      %v2863 = vpop.permute.xlu0 %2862
      %2864 = vrot.lane.b32.xlu0 %v2808, 120
      %v2865 = vpop.permute.xlu0 %2864
      %v2894 = vadd.f32 %v2712, %v2811
      %v2895 = vadd.f32 %v2713, %v2813
      %v2896 = vadd.f32 %v2714, %v2815
      %v2897 = vadd.f32 %v2715, %v2817
      %v2898 = vadd.f32 %v2716, %v2819
      %v2899 = vadd.f32 %v2717, %v2821
      %v2900 = vadd.f32 %v2718, %v2823
      %v2901 = vadd.f32 %v2719, %v2825
      %v2902 = vadd.f32 %v2720, %v2827
      %v2903 = vadd.f32 %v2721, %v2829
      %v2904 = vadd.f32 %v2722, %v2831
      %v2905 = vadd.f32 %v2723, %v2833
      %v2906 = vadd.f32 %v2724, %v2835
      %v2907 = vadd.f32 %v2725, %v2837
      %v2908 = vadd.f32 %v2726, %v2839
      %v2909 = vadd.f32 %v2727, %v2841
      %v2910 = vadd.f32 %v2728, %v2843
      %v2911 = vadd.f32 %v2729, %v2845
      %v2912 = vadd.f32 %v2730, %v2847
      %v2913 = vadd.f32 %v2731, %v2849
      %v2914 = vadd.f32 %v2732, %v2851
      %v2915 = vadd.f32 %v2733, %v2853
      %v2916 = vadd.f32 %v2734, %v2855
      %v2917 = vadd.f32 %v2735, %v2857
      %v2918 = vadd.f32 %v2736, %v2859
      %v2919 = vadd.f32 %v2737, %v2861
      %v2920 = vadd.f32 %v2738, %v2863
      %v2921 = vadd.f32 %v2739, %v2865
      %v2922 = vrot.slane %v2546, 2
      %v2923 = vrot.slane %v2551, 2
      %v2924 = vsel %vm1275, %v2922, %v2923
      %v2925 = vrot.slane %v2556, 2
      %v2926 = vrot.slane %v2561, 2
      %v2927 = vsel %vm1275, %v2925, %v2926
      %v2928 = vrot.slane %v2566, 2
      %v2929 = vrot.slane %v2571, 2
      %v2930 = vsel %vm1275, %v2928, %v2929
      %v2931 = vrot.slane %v2576, 2
      %v2932 = vrot.slane %v2581, 2
      %v2933 = vsel %vm1275, %v2931, %v2932
      %v2934 = vrot.slane %v2586, 2
      %v2935 = vrot.slane %v2591, 2
      %v2936 = vsel %vm1275, %v2934, %v2935
      %v2937 = vrot.slane %v2596, 2
      %v2938 = vrot.slane %v2601, 2
      %v2939 = vsel %vm1275, %v2937, %v2938
      %v2940 = vrot.slane %v2606, 2
      %v2941 = vrot.slane %v2611, 2
      %v2942 = vsel %vm1275, %v2940, %v2941
      %v2943 = vrot.slane %v2616, 2
      %v2944 = vrot.slane %v2621, 2
      %v2945 = vsel %vm1275, %v2943, %v2944
      %v2946 = vrot.slane %v2626, 2
      %v2947 = vrot.slane %v2631, 2
      %v2948 = vsel %vm1275, %v2946, %v2947
      %v2949 = vrot.slane %v2636, 2
      %v2950 = vrot.slane %v2641, 2
      %v2951 = vsel %vm1275, %v2949, %v2950
      %v2952 = vrot.slane %v2646, 2
      %v2953 = vrot.slane %v2651, 2
      %v2954 = vsel %vm1275, %v2952, %v2953
      %v2955 = vrot.slane %v2656, 2
      %v2956 = vrot.slane %v2661, 2
      %v2957 = vsel %vm1275, %v2955, %v2956
      %v2958 = vrot.slane %v2666, 2
      %v2959 = vrot.slane %v2671, 2
      %v2960 = vsel %vm1275, %v2958, %v2959
      %v2961 = vrot.slane %v2676, 2
      %v2962 = vrot.slane %v2681, 2
      %v2963 = vsel %vm1275, %v2961, %v2962
      %2964 = vrot.lane.b32.xlu0 %v2924, 112
      %v2965 = vpop.permute.xlu0 %2964
      %2966 = vrot.lane.b32.xlu0 %v2923, 112
      %v2967 = vpop.permute.xlu0 %2966
      %2968 = vrot.lane.b32.xlu0 %v2927, 112
      %v2969 = vpop.permute.xlu0 %2968
      %2970 = vrot.lane.b32.xlu0 %v2926, 112
      %v2971 = vpop.permute.xlu0 %2970
      %2972 = vrot.lane.b32.xlu0 %v2930, 112
      %v2973 = vpop.permute.xlu0 %2972
      %2974 = vrot.lane.b32.xlu0 %v2929, 112
      %v2975 = vpop.permute.xlu0 %2974
      %2976 = vrot.lane.b32.xlu0 %v2933, 112
      %v2977 = vpop.permute.xlu0 %2976
      %2978 = vrot.lane.b32.xlu0 %v2932, 112
      %v2979 = vpop.permute.xlu0 %2978
      %2980 = vrot.lane.b32.xlu0 %v2936, 112
      %v2981 = vpop.permute.xlu0 %2980
      %2982 = vrot.lane.b32.xlu0 %v2935, 112
      %v2983 = vpop.permute.xlu0 %2982
      %2984 = vrot.lane.b32.xlu0 %v2939, 112
      %v2985 = vpop.permute.xlu0 %2984
      %2986 = vrot.lane.b32.xlu0 %v2938, 112
      %v2987 = vpop.permute.xlu0 %2986
      %2988 = vrot.lane.b32.xlu0 %v2942, 112
      %v2989 = vpop.permute.xlu0 %2988
      %2990 = vrot.lane.b32.xlu0 %v2941, 112
      %v2991 = vpop.permute.xlu0 %2990
      %2992 = vrot.lane.b32.xlu0 %v2945, 112
      %v2993 = vpop.permute.xlu0 %2992
      %2994 = vrot.lane.b32.xlu0 %v2944, 112
      %v2995 = vpop.permute.xlu0 %2994
      %2996 = vrot.lane.b32.xlu0 %v2948, 112
      %v2997 = vpop.permute.xlu0 %2996
      %2998 = vrot.lane.b32.xlu0 %v2947, 112
      %v2999 = vpop.permute.xlu0 %2998
      %3000 = vrot.lane.b32.xlu0 %v2951, 112
      %v3001 = vpop.permute.xlu0 %3000
      %3002 = vrot.lane.b32.xlu0 %v2950, 112
      %v3003 = vpop.permute.xlu0 %3002
      %3004 = vrot.lane.b32.xlu0 %v2954, 112
      %v3005 = vpop.permute.xlu0 %3004
      %3006 = vrot.lane.b32.xlu0 %v2953, 112
      %v3007 = vpop.permute.xlu0 %3006
      %3008 = vrot.lane.b32.xlu0 %v2957, 112
      %v3009 = vpop.permute.xlu0 %3008
      %3010 = vrot.lane.b32.xlu0 %v2956, 112
      %v3011 = vpop.permute.xlu0 %3010
      %3012 = vrot.lane.b32.xlu0 %v2960, 112
      %v3013 = vpop.permute.xlu0 %3012
      %3014 = vrot.lane.b32.xlu0 %v2959, 112
      %v3015 = vpop.permute.xlu0 %3014
      %3016 = vrot.lane.b32.xlu0 %v2963, 112
      %v3017 = vpop.permute.xlu0 %3016
      %3018 = vrot.lane.b32.xlu0 %v2962, 112
      %v3019 = vpop.permute.xlu0 %3018
      %v3048 = vadd.f32 %v2894, %v2965
      %v3049 = vadd.f32 %v2895, %v2967
      %v3050 = vadd.f32 %v2896, %v2969
      %v3051 = vadd.f32 %v2897, %v2971
      %v3052 = vadd.f32 %v2898, %v2973
      %v3053 = vadd.f32 %v2899, %v2975
      %v3054 = vadd.f32 %v2900, %v2977
      %v3055 = vadd.f32 %v2901, %v2979
      %v3056 = vadd.f32 %v2902, %v2981
      %v3057 = vadd.f32 %v2903, %v2983
      %v3058 = vadd.f32 %v2904, %v2985
      %v3059 = vadd.f32 %v2905, %v2987
      %v3060 = vadd.f32 %v2906, %v2989
      %v3061 = vadd.f32 %v2907, %v2991
      %v3062 = vadd.f32 %v2908, %v2993
      %v3063 = vadd.f32 %v2909, %v2995
      %v3064 = vadd.f32 %v2910, %v2997
      %v3065 = vadd.f32 %v2911, %v2999
      %v3066 = vadd.f32 %v2912, %v3001
      %v3067 = vadd.f32 %v2913, %v3003
      %v3068 = vadd.f32 %v2914, %v3005
      %v3069 = vadd.f32 %v2915, %v3007
      %v3070 = vadd.f32 %v2916, %v3009
      %v3071 = vadd.f32 %v2917, %v3011
      %v3072 = vadd.f32 %v2918, %v3013
      %v3073 = vadd.f32 %v2919, %v3015
      %v3074 = vadd.f32 %v2920, %v3017
      %v3075 = vadd.f32 %v2921, %v3019
      %3078 = vrot.lane.b32.xlu0 %v2556, 104
      %v3079 = vpop.permute.xlu0 %3078
      %3080 = vrot.lane.b32.xlu0 %v2561, 104
      %v3081 = vpop.permute.xlu0 %3080
      %3082 = vrot.lane.b32.xlu0 %v2566, 104
      %v3083 = vpop.permute.xlu0 %3082
      %3084 = vrot.lane.b32.xlu0 %v2571, 104
      %v3085 = vpop.permute.xlu0 %3084
      %3086 = vrot.lane.b32.xlu0 %v2576, 104
      %v3087 = vpop.permute.xlu0 %3086
      %3088 = vrot.lane.b32.xlu0 %v2581, 104
      %v3089 = vpop.permute.xlu0 %3088
      %3090 = vrot.lane.b32.xlu0 %v2586, 104
      %v3091 = vpop.permute.xlu0 %3090
      %3092 = vrot.lane.b32.xlu0 %v2591, 104
      %v3093 = vpop.permute.xlu0 %3092
      %3094 = vrot.lane.b32.xlu0 %v2596, 104
      %v3095 = vpop.permute.xlu0 %3094
      %3096 = vrot.lane.b32.xlu0 %v2601, 104
      %v3097 = vpop.permute.xlu0 %3096
      %3098 = vrot.lane.b32.xlu0 %v2606, 104
      %v3099 = vpop.permute.xlu0 %3098
      %3100 = vrot.lane.b32.xlu0 %v2611, 104
      %v3101 = vpop.permute.xlu0 %3100
      %3102 = vrot.lane.b32.xlu0 %v2616, 104
      %v3103 = vpop.permute.xlu0 %3102
      %3104 = vrot.lane.b32.xlu0 %v2621, 104
      %v3105 = vpop.permute.xlu0 %3104
      %3106 = vrot.lane.b32.xlu0 %v2626, 104
      %v3107 = vpop.permute.xlu0 %3106
      %3108 = vrot.lane.b32.xlu0 %v2631, 104
      %v3109 = vpop.permute.xlu0 %3108
      %3110 = vrot.lane.b32.xlu0 %v2636, 104
      %v3111 = vpop.permute.xlu0 %3110
      %3112 = vrot.lane.b32.xlu0 %v2641, 104
      %v3113 = vpop.permute.xlu0 %3112
      %3114 = vrot.lane.b32.xlu0 %v2646, 104
      %v3115 = vpop.permute.xlu0 %3114
      %3116 = vrot.lane.b32.xlu0 %v2651, 104
      %v3117 = vpop.permute.xlu0 %3116
      %3118 = vrot.lane.b32.xlu0 %v2656, 104
      %v3119 = vpop.permute.xlu0 %3118
      %3120 = vrot.lane.b32.xlu0 %v2661, 104
      %v3121 = vpop.permute.xlu0 %3120
      %3122 = vrot.lane.b32.xlu0 %v2666, 104
      %v3123 = vpop.permute.xlu0 %3122
      %3124 = vrot.lane.b32.xlu0 %v2671, 104
      %v3125 = vpop.permute.xlu0 %3124
      %3126 = vrot.lane.b32.xlu0 %v2676, 104
      %v3127 = vpop.permute.xlu0 %3126
      %3128 = vrot.lane.b32.xlu0 %v2681, 104
      %v3129 = vpop.permute.xlu0 %3128
      %3130 = vrot.lane.b32.xlu0 %v2686, 104
      %v3131 = vpop.permute.xlu0 %3130
      %3132 = vrot.lane.b32.xlu0 %v2691, 104
      %v3133 = vpop.permute.xlu0 %3132
      %v3162 = vadd.f32 %v3048, %v3079
      %v3163 = vadd.f32 %v3049, %v3081
      %v3164 = vadd.f32 %v3050, %v3083
      %v3165 = vadd.f32 %v3051, %v3085
      %v3166 = vadd.f32 %v3052, %v3087
      %v3167 = vadd.f32 %v3053, %v3089
      %v3168 = vadd.f32 %v3054, %v3091
      %v3169 = vadd.f32 %v3055, %v3093
      %v3170 = vadd.f32 %v3056, %v3095
      %v3171 = vadd.f32 %v3057, %v3097
      %v3172 = vadd.f32 %v3058, %v3099
      %v3173 = vadd.f32 %v3059, %v3101
      %v3174 = vadd.f32 %v3060, %v3103
      %v3175 = vadd.f32 %v3061, %v3105
      %v3176 = vadd.f32 %v3062, %v3107
      %v3177 = vadd.f32 %v3063, %v3109
      %v3178 = vadd.f32 %v3064, %v3111
      %v3179 = vadd.f32 %v3065, %v3113
      %v3180 = vadd.f32 %v3066, %v3115
      %v3181 = vadd.f32 %v3067, %v3117
      %v3182 = vadd.f32 %v3068, %v3119
      %v3183 = vadd.f32 %v3069, %v3121
      %v3184 = vadd.f32 %v3070, %v3123
      %v3185 = vadd.f32 %v3071, %v3125
      %v3186 = vadd.f32 %v3072, %v3127
      %v3187 = vadd.f32 %v3073, %v3129
      %v3188 = vadd.f32 %v3074, %v3131
      %v3189 = vadd.f32 %v3075, %v3133
      %v3190 = vrot.slane %v2686, 1
      %v3191 = vrot.slane %v2691, 1
      %v3192 = vsel %vm1120, %v3190, %v3191
      %3193 = vrot.lane.b32.xlu0 %v2773, 96
      %v3194 = vpop.permute.xlu0 %3193
      %3195 = vrot.lane.b32.xlu0 %v2772, 96
      %v3196 = vpop.permute.xlu0 %3195
      %3197 = vrot.lane.b32.xlu0 %v2776, 96
      %v3198 = vpop.permute.xlu0 %3197
      %3199 = vrot.lane.b32.xlu0 %v2775, 96
      %v3200 = vpop.permute.xlu0 %3199
      %3201 = vrot.lane.b32.xlu0 %v2779, 96
      %v3202 = vpop.permute.xlu0 %3201
      %3203 = vrot.lane.b32.xlu0 %v2778, 96
      %v3204 = vpop.permute.xlu0 %3203
      %3205 = vrot.lane.b32.xlu0 %v2782, 96
      %v3206 = vpop.permute.xlu0 %3205
      %3207 = vrot.lane.b32.xlu0 %v2781, 96
      %v3208 = vpop.permute.xlu0 %3207
      %3209 = vrot.lane.b32.xlu0 %v2785, 96
      %v3210 = vpop.permute.xlu0 %3209
      %3211 = vrot.lane.b32.xlu0 %v2784, 96
      %v3212 = vpop.permute.xlu0 %3211
      %3213 = vrot.lane.b32.xlu0 %v2788, 96
      %v3214 = vpop.permute.xlu0 %3213
      %3215 = vrot.lane.b32.xlu0 %v2787, 96
      %v3216 = vpop.permute.xlu0 %3215
      %3217 = vrot.lane.b32.xlu0 %v2791, 96
      %v3218 = vpop.permute.xlu0 %3217
      %3219 = vrot.lane.b32.xlu0 %v2790, 96
      %v3220 = vpop.permute.xlu0 %3219
      %3221 = vrot.lane.b32.xlu0 %v2794, 96
      %v3222 = vpop.permute.xlu0 %3221
      %3223 = vrot.lane.b32.xlu0 %v2793, 96
      %v3224 = vpop.permute.xlu0 %3223
      %3225 = vrot.lane.b32.xlu0 %v2797, 96
      %v3226 = vpop.permute.xlu0 %3225
      %3227 = vrot.lane.b32.xlu0 %v2796, 96
      %v3228 = vpop.permute.xlu0 %3227
      %3229 = vrot.lane.b32.xlu0 %v2800, 96
      %v3230 = vpop.permute.xlu0 %3229
      %3231 = vrot.lane.b32.xlu0 %v2799, 96
      %v3232 = vpop.permute.xlu0 %3231
      %3233 = vrot.lane.b32.xlu0 %v2803, 96
      %v3234 = vpop.permute.xlu0 %3233
      %3235 = vrot.lane.b32.xlu0 %v2802, 96
      %v3236 = vpop.permute.xlu0 %3235
      %3237 = vrot.lane.b32.xlu0 %v2806, 96
      %v3238 = vpop.permute.xlu0 %3237
      %3239 = vrot.lane.b32.xlu0 %v2805, 96
      %v3240 = vpop.permute.xlu0 %3239
      %3241 = vrot.lane.b32.xlu0 %v2809, 96
      %v3242 = vpop.permute.xlu0 %3241
      %3243 = vrot.lane.b32.xlu0 %v2808, 96
      %v3244 = vpop.permute.xlu0 %3243
      %3245 = vrot.lane.b32.xlu0 %v3192, 96
      %v3246 = vpop.permute.xlu0 %3245
      %3247 = vrot.lane.b32.xlu0 %v3191, 96
      %v3248 = vpop.permute.xlu0 %3247
      %v3277 = vadd.f32 %v3162, %v3194
      %v3278 = vadd.f32 %v3163, %v3196
      %v3279 = vadd.f32 %v3164, %v3198
      %v3280 = vadd.f32 %v3165, %v3200
      %v3281 = vadd.f32 %v3166, %v3202
      %v3282 = vadd.f32 %v3167, %v3204
      %v3283 = vadd.f32 %v3168, %v3206
      %v3284 = vadd.f32 %v3169, %v3208
      %v3285 = vadd.f32 %v3170, %v3210
      %v3286 = vadd.f32 %v3171, %v3212
      %v3287 = vadd.f32 %v3172, %v3214
      %v3288 = vadd.f32 %v3173, %v3216
      %v3289 = vadd.f32 %v3174, %v3218
      %v3290 = vadd.f32 %v3175, %v3220
      %v3291 = vadd.f32 %v3176, %v3222
      %v3292 = vadd.f32 %v3177, %v3224
      %v3293 = vadd.f32 %v3178, %v3226
      %v3294 = vadd.f32 %v3179, %v3228
      %v3295 = vadd.f32 %v3180, %v3230
      %v3296 = vadd.f32 %v3181, %v3232
      %v3297 = vadd.f32 %v3182, %v3234
      %v3298 = vadd.f32 %v3183, %v3236
      %v3299 = vadd.f32 %v3184, %v3238
      %v3300 = vadd.f32 %v3185, %v3240
      %v3301 = vadd.f32 %v3186, %v3242
      %v3302 = vadd.f32 %v3187, %v3244
      %v3303 = vadd.f32 %v3188, %v3246
      %v3304 = vadd.f32 %v3189, %v3248
      %v3305 = vrot.slane %v2686, 2
      %v3306 = vrot.slane %v2691, 2
      %v3307 = vsel %vm1275, %v3305, %v3306
      %3308 = vrot.lane.b32.xlu0 %v2927, 88
      %v3309 = vpop.permute.xlu0 %3308
      %3310 = vrot.lane.b32.xlu0 %v2926, 88
      %v3311 = vpop.permute.xlu0 %3310
      %3312 = vrot.lane.b32.xlu0 %v2930, 88
      %v3313 = vpop.permute.xlu0 %3312
      %3314 = vrot.lane.b32.xlu0 %v2929, 88
      %v3315 = vpop.permute.xlu0 %3314
      %3316 = vrot.lane.b32.xlu0 %v2933, 88
      %v3317 = vpop.permute.xlu0 %3316
      %3318 = vrot.lane.b32.xlu0 %v2932, 88
      %v3319 = vpop.permute.xlu0 %3318
      %3320 = vrot.lane.b32.xlu0 %v2936, 88
      %v3321 = vpop.permute.xlu0 %3320
      %3322 = vrot.lane.b32.xlu0 %v2935, 88
      %v3323 = vpop.permute.xlu0 %3322
      %3324 = vrot.lane.b32.xlu0 %v2939, 88
      %v3325 = vpop.permute.xlu0 %3324
      %3326 = vrot.lane.b32.xlu0 %v2938, 88
      %v3327 = vpop.permute.xlu0 %3326
      %3328 = vrot.lane.b32.xlu0 %v2942, 88
      %v3329 = vpop.permute.xlu0 %3328
      %3330 = vrot.lane.b32.xlu0 %v2941, 88
      %v3331 = vpop.permute.xlu0 %3330
      %3332 = vrot.lane.b32.xlu0 %v2945, 88
      %v3333 = vpop.permute.xlu0 %3332
      %3334 = vrot.lane.b32.xlu0 %v2944, 88
      %v3335 = vpop.permute.xlu0 %3334
      %3336 = vrot.lane.b32.xlu0 %v2948, 88
      %v3337 = vpop.permute.xlu0 %3336
      %3338 = vrot.lane.b32.xlu0 %v2947, 88
      %v3339 = vpop.permute.xlu0 %3338
      %3340 = vrot.lane.b32.xlu0 %v2951, 88
      %v3341 = vpop.permute.xlu0 %3340
      %3342 = vrot.lane.b32.xlu0 %v2950, 88
      %v3343 = vpop.permute.xlu0 %3342
      %3344 = vrot.lane.b32.xlu0 %v2954, 88
      %v3345 = vpop.permute.xlu0 %3344
      %3346 = vrot.lane.b32.xlu0 %v2953, 88
      %v3347 = vpop.permute.xlu0 %3346
      %3348 = vrot.lane.b32.xlu0 %v2957, 88
      %v3349 = vpop.permute.xlu0 %3348
      %3350 = vrot.lane.b32.xlu0 %v2956, 88
      %v3351 = vpop.permute.xlu0 %3350
      %3352 = vrot.lane.b32.xlu0 %v2960, 88
      %v3353 = vpop.permute.xlu0 %3352
      %3354 = vrot.lane.b32.xlu0 %v2959, 88
      %v3355 = vpop.permute.xlu0 %3354
      %3356 = vrot.lane.b32.xlu0 %v2963, 88
      %v3357 = vpop.permute.xlu0 %3356
      %3358 = vrot.lane.b32.xlu0 %v2962, 88
      %v3359 = vpop.permute.xlu0 %3358
      %3360 = vrot.lane.b32.xlu0 %v3307, 88
      %v3361 = vpop.permute.xlu0 %3360
      %3362 = vrot.lane.b32.xlu0 %v3306, 88
      %v3363 = vpop.permute.xlu0 %3362
      %v3392 = vadd.f32 %v3277, %v3309
      %v3393 = vadd.f32 %v3278, %v3311
      %v3394 = vadd.f32 %v3279, %v3313
      %v3395 = vadd.f32 %v3280, %v3315
      %v3396 = vadd.f32 %v3281, %v3317
      %v3397 = vadd.f32 %v3282, %v3319
      %v3398 = vadd.f32 %v3283, %v3321
      %v3399 = vadd.f32 %v3284, %v3323
      %v3400 = vadd.f32 %v3285, %v3325
      %v3401 = vadd.f32 %v3286, %v3327
      %v3402 = vadd.f32 %v3287, %v3329
      %v3403 = vadd.f32 %v3288, %v3331
      %v3404 = vadd.f32 %v3289, %v3333
      %v3405 = vadd.f32 %v3290, %v3335
      %v3406 = vadd.f32 %v3291, %v3337
      %v3407 = vadd.f32 %v3292, %v3339
      %v3408 = vadd.f32 %v3293, %v3341
      %v3409 = vadd.f32 %v3294, %v3343
      %v3410 = vadd.f32 %v3295, %v3345
      %v3411 = vadd.f32 %v3296, %v3347
      %v3412 = vadd.f32 %v3297, %v3349
      %v3413 = vadd.f32 %v3298, %v3351
      %v3414 = vadd.f32 %v3299, %v3353
      %v3415 = vadd.f32 %v3300, %v3355
      %v3416 = vadd.f32 %v3301, %v3357
      %v3417 = vadd.f32 %v3302, %v3359
      %v3418 = vadd.f32 %v3303, %v3361
      %v3419 = vadd.f32 %v3304, %v3363
      %3422 = vrot.lane.b32.xlu0 %v2566, 80
      %v3423 = vpop.permute.xlu0 %3422
      %3424 = vrot.lane.b32.xlu0 %v2571, 80
      %v3425 = vpop.permute.xlu0 %3424
      %3426 = vrot.lane.b32.xlu0 %v2576, 80
      %v3427 = vpop.permute.xlu0 %3426
      %3428 = vrot.lane.b32.xlu0 %v2581, 80
      %v3429 = vpop.permute.xlu0 %3428
      %3430 = vrot.lane.b32.xlu0 %v2586, 80
      %v3431 = vpop.permute.xlu0 %3430
      %3432 = vrot.lane.b32.xlu0 %v2591, 80
      %v3433 = vpop.permute.xlu0 %3432
      %3434 = vrot.lane.b32.xlu0 %v2596, 80
      %v3435 = vpop.permute.xlu0 %3434
      %3436 = vrot.lane.b32.xlu0 %v2601, 80
      %v3437 = vpop.permute.xlu0 %3436
      %3438 = vrot.lane.b32.xlu0 %v2606, 80
      %v3439 = vpop.permute.xlu0 %3438
      %3440 = vrot.lane.b32.xlu0 %v2611, 80
      %v3441 = vpop.permute.xlu0 %3440
      %3442 = vrot.lane.b32.xlu0 %v2616, 80
      %v3443 = vpop.permute.xlu0 %3442
      %3444 = vrot.lane.b32.xlu0 %v2621, 80
      %v3445 = vpop.permute.xlu0 %3444
      %3446 = vrot.lane.b32.xlu0 %v2626, 80
      %v3447 = vpop.permute.xlu0 %3446
      %3448 = vrot.lane.b32.xlu0 %v2631, 80
      %v3449 = vpop.permute.xlu0 %3448
      %3450 = vrot.lane.b32.xlu0 %v2636, 80
      %v3451 = vpop.permute.xlu0 %3450
      %3452 = vrot.lane.b32.xlu0 %v2641, 80
      %v3453 = vpop.permute.xlu0 %3452
      %3454 = vrot.lane.b32.xlu0 %v2646, 80
      %v3455 = vpop.permute.xlu0 %3454
      %3456 = vrot.lane.b32.xlu0 %v2651, 80
      %v3457 = vpop.permute.xlu0 %3456
      %3458 = vrot.lane.b32.xlu0 %v2656, 80
      %v3459 = vpop.permute.xlu0 %3458
      %3460 = vrot.lane.b32.xlu0 %v2661, 80
      %v3461 = vpop.permute.xlu0 %3460
      %3462 = vrot.lane.b32.xlu0 %v2666, 80
      %v3463 = vpop.permute.xlu0 %3462
      %3464 = vrot.lane.b32.xlu0 %v2671, 80
      %v3465 = vpop.permute.xlu0 %3464
      %3466 = vrot.lane.b32.xlu0 %v2676, 80
      %v3467 = vpop.permute.xlu0 %3466
      %3468 = vrot.lane.b32.xlu0 %v2681, 80
      %v3469 = vpop.permute.xlu0 %3468
      %3470 = vrot.lane.b32.xlu0 %v2686, 80
      %v3471 = vpop.permute.xlu0 %3470
      %3472 = vrot.lane.b32.xlu0 %v2691, 80
      %v3473 = vpop.permute.xlu0 %3472
      %3474 = vrot.lane.b32.xlu0 %v2696, 80
      %v3475 = vpop.permute.xlu0 %3474
      %3476 = vrot.lane.b32.xlu0 %v2701, 80
      %v3477 = vpop.permute.xlu0 %3476
      %v3506 = vadd.f32 %v3392, %v3423
      %v3507 = vadd.f32 %v3393, %v3425
      %v3508 = vadd.f32 %v3394, %v3427
      %v3509 = vadd.f32 %v3395, %v3429
      %v3510 = vadd.f32 %v3396, %v3431
      %v3511 = vadd.f32 %v3397, %v3433
      %v3512 = vadd.f32 %v3398, %v3435
      %v3513 = vadd.f32 %v3399, %v3437
      %v3514 = vadd.f32 %v3400, %v3439
      %v3515 = vadd.f32 %v3401, %v3441
      %v3516 = vadd.f32 %v3402, %v3443
      %v3517 = vadd.f32 %v3403, %v3445
      %v3518 = vadd.f32 %v3404, %v3447
      %v3519 = vadd.f32 %v3405, %v3449
      %v3520 = vadd.f32 %v3406, %v3451
      %v3521 = vadd.f32 %v3407, %v3453
      %v3522 = vadd.f32 %v3408, %v3455
      %v3523 = vadd.f32 %v3409, %v3457
      %v3524 = vadd.f32 %v3410, %v3459
      %v3525 = vadd.f32 %v3411, %v3461
      %v3526 = vadd.f32 %v3412, %v3463
      %v3527 = vadd.f32 %v3413, %v3465
      %v3528 = vadd.f32 %v3414, %v3467
      %v3529 = vadd.f32 %v3415, %v3469
      %v3530 = vadd.f32 %v3416, %v3471
      %v3531 = vadd.f32 %v3417, %v3473
      %v3532 = vadd.f32 %v3418, %v3475
      %v3533 = vadd.f32 %v3419, %v3477
      %v3534 = vrot.slane %v2696, 1
      %v3535 = vrot.slane %v2701, 1
      %v3536 = vsel %vm1120, %v3534, %v3535
      %3537 = vrot.lane.b32.xlu0 %v2776, 72
      %v3538 = vpop.permute.xlu0 %3537
      %3539 = vrot.lane.b32.xlu0 %v2775, 72
      %v3540 = vpop.permute.xlu0 %3539
      %3541 = vrot.lane.b32.xlu0 %v2779, 72
      %v3542 = vpop.permute.xlu0 %3541
      %3543 = vrot.lane.b32.xlu0 %v2778, 72
      %v3544 = vpop.permute.xlu0 %3543
      %3545 = vrot.lane.b32.xlu0 %v2782, 72
      %v3546 = vpop.permute.xlu0 %3545
      %3547 = vrot.lane.b32.xlu0 %v2781, 72
      %v3548 = vpop.permute.xlu0 %3547
      %3549 = vrot.lane.b32.xlu0 %v2785, 72
      %v3550 = vpop.permute.xlu0 %3549
      %3551 = vrot.lane.b32.xlu0 %v2784, 72
      %v3552 = vpop.permute.xlu0 %3551
      %3553 = vrot.lane.b32.xlu0 %v2788, 72
      %v3554 = vpop.permute.xlu0 %3553
      %3555 = vrot.lane.b32.xlu0 %v2787, 72
      %v3556 = vpop.permute.xlu0 %3555
      %3557 = vrot.lane.b32.xlu0 %v2791, 72
      %v3558 = vpop.permute.xlu0 %3557
      %3559 = vrot.lane.b32.xlu0 %v2790, 72
      %v3560 = vpop.permute.xlu0 %3559
      %3561 = vrot.lane.b32.xlu0 %v2794, 72
      %v3562 = vpop.permute.xlu0 %3561
      %3563 = vrot.lane.b32.xlu0 %v2793, 72
      %v3564 = vpop.permute.xlu0 %3563
      %3565 = vrot.lane.b32.xlu0 %v2797, 72
      %v3566 = vpop.permute.xlu0 %3565
      %3567 = vrot.lane.b32.xlu0 %v2796, 72
      %v3568 = vpop.permute.xlu0 %3567
      %3569 = vrot.lane.b32.xlu0 %v2800, 72
      %v3570 = vpop.permute.xlu0 %3569
      %3571 = vrot.lane.b32.xlu0 %v2799, 72
      %v3572 = vpop.permute.xlu0 %3571
      %3573 = vrot.lane.b32.xlu0 %v2803, 72
      %v3574 = vpop.permute.xlu0 %3573
      %3575 = vrot.lane.b32.xlu0 %v2802, 72
      %v3576 = vpop.permute.xlu0 %3575
      %3577 = vrot.lane.b32.xlu0 %v2806, 72
      %v3578 = vpop.permute.xlu0 %3577
      %3579 = vrot.lane.b32.xlu0 %v2805, 72
      %v3580 = vpop.permute.xlu0 %3579
      %3581 = vrot.lane.b32.xlu0 %v2809, 72
      %v3582 = vpop.permute.xlu0 %3581
      %3583 = vrot.lane.b32.xlu0 %v2808, 72
      %v3584 = vpop.permute.xlu0 %3583
      %3585 = vrot.lane.b32.xlu0 %v3192, 72
      %v3586 = vpop.permute.xlu0 %3585
      %3587 = vrot.lane.b32.xlu0 %v3191, 72
      %v3588 = vpop.permute.xlu0 %3587
      %3589 = vrot.lane.b32.xlu0 %v3536, 72
      %v3590 = vpop.permute.xlu0 %3589
      %3591 = vrot.lane.b32.xlu0 %v3535, 72
      %v3592 = vpop.permute.xlu0 %3591
      %v3621 = vadd.f32 %v3506, %v3538
      %v3622 = vadd.f32 %v3507, %v3540
      %v3623 = vadd.f32 %v3508, %v3542
      %v3624 = vadd.f32 %v3509, %v3544
      %v3625 = vadd.f32 %v3510, %v3546
      %v3626 = vadd.f32 %v3511, %v3548
      %v3627 = vadd.f32 %v3512, %v3550
      %v3628 = vadd.f32 %v3513, %v3552
      %v3629 = vadd.f32 %v3514, %v3554
      %v3630 = vadd.f32 %v3515, %v3556
      %v3631 = vadd.f32 %v3516, %v3558
      %v3632 = vadd.f32 %v3517, %v3560
      %v3633 = vadd.f32 %v3518, %v3562
      %v3634 = vadd.f32 %v3519, %v3564
      %v3635 = vadd.f32 %v3520, %v3566
      %v3636 = vadd.f32 %v3521, %v3568
      %v3637 = vadd.f32 %v3522, %v3570
      %v3638 = vadd.f32 %v3523, %v3572
      %v3639 = vadd.f32 %v3524, %v3574
      %v3640 = vadd.f32 %v3525, %v3576
      %v3641 = vadd.f32 %v3526, %v3578
      %v3642 = vadd.f32 %v3527, %v3580
      %v3643 = vadd.f32 %v3528, %v3582
      %v3644 = vadd.f32 %v3529, %v3584
      %v3645 = vadd.f32 %v3530, %v3586
      %v3646 = vadd.f32 %v3531, %v3588
      %v3647 = vadd.f32 %v3532, %v3590
      %v3648 = vadd.f32 %v3533, %v3592
      %v3649 = vrot.slane %v2696, 2
      %v3650 = vrot.slane %v2701, 2
      %v3651 = vsel %vm1275, %v3649, %v3650
      %3652 = vrot.lane.b32.xlu0 %v2930, 64
      %v3653 = vpop.permute.xlu0 %3652
      %3654 = vrot.lane.b32.xlu0 %v2929, 64
      %v3655 = vpop.permute.xlu0 %3654
      %3656 = vrot.lane.b32.xlu0 %v2933, 64
      %v3657 = vpop.permute.xlu0 %3656
      %3658 = vrot.lane.b32.xlu0 %v2932, 64
      %v3659 = vpop.permute.xlu0 %3658
      %3660 = vrot.lane.b32.xlu0 %v2936, 64
      %v3661 = vpop.permute.xlu0 %3660
      %3662 = vrot.lane.b32.xlu0 %v2935, 64
      %v3663 = vpop.permute.xlu0 %3662
      %3664 = vrot.lane.b32.xlu0 %v2939, 64
      %v3665 = vpop.permute.xlu0 %3664
      %3666 = vrot.lane.b32.xlu0 %v2938, 64
      %v3667 = vpop.permute.xlu0 %3666
      %3668 = vrot.lane.b32.xlu0 %v2942, 64
      %v3669 = vpop.permute.xlu0 %3668
      %3670 = vrot.lane.b32.xlu0 %v2941, 64
      %v3671 = vpop.permute.xlu0 %3670
      %3672 = vrot.lane.b32.xlu0 %v2945, 64
      %v3673 = vpop.permute.xlu0 %3672
      %3674 = vrot.lane.b32.xlu0 %v2944, 64
      %v3675 = vpop.permute.xlu0 %3674
      %3676 = vrot.lane.b32.xlu0 %v2948, 64
      %v3677 = vpop.permute.xlu0 %3676
      %3678 = vrot.lane.b32.xlu0 %v2947, 64
      %v3679 = vpop.permute.xlu0 %3678
      %3680 = vrot.lane.b32.xlu0 %v2951, 64
      %v3681 = vpop.permute.xlu0 %3680
      %3682 = vrot.lane.b32.xlu0 %v2950, 64
      %v3683 = vpop.permute.xlu0 %3682
      %3684 = vrot.lane.b32.xlu0 %v2954, 64
      %v3685 = vpop.permute.xlu0 %3684
      %3686 = vrot.lane.b32.xlu0 %v2953, 64
      %v3687 = vpop.permute.xlu0 %3686
      %3688 = vrot.lane.b32.xlu0 %v2957, 64
      %v3689 = vpop.permute.xlu0 %3688
      %3690 = vrot.lane.b32.xlu0 %v2956, 64
      %v3691 = vpop.permute.xlu0 %3690
      %3692 = vrot.lane.b32.xlu0 %v2960, 64
      %v3693 = vpop.permute.xlu0 %3692
      %3694 = vrot.lane.b32.xlu0 %v2959, 64
      %v3695 = vpop.permute.xlu0 %3694
      %3696 = vrot.lane.b32.xlu0 %v2963, 64
      %v3697 = vpop.permute.xlu0 %3696
      %3698 = vrot.lane.b32.xlu0 %v2962, 64
      %v3699 = vpop.permute.xlu0 %3698
      %3700 = vrot.lane.b32.xlu0 %v3307, 64
      %v3701 = vpop.permute.xlu0 %3700
      %3702 = vrot.lane.b32.xlu0 %v3306, 64
      %v3703 = vpop.permute.xlu0 %3702
      %3704 = vrot.lane.b32.xlu0 %v3651, 64
      %v3705 = vpop.permute.xlu0 %3704
      %3706 = vrot.lane.b32.xlu0 %v3650, 64
      %v3707 = vpop.permute.xlu0 %3706
      %v3736 = vadd.f32 %v3621, %v3653
      %v3737 = vadd.f32 %v3622, %v3655
      %v3738 = vadd.f32 %v3623, %v3657
      %v3739 = vadd.f32 %v3624, %v3659
      %v3740 = vadd.f32 %v3625, %v3661
      %v3741 = vadd.f32 %v3626, %v3663
      %v3742 = vadd.f32 %v3627, %v3665
      %v3743 = vadd.f32 %v3628, %v3667
      %v3744 = vadd.f32 %v3629, %v3669
      %v3745 = vadd.f32 %v3630, %v3671
      %v3746 = vadd.f32 %v3631, %v3673
      %v3747 = vadd.f32 %v3632, %v3675
      %v3748 = vadd.f32 %v3633, %v3677
      %v3749 = vadd.f32 %v3634, %v3679
      %v3750 = vadd.f32 %v3635, %v3681
      %v3751 = vadd.f32 %v3636, %v3683
      %v3752 = vadd.f32 %v3637, %v3685
      %v3753 = vadd.f32 %v3638, %v3687
      %v3754 = vadd.f32 %v3639, %v3689
      %v3755 = vadd.f32 %v3640, %v3691
      %v3756 = vadd.f32 %v3641, %v3693
      %v3757 = vadd.f32 %v3642, %v3695
      %v3758 = vadd.f32 %v3643, %v3697
      %v3759 = vadd.f32 %v3644, %v3699
      %v3760 = vadd.f32 %v3645, %v3701
      %v3761 = vadd.f32 %v3646, %v3703
      %v3762 = vadd.f32 %v3647, %v3705
      %v3763 = vadd.f32 %v3648, %v3707
      %vm3764 = vcmp.ge.f32.partialorder %v3736, 0.0
      %vm3765 = vcmp.ge.f32.partialorder %v3737, 0.0
      %vm3766 = vcmp.ge.f32.partialorder %v3738, 0.0
      %vm3767 = vcmp.ge.f32.partialorder %v3739, 0.0
      %vm3768 = vcmp.ge.f32.partialorder %v3740, 0.0
      %vm3769 = vcmp.ge.f32.partialorder %v3741, 0.0
      %vm3770 = vcmp.ge.f32.partialorder %v3742, 0.0
      %vm3771 = vcmp.ge.f32.partialorder %v3743, 0.0
      %vm3772 = vcmp.ge.f32.partialorder %v3744, 0.0
      %vm3773 = vcmp.ge.f32.partialorder %v3745, 0.0
      %vm3774 = vcmp.ge.f32.partialorder %v3746, 0.0
      %vm3775 = vcmp.ge.f32.partialorder %v3747, 0.0
      %vm3776 = vcmp.ge.f32.partialorder %v3748, 0.0
      %vm3777 = vcmp.ge.f32.partialorder %v3749, 0.0
      %vm3778 = vcmp.ge.f32.partialorder %v3750, 0.0
      %vm3779 = vcmp.ge.f32.partialorder %v3751, 0.0
      %vm3780 = vcmp.ge.f32.partialorder %v3752, 0.0
      %vm3781 = vcmp.ge.f32.partialorder %v3753, 0.0
      %vm3782 = vcmp.ge.f32.partialorder %v3754, 0.0
      %vm3783 = vcmp.ge.f32.partialorder %v3755, 0.0
      %vm3784 = vcmp.ge.f32.partialorder %v3756, 0.0
      %vm3785 = vcmp.ge.f32.partialorder %v3757, 0.0
      %vm3786 = vcmp.ge.f32.partialorder %v3758, 0.0
      %vm3787 = vcmp.ge.f32.partialorder %v3759, 0.0
      %vm3788 = vcmp.ge.f32.partialorder %v3760, 0.0
      %vm3789 = vcmp.ge.f32.partialorder %v3761, 0.0
      %vm3790 = vcmp.ge.f32.partialorder %v3762, 0.0
      %vm3791 = vcmp.ge.f32.partialorder %v3763, 0.0
      %v3792 = vmul.f32 %v3736, 0.2
      %v3793 = vmul.f32 %v3737, 0.2
      %v3794 = vmul.f32 %v3738, 0.2
      %v3795 = vmul.f32 %v3739, 0.2
      %v3796 = vmul.f32 %v3740, 0.2
      %v3797 = vmul.f32 %v3741, 0.2
      %v3798 = vmul.f32 %v3742, 0.2
      %v3799 = vmul.f32 %v3743, 0.2
      %v3800 = vmul.f32 %v3744, 0.2
      %v3801 = vmul.f32 %v3745, 0.2
      %v3802 = vmul.f32 %v3746, 0.2
      %v3803 = vmul.f32 %v3747, 0.2
      %v3804 = vmul.f32 %v3748, 0.2
      %v3805 = vmul.f32 %v3749, 0.2
      %v3806 = vmul.f32 %v3750, 0.2
      %v3807 = vmul.f32 %v3751, 0.2
      %v3808 = vmul.f32 %v3752, 0.2
      %v3809 = vmul.f32 %v3753, 0.2
      %v3810 = vmul.f32 %v3754, 0.2
      %v3811 = vmul.f32 %v3755, 0.2
      %v3812 = vmul.f32 %v3756, 0.2
      %v3813 = vmul.f32 %v3757, 0.2
      %v3814 = vmul.f32 %v3758, 0.2
      %v3815 = vmul.f32 %v3759, 0.2
      %v3816 = vmul.f32 %v3760, 0.2
      %v3817 = vmul.f32 %v3761, 0.2
      %v3818 = vmul.f32 %v3762, 0.2
      %v3819 = vmul.f32 %v3763, 0.2
      %v3820 = vsel %vm3764, %v3736, %v3792
      %v3821 = vsel %vm3765, %v3737, %v3793
      %v3822 = vsel %vm3766, %v3738, %v3794
      %v3823 = vsel %vm3767, %v3739, %v3795
      %v3824 = vsel %vm3768, %v3740, %v3796
      %v3825 = vsel %vm3769, %v3741, %v3797
      %v3826 = vsel %vm3770, %v3742, %v3798
      %v3827 = vsel %vm3771, %v3743, %v3799
      %v3828 = vsel %vm3772, %v3744, %v3800
      %v3829 = vsel %vm3773, %v3745, %v3801
      %v3830 = vsel %vm3774, %v3746, %v3802
      %v3831 = vsel %vm3775, %v3747, %v3803
      %v3832 = vsel %vm3776, %v3748, %v3804
      %v3833 = vsel %vm3777, %v3749, %v3805
      %v3834 = vsel %vm3778, %v3750, %v3806
      %v3835 = vsel %vm3779, %v3751, %v3807
      %v3836 = vsel %vm3780, %v3752, %v3808
      %v3837 = vsel %vm3781, %v3753, %v3809
      %v3838 = vsel %vm3782, %v3754, %v3810
      %v3839 = vsel %vm3783, %v3755, %v3811
      %v3840 = vsel %vm3784, %v3756, %v3812
      %v3841 = vsel %vm3785, %v3757, %v3813
      %v3842 = vsel %vm3786, %v3758, %v3814
      %v3843 = vsel %vm3787, %v3759, %v3815
      %v3844 = vsel %vm3788, %v3760, %v3816
      %v3845 = vsel %vm3789, %v3761, %v3817
      %v3846 = vsel %vm3790, %v3762, %v3818
      %v3847 = vsel %vm3791, %v3763, %v3819
      %3876 = vrot.lane.b32.xlu0 %v3820, 24
      %v3877 = vpop.permute.xlu0 %3876
      %3878 = vrot.lane.b32.xlu0 %v3821, 24
      %v3879 = vpop.permute.xlu0 %3878
      %3880 = vrot.lane.b32.xlu0 %v3822, 24
      %v3881 = vpop.permute.xlu0 %3880
      %3882 = vrot.lane.b32.xlu0 %v3823, 24
      %v3883 = vpop.permute.xlu0 %3882
      %3884 = vrot.lane.b32.xlu0 %v3824, 24
      %v3885 = vpop.permute.xlu0 %3884
      %3886 = vrot.lane.b32.xlu0 %v3825, 24
      %v3887 = vpop.permute.xlu0 %3886
      %3888 = vrot.lane.b32.xlu0 %v3826, 24
      %v3889 = vpop.permute.xlu0 %3888
      %3890 = vrot.lane.b32.xlu0 %v3827, 24
      %v3891 = vpop.permute.xlu0 %3890
      %3892 = vrot.lane.b32.xlu0 %v3828, 24
      %v3893 = vpop.permute.xlu0 %3892
      %3894 = vrot.lane.b32.xlu0 %v3829, 24
      %v3895 = vpop.permute.xlu0 %3894
      %3896 = vrot.lane.b32.xlu0 %v3830, 24
      %v3897 = vpop.permute.xlu0 %3896
      %3898 = vrot.lane.b32.xlu0 %v3831, 24
      %v3899 = vpop.permute.xlu0 %3898
      %3900 = vrot.lane.b32.xlu0 %v3832, 24
      %v3901 = vpop.permute.xlu0 %3900
      %3902 = vrot.lane.b32.xlu0 %v3833, 24
      %v3903 = vpop.permute.xlu0 %3902
      %3904 = vrot.lane.b32.xlu0 %v3834, 24
      %v3905 = vpop.permute.xlu0 %3904
      %3906 = vrot.lane.b32.xlu0 %v3835, 24
      %v3907 = vpop.permute.xlu0 %3906
      %3908 = vrot.lane.b32.xlu0 %v3836, 24
      %v3909 = vpop.permute.xlu0 %3908
      %3910 = vrot.lane.b32.xlu0 %v3837, 24
      %v3911 = vpop.permute.xlu0 %3910
      %3912 = vrot.lane.b32.xlu0 %v3838, 24
      %v3913 = vpop.permute.xlu0 %3912
      %3914 = vrot.lane.b32.xlu0 %v3839, 24
      %v3915 = vpop.permute.xlu0 %3914
      %3916 = vrot.lane.b32.xlu0 %v3840, 24
      %v3917 = vpop.permute.xlu0 %3916
      %3918 = vrot.lane.b32.xlu0 %v3841, 24
      %v3919 = vpop.permute.xlu0 %3918
      %3920 = vrot.lane.b32.xlu0 %v3842, 24
      %v3921 = vpop.permute.xlu0 %3920
      %3922 = vrot.lane.b32.xlu0 %v3843, 24
      %v3923 = vpop.permute.xlu0 %3922
      %3924 = vrot.lane.b32.xlu0 %v3844, 24
      %v3925 = vpop.permute.xlu0 %3924
      %3926 = vrot.lane.b32.xlu0 %v3845, 24
      %v3927 = vpop.permute.xlu0 %3926
      %3928 = vrot.lane.b32.xlu0 %v3846, 24
      %v3929 = vpop.permute.xlu0 %3928
      %3930 = vrot.lane.b32.xlu0 %v3847, 24
      %v3931 = vpop.permute.xlu0 %3930
      %vm3960 = vcmask 261312
      %3961 = vst.msk [vmem:[%s495 + $0x1] sm:$0xff] %vm3960, %v3877
      %vm3962 = vcmask 259264
      %3963 = vst.msk [vmem:[%s495 + $0x9] sm:$0x3f] %vm3962, %v3879
      %3964 = vst.msk [vmem:[%s495 + $0x11] sm:$0xff] %vm3960, %v3881
      %3965 = vst.msk [vmem:[%s495 + $0x19] sm:$0x3f] %vm3962, %v3883
      %3966 = vst.msk [vmem:[%s495 + $0x21] sm:$0xff] %vm3960, %v3885
      %3967 = vst.msk [vmem:[%s495 + $0x29] sm:$0x3f] %vm3962, %v3887
      %3968 = vst.msk [vmem:[%s495 + $0x31] sm:$0xff] %vm3960, %v3889
      %3969 = vst.msk [vmem:[%s495 + $0x39] sm:$0x3f] %vm3962, %v3891
      %3970 = vst.msk [vmem:[%s495 + $0x41] sm:$0xff] %vm3960, %v3893
      %3971 = vst.msk [vmem:[%s495 + $0x49] sm:$0x3f] %vm3962, %v3895
      %3972 = vst.msk [vmem:[%s495 + $0x51] sm:$0xff] %vm3960, %v3897
      %3973 = vst.msk [vmem:[%s495 + $0x59] sm:$0x3f] %vm3962, %v3899
      %3974 = vst.msk [vmem:[%s495 + $0x61] sm:$0xff] %vm3960, %v3901
      %3975 = vst.msk [vmem:[%s495 + $0x69] sm:$0x3f] %vm3962, %v3903
      %3976 = vst.msk [vmem:[%s495 + $0x71] sm:$0xff] %vm3960, %v3905
      %3977 = vst.msk [vmem:[%s495 + $0x79] sm:$0x3f] %vm3962, %v3907
      %3978 = vst.msk [vmem:[%s495 + $0x81] sm:$0xff] %vm3960, %v3909
      %3979 = vst.msk [vmem:[%s495 + $0x89] sm:$0x3f] %vm3962, %v3911
      %3980 = vst.msk [vmem:[%s495 + $0x91] sm:$0xff] %vm3960, %v3913
      %3981 = vst.msk [vmem:[%s495 + $0x99] sm:$0x3f] %vm3962, %v3915
      %3982 = vst.msk [vmem:[%s495 + $0xa1] sm:$0xff] %vm3960, %v3917
      %3983 = vst.msk [vmem:[%s495 + $0xa9] sm:$0x3f] %vm3962, %v3919
      %3984 = vst.msk [vmem:[%s495 + $0xb1] sm:$0xff] %vm3960, %v3921
      %3985 = vst.msk [vmem:[%s495 + $0xb9] sm:$0x3f] %vm3962, %v3923
      %3986 = vst.msk [vmem:[%s495 + $0xc1] sm:$0xff] %vm3960, %v3925
      %3987 = vst.msk [vmem:[%s495 + $0xc9] sm:$0x3f] %vm3962, %v3927
      %3988 = vst.msk [vmem:[%s495 + $0xd1] sm:$0xff] %vm3960, %v3929
      %3989 = vst.msk [vmem:[%s495 + $0xd9] sm:$0x3f] %vm3962, %v3931
      %v3990 = vld [vmem:[#allocation2] sm:$0xff]
      %v3991 = vld [vmem:[#allocation2 + $0x8] sm:$0xff]
      %v3992 = vld [vmem:[#allocation2 + $0x10] sm:$0xff]
      %v3993 = vld [vmem:[#allocation2 + $0x18] sm:$0xff]
      %v3994 = vld [vmem:[#allocation2 + $0x20] sm:$0xff]
      %v3995 = vld [vmem:[#allocation2 + $0x28] sm:$0xff]
      %v3996 = vld [vmem:[#allocation2 + $0x30] sm:$0xff]
      %v3997 = vld [vmem:[#allocation2 + $0x38] sm:$0xff]
      %v3998 = vld [vmem:[#allocation2 + $0x40] sm:$0xff]
      %v3999 = vld [vmem:[#allocation2 + $0x48] sm:$0xff]
      %v4000 = vld [vmem:[#allocation2 + $0x50] sm:$0xff]
      %v4001 = vld [vmem:[#allocation2 + $0x58] sm:$0xff]
      %v4002 = vld [vmem:[#allocation2 + $0x60] sm:$0xff]
      %v4003 = vld [vmem:[#allocation2 + $0x68] sm:$0xff]
      %v4004 = vld [vmem:[#allocation2 + $0x70] sm:$0xff]
      %v4005 = vld [vmem:[#allocation2 + $0x78] sm:$0xff]
      %v4006 = vld [vmem:[#allocation2 + $0x80] sm:$0xff]
      %v4007 = vld [vmem:[#allocation2 + $0x88] sm:$0xff]
      %v4008 = vld [vmem:[#allocation2 + $0x90] sm:$0xff]
      %v4009 = vld [vmem:[#allocation2 + $0x98] sm:$0xff]
      %v4010 = vld [vmem:[#allocation2 + $0xa0] sm:$0xff]
      %v4011 = vld [vmem:[#allocation2 + $0xa8] sm:$0xff]
      %v4012 = vld [vmem:[#allocation2 + $0xb0] sm:$0xff]
      %v4013 = vld [vmem:[#allocation2 + $0xb8] sm:$0xff]
      %v4014 = vld [vmem:[#allocation2 + $0xc0] sm:$0xff]
      %v4015 = vld [vmem:[#allocation2 + $0xc8] sm:$0xff]
      %v4016 = vld [vmem:[#allocation2 + $0xd0] sm:$0xff]
      %v4017 = vld [vmem:[#allocation2 + $0xd8] sm:$0xff]
      %v4018 = vld [vmem:[#allocation2 + $0xe0] sm:$0xff]
      %v4019 = vld [vmem:[#allocation2 + $0xe8] sm:$0xff]
      %v4020 = vld [vmem:[#allocation2 + $0xf0] sm:$0xff]
      %v4021 = vld [vmem:[#allocation2 + $0xf8] sm:$0xff]
      %v4022 = vld [vmem:[%s6] sm:$0xff]
      %v4023 = vld [vmem:[%s6 + $0x8] sm:$0xff]
      %v4024 = vld [vmem:[%s6 + $0x10] sm:$0xff]
      %v4025 = vld [vmem:[%s6 + $0x18] sm:$0xff]
      %v4026 = vld [vmem:[%s6 + $0x20] sm:$0xff]
      %v4027 = vld [vmem:[%s6 + $0x28] sm:$0xff]
      %v4028 = vld [vmem:[%s6 + $0x30] sm:$0xff]
      %v4030 = vsel %vm434, %v3990, 0
      %v4033 = vsel %vm434, %v3991, 0
      %v4036 = vsel %vm434, %v3992, 0
      %v4039 = vsel %vm434, %v3993, 0
      %v4042 = vsel %vm434, %v3994, 0
      %v4045 = vsel %vm434, %v3995, 0
      %v4048 = vsel %vm434, %v3996, 0
      %v4051 = vsel %vm434, %v3997, 0
      %v4054 = vsel %vm434, %v3998, 0
      %v4057 = vsel %vm434, %v3999, 0
      %v4060 = vsel %vm434, %v4000, 0
      %v4063 = vsel %vm434, %v4001, 0
      %v4066 = vsel %vm434, %v4002, 0
      %v4069 = vsel %vm434, %v4003, 0
      %v4072 = vsel %vm434, %v4004, 0
      %v4075 = vsel %vm434, %v4005, 0
      %v4078 = vsel %vm434, %v4006, 0
      %v4081 = vsel %vm434, %v4007, 0
      %v4084 = vsel %vm434, %v4008, 0
      %v4087 = vsel %vm434, %v4009, 0
      %v4090 = vsel %vm434, %v4010, 0
      %v4093 = vsel %vm434, %v4011, 0
      %v4096 = vsel %vm434, %v4012, 0
      %v4099 = vsel %vm434, %v4013, 0
      %v4102 = vsel %vm434, %v4014, 0
      %v4105 = vsel %vm434, %v4015, 0
      %v4108 = vsel %vm434, %v4016, 0
      %v4111 = vsel %vm434, %v4017, 0
      %v4114 = vsel %vm434, %v4018, 0
      %v4117 = vsel %vm434, %v4019, 0
      %v4120 = vsel %vm434, %v4020, 0
      %v4123 = vsel %vm434, %v4021, 0
      %4125 = vmatprep.subr.mxu0 0.0
      %4126 = vmatpush1.msra.mxu0 %v4022
      %4127 = vmatprep.subr.mxu0 0.0
      %4128 = vmatpush1.msra.mxu0 %v4023
      %4129 = vmatprep.subr.mxu0 0.0
      %4130 = vmatpush1.msra.mxu0 %v4024
      %4131 = vmatprep.subr.mxu0 0.0
      %4132 = vmatpush1.msra.mxu0 %v4025
      %4133 = vmatprep.subr.mxu0 0.0
      %4134 = vmatpush1.msra.mxu0 %v4026
      %4135 = vmatprep.subr.mxu0 0.0
      %4136 = vmatpush1.msra.mxu0 %v4027
      %4137 = vmatprep.subr.mxu0 0.0
      %4138 = vmatpush1.msra.mxu0 %v4028
      %4139 = vmatprep.subr.mxu0 0.0
      %4140 = vmatpush1.msra.mxu0 0.0
      %4141 = vmatprep.subr.mxu0 0.0
      %4142 = vmatpush1.msra.mxu0 0.0
      %4143 = vmatprep.subr.mxu0 0.0
      %4144 = vmatpush1.msra.mxu0 0.0
      %4145 = vmatprep.subr.mxu0 0.0
      %4146 = vmatpush1.msra.mxu0 0.0
      %4147 = vmatprep.subr.mxu0 0.0
      %4148 = vmatpush1.msra.mxu0 0.0
      %4149 = vmatprep.subr.mxu0 0.0
      %4150 = vmatpush1.msra.mxu0 0.0
      %4151 = vmatprep.subr.mxu0 0.0
      %4152 = vmatpush1.msra.mxu0 0.0
      %4153 = vmatprep.subr.mxu0 0.0
      %4154 = vmatpush1.msra.mxu0 0.0
      %4155 = vmatprep.subr.mxu0 0.0
      %4156 = vmatpush1.msra.mxu0 0.0
      %4157 = vmatprep.subr.mxu0 0.0
      %4158 = vmatpush1.msra.mxu0 0.0
      %4159 = vmatprep.subr.mxu0 0.0
      %4160 = vmatpush1.msra.mxu0 0.0
      %4161 = vmatprep.subr.mxu0 0.0
      %4162 = vmatpush1.msra.mxu0 0.0
      %4163 = vmatprep.subr.mxu0 0.0
      %4164 = vmatpush1.msra.mxu0 0.0
      %4165 = vmatprep.subr.mxu0 0.0
      %4166 = vmatpush1.msra.mxu0 0.0
      %4167 = vmatprep.subr.mxu0 0.0
      %4168 = vmatpush1.msra.mxu0 0.0
      %4169 = vmatprep.subr.mxu0 0.0
      %4170 = vmatpush1.msra.mxu0 0.0
      %4171 = vmatprep.subr.mxu0 0.0
      %4172 = vmatpush1.msra.mxu0 0.0
      %4173 = vmatprep.subr.mxu0 0.0
      %4174 = vmatpush1.msra.mxu0 0.0
      %4175 = vmatprep.subr.mxu0 0.0
      %4176 = vmatpush1.msra.mxu0 0.0
      %4177 = vmatprep.subr.mxu0 0.0
      %4178 = vmatpush1.msra.mxu0 0.0
      %4179 = vmatprep.subr.mxu0 0.0
      %4180 = vmatpush1.msra.mxu0 0.0
      %4181 = vmatprep.subr.mxu0 0.0
      %4182 = vmatpush1.msra.mxu0 0.0
      %4183 = vmatprep.subr.mxu0 0.0
      %4184 = vmatpush1.msra.mxu0 0.0
      %4185 = vmatprep.subr.mxu0 0.0
      %4186 = vmatpush1.msra.mxu0 0.0
      %4187 = vmatprep.subr.mxu0 0.0
      %4188 = vmatpush1.msra.mxu0 0.0
      %4189 = vmatprep.mubr.f32.mxu0 0.0
      %4190 = vmatmul.mubr.f32.gmra.mrb[0].mxu0 %v4030
      %v4191 = vpop.f32.mrb[0].mxu0
      %v4192 = vadd.f32 0.0, %v4191
      %v4193 = vpop.f32.mrb[0].mxu0
      %4194 = vmatprep.mubr.f32.mxu0 0.0
      %4195 = vmatmul.mubr.f32.gmra.mrb[0].mxu0 %v4033
      %v4196 = vpop.f32.mrb[0].mxu0
      %v4197 = vadd.f32 0.0, %v4196
      %v4198 = vpop.f32.mrb[0].mxu0
      %4199 = vmatprep.mubr.f32.mxu0 0.0
      %4200 = vmatmul.mubr.f32.gmra.mrb[0].mxu0 %v4036
      %v4201 = vpop.f32.mrb[0].mxu0
      %v4202 = vadd.f32 0.0, %v4201
      %v4203 = vpop.f32.mrb[0].mxu0
      %4204 = vmatprep.mubr.f32.mxu0 0.0
      %4205 = vmatmul.mubr.f32.gmra.mrb[0].mxu0 %v4039
      %v4206 = vpop.f32.mrb[0].mxu0
      %v4207 = vadd.f32 0.0, %v4206
      %v4208 = vpop.f32.mrb[0].mxu0
      %4209 = vmatprep.mubr.f32.mxu0 0.0
      %4210 = vmatmul.mubr.f32.gmra.mrb[0].mxu0 %v4042
      %v4211 = vpop.f32.mrb[0].mxu0
      %v4212 = vadd.f32 0.0, %v4211
      %v4213 = vpop.f32.mrb[0].mxu0
      %4214 = vmatprep.mubr.f32.mxu0 0.0
      %4215 = vmatmul.mubr.f32.gmra.mrb[0].mxu0 %v4045
      %v4216 = vpop.f32.mrb[0].mxu0
      %v4217 = vadd.f32 0.0, %v4216
      %v4218 = vpop.f32.mrb[0].mxu0
      %4219 = vmatprep.mubr.f32.mxu0 0.0
      %4220 = vmatmul.mubr.f32.gmra.mrb[0].mxu0 %v4048
      %v4221 = vpop.f32.mrb[0].mxu0
      %v4222 = vadd.f32 0.0, %v4221
      %v4223 = vpop.f32.mrb[0].mxu0
      %4224 = vmatprep.mubr.f32.mxu0 0.0
      %4225 = vmatmul.mubr.f32.gmra.mrb[0].mxu0 %v4051
      %v4226 = vpop.f32.mrb[0].mxu0
      %v4227 = vadd.f32 0.0, %v4226
      %v4228 = vpop.f32.mrb[0].mxu0
      %4229 = vmatprep.mubr.f32.mxu0 0.0
      %4230 = vmatmul.mubr.f32.gmra.mrb[0].mxu0 %v4054
      %v4231 = vpop.f32.mrb[0].mxu0
      %v4232 = vadd.f32 0.0, %v4231
      %v4233 = vpop.f32.mrb[0].mxu0
      %4234 = vmatprep.mubr.f32.mxu0 0.0
      %4235 = vmatmul.mubr.f32.gmra.mrb[0].mxu0 %v4057
      %v4236 = vpop.f32.mrb[0].mxu0
      %v4237 = vadd.f32 0.0, %v4236
      %v4238 = vpop.f32.mrb[0].mxu0
      %4239 = vmatprep.mubr.f32.mxu0 0.0
      %4240 = vmatmul.mubr.f32.gmra.mrb[0].mxu0 %v4060
      %v4241 = vpop.f32.mrb[0].mxu0
      %v4242 = vadd.f32 0.0, %v4241
      %v4243 = vpop.f32.mrb[0].mxu0
      %4244 = vmatprep.mubr.f32.mxu0 0.0
      %4245 = vmatmul.mubr.f32.gmra.mrb[0].mxu0 %v4063
      %v4246 = vpop.f32.mrb[0].mxu0
      %v4247 = vadd.f32 0.0, %v4246
      %v4248 = vpop.f32.mrb[0].mxu0
      %4249 = vmatprep.mubr.f32.mxu0 0.0
      %4250 = vmatmul.mubr.f32.gmra.mrb[0].mxu0 %v4066
      %v4251 = vpop.f32.mrb[0].mxu0
      %v4252 = vadd.f32 0.0, %v4251
      %v4253 = vpop.f32.mrb[0].mxu0
      %4254 = vmatprep.mubr.f32.mxu0 0.0
      %4255 = vmatmul.mubr.f32.gmra.mrb[0].mxu0 %v4069
      %v4256 = vpop.f32.mrb[0].mxu0
      %v4257 = vadd.f32 0.0, %v4256
      %v4258 = vpop.f32.mrb[0].mxu0
      %4259 = vmatprep.mubr.f32.mxu0 0.0
      %4260 = vmatmul.mubr.f32.gmra.mrb[0].mxu0 %v4072
      %v4261 = vpop.f32.mrb[0].mxu0
      %v4262 = vadd.f32 0.0, %v4261
      %v4263 = vpop.f32.mrb[0].mxu0
      %4264 = vmatprep.mubr.f32.mxu0 0.0
      %4265 = vmatmul.mubr.f32.gmra.mrb[0].mxu0 %v4075
      %v4266 = vpop.f32.mrb[0].mxu0
      %v4267 = vadd.f32 0.0, %v4266
      %v4268 = vpop.f32.mrb[0].mxu0
      %4269 = vmatprep.mubr.f32.mxu0 0.0
      %4270 = vmatmul.mubr.f32.gmra.mrb[0].mxu0 %v4078
      %v4271 = vpop.f32.mrb[0].mxu0
      %v4272 = vadd.f32 0.0, %v4271
      %v4273 = vpop.f32.mrb[0].mxu0
      %4274 = vmatprep.mubr.f32.mxu0 0.0
      %4275 = vmatmul.mubr.f32.gmra.mrb[0].mxu0 %v4081
      %v4276 = vpop.f32.mrb[0].mxu0
      %v4277 = vadd.f32 0.0, %v4276
      %v4278 = vpop.f32.mrb[0].mxu0
      %4279 = vmatprep.mubr.f32.mxu0 0.0
      %4280 = vmatmul.mubr.f32.gmra.mrb[0].mxu0 %v4084
      %v4281 = vpop.f32.mrb[0].mxu0
      %v4282 = vadd.f32 0.0, %v4281
      %v4283 = vpop.f32.mrb[0].mxu0
      %4284 = vmatprep.mubr.f32.mxu0 0.0
      %4285 = vmatmul.mubr.f32.gmra.mrb[0].mxu0 %v4087
      %v4286 = vpop.f32.mrb[0].mxu0
      %v4287 = vadd.f32 0.0, %v4286
      %v4288 = vpop.f32.mrb[0].mxu0
      %4289 = vmatprep.mubr.f32.mxu0 0.0
      %4290 = vmatmul.mubr.f32.gmra.mrb[0].mxu0 %v4090
      %v4291 = vpop.f32.mrb[0].mxu0
      %v4292 = vadd.f32 0.0, %v4291
      %v4293 = vpop.f32.mrb[0].mxu0
      %4294 = vmatprep.mubr.f32.mxu0 0.0
      %4295 = vmatmul.mubr.f32.gmra.mrb[0].mxu0 %v4093
      %v4296 = vpop.f32.mrb[0].mxu0
      %v4297 = vadd.f32 0.0, %v4296
      %v4298 = vpop.f32.mrb[0].mxu0
      %4299 = vmatprep.mubr.f32.mxu0 0.0
      %4300 = vmatmul.mubr.f32.gmra.mrb[0].mxu0 %v4096
      %v4301 = vpop.f32.mrb[0].mxu0
      %v4302 = vadd.f32 0.0, %v4301
      %v4303 = vpop.f32.mrb[0].mxu0
      %4304 = vmatprep.mubr.f32.mxu0 0.0
      %4305 = vmatmul.mubr.f32.gmra.mrb[0].mxu0 %v4099
      %v4306 = vpop.f32.mrb[0].mxu0
      %v4307 = vadd.f32 0.0, %v4306
      %v4308 = vpop.f32.mrb[0].mxu0
      %4309 = vmatprep.mubr.f32.mxu0 0.0
      %4310 = vmatmul.mubr.f32.gmra.mrb[0].mxu0 %v4102
      %v4311 = vpop.f32.mrb[0].mxu0
      %v4312 = vadd.f32 0.0, %v4311
      %v4313 = vpop.f32.mrb[0].mxu0
      %4314 = vmatprep.mubr.f32.mxu0 0.0
      %4315 = vmatmul.mubr.f32.gmra.mrb[0].mxu0 %v4105
      %v4316 = vpop.f32.mrb[0].mxu0
      %v4317 = vadd.f32 0.0, %v4316
      %v4318 = vpop.f32.mrb[0].mxu0
      %4319 = vmatprep.mubr.f32.mxu0 0.0
      %4320 = vmatmul.mubr.f32.gmra.mrb[0].mxu0 %v4108
      %v4321 = vpop.f32.mrb[0].mxu0
      %v4322 = vadd.f32 0.0, %v4321
      %v4323 = vpop.f32.mrb[0].mxu0
      %4324 = vmatprep.mubr.f32.mxu0 0.0
      %4325 = vmatmul.mubr.f32.gmra.mrb[0].mxu0 %v4111
      %v4326 = vpop.f32.mrb[0].mxu0
      %v4327 = vadd.f32 0.0, %v4326
      %v4328 = vpop.f32.mrb[0].mxu0
      %4329 = vmatprep.mubr.f32.mxu0 0.0
      %4330 = vmatmul.mubr.f32.gmra.mrb[0].mxu0 %v4114
      %v4331 = vpop.f32.mrb[0].mxu0
      %v4332 = vadd.f32 0.0, %v4331
      %v4333 = vpop.f32.mrb[0].mxu0
      %4334 = vmatprep.mubr.f32.mxu0 0.0
      %4335 = vmatmul.mubr.f32.gmra.mrb[0].mxu0 %v4117
      %v4336 = vpop.f32.mrb[0].mxu0
      %v4337 = vadd.f32 0.0, %v4336
      %v4338 = vpop.f32.mrb[0].mxu0
      %4339 = vmatprep.mubr.f32.mxu0 0.0
      %4340 = vmatmul.mubr.f32.gmra.mrb[0].mxu0 %v4120
      %v4341 = vpop.f32.mrb[0].mxu0
      %v4342 = vadd.f32 0.0, %v4341
      %v4343 = vpop.f32.mrb[0].mxu0
      %4344 = vmatprep.mubr.f32.mxu0 0.0
      %4345 = vmatmul.mubr.f32.gmra.mrb[0].mxu0 %v4123
      %v4346 = vpop.f32.mrb[0].mxu0
      %v4347 = vadd.f32 0.0, %v4346
      %v4348 = vpop.f32.mrb[0].mxu0
      %4349 = vdwg.mxu0
      %v4350 = vld [vmem:[%s7] sm:$0x1]
      %v4352 = vlaneseq
      %v4353 = vshrl.u32 %v4352, 7
      %v4354 = vsub.s32 0, %v4353
      %v4355 = vrot.slane %v4350, %v4354
      %v4357 = vadd.f32 %v4355, 0.0
      %v4358 = vadd.f32 %v4357, %v4192
      %v4359 = vadd.f32 %v4357, %v4197
      %v4360 = vadd.f32 %v4357, %v4202
      %v4361 = vadd.f32 %v4357, %v4207
      %v4362 = vadd.f32 %v4357, %v4212
      %v4363 = vadd.f32 %v4357, %v4217
      %v4364 = vadd.f32 %v4357, %v4222
      %v4365 = vadd.f32 %v4357, %v4227
      %v4366 = vadd.f32 %v4357, %v4232
      %v4367 = vadd.f32 %v4357, %v4237
      %v4368 = vadd.f32 %v4357, %v4242
      %v4369 = vadd.f32 %v4357, %v4247
      %v4370 = vadd.f32 %v4357, %v4252
      %v4371 = vadd.f32 %v4357, %v4257
      %v4372 = vadd.f32 %v4357, %v4262
      %v4373 = vadd.f32 %v4357, %v4267
      %v4374 = vadd.f32 %v4357, %v4272
      %v4375 = vadd.f32 %v4357, %v4277
      %v4376 = vadd.f32 %v4357, %v4282
      %v4377 = vadd.f32 %v4357, %v4287
      %v4378 = vadd.f32 %v4357, %v4292
      %v4379 = vadd.f32 %v4357, %v4297
      %v4380 = vadd.f32 %v4357, %v4302
      %v4381 = vadd.f32 %v4357, %v4307
      %v4382 = vadd.f32 %v4357, %v4312
      %v4383 = vadd.f32 %v4357, %v4317
      %v4384 = vadd.f32 %v4357, %v4322
      %v4385 = vadd.f32 %v4357, %v4327
      %v4414 = vrot.slane %v4192, 1
      %v4415 = vrot.slane %v4197, 1
      %v4416 = vsel %vm1120, %v4414, %v4415
      %v4417 = vrot.slane %v4202, 1
      %v4418 = vrot.slane %v4207, 1
      %v4419 = vsel %vm1120, %v4417, %v4418
      %v4420 = vrot.slane %v4212, 1
      %v4421 = vrot.slane %v4217, 1
      %v4422 = vsel %vm1120, %v4420, %v4421
      %v4423 = vrot.slane %v4222, 1
      %v4424 = vrot.slane %v4227, 1
      %v4425 = vsel %vm1120, %v4423, %v4424
      %v4426 = vrot.slane %v4232, 1
      %v4427 = vrot.slane %v4237, 1
      %v4428 = vsel %vm1120, %v4426, %v4427
      %v4429 = vrot.slane %v4242, 1
      %v4430 = vrot.slane %v4247, 1
      %v4431 = vsel %vm1120, %v4429, %v4430
      %v4432 = vrot.slane %v4252, 1
      %v4433 = vrot.slane %v4257, 1
      %v4434 = vsel %vm1120, %v4432, %v4433
      %v4435 = vrot.slane %v4262, 1
      %v4436 = vrot.slane %v4267, 1
      %v4437 = vsel %vm1120, %v4435, %v4436
      %v4438 = vrot.slane %v4272, 1
      %v4439 = vrot.slane %v4277, 1
      %v4440 = vsel %vm1120, %v4438, %v4439
      %v4441 = vrot.slane %v4282, 1
      %v4442 = vrot.slane %v4287, 1
      %v4443 = vsel %vm1120, %v4441, %v4442
      %v4444 = vrot.slane %v4292, 1
      %v4445 = vrot.slane %v4297, 1
      %v4446 = vsel %vm1120, %v4444, %v4445
      %v4447 = vrot.slane %v4302, 1
      %v4448 = vrot.slane %v4307, 1
      %v4449 = vsel %vm1120, %v4447, %v4448
      %v4450 = vrot.slane %v4312, 1
      %v4451 = vrot.slane %v4317, 1
      %v4452 = vsel %vm1120, %v4450, %v4451
      %v4453 = vrot.slane %v4322, 1
      %v4454 = vrot.slane %v4327, 1
      %v4455 = vsel %vm1120, %v4453, %v4454
      %4456 = vrot.lane.b32.xlu0 %v4416, 120
      %v4457 = vpop.permute.xlu0 %4456
      %4458 = vrot.lane.b32.xlu0 %v4415, 120
      %v4459 = vpop.permute.xlu0 %4458
      %4460 = vrot.lane.b32.xlu0 %v4419, 120
      %v4461 = vpop.permute.xlu0 %4460
      %4462 = vrot.lane.b32.xlu0 %v4418, 120
      %v4463 = vpop.permute.xlu0 %4462
      %4464 = vrot.lane.b32.xlu0 %v4422, 120
      %v4465 = vpop.permute.xlu0 %4464
      %4466 = vrot.lane.b32.xlu0 %v4421, 120
      %v4467 = vpop.permute.xlu0 %4466
      %4468 = vrot.lane.b32.xlu0 %v4425, 120
      %v4469 = vpop.permute.xlu0 %4468
      %4470 = vrot.lane.b32.xlu0 %v4424, 120
      %v4471 = vpop.permute.xlu0 %4470
      %4472 = vrot.lane.b32.xlu0 %v4428, 120
      %v4473 = vpop.permute.xlu0 %4472
      %4474 = vrot.lane.b32.xlu0 %v4427, 120
      %v4475 = vpop.permute.xlu0 %4474
      %4476 = vrot.lane.b32.xlu0 %v4431, 120
      %v4477 = vpop.permute.xlu0 %4476
      %4478 = vrot.lane.b32.xlu0 %v4430, 120
      %v4479 = vpop.permute.xlu0 %4478
      %4480 = vrot.lane.b32.xlu0 %v4434, 120
      %v4481 = vpop.permute.xlu0 %4480
      %4482 = vrot.lane.b32.xlu0 %v4433, 120
      %v4483 = vpop.permute.xlu0 %4482
      %4484 = vrot.lane.b32.xlu0 %v4437, 120
      %v4485 = vpop.permute.xlu0 %4484
      %4486 = vrot.lane.b32.xlu0 %v4436, 120
      %v4487 = vpop.permute.xlu0 %4486
      %4488 = vrot.lane.b32.xlu0 %v4440, 120
      %v4489 = vpop.permute.xlu0 %4488
      %4490 = vrot.lane.b32.xlu0 %v4439, 120
      %v4491 = vpop.permute.xlu0 %4490
      %4492 = vrot.lane.b32.xlu0 %v4443, 120
      %v4493 = vpop.permute.xlu0 %4492
      %4494 = vrot.lane.b32.xlu0 %v4442, 120
      %v4495 = vpop.permute.xlu0 %4494
      %4496 = vrot.lane.b32.xlu0 %v4446, 120
      %v4497 = vpop.permute.xlu0 %4496
      %4498 = vrot.lane.b32.xlu0 %v4445, 120
      %v4499 = vpop.permute.xlu0 %4498
      %4500 = vrot.lane.b32.xlu0 %v4449, 120
      %v4501 = vpop.permute.xlu0 %4500
      %4502 = vrot.lane.b32.xlu0 %v4448, 120
      %v4503 = vpop.permute.xlu0 %4502
      %4504 = vrot.lane.b32.xlu0 %v4452, 120
      %v4505 = vpop.permute.xlu0 %4504
      %4506 = vrot.lane.b32.xlu0 %v4451, 120
      %v4507 = vpop.permute.xlu0 %4506
      %4508 = vrot.lane.b32.xlu0 %v4455, 120
      %v4509 = vpop.permute.xlu0 %4508
      %4510 = vrot.lane.b32.xlu0 %v4454, 120
      %v4511 = vpop.permute.xlu0 %4510
      %v4540 = vadd.f32 %v4358, %v4457
      %v4541 = vadd.f32 %v4359, %v4459
      %v4542 = vadd.f32 %v4360, %v4461
      %v4543 = vadd.f32 %v4361, %v4463
      %v4544 = vadd.f32 %v4362, %v4465
      %v4545 = vadd.f32 %v4363, %v4467
      %v4546 = vadd.f32 %v4364, %v4469
      %v4547 = vadd.f32 %v4365, %v4471
      %v4548 = vadd.f32 %v4366, %v4473
      %v4549 = vadd.f32 %v4367, %v4475
      %v4550 = vadd.f32 %v4368, %v4477
      %v4551 = vadd.f32 %v4369, %v4479
      %v4552 = vadd.f32 %v4370, %v4481
      %v4553 = vadd.f32 %v4371, %v4483
      %v4554 = vadd.f32 %v4372, %v4485
      %v4555 = vadd.f32 %v4373, %v4487
      %v4556 = vadd.f32 %v4374, %v4489
      %v4557 = vadd.f32 %v4375, %v4491
      %v4558 = vadd.f32 %v4376, %v4493
      %v4559 = vadd.f32 %v4377, %v4495
      %v4560 = vadd.f32 %v4378, %v4497
      %v4561 = vadd.f32 %v4379, %v4499
      %v4562 = vadd.f32 %v4380, %v4501
      %v4563 = vadd.f32 %v4381, %v4503
      %v4564 = vadd.f32 %v4382, %v4505
      %v4565 = vadd.f32 %v4383, %v4507
      %v4566 = vadd.f32 %v4384, %v4509
      %v4567 = vadd.f32 %v4385, %v4511
      %v4568 = vrot.slane %v4192, 2
      %v4569 = vrot.slane %v4197, 2
      %v4570 = vsel %vm1275, %v4568, %v4569
      %v4571 = vrot.slane %v4202, 2
      %v4572 = vrot.slane %v4207, 2
      %v4573 = vsel %vm1275, %v4571, %v4572
      %v4574 = vrot.slane %v4212, 2
      %v4575 = vrot.slane %v4217, 2
      %v4576 = vsel %vm1275, %v4574, %v4575
      %v4577 = vrot.slane %v4222, 2
      %v4578 = vrot.slane %v4227, 2
      %v4579 = vsel %vm1275, %v4577, %v4578
      %v4580 = vrot.slane %v4232, 2
      %v4581 = vrot.slane %v4237, 2
      %v4582 = vsel %vm1275, %v4580, %v4581
      %v4583 = vrot.slane %v4242, 2
      %v4584 = vrot.slane %v4247, 2
      %v4585 = vsel %vm1275, %v4583, %v4584
      %v4586 = vrot.slane %v4252, 2
      %v4587 = vrot.slane %v4257, 2
      %v4588 = vsel %vm1275, %v4586, %v4587
      %v4589 = vrot.slane %v4262, 2
      %v4590 = vrot.slane %v4267, 2
      %v4591 = vsel %vm1275, %v4589, %v4590
      %v4592 = vrot.slane %v4272, 2
      %v4593 = vrot.slane %v4277, 2
      %v4594 = vsel %vm1275, %v4592, %v4593
      %v4595 = vrot.slane %v4282, 2
      %v4596 = vrot.slane %v4287, 2
      %v4597 = vsel %vm1275, %v4595, %v4596
      %v4598 = vrot.slane %v4292, 2
      %v4599 = vrot.slane %v4297, 2
      %v4600 = vsel %vm1275, %v4598, %v4599
      %v4601 = vrot.slane %v4302, 2
      %v4602 = vrot.slane %v4307, 2
      %v4603 = vsel %vm1275, %v4601, %v4602
      %v4604 = vrot.slane %v4312, 2
      %v4605 = vrot.slane %v4317, 2
      %v4606 = vsel %vm1275, %v4604, %v4605
      %v4607 = vrot.slane %v4322, 2
      %v4608 = vrot.slane %v4327, 2
      %v4609 = vsel %vm1275, %v4607, %v4608
      %4610 = vrot.lane.b32.xlu0 %v4570, 112
      %v4611 = vpop.permute.xlu0 %4610
      %4612 = vrot.lane.b32.xlu0 %v4569, 112
      %v4613 = vpop.permute.xlu0 %4612
      %4614 = vrot.lane.b32.xlu0 %v4573, 112
      %v4615 = vpop.permute.xlu0 %4614
      %4616 = vrot.lane.b32.xlu0 %v4572, 112
      %v4617 = vpop.permute.xlu0 %4616
      %4618 = vrot.lane.b32.xlu0 %v4576, 112
      %v4619 = vpop.permute.xlu0 %4618
      %4620 = vrot.lane.b32.xlu0 %v4575, 112
      %v4621 = vpop.permute.xlu0 %4620
      %4622 = vrot.lane.b32.xlu0 %v4579, 112
      %v4623 = vpop.permute.xlu0 %4622
      %4624 = vrot.lane.b32.xlu0 %v4578, 112
      %v4625 = vpop.permute.xlu0 %4624
      %4626 = vrot.lane.b32.xlu0 %v4582, 112
      %v4627 = vpop.permute.xlu0 %4626
      %4628 = vrot.lane.b32.xlu0 %v4581, 112
      %v4629 = vpop.permute.xlu0 %4628
      %4630 = vrot.lane.b32.xlu0 %v4585, 112
      %v4631 = vpop.permute.xlu0 %4630
      %4632 = vrot.lane.b32.xlu0 %v4584, 112
      %v4633 = vpop.permute.xlu0 %4632
      %4634 = vrot.lane.b32.xlu0 %v4588, 112
      %v4635 = vpop.permute.xlu0 %4634
      %4636 = vrot.lane.b32.xlu0 %v4587, 112
      %v4637 = vpop.permute.xlu0 %4636
      %4638 = vrot.lane.b32.xlu0 %v4591, 112
      %v4639 = vpop.permute.xlu0 %4638
      %4640 = vrot.lane.b32.xlu0 %v4590, 112
      %v4641 = vpop.permute.xlu0 %4640
      %4642 = vrot.lane.b32.xlu0 %v4594, 112
      %v4643 = vpop.permute.xlu0 %4642
      %4644 = vrot.lane.b32.xlu0 %v4593, 112
      %v4645 = vpop.permute.xlu0 %4644
      %4646 = vrot.lane.b32.xlu0 %v4597, 112
      %v4647 = vpop.permute.xlu0 %4646
      %4648 = vrot.lane.b32.xlu0 %v4596, 112
      %v4649 = vpop.permute.xlu0 %4648
      %4650 = vrot.lane.b32.xlu0 %v4600, 112
      %v4651 = vpop.permute.xlu0 %4650
      %4652 = vrot.lane.b32.xlu0 %v4599, 112
      %v4653 = vpop.permute.xlu0 %4652
      %4654 = vrot.lane.b32.xlu0 %v4603, 112
      %v4655 = vpop.permute.xlu0 %4654
      %4656 = vrot.lane.b32.xlu0 %v4602, 112
      %v4657 = vpop.permute.xlu0 %4656
      %4658 = vrot.lane.b32.xlu0 %v4606, 112
      %v4659 = vpop.permute.xlu0 %4658
      %4660 = vrot.lane.b32.xlu0 %v4605, 112
      %v4661 = vpop.permute.xlu0 %4660
      %4662 = vrot.lane.b32.xlu0 %v4609, 112
      %v4663 = vpop.permute.xlu0 %4662
      %4664 = vrot.lane.b32.xlu0 %v4608, 112
      %v4665 = vpop.permute.xlu0 %4664
      %v4694 = vadd.f32 %v4540, %v4611
      %v4695 = vadd.f32 %v4541, %v4613
      %v4696 = vadd.f32 %v4542, %v4615
      %v4697 = vadd.f32 %v4543, %v4617
      %v4698 = vadd.f32 %v4544, %v4619
      %v4699 = vadd.f32 %v4545, %v4621
      %v4700 = vadd.f32 %v4546, %v4623
      %v4701 = vadd.f32 %v4547, %v4625
      %v4702 = vadd.f32 %v4548, %v4627
      %v4703 = vadd.f32 %v4549, %v4629
      %v4704 = vadd.f32 %v4550, %v4631
      %v4705 = vadd.f32 %v4551, %v4633
      %v4706 = vadd.f32 %v4552, %v4635
      %v4707 = vadd.f32 %v4553, %v4637
      %v4708 = vadd.f32 %v4554, %v4639
      %v4709 = vadd.f32 %v4555, %v4641
      %v4710 = vadd.f32 %v4556, %v4643
      %v4711 = vadd.f32 %v4557, %v4645
      %v4712 = vadd.f32 %v4558, %v4647
      %v4713 = vadd.f32 %v4559, %v4649
      %v4714 = vadd.f32 %v4560, %v4651
      %v4715 = vadd.f32 %v4561, %v4653
      %v4716 = vadd.f32 %v4562, %v4655
      %v4717 = vadd.f32 %v4563, %v4657
      %v4718 = vadd.f32 %v4564, %v4659
      %v4719 = vadd.f32 %v4565, %v4661
      %v4720 = vadd.f32 %v4566, %v4663
      %v4721 = vadd.f32 %v4567, %v4665
      %4724 = vrot.lane.b32.xlu0 %v4202, 104
      %v4725 = vpop.permute.xlu0 %4724
      %4726 = vrot.lane.b32.xlu0 %v4207, 104
      %v4727 = vpop.permute.xlu0 %4726
      %4728 = vrot.lane.b32.xlu0 %v4212, 104
      %v4729 = vpop.permute.xlu0 %4728
      %4730 = vrot.lane.b32.xlu0 %v4217, 104
      %v4731 = vpop.permute.xlu0 %4730
      %4732 = vrot.lane.b32.xlu0 %v4222, 104
      %v4733 = vpop.permute.xlu0 %4732
      %4734 = vrot.lane.b32.xlu0 %v4227, 104
      %v4735 = vpop.permute.xlu0 %4734
      %4736 = vrot.lane.b32.xlu0 %v4232, 104
      %v4737 = vpop.permute.xlu0 %4736
      %4738 = vrot.lane.b32.xlu0 %v4237, 104
      %v4739 = vpop.permute.xlu0 %4738
      %4740 = vrot.lane.b32.xlu0 %v4242, 104
      %v4741 = vpop.permute.xlu0 %4740
      %4742 = vrot.lane.b32.xlu0 %v4247, 104
      %v4743 = vpop.permute.xlu0 %4742
      %4744 = vrot.lane.b32.xlu0 %v4252, 104
      %v4745 = vpop.permute.xlu0 %4744
      %4746 = vrot.lane.b32.xlu0 %v4257, 104
      %v4747 = vpop.permute.xlu0 %4746
      %4748 = vrot.lane.b32.xlu0 %v4262, 104
      %v4749 = vpop.permute.xlu0 %4748
      %4750 = vrot.lane.b32.xlu0 %v4267, 104
      %v4751 = vpop.permute.xlu0 %4750
      %4752 = vrot.lane.b32.xlu0 %v4272, 104
      %v4753 = vpop.permute.xlu0 %4752
      %4754 = vrot.lane.b32.xlu0 %v4277, 104
      %v4755 = vpop.permute.xlu0 %4754
      %4756 = vrot.lane.b32.xlu0 %v4282, 104
      %v4757 = vpop.permute.xlu0 %4756
      %4758 = vrot.lane.b32.xlu0 %v4287, 104
      %v4759 = vpop.permute.xlu0 %4758
      %4760 = vrot.lane.b32.xlu0 %v4292, 104
      %v4761 = vpop.permute.xlu0 %4760
      %4762 = vrot.lane.b32.xlu0 %v4297, 104
      %v4763 = vpop.permute.xlu0 %4762
      %4764 = vrot.lane.b32.xlu0 %v4302, 104
      %v4765 = vpop.permute.xlu0 %4764
      %4766 = vrot.lane.b32.xlu0 %v4307, 104
      %v4767 = vpop.permute.xlu0 %4766
      %4768 = vrot.lane.b32.xlu0 %v4312, 104
      %v4769 = vpop.permute.xlu0 %4768
      %4770 = vrot.lane.b32.xlu0 %v4317, 104
      %v4771 = vpop.permute.xlu0 %4770
      %4772 = vrot.lane.b32.xlu0 %v4322, 104
      %v4773 = vpop.permute.xlu0 %4772
      %4774 = vrot.lane.b32.xlu0 %v4327, 104
      %v4775 = vpop.permute.xlu0 %4774
      %4776 = vrot.lane.b32.xlu0 %v4332, 104
      %v4777 = vpop.permute.xlu0 %4776
      %4778 = vrot.lane.b32.xlu0 %v4337, 104
      %v4779 = vpop.permute.xlu0 %4778
      %v4808 = vadd.f32 %v4694, %v4725
      %v4809 = vadd.f32 %v4695, %v4727
      %v4810 = vadd.f32 %v4696, %v4729
      %v4811 = vadd.f32 %v4697, %v4731
      %v4812 = vadd.f32 %v4698, %v4733
      %v4813 = vadd.f32 %v4699, %v4735
      %v4814 = vadd.f32 %v4700, %v4737
      %v4815 = vadd.f32 %v4701, %v4739
      %v4816 = vadd.f32 %v4702, %v4741
      %v4817 = vadd.f32 %v4703, %v4743
      %v4818 = vadd.f32 %v4704, %v4745
      %v4819 = vadd.f32 %v4705, %v4747
      %v4820 = vadd.f32 %v4706, %v4749
      %v4821 = vadd.f32 %v4707, %v4751
      %v4822 = vadd.f32 %v4708, %v4753
      %v4823 = vadd.f32 %v4709, %v4755
      %v4824 = vadd.f32 %v4710, %v4757
      %v4825 = vadd.f32 %v4711, %v4759
      %v4826 = vadd.f32 %v4712, %v4761
      %v4827 = vadd.f32 %v4713, %v4763
      %v4828 = vadd.f32 %v4714, %v4765
      %v4829 = vadd.f32 %v4715, %v4767
      %v4830 = vadd.f32 %v4716, %v4769
      %v4831 = vadd.f32 %v4717, %v4771
      %v4832 = vadd.f32 %v4718, %v4773
      %v4833 = vadd.f32 %v4719, %v4775
      %v4834 = vadd.f32 %v4720, %v4777
      %v4835 = vadd.f32 %v4721, %v4779
      %v4836 = vrot.slane %v4332, 1
      %v4837 = vrot.slane %v4337, 1
      %v4838 = vsel %vm1120, %v4836, %v4837
      %4839 = vrot.lane.b32.xlu0 %v4419, 96
      %v4840 = vpop.permute.xlu0 %4839
      %4841 = vrot.lane.b32.xlu0 %v4418, 96
      %v4842 = vpop.permute.xlu0 %4841
      %4843 = vrot.lane.b32.xlu0 %v4422, 96
      %v4844 = vpop.permute.xlu0 %4843
      %4845 = vrot.lane.b32.xlu0 %v4421, 96
      %v4846 = vpop.permute.xlu0 %4845
      %4847 = vrot.lane.b32.xlu0 %v4425, 96
      %v4848 = vpop.permute.xlu0 %4847
      %4849 = vrot.lane.b32.xlu0 %v4424, 96
      %v4850 = vpop.permute.xlu0 %4849
      %4851 = vrot.lane.b32.xlu0 %v4428, 96
      %v4852 = vpop.permute.xlu0 %4851
      %4853 = vrot.lane.b32.xlu0 %v4427, 96
      %v4854 = vpop.permute.xlu0 %4853
      %4855 = vrot.lane.b32.xlu0 %v4431, 96
      %v4856 = vpop.permute.xlu0 %4855
      %4857 = vrot.lane.b32.xlu0 %v4430, 96
      %v4858 = vpop.permute.xlu0 %4857
      %4859 = vrot.lane.b32.xlu0 %v4434, 96
      %v4860 = vpop.permute.xlu0 %4859
      %4861 = vrot.lane.b32.xlu0 %v4433, 96
      %v4862 = vpop.permute.xlu0 %4861
      %4863 = vrot.lane.b32.xlu0 %v4437, 96
      %v4864 = vpop.permute.xlu0 %4863
      %4865 = vrot.lane.b32.xlu0 %v4436, 96
      %v4866 = vpop.permute.xlu0 %4865
      %4867 = vrot.lane.b32.xlu0 %v4440, 96
      %v4868 = vpop.permute.xlu0 %4867
      %4869 = vrot.lane.b32.xlu0 %v4439, 96
      %v4870 = vpop.permute.xlu0 %4869
      %4871 = vrot.lane.b32.xlu0 %v4443, 96
      %v4872 = vpop.permute.xlu0 %4871
      %4873 = vrot.lane.b32.xlu0 %v4442, 96
      %v4874 = vpop.permute.xlu0 %4873
      %4875 = vrot.lane.b32.xlu0 %v4446, 96
      %v4876 = vpop.permute.xlu0 %4875
      %4877 = vrot.lane.b32.xlu0 %v4445, 96
      %v4878 = vpop.permute.xlu0 %4877
      %4879 = vrot.lane.b32.xlu0 %v4449, 96
      %v4880 = vpop.permute.xlu0 %4879
      %4881 = vrot.lane.b32.xlu0 %v4448, 96
      %v4882 = vpop.permute.xlu0 %4881
      %4883 = vrot.lane.b32.xlu0 %v4452, 96
      %v4884 = vpop.permute.xlu0 %4883
      %4885 = vrot.lane.b32.xlu0 %v4451, 96
      %v4886 = vpop.permute.xlu0 %4885
      %4887 = vrot.lane.b32.xlu0 %v4455, 96
      %v4888 = vpop.permute.xlu0 %4887
      %4889 = vrot.lane.b32.xlu0 %v4454, 96
      %v4890 = vpop.permute.xlu0 %4889
      %4891 = vrot.lane.b32.xlu0 %v4838, 96
      %v4892 = vpop.permute.xlu0 %4891
      %4893 = vrot.lane.b32.xlu0 %v4837, 96
      %v4894 = vpop.permute.xlu0 %4893
      %v4923 = vadd.f32 %v4808, %v4840
      %v4924 = vadd.f32 %v4809, %v4842
      %v4925 = vadd.f32 %v4810, %v4844
      %v4926 = vadd.f32 %v4811, %v4846
      %v4927 = vadd.f32 %v4812, %v4848
      %v4928 = vadd.f32 %v4813, %v4850
      %v4929 = vadd.f32 %v4814, %v4852
      %v4930 = vadd.f32 %v4815, %v4854
      %v4931 = vadd.f32 %v4816, %v4856
      %v4932 = vadd.f32 %v4817, %v4858
      %v4933 = vadd.f32 %v4818, %v4860
      %v4934 = vadd.f32 %v4819, %v4862
      %v4935 = vadd.f32 %v4820, %v4864
      %v4936 = vadd.f32 %v4821, %v4866
      %v4937 = vadd.f32 %v4822, %v4868
      %v4938 = vadd.f32 %v4823, %v4870
      %v4939 = vadd.f32 %v4824, %v4872
      %v4940 = vadd.f32 %v4825, %v4874
      %v4941 = vadd.f32 %v4826, %v4876
      %v4942 = vadd.f32 %v4827, %v4878
      %v4943 = vadd.f32 %v4828, %v4880
      %v4944 = vadd.f32 %v4829, %v4882
      %v4945 = vadd.f32 %v4830, %v4884
      %v4946 = vadd.f32 %v4831, %v4886
      %v4947 = vadd.f32 %v4832, %v4888
      %v4948 = vadd.f32 %v4833, %v4890
      %v4949 = vadd.f32 %v4834, %v4892
      %v4950 = vadd.f32 %v4835, %v4894
      %v4951 = vrot.slane %v4332, 2
      %v4952 = vrot.slane %v4337, 2
      %v4953 = vsel %vm1275, %v4951, %v4952
      %4954 = vrot.lane.b32.xlu0 %v4573, 88
      %v4955 = vpop.permute.xlu0 %4954
      %4956 = vrot.lane.b32.xlu0 %v4572, 88
      %v4957 = vpop.permute.xlu0 %4956
      %4958 = vrot.lane.b32.xlu0 %v4576, 88
      %v4959 = vpop.permute.xlu0 %4958
      %4960 = vrot.lane.b32.xlu0 %v4575, 88
      %v4961 = vpop.permute.xlu0 %4960
      %4962 = vrot.lane.b32.xlu0 %v4579, 88
      %v4963 = vpop.permute.xlu0 %4962
      %4964 = vrot.lane.b32.xlu0 %v4578, 88
      %v4965 = vpop.permute.xlu0 %4964
      %4966 = vrot.lane.b32.xlu0 %v4582, 88
      %v4967 = vpop.permute.xlu0 %4966
      %4968 = vrot.lane.b32.xlu0 %v4581, 88
      %v4969 = vpop.permute.xlu0 %4968
      %4970 = vrot.lane.b32.xlu0 %v4585, 88
      %v4971 = vpop.permute.xlu0 %4970
      %4972 = vrot.lane.b32.xlu0 %v4584, 88
      %v4973 = vpop.permute.xlu0 %4972
      %4974 = vrot.lane.b32.xlu0 %v4588, 88
      %v4975 = vpop.permute.xlu0 %4974
      %4976 = vrot.lane.b32.xlu0 %v4587, 88
      %v4977 = vpop.permute.xlu0 %4976
      %4978 = vrot.lane.b32.xlu0 %v4591, 88
      %v4979 = vpop.permute.xlu0 %4978
      %4980 = vrot.lane.b32.xlu0 %v4590, 88
      %v4981 = vpop.permute.xlu0 %4980
      %4982 = vrot.lane.b32.xlu0 %v4594, 88
      %v4983 = vpop.permute.xlu0 %4982
      %4984 = vrot.lane.b32.xlu0 %v4593, 88
      %v4985 = vpop.permute.xlu0 %4984
      %4986 = vrot.lane.b32.xlu0 %v4597, 88
      %v4987 = vpop.permute.xlu0 %4986
      %4988 = vrot.lane.b32.xlu0 %v4596, 88
      %v4989 = vpop.permute.xlu0 %4988
      %4990 = vrot.lane.b32.xlu0 %v4600, 88
      %v4991 = vpop.permute.xlu0 %4990
      %4992 = vrot.lane.b32.xlu0 %v4599, 88
      %v4993 = vpop.permute.xlu0 %4992
      %4994 = vrot.lane.b32.xlu0 %v4603, 88
      %v4995 = vpop.permute.xlu0 %4994
      %4996 = vrot.lane.b32.xlu0 %v4602, 88
      %v4997 = vpop.permute.xlu0 %4996
      %4998 = vrot.lane.b32.xlu0 %v4606, 88
      %v4999 = vpop.permute.xlu0 %4998
      %5000 = vrot.lane.b32.xlu0 %v4605, 88
      %v5001 = vpop.permute.xlu0 %5000
      %5002 = vrot.lane.b32.xlu0 %v4609, 88
      %v5003 = vpop.permute.xlu0 %5002
      %5004 = vrot.lane.b32.xlu0 %v4608, 88
      %v5005 = vpop.permute.xlu0 %5004
      %5006 = vrot.lane.b32.xlu0 %v4953, 88
      %v5007 = vpop.permute.xlu0 %5006
      %5008 = vrot.lane.b32.xlu0 %v4952, 88
      %v5009 = vpop.permute.xlu0 %5008
      %v5038 = vadd.f32 %v4923, %v4955
      %v5039 = vadd.f32 %v4924, %v4957
      %v5040 = vadd.f32 %v4925, %v4959
      %v5041 = vadd.f32 %v4926, %v4961
      %v5042 = vadd.f32 %v4927, %v4963
      %v5043 = vadd.f32 %v4928, %v4965
      %v5044 = vadd.f32 %v4929, %v4967
      %v5045 = vadd.f32 %v4930, %v4969
      %v5046 = vadd.f32 %v4931, %v4971
      %v5047 = vadd.f32 %v4932, %v4973
      %v5048 = vadd.f32 %v4933, %v4975
      %v5049 = vadd.f32 %v4934, %v4977
      %v5050 = vadd.f32 %v4935, %v4979
      %v5051 = vadd.f32 %v4936, %v4981
      %v5052 = vadd.f32 %v4937, %v4983
      %v5053 = vadd.f32 %v4938, %v4985
      %v5054 = vadd.f32 %v4939, %v4987
      %v5055 = vadd.f32 %v4940, %v4989
      %v5056 = vadd.f32 %v4941, %v4991
      %v5057 = vadd.f32 %v4942, %v4993
      %v5058 = vadd.f32 %v4943, %v4995
      %v5059 = vadd.f32 %v4944, %v4997
      %v5060 = vadd.f32 %v4945, %v4999
      %v5061 = vadd.f32 %v4946, %v5001
      %v5062 = vadd.f32 %v4947, %v5003
      %v5063 = vadd.f32 %v4948, %v5005
      %v5064 = vadd.f32 %v4949, %v5007
      %v5065 = vadd.f32 %v4950, %v5009
      %5068 = vrot.lane.b32.xlu0 %v4212, 80
      %v5069 = vpop.permute.xlu0 %5068
      %5070 = vrot.lane.b32.xlu0 %v4217, 80
      %v5071 = vpop.permute.xlu0 %5070
      %5072 = vrot.lane.b32.xlu0 %v4222, 80
      %v5073 = vpop.permute.xlu0 %5072
      %5074 = vrot.lane.b32.xlu0 %v4227, 80
      %v5075 = vpop.permute.xlu0 %5074
      %5076 = vrot.lane.b32.xlu0 %v4232, 80
      %v5077 = vpop.permute.xlu0 %5076
      %5078 = vrot.lane.b32.xlu0 %v4237, 80
      %v5079 = vpop.permute.xlu0 %5078
      %5080 = vrot.lane.b32.xlu0 %v4242, 80
      %v5081 = vpop.permute.xlu0 %5080
      %5082 = vrot.lane.b32.xlu0 %v4247, 80
      %v5083 = vpop.permute.xlu0 %5082
      %5084 = vrot.lane.b32.xlu0 %v4252, 80
      %v5085 = vpop.permute.xlu0 %5084
      %5086 = vrot.lane.b32.xlu0 %v4257, 80
      %v5087 = vpop.permute.xlu0 %5086
      %5088 = vrot.lane.b32.xlu0 %v4262, 80
      %v5089 = vpop.permute.xlu0 %5088
      %5090 = vrot.lane.b32.xlu0 %v4267, 80
      %v5091 = vpop.permute.xlu0 %5090
      %5092 = vrot.lane.b32.xlu0 %v4272, 80
      %v5093 = vpop.permute.xlu0 %5092
      %5094 = vrot.lane.b32.xlu0 %v4277, 80
      %v5095 = vpop.permute.xlu0 %5094
      %5096 = vrot.lane.b32.xlu0 %v4282, 80
      %v5097 = vpop.permute.xlu0 %5096
      %5098 = vrot.lane.b32.xlu0 %v4287, 80
      %v5099 = vpop.permute.xlu0 %5098
      %5100 = vrot.lane.b32.xlu0 %v4292, 80
      %v5101 = vpop.permute.xlu0 %5100
      %5102 = vrot.lane.b32.xlu0 %v4297, 80
      %v5103 = vpop.permute.xlu0 %5102
      %5104 = vrot.lane.b32.xlu0 %v4302, 80
      %v5105 = vpop.permute.xlu0 %5104
      %5106 = vrot.lane.b32.xlu0 %v4307, 80
      %v5107 = vpop.permute.xlu0 %5106
      %5108 = vrot.lane.b32.xlu0 %v4312, 80
      %v5109 = vpop.permute.xlu0 %5108
      %5110 = vrot.lane.b32.xlu0 %v4317, 80
      %v5111 = vpop.permute.xlu0 %5110
      %5112 = vrot.lane.b32.xlu0 %v4322, 80
      %v5113 = vpop.permute.xlu0 %5112
      %5114 = vrot.lane.b32.xlu0 %v4327, 80
      %v5115 = vpop.permute.xlu0 %5114
      %5116 = vrot.lane.b32.xlu0 %v4332, 80
      %v5117 = vpop.permute.xlu0 %5116
      %5118 = vrot.lane.b32.xlu0 %v4337, 80
      %v5119 = vpop.permute.xlu0 %5118
      %5120 = vrot.lane.b32.xlu0 %v4342, 80
      %v5121 = vpop.permute.xlu0 %5120
      %5122 = vrot.lane.b32.xlu0 %v4347, 80
      %v5123 = vpop.permute.xlu0 %5122
      %v5152 = vadd.f32 %v5038, %v5069
      %v5153 = vadd.f32 %v5039, %v5071
      %v5154 = vadd.f32 %v5040, %v5073
      %v5155 = vadd.f32 %v5041, %v5075
      %v5156 = vadd.f32 %v5042, %v5077
      %v5157 = vadd.f32 %v5043, %v5079
      %v5158 = vadd.f32 %v5044, %v5081
      %v5159 = vadd.f32 %v5045, %v5083
      %v5160 = vadd.f32 %v5046, %v5085
      %v5161 = vadd.f32 %v5047, %v5087
      %v5162 = vadd.f32 %v5048, %v5089
      %v5163 = vadd.f32 %v5049, %v5091
      %v5164 = vadd.f32 %v5050, %v5093
      %v5165 = vadd.f32 %v5051, %v5095
      %v5166 = vadd.f32 %v5052, %v5097
      %v5167 = vadd.f32 %v5053, %v5099
      %v5168 = vadd.f32 %v5054, %v5101
      %v5169 = vadd.f32 %v5055, %v5103
      %v5170 = vadd.f32 %v5056, %v5105
      %v5171 = vadd.f32 %v5057, %v5107
      %v5172 = vadd.f32 %v5058, %v5109
      %v5173 = vadd.f32 %v5059, %v5111
      %v5174 = vadd.f32 %v5060, %v5113
      %v5175 = vadd.f32 %v5061, %v5115
      %v5176 = vadd.f32 %v5062, %v5117
      %v5177 = vadd.f32 %v5063, %v5119
      %v5178 = vadd.f32 %v5064, %v5121
      %v5179 = vadd.f32 %v5065, %v5123
      %v5180 = vrot.slane %v4342, 1
      %v5181 = vrot.slane %v4347, 1
      %v5182 = vsel %vm1120, %v5180, %v5181
      %5183 = vrot.lane.b32.xlu0 %v4422, 72
      %v5184 = vpop.permute.xlu0 %5183
      %5185 = vrot.lane.b32.xlu0 %v4421, 72
      %v5186 = vpop.permute.xlu0 %5185
      %5187 = vrot.lane.b32.xlu0 %v4425, 72
      %v5188 = vpop.permute.xlu0 %5187
      %5189 = vrot.lane.b32.xlu0 %v4424, 72
      %v5190 = vpop.permute.xlu0 %5189
      %5191 = vrot.lane.b32.xlu0 %v4428, 72
      %v5192 = vpop.permute.xlu0 %5191
      %5193 = vrot.lane.b32.xlu0 %v4427, 72
      %v5194 = vpop.permute.xlu0 %5193
      %5195 = vrot.lane.b32.xlu0 %v4431, 72
      %v5196 = vpop.permute.xlu0 %5195
      %5197 = vrot.lane.b32.xlu0 %v4430, 72
      %v5198 = vpop.permute.xlu0 %5197
      %5199 = vrot.lane.b32.xlu0 %v4434, 72
      %v5200 = vpop.permute.xlu0 %5199
      %5201 = vrot.lane.b32.xlu0 %v4433, 72
      %v5202 = vpop.permute.xlu0 %5201
      %5203 = vrot.lane.b32.xlu0 %v4437, 72
      %v5204 = vpop.permute.xlu0 %5203
      %5205 = vrot.lane.b32.xlu0 %v4436, 72
      %v5206 = vpop.permute.xlu0 %5205
      %5207 = vrot.lane.b32.xlu0 %v4440, 72
      %v5208 = vpop.permute.xlu0 %5207
      %5209 = vrot.lane.b32.xlu0 %v4439, 72
      %v5210 = vpop.permute.xlu0 %5209
      %5211 = vrot.lane.b32.xlu0 %v4443, 72
      %v5212 = vpop.permute.xlu0 %5211
      %5213 = vrot.lane.b32.xlu0 %v4442, 72
      %v5214 = vpop.permute.xlu0 %5213
      %5215 = vrot.lane.b32.xlu0 %v4446, 72
      %v5216 = vpop.permute.xlu0 %5215
      %5217 = vrot.lane.b32.xlu0 %v4445, 72
      %v5218 = vpop.permute.xlu0 %5217
      %5219 = vrot.lane.b32.xlu0 %v4449, 72
      %v5220 = vpop.permute.xlu0 %5219
      %5221 = vrot.lane.b32.xlu0 %v4448, 72
      %v5222 = vpop.permute.xlu0 %5221
      %5223 = vrot.lane.b32.xlu0 %v4452, 72
      %v5224 = vpop.permute.xlu0 %5223
      %5225 = vrot.lane.b32.xlu0 %v4451, 72
      %v5226 = vpop.permute.xlu0 %5225
      %5227 = vrot.lane.b32.xlu0 %v4455, 72
      %v5228 = vpop.permute.xlu0 %5227
      %5229 = vrot.lane.b32.xlu0 %v4454, 72
      %v5230 = vpop.permute.xlu0 %5229
      %5231 = vrot.lane.b32.xlu0 %v4838, 72
      %v5232 = vpop.permute.xlu0 %5231
      %5233 = vrot.lane.b32.xlu0 %v4837, 72
      %v5234 = vpop.permute.xlu0 %5233
      %5235 = vrot.lane.b32.xlu0 %v5182, 72
      %v5236 = vpop.permute.xlu0 %5235
      %5237 = vrot.lane.b32.xlu0 %v5181, 72
      %v5238 = vpop.permute.xlu0 %5237
      %v5267 = vadd.f32 %v5152, %v5184
      %v5268 = vadd.f32 %v5153, %v5186
      %v5269 = vadd.f32 %v5154, %v5188
      %v5270 = vadd.f32 %v5155, %v5190
      %v5271 = vadd.f32 %v5156, %v5192
      %v5272 = vadd.f32 %v5157, %v5194
      %v5273 = vadd.f32 %v5158, %v5196
      %v5274 = vadd.f32 %v5159, %v5198
      %v5275 = vadd.f32 %v5160, %v5200
      %v5276 = vadd.f32 %v5161, %v5202
      %v5277 = vadd.f32 %v5162, %v5204
      %v5278 = vadd.f32 %v5163, %v5206
      %v5279 = vadd.f32 %v5164, %v5208
      %v5280 = vadd.f32 %v5165, %v5210
      %v5281 = vadd.f32 %v5166, %v5212
      %v5282 = vadd.f32 %v5167, %v5214
      %v5283 = vadd.f32 %v5168, %v5216
      %v5284 = vadd.f32 %v5169, %v5218
      %v5285 = vadd.f32 %v5170, %v5220
      %v5286 = vadd.f32 %v5171, %v5222
      %v5287 = vadd.f32 %v5172, %v5224
      %v5288 = vadd.f32 %v5173, %v5226
      %v5289 = vadd.f32 %v5174, %v5228
      %v5290 = vadd.f32 %v5175, %v5230
      %v5291 = vadd.f32 %v5176, %v5232
      %v5292 = vadd.f32 %v5177, %v5234
      %v5293 = vadd.f32 %v5178, %v5236
      %v5294 = vadd.f32 %v5179, %v5238
      %v5295 = vrot.slane %v4342, 2
      %v5296 = vrot.slane %v4347, 2
      %v5297 = vsel %vm1275, %v5295, %v5296
      %5298 = vrot.lane.b32.xlu0 %v4576, 64
      %v5299 = vpop.permute.xlu0 %5298
      %5300 = vrot.lane.b32.xlu0 %v4575, 64
      %v5301 = vpop.permute.xlu0 %5300
      %5302 = vrot.lane.b32.xlu0 %v4579, 64
      %v5303 = vpop.permute.xlu0 %5302
      %5304 = vrot.lane.b32.xlu0 %v4578, 64
      %v5305 = vpop.permute.xlu0 %5304
      %5306 = vrot.lane.b32.xlu0 %v4582, 64
      %v5307 = vpop.permute.xlu0 %5306
      %5308 = vrot.lane.b32.xlu0 %v4581, 64
      %v5309 = vpop.permute.xlu0 %5308
      %5310 = vrot.lane.b32.xlu0 %v4585, 64
      %v5311 = vpop.permute.xlu0 %5310
      %5312 = vrot.lane.b32.xlu0 %v4584, 64
      %v5313 = vpop.permute.xlu0 %5312
      %5314 = vrot.lane.b32.xlu0 %v4588, 64
      %v5315 = vpop.permute.xlu0 %5314
      %5316 = vrot.lane.b32.xlu0 %v4587, 64
      %v5317 = vpop.permute.xlu0 %5316
      %5318 = vrot.lane.b32.xlu0 %v4591, 64
      %v5319 = vpop.permute.xlu0 %5318
      %5320 = vrot.lane.b32.xlu0 %v4590, 64
      %v5321 = vpop.permute.xlu0 %5320
      %5322 = vrot.lane.b32.xlu0 %v4594, 64
      %v5323 = vpop.permute.xlu0 %5322
      %5324 = vrot.lane.b32.xlu0 %v4593, 64
      %v5325 = vpop.permute.xlu0 %5324
      %5326 = vrot.lane.b32.xlu0 %v4597, 64
      %v5327 = vpop.permute.xlu0 %5326
      %5328 = vrot.lane.b32.xlu0 %v4596, 64
      %v5329 = vpop.permute.xlu0 %5328
      %5330 = vrot.lane.b32.xlu0 %v4600, 64
      %v5331 = vpop.permute.xlu0 %5330
      %5332 = vrot.lane.b32.xlu0 %v4599, 64
      %v5333 = vpop.permute.xlu0 %5332
      %5334 = vrot.lane.b32.xlu0 %v4603, 64
      %v5335 = vpop.permute.xlu0 %5334
      %5336 = vrot.lane.b32.xlu0 %v4602, 64
      %v5337 = vpop.permute.xlu0 %5336
      %5338 = vrot.lane.b32.xlu0 %v4606, 64
      %v5339 = vpop.permute.xlu0 %5338
      %5340 = vrot.lane.b32.xlu0 %v4605, 64
      %v5341 = vpop.permute.xlu0 %5340
      %5342 = vrot.lane.b32.xlu0 %v4609, 64
      %v5343 = vpop.permute.xlu0 %5342
      %5344 = vrot.lane.b32.xlu0 %v4608, 64
      %v5345 = vpop.permute.xlu0 %5344
      %5346 = vrot.lane.b32.xlu0 %v4953, 64
      %v5347 = vpop.permute.xlu0 %5346
      %5348 = vrot.lane.b32.xlu0 %v4952, 64
      %v5349 = vpop.permute.xlu0 %5348
      %5350 = vrot.lane.b32.xlu0 %v5297, 64
      %v5351 = vpop.permute.xlu0 %5350
      %5352 = vrot.lane.b32.xlu0 %v5296, 64
      %v5353 = vpop.permute.xlu0 %5352
      %v5382 = vadd.f32 %v5267, %v5299
      %v5383 = vadd.f32 %v5268, %v5301
      %v5384 = vadd.f32 %v5269, %v5303
      %v5385 = vadd.f32 %v5270, %v5305
      %v5386 = vadd.f32 %v5271, %v5307
      %v5387 = vadd.f32 %v5272, %v5309
      %v5388 = vadd.f32 %v5273, %v5311
      %v5389 = vadd.f32 %v5274, %v5313
      %v5390 = vadd.f32 %v5275, %v5315
      %v5391 = vadd.f32 %v5276, %v5317
      %v5392 = vadd.f32 %v5277, %v5319
      %v5393 = vadd.f32 %v5278, %v5321
      %v5394 = vadd.f32 %v5279, %v5323
      %v5395 = vadd.f32 %v5280, %v5325
      %v5396 = vadd.f32 %v5281, %v5327
      %v5397 = vadd.f32 %v5282, %v5329
      %v5398 = vadd.f32 %v5283, %v5331
      %v5399 = vadd.f32 %v5284, %v5333
      %v5400 = vadd.f32 %v5285, %v5335
      %v5401 = vadd.f32 %v5286, %v5337
      %v5402 = vadd.f32 %v5287, %v5339
      %v5403 = vadd.f32 %v5288, %v5341
      %v5404 = vadd.f32 %v5289, %v5343
      %v5405 = vadd.f32 %v5290, %v5345
      %v5406 = vadd.f32 %v5291, %v5347
      %v5407 = vadd.f32 %v5292, %v5349
      %v5408 = vadd.f32 %v5293, %v5351
      %v5409 = vadd.f32 %v5294, %v5353
      %vm5410 = vcmp.ge.f32.partialorder %v5382, 0.0
      %vm5411 = vcmp.ge.f32.partialorder %v5383, 0.0
      %vm5412 = vcmp.ge.f32.partialorder %v5384, 0.0
      %vm5413 = vcmp.ge.f32.partialorder %v5385, 0.0
      %vm5414 = vcmp.ge.f32.partialorder %v5386, 0.0
      %vm5415 = vcmp.ge.f32.partialorder %v5387, 0.0
      %vm5416 = vcmp.ge.f32.partialorder %v5388, 0.0
      %vm5417 = vcmp.ge.f32.partialorder %v5389, 0.0
      %vm5418 = vcmp.ge.f32.partialorder %v5390, 0.0
      %vm5419 = vcmp.ge.f32.partialorder %v5391, 0.0
      %vm5420 = vcmp.ge.f32.partialorder %v5392, 0.0
      %vm5421 = vcmp.ge.f32.partialorder %v5393, 0.0
      %vm5422 = vcmp.ge.f32.partialorder %v5394, 0.0
      %vm5423 = vcmp.ge.f32.partialorder %v5395, 0.0
      %vm5424 = vcmp.ge.f32.partialorder %v5396, 0.0
      %vm5425 = vcmp.ge.f32.partialorder %v5397, 0.0
      %vm5426 = vcmp.ge.f32.partialorder %v5398, 0.0
      %vm5427 = vcmp.ge.f32.partialorder %v5399, 0.0
      %vm5428 = vcmp.ge.f32.partialorder %v5400, 0.0
      %vm5429 = vcmp.ge.f32.partialorder %v5401, 0.0
      %vm5430 = vcmp.ge.f32.partialorder %v5402, 0.0
      %vm5431 = vcmp.ge.f32.partialorder %v5403, 0.0
      %vm5432 = vcmp.ge.f32.partialorder %v5404, 0.0
      %vm5433 = vcmp.ge.f32.partialorder %v5405, 0.0
      %vm5434 = vcmp.ge.f32.partialorder %v5406, 0.0
      %vm5435 = vcmp.ge.f32.partialorder %v5407, 0.0
      %vm5436 = vcmp.ge.f32.partialorder %v5408, 0.0
      %vm5437 = vcmp.ge.f32.partialorder %v5409, 0.0
      %v5438 = vmul.f32 %v5382, 0.2
      %v5439 = vmul.f32 %v5383, 0.2
      %v5440 = vmul.f32 %v5384, 0.2
      %v5441 = vmul.f32 %v5385, 0.2
      %v5442 = vmul.f32 %v5386, 0.2
      %v5443 = vmul.f32 %v5387, 0.2
      %v5444 = vmul.f32 %v5388, 0.2
      %v5445 = vmul.f32 %v5389, 0.2
      %v5446 = vmul.f32 %v5390, 0.2
      %v5447 = vmul.f32 %v5391, 0.2
      %v5448 = vmul.f32 %v5392, 0.2
      %v5449 = vmul.f32 %v5393, 0.2
      %v5450 = vmul.f32 %v5394, 0.2
      %v5451 = vmul.f32 %v5395, 0.2
      %v5452 = vmul.f32 %v5396, 0.2
      %v5453 = vmul.f32 %v5397, 0.2
      %v5454 = vmul.f32 %v5398, 0.2
      %v5455 = vmul.f32 %v5399, 0.2
      %v5456 = vmul.f32 %v5400, 0.2
      %v5457 = vmul.f32 %v5401, 0.2
      %v5458 = vmul.f32 %v5402, 0.2
      %v5459 = vmul.f32 %v5403, 0.2
      %v5460 = vmul.f32 %v5404, 0.2
      %v5461 = vmul.f32 %v5405, 0.2
      %v5462 = vmul.f32 %v5406, 0.2
      %v5463 = vmul.f32 %v5407, 0.2
      %v5464 = vmul.f32 %v5408, 0.2
      %v5465 = vmul.f32 %v5409, 0.2
      %v5466 = vsel %vm5410, %v5382, %v5438
      %v5467 = vsel %vm5411, %v5383, %v5439
      %v5468 = vsel %vm5412, %v5384, %v5440
      %v5469 = vsel %vm5413, %v5385, %v5441
      %v5470 = vsel %vm5414, %v5386, %v5442
      %v5471 = vsel %vm5415, %v5387, %v5443
      %v5472 = vsel %vm5416, %v5388, %v5444
      %v5473 = vsel %vm5417, %v5389, %v5445
      %v5474 = vsel %vm5418, %v5390, %v5446
      %v5475 = vsel %vm5419, %v5391, %v5447
      %v5476 = vsel %vm5420, %v5392, %v5448
      %v5477 = vsel %vm5421, %v5393, %v5449
      %v5478 = vsel %vm5422, %v5394, %v5450
      %v5479 = vsel %vm5423, %v5395, %v5451
      %v5480 = vsel %vm5424, %v5396, %v5452
      %v5481 = vsel %vm5425, %v5397, %v5453
      %v5482 = vsel %vm5426, %v5398, %v5454
      %v5483 = vsel %vm5427, %v5399, %v5455
      %v5484 = vsel %vm5428, %v5400, %v5456
      %v5485 = vsel %vm5429, %v5401, %v5457
      %v5486 = vsel %vm5430, %v5402, %v5458
      %v5487 = vsel %vm5431, %v5403, %v5459
      %v5488 = vsel %vm5432, %v5404, %v5460
      %v5489 = vsel %vm5433, %v5405, %v5461
      %v5490 = vsel %vm5434, %v5406, %v5462
      %v5491 = vsel %vm5435, %v5407, %v5463
      %v5492 = vsel %vm5436, %v5408, %v5464
      %v5493 = vsel %vm5437, %v5409, %v5465
      %5522 = vrot.lane.b32.xlu0 %v5466, 32
      %v5523 = vpop.permute.xlu0 %5522
      %5524 = vrot.lane.b32.xlu0 %v5467, 32
      %v5525 = vpop.permute.xlu0 %5524
      %5526 = vrot.lane.b32.xlu0 %v5468, 32
      %v5527 = vpop.permute.xlu0 %5526
      %5528 = vrot.lane.b32.xlu0 %v5469, 32
      %v5529 = vpop.permute.xlu0 %5528
      %5530 = vrot.lane.b32.xlu0 %v5470, 32
      %v5531 = vpop.permute.xlu0 %5530
      %5532 = vrot.lane.b32.xlu0 %v5471, 32
      %v5533 = vpop.permute.xlu0 %5532
      %5534 = vrot.lane.b32.xlu0 %v5472, 32
      %v5535 = vpop.permute.xlu0 %5534
      %5536 = vrot.lane.b32.xlu0 %v5473, 32
      %v5537 = vpop.permute.xlu0 %5536
      %5538 = vrot.lane.b32.xlu0 %v5474, 32
      %v5539 = vpop.permute.xlu0 %5538
      %5540 = vrot.lane.b32.xlu0 %v5475, 32
      %v5541 = vpop.permute.xlu0 %5540
      %5542 = vrot.lane.b32.xlu0 %v5476, 32
      %v5543 = vpop.permute.xlu0 %5542
      %5544 = vrot.lane.b32.xlu0 %v5477, 32
      %v5545 = vpop.permute.xlu0 %5544
      %5546 = vrot.lane.b32.xlu0 %v5478, 32
      %v5547 = vpop.permute.xlu0 %5546
      %5548 = vrot.lane.b32.xlu0 %v5479, 32
      %v5549 = vpop.permute.xlu0 %5548
      %5550 = vrot.lane.b32.xlu0 %v5480, 32
      %v5551 = vpop.permute.xlu0 %5550
      %5552 = vrot.lane.b32.xlu0 %v5481, 32
      %v5553 = vpop.permute.xlu0 %5552
      %5554 = vrot.lane.b32.xlu0 %v5482, 32
      %v5555 = vpop.permute.xlu0 %5554
      %5556 = vrot.lane.b32.xlu0 %v5483, 32
      %v5557 = vpop.permute.xlu0 %5556
      %5558 = vrot.lane.b32.xlu0 %v5484, 32
      %v5559 = vpop.permute.xlu0 %5558
      %5560 = vrot.lane.b32.xlu0 %v5485, 32
      %v5561 = vpop.permute.xlu0 %5560
      %5562 = vrot.lane.b32.xlu0 %v5486, 32
      %v5563 = vpop.permute.xlu0 %5562
      %5564 = vrot.lane.b32.xlu0 %v5487, 32
      %v5565 = vpop.permute.xlu0 %5564
      %5566 = vrot.lane.b32.xlu0 %v5488, 32
      %v5567 = vpop.permute.xlu0 %5566
      %5568 = vrot.lane.b32.xlu0 %v5489, 32
      %v5569 = vpop.permute.xlu0 %5568
      %5570 = vrot.lane.b32.xlu0 %v5490, 32
      %v5571 = vpop.permute.xlu0 %5570
      %5572 = vrot.lane.b32.xlu0 %v5491, 32
      %v5573 = vpop.permute.xlu0 %5572
      %5574 = vrot.lane.b32.xlu0 %v5492, 32
      %v5575 = vpop.permute.xlu0 %5574
      %5576 = vrot.lane.b32.xlu0 %v5493, 32
      %v5577 = vpop.permute.xlu0 %5576
      %vm5606 = vcmask 326912
      %5607 = vst.msk [vmem:[%s495 + $0x1] sm:$0xff] %vm5606, %v5523
      %vm5608 = vcmask 324864
      %5609 = vst.msk [vmem:[%s495 + $0x9] sm:$0x3f] %vm5608, %v5525
      %5610 = vst.msk [vmem:[%s495 + $0x11] sm:$0xff] %vm5606, %v5527
      %5611 = vst.msk [vmem:[%s495 + $0x19] sm:$0x3f] %vm5608, %v5529
      %5612 = vst.msk [vmem:[%s495 + $0x21] sm:$0xff] %vm5606, %v5531
      %5613 = vst.msk [vmem:[%s495 + $0x29] sm:$0x3f] %vm5608, %v5533
      %5614 = vst.msk [vmem:[%s495 + $0x31] sm:$0xff] %vm5606, %v5535
      %5615 = vst.msk [vmem:[%s495 + $0x39] sm:$0x3f] %vm5608, %v5537
      %5616 = vst.msk [vmem:[%s495 + $0x41] sm:$0xff] %vm5606, %v5539
      %5617 = vst.msk [vmem:[%s495 + $0x49] sm:$0x3f] %vm5608, %v5541
      %5618 = vst.msk [vmem:[%s495 + $0x51] sm:$0xff] %vm5606, %v5543
      %5619 = vst.msk [vmem:[%s495 + $0x59] sm:$0x3f] %vm5608, %v5545
      %5620 = vst.msk [vmem:[%s495 + $0x61] sm:$0xff] %vm5606, %v5547
      %5621 = vst.msk [vmem:[%s495 + $0x69] sm:$0x3f] %vm5608, %v5549
      %5622 = vst.msk [vmem:[%s495 + $0x71] sm:$0xff] %vm5606, %v5551
      %5623 = vst.msk [vmem:[%s495 + $0x79] sm:$0x3f] %vm5608, %v5553
      %5624 = vst.msk [vmem:[%s495 + $0x81] sm:$0xff] %vm5606, %v5555
      %5625 = vst.msk [vmem:[%s495 + $0x89] sm:$0x3f] %vm5608, %v5557
      %5626 = vst.msk [vmem:[%s495 + $0x91] sm:$0xff] %vm5606, %v5559
      %5627 = vst.msk [vmem:[%s495 + $0x99] sm:$0x3f] %vm5608, %v5561
      %5628 = vst.msk [vmem:[%s495 + $0xa1] sm:$0xff] %vm5606, %v5563
      %5629 = vst.msk [vmem:[%s495 + $0xa9] sm:$0x3f] %vm5608, %v5565
      %5630 = vst.msk [vmem:[%s495 + $0xb1] sm:$0xff] %vm5606, %v5567
      %5631 = vst.msk [vmem:[%s495 + $0xb9] sm:$0x3f] %vm5608, %v5569
      %5632 = vst.msk [vmem:[%s495 + $0xc1] sm:$0xff] %vm5606, %v5571
      %5633 = vst.msk [vmem:[%s495 + $0xc9] sm:$0x3f] %vm5608, %v5573
      %5634 = vst.msk [vmem:[%s495 + $0xd1] sm:$0xff] %vm5606, %v5575
      %5635 = vst.msk [vmem:[%s495 + $0xd9] sm:$0x3f] %vm5608, %v5577
      %v5636 = vld [vmem:[#allocation2] sm:$0xff]
      %v5637 = vld [vmem:[#allocation2 + $0x8] sm:$0xff]
      %v5638 = vld [vmem:[#allocation2 + $0x10] sm:$0xff]
      %v5639 = vld [vmem:[#allocation2 + $0x18] sm:$0xff]
      %v5640 = vld [vmem:[#allocation2 + $0x20] sm:$0xff]
      %v5641 = vld [vmem:[#allocation2 + $0x28] sm:$0xff]
      %v5642 = vld [vmem:[#allocation2 + $0x30] sm:$0xff]
      %v5643 = vld [vmem:[#allocation2 + $0x38] sm:$0xff]
      %v5644 = vld [vmem:[#allocation2 + $0x40] sm:$0xff]
      %v5645 = vld [vmem:[#allocation2 + $0x48] sm:$0xff]
      %v5646 = vld [vmem:[#allocation2 + $0x50] sm:$0xff]
      %v5647 = vld [vmem:[#allocation2 + $0x58] sm:$0xff]
      %v5648 = vld [vmem:[#allocation2 + $0x60] sm:$0xff]
      %v5649 = vld [vmem:[#allocation2 + $0x68] sm:$0xff]
      %v5650 = vld [vmem:[#allocation2 + $0x70] sm:$0xff]
      %v5651 = vld [vmem:[#allocation2 + $0x78] sm:$0xff]
      %v5652 = vld [vmem:[#allocation2 + $0x80] sm:$0xff]
      %v5653 = vld [vmem:[#allocation2 + $0x88] sm:$0xff]
      %v5654 = vld [vmem:[#allocation2 + $0x90] sm:$0xff]
      %v5655 = vld [vmem:[#allocation2 + $0x98] sm:$0xff]
      %v5656 = vld [vmem:[#allocation2 + $0xa0] sm:$0xff]
      %v5657 = vld [vmem:[#allocation2 + $0xa8] sm:$0xff]
      %v5658 = vld [vmem:[#allocation2 + $0xb0] sm:$0xff]
      %v5659 = vld [vmem:[#allocation2 + $0xb8] sm:$0xff]
      %v5660 = vld [vmem:[#allocation2 + $0xc0] sm:$0xff]
      %v5661 = vld [vmem:[#allocation2 + $0xc8] sm:$0xff]
      %v5662 = vld [vmem:[#allocation2 + $0xd0] sm:$0xff]
      %v5663 = vld [vmem:[#allocation2 + $0xd8] sm:$0xff]
      %v5664 = vld [vmem:[#allocation2 + $0xe0] sm:$0xff]
      %v5665 = vld [vmem:[#allocation2 + $0xe8] sm:$0xff]
      %v5666 = vld [vmem:[#allocation2 + $0xf0] sm:$0xff]
      %v5667 = vld [vmem:[#allocation2 + $0xf8] sm:$0xff]
      %v5668 = vld [vmem:[%s8] sm:$0xff]
      %v5669 = vld [vmem:[%s8 + $0x8] sm:$0xff]
      %v5670 = vld [vmem:[%s8 + $0x10] sm:$0xff]
      %v5671 = vld [vmem:[%s8 + $0x18] sm:$0xff]
      %v5672 = vld [vmem:[%s8 + $0x20] sm:$0xff]
      %v5673 = vld [vmem:[%s8 + $0x28] sm:$0xff]
      %v5674 = vld [vmem:[%s8 + $0x30] sm:$0xff]
      %v5676 = vsel %vm434, %v5636, 0
      %v5679 = vsel %vm434, %v5637, 0
      %v5682 = vsel %vm434, %v5638, 0
      %v5685 = vsel %vm434, %v5639, 0
      %v5688 = vsel %vm434, %v5640, 0
      %v5691 = vsel %vm434, %v5641, 0
      %v5694 = vsel %vm434, %v5642, 0
      %v5697 = vsel %vm434, %v5643, 0
      %v5700 = vsel %vm434, %v5644, 0
      %v5703 = vsel %vm434, %v5645, 0
      %v5706 = vsel %vm434, %v5646, 0
      %v5709 = vsel %vm434, %v5647, 0
      %v5712 = vsel %vm434, %v5648, 0
      %v5715 = vsel %vm434, %v5649, 0
      %v5718 = vsel %vm434, %v5650, 0
      %v5721 = vsel %vm434, %v5651, 0
      %v5724 = vsel %vm434, %v5652, 0
      %v5727 = vsel %vm434, %v5653, 0
      %v5730 = vsel %vm434, %v5654, 0
      %v5733 = vsel %vm434, %v5655, 0
      %v5736 = vsel %vm434, %v5656, 0
      %v5739 = vsel %vm434, %v5657, 0
      %v5742 = vsel %vm434, %v5658, 0
      %v5745 = vsel %vm434, %v5659, 0
      %v5748 = vsel %vm434, %v5660, 0
      %v5751 = vsel %vm434, %v5661, 0
      %v5754 = vsel %vm434, %v5662, 0
      %v5757 = vsel %vm434, %v5663, 0
      %v5760 = vsel %vm434, %v5664, 0
      %v5763 = vsel %vm434, %v5665, 0
      %v5766 = vsel %vm434, %v5666, 0
      %v5769 = vsel %vm434, %v5667, 0
      %5771 = vmatprep.subr.mxu0 0.0
      %5772 = vmatpush1.msra.mxu0 %v5668
      %5773 = vmatprep.subr.mxu0 0.0
      %5774 = vmatpush1.msra.mxu0 %v5669
      %5775 = vmatprep.subr.mxu0 0.0
      %5776 = vmatpush1.msra.mxu0 %v5670
      %5777 = vmatprep.subr.mxu0 0.0
      %5778 = vmatpush1.msra.mxu0 %v5671
      %5779 = vmatprep.subr.mxu0 0.0
      %5780 = vmatpush1.msra.mxu0 %v5672
      %5781 = vmatprep.subr.mxu0 0.0
      %5782 = vmatpush1.msra.mxu0 %v5673
      %5783 = vmatprep.subr.mxu0 0.0
      %5784 = vmatpush1.msra.mxu0 %v5674
      %5785 = vmatprep.subr.mxu0 0.0
      %5786 = vmatpush1.msra.mxu0 0.0
      %5787 = vmatprep.subr.mxu0 0.0
      %5788 = vmatpush1.msra.mxu0 0.0
      %5789 = vmatprep.subr.mxu0 0.0
      %5790 = vmatpush1.msra.mxu0 0.0
      %5791 = vmatprep.subr.mxu0 0.0
      %5792 = vmatpush1.msra.mxu0 0.0
      %5793 = vmatprep.subr.mxu0 0.0
      %5794 = vmatpush1.msra.mxu0 0.0
      %5795 = vmatprep.subr.mxu0 0.0
      %5796 = vmatpush1.msra.mxu0 0.0
      %5797 = vmatprep.subr.mxu0 0.0
      %5798 = vmatpush1.msra.mxu0 0.0
      %5799 = vmatprep.subr.mxu0 0.0
      %5800 = vmatpush1.msra.mxu0 0.0
      %5801 = vmatprep.subr.mxu0 0.0
      %5802 = vmatpush1.msra.mxu0 0.0
      %5803 = vmatprep.subr.mxu0 0.0
      %5804 = vmatpush1.msra.mxu0 0.0
      %5805 = vmatprep.subr.mxu0 0.0
      %5806 = vmatpush1.msra.mxu0 0.0
      %5807 = vmatprep.subr.mxu0 0.0
      %5808 = vmatpush1.msra.mxu0 0.0
      %5809 = vmatprep.subr.mxu0 0.0
      %5810 = vmatpush1.msra.mxu0 0.0
      %5811 = vmatprep.subr.mxu0 0.0
      %5812 = vmatpush1.msra.mxu0 0.0
      %5813 = vmatprep.subr.mxu0 0.0
      %5814 = vmatpush1.msra.mxu0 0.0
      %5815 = vmatprep.subr.mxu0 0.0
      %5816 = vmatpush1.msra.mxu0 0.0
      %5817 = vmatprep.subr.mxu0 0.0
      %5818 = vmatpush1.msra.mxu0 0.0
      %5819 = vmatprep.subr.mxu0 0.0
      %5820 = vmatpush1.msra.mxu0 0.0
      %5821 = vmatprep.subr.mxu0 0.0
      %5822 = vmatpush1.msra.mxu0 0.0
      %5823 = vmatprep.subr.mxu0 0.0
      %5824 = vmatpush1.msra.mxu0 0.0
      %5825 = vmatprep.subr.mxu0 0.0
      %5826 = vmatpush1.msra.mxu0 0.0
      %5827 = vmatprep.subr.mxu0 0.0
      %5828 = vmatpush1.msra.mxu0 0.0
      %5829 = vmatprep.subr.mxu0 0.0
      %5830 = vmatpush1.msra.mxu0 0.0
      %5831 = vmatprep.subr.mxu0 0.0
      %5832 = vmatpush1.msra.mxu0 0.0
      %5833 = vmatprep.subr.mxu0 0.0
      %5834 = vmatpush1.msra.mxu0 0.0
      %5835 = vmatprep.mubr.f32.mxu0 0.0
      %5836 = vmatmul.mubr.f32.gmra.mrb[0].mxu0 %v5676
      %v5837 = vpop.f32.mrb[0].mxu0
      %v5838 = vadd.f32 0.0, %v5837
      %v5839 = vpop.f32.mrb[0].mxu0
      %5840 = vmatprep.mubr.f32.mxu0 0.0
      %5841 = vmatmul.mubr.f32.gmra.mrb[0].mxu0 %v5679
      %v5842 = vpop.f32.mrb[0].mxu0
      %v5843 = vadd.f32 0.0, %v5842
      %v5844 = vpop.f32.mrb[0].mxu0
      %5845 = vmatprep.mubr.f32.mxu0 0.0
      %5846 = vmatmul.mubr.f32.gmra.mrb[0].mxu0 %v5682
      %v5847 = vpop.f32.mrb[0].mxu0
      %v5848 = vadd.f32 0.0, %v5847
      %v5849 = vpop.f32.mrb[0].mxu0
      %5850 = vmatprep.mubr.f32.mxu0 0.0
      %5851 = vmatmul.mubr.f32.gmra.mrb[0].mxu0 %v5685
      %v5852 = vpop.f32.mrb[0].mxu0
      %v5853 = vadd.f32 0.0, %v5852
      %v5854 = vpop.f32.mrb[0].mxu0
      %5855 = vmatprep.mubr.f32.mxu0 0.0
      %5856 = vmatmul.mubr.f32.gmra.mrb[0].mxu0 %v5688
      %v5857 = vpop.f32.mrb[0].mxu0
      %v5858 = vadd.f32 0.0, %v5857
      %v5859 = vpop.f32.mrb[0].mxu0
      %5860 = vmatprep.mubr.f32.mxu0 0.0
      %5861 = vmatmul.mubr.f32.gmra.mrb[0].mxu0 %v5691
      %v5862 = vpop.f32.mrb[0].mxu0
      %v5863 = vadd.f32 0.0, %v5862
      %v5864 = vpop.f32.mrb[0].mxu0
      %5865 = vmatprep.mubr.f32.mxu0 0.0
      %5866 = vmatmul.mubr.f32.gmra.mrb[0].mxu0 %v5694
      %v5867 = vpop.f32.mrb[0].mxu0
      %v5868 = vadd.f32 0.0, %v5867
      %v5869 = vpop.f32.mrb[0].mxu0
      %5870 = vmatprep.mubr.f32.mxu0 0.0
      %5871 = vmatmul.mubr.f32.gmra.mrb[0].mxu0 %v5697
      %v5872 = vpop.f32.mrb[0].mxu0
      %v5873 = vadd.f32 0.0, %v5872
      %v5874 = vpop.f32.mrb[0].mxu0
      %5875 = vmatprep.mubr.f32.mxu0 0.0
      %5876 = vmatmul.mubr.f32.gmra.mrb[0].mxu0 %v5700
      %v5877 = vpop.f32.mrb[0].mxu0
      %v5878 = vadd.f32 0.0, %v5877
      %v5879 = vpop.f32.mrb[0].mxu0
      %5880 = vmatprep.mubr.f32.mxu0 0.0
      %5881 = vmatmul.mubr.f32.gmra.mrb[0].mxu0 %v5703
      %v5882 = vpop.f32.mrb[0].mxu0
      %v5883 = vadd.f32 0.0, %v5882
      %v5884 = vpop.f32.mrb[0].mxu0
      %5885 = vmatprep.mubr.f32.mxu0 0.0
      %5886 = vmatmul.mubr.f32.gmra.mrb[0].mxu0 %v5706
      %v5887 = vpop.f32.mrb[0].mxu0
      %v5888 = vadd.f32 0.0, %v5887
      %v5889 = vpop.f32.mrb[0].mxu0
      %5890 = vmatprep.mubr.f32.mxu0 0.0
      %5891 = vmatmul.mubr.f32.gmra.mrb[0].mxu0 %v5709
      %v5892 = vpop.f32.mrb[0].mxu0
      %v5893 = vadd.f32 0.0, %v5892
      %v5894 = vpop.f32.mrb[0].mxu0
      %5895 = vmatprep.mubr.f32.mxu0 0.0
      %5896 = vmatmul.mubr.f32.gmra.mrb[0].mxu0 %v5712
      %v5897 = vpop.f32.mrb[0].mxu0
      %v5898 = vadd.f32 0.0, %v5897
      %v5899 = vpop.f32.mrb[0].mxu0
      %5900 = vmatprep.mubr.f32.mxu0 0.0
      %5901 = vmatmul.mubr.f32.gmra.mrb[0].mxu0 %v5715
      %v5902 = vpop.f32.mrb[0].mxu0
      %v5903 = vadd.f32 0.0, %v5902
      %v5904 = vpop.f32.mrb[0].mxu0
      %5905 = vmatprep.mubr.f32.mxu0 0.0
      %5906 = vmatmul.mubr.f32.gmra.mrb[0].mxu0 %v5718
      %v5907 = vpop.f32.mrb[0].mxu0
      %v5908 = vadd.f32 0.0, %v5907
      %v5909 = vpop.f32.mrb[0].mxu0
      %5910 = vmatprep.mubr.f32.mxu0 0.0
      %5911 = vmatmul.mubr.f32.gmra.mrb[0].mxu0 %v5721
      %v5912 = vpop.f32.mrb[0].mxu0
      %v5913 = vadd.f32 0.0, %v5912
      %v5914 = vpop.f32.mrb[0].mxu0
      %5915 = vmatprep.mubr.f32.mxu0 0.0
      %5916 = vmatmul.mubr.f32.gmra.mrb[0].mxu0 %v5724
      %v5917 = vpop.f32.mrb[0].mxu0
      %v5918 = vadd.f32 0.0, %v5917
      %v5919 = vpop.f32.mrb[0].mxu0
      %5920 = vmatprep.mubr.f32.mxu0 0.0
      %5921 = vmatmul.mubr.f32.gmra.mrb[0].mxu0 %v5727
      %v5922 = vpop.f32.mrb[0].mxu0
      %v5923 = vadd.f32 0.0, %v5922
      %v5924 = vpop.f32.mrb[0].mxu0
      %5925 = vmatprep.mubr.f32.mxu0 0.0
      %5926 = vmatmul.mubr.f32.gmra.mrb[0].mxu0 %v5730
      %v5927 = vpop.f32.mrb[0].mxu0
      %v5928 = vadd.f32 0.0, %v5927
      %v5929 = vpop.f32.mrb[0].mxu0
      %5930 = vmatprep.mubr.f32.mxu0 0.0
      %5931 = vmatmul.mubr.f32.gmra.mrb[0].mxu0 %v5733
      %v5932 = vpop.f32.mrb[0].mxu0
      %v5933 = vadd.f32 0.0, %v5932
      %v5934 = vpop.f32.mrb[0].mxu0
      %5935 = vmatprep.mubr.f32.mxu0 0.0
      %5936 = vmatmul.mubr.f32.gmra.mrb[0].mxu0 %v5736
      %v5937 = vpop.f32.mrb[0].mxu0
      %v5938 = vadd.f32 0.0, %v5937
      %v5939 = vpop.f32.mrb[0].mxu0
      %5940 = vmatprep.mubr.f32.mxu0 0.0
      %5941 = vmatmul.mubr.f32.gmra.mrb[0].mxu0 %v5739
      %v5942 = vpop.f32.mrb[0].mxu0
      %v5943 = vadd.f32 0.0, %v5942
      %v5944 = vpop.f32.mrb[0].mxu0
      %5945 = vmatprep.mubr.f32.mxu0 0.0
      %5946 = vmatmul.mubr.f32.gmra.mrb[0].mxu0 %v5742
      %v5947 = vpop.f32.mrb[0].mxu0
      %v5948 = vadd.f32 0.0, %v5947
      %v5949 = vpop.f32.mrb[0].mxu0
      %5950 = vmatprep.mubr.f32.mxu0 0.0
      %5951 = vmatmul.mubr.f32.gmra.mrb[0].mxu0 %v5745
      %v5952 = vpop.f32.mrb[0].mxu0
      %v5953 = vadd.f32 0.0, %v5952
      %v5954 = vpop.f32.mrb[0].mxu0
      %5955 = vmatprep.mubr.f32.mxu0 0.0
      %5956 = vmatmul.mubr.f32.gmra.mrb[0].mxu0 %v5748
      %v5957 = vpop.f32.mrb[0].mxu0
      %v5958 = vadd.f32 0.0, %v5957
      %v5959 = vpop.f32.mrb[0].mxu0
      %5960 = vmatprep.mubr.f32.mxu0 0.0
      %5961 = vmatmul.mubr.f32.gmra.mrb[0].mxu0 %v5751
      %v5962 = vpop.f32.mrb[0].mxu0
      %v5963 = vadd.f32 0.0, %v5962
      %v5964 = vpop.f32.mrb[0].mxu0
      %5965 = vmatprep.mubr.f32.mxu0 0.0
      %5966 = vmatmul.mubr.f32.gmra.mrb[0].mxu0 %v5754
      %v5967 = vpop.f32.mrb[0].mxu0
      %v5968 = vadd.f32 0.0, %v5967
      %v5969 = vpop.f32.mrb[0].mxu0
      %5970 = vmatprep.mubr.f32.mxu0 0.0
      %5971 = vmatmul.mubr.f32.gmra.mrb[0].mxu0 %v5757
      %v5972 = vpop.f32.mrb[0].mxu0
      %v5973 = vadd.f32 0.0, %v5972
      %v5974 = vpop.f32.mrb[0].mxu0
      %5975 = vmatprep.mubr.f32.mxu0 0.0
      %5976 = vmatmul.mubr.f32.gmra.mrb[0].mxu0 %v5760
      %v5977 = vpop.f32.mrb[0].mxu0
      %v5978 = vadd.f32 0.0, %v5977
      %v5979 = vpop.f32.mrb[0].mxu0
      %5980 = vmatprep.mubr.f32.mxu0 0.0
      %5981 = vmatmul.mubr.f32.gmra.mrb[0].mxu0 %v5763
      %v5982 = vpop.f32.mrb[0].mxu0
      %v5983 = vadd.f32 0.0, %v5982
      %v5984 = vpop.f32.mrb[0].mxu0
      %5985 = vmatprep.mubr.f32.mxu0 0.0
      %5986 = vmatmul.mubr.f32.gmra.mrb[0].mxu0 %v5766
      %v5987 = vpop.f32.mrb[0].mxu0
      %v5988 = vadd.f32 0.0, %v5987
      %v5989 = vpop.f32.mrb[0].mxu0
      %5990 = vmatprep.mubr.f32.mxu0 0.0
      %5991 = vmatmul.mubr.f32.gmra.mrb[0].mxu0 %v5769
      %v5992 = vpop.f32.mrb[0].mxu0
      %v5993 = vadd.f32 0.0, %v5992
      %v5994 = vpop.f32.mrb[0].mxu0
      %5995 = vdwg.mxu0
      %v5996 = vld [vmem:[%s9] sm:$0x1]
      %v5998 = vlaneseq
      %v5999 = vshrl.u32 %v5998, 7
      %v6000 = vsub.s32 0, %v5999
      %v6001 = vrot.slane %v5996, %v6000
      %v6003 = vadd.f32 %v6001, 0.0
      %v6004 = vadd.f32 %v6003, %v5838
      %v6005 = vadd.f32 %v6003, %v5843
      %v6006 = vadd.f32 %v6003, %v5848
      %v6007 = vadd.f32 %v6003, %v5853
      %v6008 = vadd.f32 %v6003, %v5858
      %v6009 = vadd.f32 %v6003, %v5863
      %v6010 = vadd.f32 %v6003, %v5868
      %v6011 = vadd.f32 %v6003, %v5873
      %v6012 = vadd.f32 %v6003, %v5878
      %v6013 = vadd.f32 %v6003, %v5883
      %v6014 = vadd.f32 %v6003, %v5888
      %v6015 = vadd.f32 %v6003, %v5893
      %v6016 = vadd.f32 %v6003, %v5898
      %v6017 = vadd.f32 %v6003, %v5903
      %v6018 = vadd.f32 %v6003, %v5908
      %v6019 = vadd.f32 %v6003, %v5913
      %v6020 = vadd.f32 %v6003, %v5918
      %v6021 = vadd.f32 %v6003, %v5923
      %v6022 = vadd.f32 %v6003, %v5928
      %v6023 = vadd.f32 %v6003, %v5933
      %v6024 = vadd.f32 %v6003, %v5938
      %v6025 = vadd.f32 %v6003, %v5943
      %v6026 = vadd.f32 %v6003, %v5948
      %v6027 = vadd.f32 %v6003, %v5953
      %v6028 = vadd.f32 %v6003, %v5958
      %v6029 = vadd.f32 %v6003, %v5963
      %v6030 = vadd.f32 %v6003, %v5968
      %v6031 = vadd.f32 %v6003, %v5973
      %v6060 = vrot.slane %v5838, 1
      %v6061 = vrot.slane %v5843, 1
      %v6062 = vsel %vm1120, %v6060, %v6061
      %v6063 = vrot.slane %v5848, 1
      %v6064 = vrot.slane %v5853, 1
      %v6065 = vsel %vm1120, %v6063, %v6064
      %v6066 = vrot.slane %v5858, 1
      %v6067 = vrot.slane %v5863, 1
      %v6068 = vsel %vm1120, %v6066, %v6067
      %v6069 = vrot.slane %v5868, 1
      %v6070 = vrot.slane %v5873, 1
      %v6071 = vsel %vm1120, %v6069, %v6070
      %v6072 = vrot.slane %v5878, 1
      %v6073 = vrot.slane %v5883, 1
      %v6074 = vsel %vm1120, %v6072, %v6073
      %v6075 = vrot.slane %v5888, 1
      %v6076 = vrot.slane %v5893, 1
      %v6077 = vsel %vm1120, %v6075, %v6076
      %v6078 = vrot.slane %v5898, 1
      %v6079 = vrot.slane %v5903, 1
      %v6080 = vsel %vm1120, %v6078, %v6079
      %v6081 = vrot.slane %v5908, 1
      %v6082 = vrot.slane %v5913, 1
      %v6083 = vsel %vm1120, %v6081, %v6082
      %v6084 = vrot.slane %v5918, 1
      %v6085 = vrot.slane %v5923, 1
      %v6086 = vsel %vm1120, %v6084, %v6085
      %v6087 = vrot.slane %v5928, 1
      %v6088 = vrot.slane %v5933, 1
      %v6089 = vsel %vm1120, %v6087, %v6088
      %v6090 = vrot.slane %v5938, 1
      %v6091 = vrot.slane %v5943, 1
      %v6092 = vsel %vm1120, %v6090, %v6091
      %v6093 = vrot.slane %v5948, 1
      %v6094 = vrot.slane %v5953, 1
      %v6095 = vsel %vm1120, %v6093, %v6094
      %v6096 = vrot.slane %v5958, 1
      %v6097 = vrot.slane %v5963, 1
      %v6098 = vsel %vm1120, %v6096, %v6097
      %v6099 = vrot.slane %v5968, 1
      %v6100 = vrot.slane %v5973, 1
      %v6101 = vsel %vm1120, %v6099, %v6100
      %6102 = vrot.lane.b32.xlu0 %v6062, 120
      %v6103 = vpop.permute.xlu0 %6102
      %6104 = vrot.lane.b32.xlu0 %v6061, 120
      %v6105 = vpop.permute.xlu0 %6104
      %6106 = vrot.lane.b32.xlu0 %v6065, 120
      %v6107 = vpop.permute.xlu0 %6106
      %6108 = vrot.lane.b32.xlu0 %v6064, 120
      %v6109 = vpop.permute.xlu0 %6108
      %6110 = vrot.lane.b32.xlu0 %v6068, 120
      %v6111 = vpop.permute.xlu0 %6110
      %6112 = vrot.lane.b32.xlu0 %v6067, 120
      %v6113 = vpop.permute.xlu0 %6112
      %6114 = vrot.lane.b32.xlu0 %v6071, 120
      %v6115 = vpop.permute.xlu0 %6114
      %6116 = vrot.lane.b32.xlu0 %v6070, 120
      %v6117 = vpop.permute.xlu0 %6116
      %6118 = vrot.lane.b32.xlu0 %v6074, 120
      %v6119 = vpop.permute.xlu0 %6118
      %6120 = vrot.lane.b32.xlu0 %v6073, 120
      %v6121 = vpop.permute.xlu0 %6120
      %6122 = vrot.lane.b32.xlu0 %v6077, 120
      %v6123 = vpop.permute.xlu0 %6122
      %6124 = vrot.lane.b32.xlu0 %v6076, 120
      %v6125 = vpop.permute.xlu0 %6124
      %6126 = vrot.lane.b32.xlu0 %v6080, 120
      %v6127 = vpop.permute.xlu0 %6126
      %6128 = vrot.lane.b32.xlu0 %v6079, 120
      %v6129 = vpop.permute.xlu0 %6128
      %6130 = vrot.lane.b32.xlu0 %v6083, 120
      %v6131 = vpop.permute.xlu0 %6130
      %6132 = vrot.lane.b32.xlu0 %v6082, 120
      %v6133 = vpop.permute.xlu0 %6132
      %6134 = vrot.lane.b32.xlu0 %v6086, 120
      %v6135 = vpop.permute.xlu0 %6134
      %6136 = vrot.lane.b32.xlu0 %v6085, 120
      %v6137 = vpop.permute.xlu0 %6136
      %6138 = vrot.lane.b32.xlu0 %v6089, 120
      %v6139 = vpop.permute.xlu0 %6138
      %6140 = vrot.lane.b32.xlu0 %v6088, 120
      %v6141 = vpop.permute.xlu0 %6140
      %6142 = vrot.lane.b32.xlu0 %v6092, 120
      %v6143 = vpop.permute.xlu0 %6142
      %6144 = vrot.lane.b32.xlu0 %v6091, 120
      %v6145 = vpop.permute.xlu0 %6144
      %6146 = vrot.lane.b32.xlu0 %v6095, 120
      %v6147 = vpop.permute.xlu0 %6146
      %6148 = vrot.lane.b32.xlu0 %v6094, 120
      %v6149 = vpop.permute.xlu0 %6148
      %6150 = vrot.lane.b32.xlu0 %v6098, 120
      %v6151 = vpop.permute.xlu0 %6150
      %6152 = vrot.lane.b32.xlu0 %v6097, 120
      %v6153 = vpop.permute.xlu0 %6152
      %6154 = vrot.lane.b32.xlu0 %v6101, 120
      %v6155 = vpop.permute.xlu0 %6154
      %6156 = vrot.lane.b32.xlu0 %v6100, 120
      %v6157 = vpop.permute.xlu0 %6156
      %v6186 = vadd.f32 %v6004, %v6103
      %v6187 = vadd.f32 %v6005, %v6105
      %v6188 = vadd.f32 %v6006, %v6107
      %v6189 = vadd.f32 %v6007, %v6109
      %v6190 = vadd.f32 %v6008, %v6111
      %v6191 = vadd.f32 %v6009, %v6113
      %v6192 = vadd.f32 %v6010, %v6115
      %v6193 = vadd.f32 %v6011, %v6117
      %v6194 = vadd.f32 %v6012, %v6119
      %v6195 = vadd.f32 %v6013, %v6121
      %v6196 = vadd.f32 %v6014, %v6123
      %v6197 = vadd.f32 %v6015, %v6125
      %v6198 = vadd.f32 %v6016, %v6127
      %v6199 = vadd.f32 %v6017, %v6129
      %v6200 = vadd.f32 %v6018, %v6131
      %v6201 = vadd.f32 %v6019, %v6133
      %v6202 = vadd.f32 %v6020, %v6135
      %v6203 = vadd.f32 %v6021, %v6137
      %v6204 = vadd.f32 %v6022, %v6139
      %v6205 = vadd.f32 %v6023, %v6141
      %v6206 = vadd.f32 %v6024, %v6143
      %v6207 = vadd.f32 %v6025, %v6145
      %v6208 = vadd.f32 %v6026, %v6147
      %v6209 = vadd.f32 %v6027, %v6149
      %v6210 = vadd.f32 %v6028, %v6151
      %v6211 = vadd.f32 %v6029, %v6153
      %v6212 = vadd.f32 %v6030, %v6155
      %v6213 = vadd.f32 %v6031, %v6157
      %v6214 = vrot.slane %v5838, 2
      %v6215 = vrot.slane %v5843, 2
      %v6216 = vsel %vm1275, %v6214, %v6215
      %v6217 = vrot.slane %v5848, 2
      %v6218 = vrot.slane %v5853, 2
      %v6219 = vsel %vm1275, %v6217, %v6218
      %v6220 = vrot.slane %v5858, 2
      %v6221 = vrot.slane %v5863, 2
      %v6222 = vsel %vm1275, %v6220, %v6221
      %v6223 = vrot.slane %v5868, 2
      %v6224 = vrot.slane %v5873, 2
      %v6225 = vsel %vm1275, %v6223, %v6224
      %v6226 = vrot.slane %v5878, 2
      %v6227 = vrot.slane %v5883, 2
      %v6228 = vsel %vm1275, %v6226, %v6227
      %v6229 = vrot.slane %v5888, 2
      %v6230 = vrot.slane %v5893, 2
      %v6231 = vsel %vm1275, %v6229, %v6230
      %v6232 = vrot.slane %v5898, 2
      %v6233 = vrot.slane %v5903, 2
      %v6234 = vsel %vm1275, %v6232, %v6233
      %v6235 = vrot.slane %v5908, 2
      %v6236 = vrot.slane %v5913, 2
      %v6237 = vsel %vm1275, %v6235, %v6236
      %v6238 = vrot.slane %v5918, 2
      %v6239 = vrot.slane %v5923, 2
      %v6240 = vsel %vm1275, %v6238, %v6239
      %v6241 = vrot.slane %v5928, 2
      %v6242 = vrot.slane %v5933, 2
      %v6243 = vsel %vm1275, %v6241, %v6242
      %v6244 = vrot.slane %v5938, 2
      %v6245 = vrot.slane %v5943, 2
      %v6246 = vsel %vm1275, %v6244, %v6245
      %v6247 = vrot.slane %v5948, 2
      %v6248 = vrot.slane %v5953, 2
      %v6249 = vsel %vm1275, %v6247, %v6248
      %v6250 = vrot.slane %v5958, 2
      %v6251 = vrot.slane %v5963, 2
      %v6252 = vsel %vm1275, %v6250, %v6251
      %v6253 = vrot.slane %v5968, 2
      %v6254 = vrot.slane %v5973, 2
      %v6255 = vsel %vm1275, %v6253, %v6254
      %6256 = vrot.lane.b32.xlu0 %v6216, 112
      %v6257 = vpop.permute.xlu0 %6256
      %6258 = vrot.lane.b32.xlu0 %v6215, 112
      %v6259 = vpop.permute.xlu0 %6258
      %6260 = vrot.lane.b32.xlu0 %v6219, 112
      %v6261 = vpop.permute.xlu0 %6260
      %6262 = vrot.lane.b32.xlu0 %v6218, 112
      %v6263 = vpop.permute.xlu0 %6262
      %6264 = vrot.lane.b32.xlu0 %v6222, 112
      %v6265 = vpop.permute.xlu0 %6264
      %6266 = vrot.lane.b32.xlu0 %v6221, 112
      %v6267 = vpop.permute.xlu0 %6266
      %6268 = vrot.lane.b32.xlu0 %v6225, 112
      %v6269 = vpop.permute.xlu0 %6268
      %6270 = vrot.lane.b32.xlu0 %v6224, 112
      %v6271 = vpop.permute.xlu0 %6270
      %6272 = vrot.lane.b32.xlu0 %v6228, 112
      %v6273 = vpop.permute.xlu0 %6272
      %6274 = vrot.lane.b32.xlu0 %v6227, 112
      %v6275 = vpop.permute.xlu0 %6274
      %6276 = vrot.lane.b32.xlu0 %v6231, 112
      %v6277 = vpop.permute.xlu0 %6276
      %6278 = vrot.lane.b32.xlu0 %v6230, 112
      %v6279 = vpop.permute.xlu0 %6278
      %6280 = vrot.lane.b32.xlu0 %v6234, 112
      %v6281 = vpop.permute.xlu0 %6280
      %6282 = vrot.lane.b32.xlu0 %v6233, 112
      %v6283 = vpop.permute.xlu0 %6282
      %6284 = vrot.lane.b32.xlu0 %v6237, 112
      %v6285 = vpop.permute.xlu0 %6284
      %6286 = vrot.lane.b32.xlu0 %v6236, 112
      %v6287 = vpop.permute.xlu0 %6286
      %6288 = vrot.lane.b32.xlu0 %v6240, 112
      %v6289 = vpop.permute.xlu0 %6288
      %6290 = vrot.lane.b32.xlu0 %v6239, 112
      %v6291 = vpop.permute.xlu0 %6290
      %6292 = vrot.lane.b32.xlu0 %v6243, 112
      %v6293 = vpop.permute.xlu0 %6292
      %6294 = vrot.lane.b32.xlu0 %v6242, 112
      %v6295 = vpop.permute.xlu0 %6294
      %6296 = vrot.lane.b32.xlu0 %v6246, 112
      %v6297 = vpop.permute.xlu0 %6296
      %6298 = vrot.lane.b32.xlu0 %v6245, 112
      %v6299 = vpop.permute.xlu0 %6298
      %6300 = vrot.lane.b32.xlu0 %v6249, 112
      %v6301 = vpop.permute.xlu0 %6300
      %6302 = vrot.lane.b32.xlu0 %v6248, 112
      %v6303 = vpop.permute.xlu0 %6302
      %6304 = vrot.lane.b32.xlu0 %v6252, 112
      %v6305 = vpop.permute.xlu0 %6304
      %6306 = vrot.lane.b32.xlu0 %v6251, 112
      %v6307 = vpop.permute.xlu0 %6306
      %6308 = vrot.lane.b32.xlu0 %v6255, 112
      %v6309 = vpop.permute.xlu0 %6308
      %6310 = vrot.lane.b32.xlu0 %v6254, 112
      %v6311 = vpop.permute.xlu0 %6310
      %v6340 = vadd.f32 %v6186, %v6257
      %v6341 = vadd.f32 %v6187, %v6259
      %v6342 = vadd.f32 %v6188, %v6261
      %v6343 = vadd.f32 %v6189, %v6263
      %v6344 = vadd.f32 %v6190, %v6265
      %v6345 = vadd.f32 %v6191, %v6267
      %v6346 = vadd.f32 %v6192, %v6269
      %v6347 = vadd.f32 %v6193, %v6271
      %v6348 = vadd.f32 %v6194, %v6273
      %v6349 = vadd.f32 %v6195, %v6275
      %v6350 = vadd.f32 %v6196, %v6277
      %v6351 = vadd.f32 %v6197, %v6279
      %v6352 = vadd.f32 %v6198, %v6281
      %v6353 = vadd.f32 %v6199, %v6283
      %v6354 = vadd.f32 %v6200, %v6285
      %v6355 = vadd.f32 %v6201, %v6287
      %v6356 = vadd.f32 %v6202, %v6289
      %v6357 = vadd.f32 %v6203, %v6291
      %v6358 = vadd.f32 %v6204, %v6293
      %v6359 = vadd.f32 %v6205, %v6295
      %v6360 = vadd.f32 %v6206, %v6297
      %v6361 = vadd.f32 %v6207, %v6299
      %v6362 = vadd.f32 %v6208, %v6301
      %v6363 = vadd.f32 %v6209, %v6303
      %v6364 = vadd.f32 %v6210, %v6305
      %v6365 = vadd.f32 %v6211, %v6307
      %v6366 = vadd.f32 %v6212, %v6309
      %v6367 = vadd.f32 %v6213, %v6311
      %6370 = vrot.lane.b32.xlu0 %v5848, 104
      %v6371 = vpop.permute.xlu0 %6370
      %6372 = vrot.lane.b32.xlu0 %v5853, 104
      %v6373 = vpop.permute.xlu0 %6372
      %6374 = vrot.lane.b32.xlu0 %v5858, 104
      %v6375 = vpop.permute.xlu0 %6374
      %6376 = vrot.lane.b32.xlu0 %v5863, 104
      %v6377 = vpop.permute.xlu0 %6376
      %6378 = vrot.lane.b32.xlu0 %v5868, 104
      %v6379 = vpop.permute.xlu0 %6378
      %6380 = vrot.lane.b32.xlu0 %v5873, 104
      %v6381 = vpop.permute.xlu0 %6380
      %6382 = vrot.lane.b32.xlu0 %v5878, 104
      %v6383 = vpop.permute.xlu0 %6382
      %6384 = vrot.lane.b32.xlu0 %v5883, 104
      %v6385 = vpop.permute.xlu0 %6384
      %6386 = vrot.lane.b32.xlu0 %v5888, 104
      %v6387 = vpop.permute.xlu0 %6386
      %6388 = vrot.lane.b32.xlu0 %v5893, 104
      %v6389 = vpop.permute.xlu0 %6388
      %6390 = vrot.lane.b32.xlu0 %v5898, 104
      %v6391 = vpop.permute.xlu0 %6390
      %6392 = vrot.lane.b32.xlu0 %v5903, 104
      %v6393 = vpop.permute.xlu0 %6392
      %6394 = vrot.lane.b32.xlu0 %v5908, 104
      %v6395 = vpop.permute.xlu0 %6394
      %6396 = vrot.lane.b32.xlu0 %v5913, 104
      %v6397 = vpop.permute.xlu0 %6396
      %6398 = vrot.lane.b32.xlu0 %v5918, 104
      %v6399 = vpop.permute.xlu0 %6398
      %6400 = vrot.lane.b32.xlu0 %v5923, 104
      %v6401 = vpop.permute.xlu0 %6400
      %6402 = vrot.lane.b32.xlu0 %v5928, 104
      %v6403 = vpop.permute.xlu0 %6402
      %6404 = vrot.lane.b32.xlu0 %v5933, 104
      %v6405 = vpop.permute.xlu0 %6404
      %6406 = vrot.lane.b32.xlu0 %v5938, 104
      %v6407 = vpop.permute.xlu0 %6406
      %6408 = vrot.lane.b32.xlu0 %v5943, 104
      %v6409 = vpop.permute.xlu0 %6408
      %6410 = vrot.lane.b32.xlu0 %v5948, 104
      %v6411 = vpop.permute.xlu0 %6410
      %6412 = vrot.lane.b32.xlu0 %v5953, 104
      %v6413 = vpop.permute.xlu0 %6412
      %6414 = vrot.lane.b32.xlu0 %v5958, 104
      %v6415 = vpop.permute.xlu0 %6414
      %6416 = vrot.lane.b32.xlu0 %v5963, 104
      %v6417 = vpop.permute.xlu0 %6416
      %6418 = vrot.lane.b32.xlu0 %v5968, 104
      %v6419 = vpop.permute.xlu0 %6418
      %6420 = vrot.lane.b32.xlu0 %v5973, 104
      %v6421 = vpop.permute.xlu0 %6420
      %6422 = vrot.lane.b32.xlu0 %v5978, 104
      %v6423 = vpop.permute.xlu0 %6422
      %6424 = vrot.lane.b32.xlu0 %v5983, 104
      %v6425 = vpop.permute.xlu0 %6424
      %v6454 = vadd.f32 %v6340, %v6371
      %v6455 = vadd.f32 %v6341, %v6373
      %v6456 = vadd.f32 %v6342, %v6375
      %v6457 = vadd.f32 %v6343, %v6377
      %v6458 = vadd.f32 %v6344, %v6379
      %v6459 = vadd.f32 %v6345, %v6381
      %v6460 = vadd.f32 %v6346, %v6383
      %v6461 = vadd.f32 %v6347, %v6385
      %v6462 = vadd.f32 %v6348, %v6387
      %v6463 = vadd.f32 %v6349, %v6389
      %v6464 = vadd.f32 %v6350, %v6391
      %v6465 = vadd.f32 %v6351, %v6393
      %v6466 = vadd.f32 %v6352, %v6395
      %v6467 = vadd.f32 %v6353, %v6397
      %v6468 = vadd.f32 %v6354, %v6399
      %v6469 = vadd.f32 %v6355, %v6401
      %v6470 = vadd.f32 %v6356, %v6403
      %v6471 = vadd.f32 %v6357, %v6405
      %v6472 = vadd.f32 %v6358, %v6407
      %v6473 = vadd.f32 %v6359, %v6409
      %v6474 = vadd.f32 %v6360, %v6411
      %v6475 = vadd.f32 %v6361, %v6413
      %v6476 = vadd.f32 %v6362, %v6415
      %v6477 = vadd.f32 %v6363, %v6417
      %v6478 = vadd.f32 %v6364, %v6419
      %v6479 = vadd.f32 %v6365, %v6421
      %v6480 = vadd.f32 %v6366, %v6423
      %v6481 = vadd.f32 %v6367, %v6425
      %v6482 = vrot.slane %v5978, 1
      %v6483 = vrot.slane %v5983, 1
      %v6484 = vsel %vm1120, %v6482, %v6483
      %6485 = vrot.lane.b32.xlu0 %v6065, 96
      %v6486 = vpop.permute.xlu0 %6485
      %6487 = vrot.lane.b32.xlu0 %v6064, 96
      %v6488 = vpop.permute.xlu0 %6487
      %6489 = vrot.lane.b32.xlu0 %v6068, 96
      %v6490 = vpop.permute.xlu0 %6489
      %6491 = vrot.lane.b32.xlu0 %v6067, 96
      %v6492 = vpop.permute.xlu0 %6491
      %6493 = vrot.lane.b32.xlu0 %v6071, 96
      %v6494 = vpop.permute.xlu0 %6493
      %6495 = vrot.lane.b32.xlu0 %v6070, 96
      %v6496 = vpop.permute.xlu0 %6495
      %6497 = vrot.lane.b32.xlu0 %v6074, 96
      %v6498 = vpop.permute.xlu0 %6497
      %6499 = vrot.lane.b32.xlu0 %v6073, 96
      %v6500 = vpop.permute.xlu0 %6499
      %6501 = vrot.lane.b32.xlu0 %v6077, 96
      %v6502 = vpop.permute.xlu0 %6501
      %6503 = vrot.lane.b32.xlu0 %v6076, 96
      %v6504 = vpop.permute.xlu0 %6503
      %6505 = vrot.lane.b32.xlu0 %v6080, 96
      %v6506 = vpop.permute.xlu0 %6505
      %6507 = vrot.lane.b32.xlu0 %v6079, 96
      %v6508 = vpop.permute.xlu0 %6507
      %6509 = vrot.lane.b32.xlu0 %v6083, 96
      %v6510 = vpop.permute.xlu0 %6509
      %6511 = vrot.lane.b32.xlu0 %v6082, 96
      %v6512 = vpop.permute.xlu0 %6511
      %6513 = vrot.lane.b32.xlu0 %v6086, 96
      %v6514 = vpop.permute.xlu0 %6513
      %6515 = vrot.lane.b32.xlu0 %v6085, 96
      %v6516 = vpop.permute.xlu0 %6515
      %6517 = vrot.lane.b32.xlu0 %v6089, 96
      %v6518 = vpop.permute.xlu0 %6517
      %6519 = vrot.lane.b32.xlu0 %v6088, 96
      %v6520 = vpop.permute.xlu0 %6519
      %6521 = vrot.lane.b32.xlu0 %v6092, 96
      %v6522 = vpop.permute.xlu0 %6521
      %6523 = vrot.lane.b32.xlu0 %v6091, 96
      %v6524 = vpop.permute.xlu0 %6523
      %6525 = vrot.lane.b32.xlu0 %v6095, 96
      %v6526 = vpop.permute.xlu0 %6525
      %6527 = vrot.lane.b32.xlu0 %v6094, 96
      %v6528 = vpop.permute.xlu0 %6527
      %6529 = vrot.lane.b32.xlu0 %v6098, 96
      %v6530 = vpop.permute.xlu0 %6529
      %6531 = vrot.lane.b32.xlu0 %v6097, 96
      %v6532 = vpop.permute.xlu0 %6531
      %6533 = vrot.lane.b32.xlu0 %v6101, 96
      %v6534 = vpop.permute.xlu0 %6533
      %6535 = vrot.lane.b32.xlu0 %v6100, 96
      %v6536 = vpop.permute.xlu0 %6535
      %6537 = vrot.lane.b32.xlu0 %v6484, 96
      %v6538 = vpop.permute.xlu0 %6537
      %6539 = vrot.lane.b32.xlu0 %v6483, 96
      %v6540 = vpop.permute.xlu0 %6539
      %v6569 = vadd.f32 %v6454, %v6486
      %v6570 = vadd.f32 %v6455, %v6488
      %v6571 = vadd.f32 %v6456, %v6490
      %v6572 = vadd.f32 %v6457, %v6492
      %v6573 = vadd.f32 %v6458, %v6494
      %v6574 = vadd.f32 %v6459, %v6496
      %v6575 = vadd.f32 %v6460, %v6498
      %v6576 = vadd.f32 %v6461, %v6500
      %v6577 = vadd.f32 %v6462, %v6502
      %v6578 = vadd.f32 %v6463, %v6504
      %v6579 = vadd.f32 %v6464, %v6506
      %v6580 = vadd.f32 %v6465, %v6508
      %v6581 = vadd.f32 %v6466, %v6510
      %v6582 = vadd.f32 %v6467, %v6512
      %v6583 = vadd.f32 %v6468, %v6514
      %v6584 = vadd.f32 %v6469, %v6516
      %v6585 = vadd.f32 %v6470, %v6518
      %v6586 = vadd.f32 %v6471, %v6520
      %v6587 = vadd.f32 %v6472, %v6522
      %v6588 = vadd.f32 %v6473, %v6524
      %v6589 = vadd.f32 %v6474, %v6526
      %v6590 = vadd.f32 %v6475, %v6528
      %v6591 = vadd.f32 %v6476, %v6530
      %v6592 = vadd.f32 %v6477, %v6532
      %v6593 = vadd.f32 %v6478, %v6534
      %v6594 = vadd.f32 %v6479, %v6536
      %v6595 = vadd.f32 %v6480, %v6538
      %v6596 = vadd.f32 %v6481, %v6540
      %v6597 = vrot.slane %v5978, 2
      %v6598 = vrot.slane %v5983, 2
      %v6599 = vsel %vm1275, %v6597, %v6598
      %6600 = vrot.lane.b32.xlu0 %v6219, 88
      %v6601 = vpop.permute.xlu0 %6600
      %6602 = vrot.lane.b32.xlu0 %v6218, 88
      %v6603 = vpop.permute.xlu0 %6602
      %6604 = vrot.lane.b32.xlu0 %v6222, 88
      %v6605 = vpop.permute.xlu0 %6604
      %6606 = vrot.lane.b32.xlu0 %v6221, 88
      %v6607 = vpop.permute.xlu0 %6606
      %6608 = vrot.lane.b32.xlu0 %v6225, 88
      %v6609 = vpop.permute.xlu0 %6608
      %6610 = vrot.lane.b32.xlu0 %v6224, 88
      %v6611 = vpop.permute.xlu0 %6610
      %6612 = vrot.lane.b32.xlu0 %v6228, 88
      %v6613 = vpop.permute.xlu0 %6612
      %6614 = vrot.lane.b32.xlu0 %v6227, 88
      %v6615 = vpop.permute.xlu0 %6614
      %6616 = vrot.lane.b32.xlu0 %v6231, 88
      %v6617 = vpop.permute.xlu0 %6616
      %6618 = vrot.lane.b32.xlu0 %v6230, 88
      %v6619 = vpop.permute.xlu0 %6618
      %6620 = vrot.lane.b32.xlu0 %v6234, 88
      %v6621 = vpop.permute.xlu0 %6620
      %6622 = vrot.lane.b32.xlu0 %v6233, 88
      %v6623 = vpop.permute.xlu0 %6622
      %6624 = vrot.lane.b32.xlu0 %v6237, 88
      %v6625 = vpop.permute.xlu0 %6624
      %6626 = vrot.lane.b32.xlu0 %v6236, 88
      %v6627 = vpop.permute.xlu0 %6626
      %6628 = vrot.lane.b32.xlu0 %v6240, 88
      %v6629 = vpop.permute.xlu0 %6628
      %6630 = vrot.lane.b32.xlu0 %v6239, 88
      %v6631 = vpop.permute.xlu0 %6630
      %6632 = vrot.lane.b32.xlu0 %v6243, 88
      %v6633 = vpop.permute.xlu0 %6632
      %6634 = vrot.lane.b32.xlu0 %v6242, 88
      %v6635 = vpop.permute.xlu0 %6634
      %6636 = vrot.lane.b32.xlu0 %v6246, 88
      %v6637 = vpop.permute.xlu0 %6636
      %6638 = vrot.lane.b32.xlu0 %v6245, 88
      %v6639 = vpop.permute.xlu0 %6638
      %6640 = vrot.lane.b32.xlu0 %v6249, 88
      %v6641 = vpop.permute.xlu0 %6640
      %6642 = vrot.lane.b32.xlu0 %v6248, 88
      %v6643 = vpop.permute.xlu0 %6642
      %6644 = vrot.lane.b32.xlu0 %v6252, 88
      %v6645 = vpop.permute.xlu0 %6644
      %6646 = vrot.lane.b32.xlu0 %v6251, 88
      %v6647 = vpop.permute.xlu0 %6646
      %6648 = vrot.lane.b32.xlu0 %v6255, 88
      %v6649 = vpop.permute.xlu0 %6648
      %6650 = vrot.lane.b32.xlu0 %v6254, 88
      %v6651 = vpop.permute.xlu0 %6650
      %6652 = vrot.lane.b32.xlu0 %v6599, 88
      %v6653 = vpop.permute.xlu0 %6652
      %6654 = vrot.lane.b32.xlu0 %v6598, 88
      %v6655 = vpop.permute.xlu0 %6654
      %v6684 = vadd.f32 %v6569, %v6601
      %v6685 = vadd.f32 %v6570, %v6603
      %v6686 = vadd.f32 %v6571, %v6605
      %v6687 = vadd.f32 %v6572, %v6607
      %v6688 = vadd.f32 %v6573, %v6609
      %v6689 = vadd.f32 %v6574, %v6611
      %v6690 = vadd.f32 %v6575, %v6613
      %v6691 = vadd.f32 %v6576, %v6615
      %v6692 = vadd.f32 %v6577, %v6617
      %v6693 = vadd.f32 %v6578, %v6619
      %v6694 = vadd.f32 %v6579, %v6621
      %v6695 = vadd.f32 %v6580, %v6623
      %v6696 = vadd.f32 %v6581, %v6625
      %v6697 = vadd.f32 %v6582, %v6627
      %v6698 = vadd.f32 %v6583, %v6629
      %v6699 = vadd.f32 %v6584, %v6631
      %v6700 = vadd.f32 %v6585, %v6633
      %v6701 = vadd.f32 %v6586, %v6635
      %v6702 = vadd.f32 %v6587, %v6637
      %v6703 = vadd.f32 %v6588, %v6639
      %v6704 = vadd.f32 %v6589, %v6641
      %v6705 = vadd.f32 %v6590, %v6643
      %v6706 = vadd.f32 %v6591, %v6645
      %v6707 = vadd.f32 %v6592, %v6647
      %v6708 = vadd.f32 %v6593, %v6649
      %v6709 = vadd.f32 %v6594, %v6651
      %v6710 = vadd.f32 %v6595, %v6653
      %v6711 = vadd.f32 %v6596, %v6655
      %6714 = vrot.lane.b32.xlu0 %v5858, 80
      %v6715 = vpop.permute.xlu0 %6714
      %6716 = vrot.lane.b32.xlu0 %v5863, 80
      %v6717 = vpop.permute.xlu0 %6716
      %6718 = vrot.lane.b32.xlu0 %v5868, 80
      %v6719 = vpop.permute.xlu0 %6718
      %6720 = vrot.lane.b32.xlu0 %v5873, 80
      %v6721 = vpop.permute.xlu0 %6720
      %6722 = vrot.lane.b32.xlu0 %v5878, 80
      %v6723 = vpop.permute.xlu0 %6722
      %6724 = vrot.lane.b32.xlu0 %v5883, 80
      %v6725 = vpop.permute.xlu0 %6724
      %6726 = vrot.lane.b32.xlu0 %v5888, 80
      %v6727 = vpop.permute.xlu0 %6726
      %6728 = vrot.lane.b32.xlu0 %v5893, 80
      %v6729 = vpop.permute.xlu0 %6728
      %6730 = vrot.lane.b32.xlu0 %v5898, 80
      %v6731 = vpop.permute.xlu0 %6730
      %6732 = vrot.lane.b32.xlu0 %v5903, 80
      %v6733 = vpop.permute.xlu0 %6732
      %6734 = vrot.lane.b32.xlu0 %v5908, 80
      %v6735 = vpop.permute.xlu0 %6734
      %6736 = vrot.lane.b32.xlu0 %v5913, 80
      %v6737 = vpop.permute.xlu0 %6736
      %6738 = vrot.lane.b32.xlu0 %v5918, 80
      %v6739 = vpop.permute.xlu0 %6738
      %6740 = vrot.lane.b32.xlu0 %v5923, 80
      %v6741 = vpop.permute.xlu0 %6740
      %6742 = vrot.lane.b32.xlu0 %v5928, 80
      %v6743 = vpop.permute.xlu0 %6742
      %6744 = vrot.lane.b32.xlu0 %v5933, 80
      %v6745 = vpop.permute.xlu0 %6744
      %6746 = vrot.lane.b32.xlu0 %v5938, 80
      %v6747 = vpop.permute.xlu0 %6746
      %6748 = vrot.lane.b32.xlu0 %v5943, 80
      %v6749 = vpop.permute.xlu0 %6748
      %6750 = vrot.lane.b32.xlu0 %v5948, 80
      %v6751 = vpop.permute.xlu0 %6750
      %6752 = vrot.lane.b32.xlu0 %v5953, 80
      %v6753 = vpop.permute.xlu0 %6752
      %6754 = vrot.lane.b32.xlu0 %v5958, 80
      %v6755 = vpop.permute.xlu0 %6754
      %6756 = vrot.lane.b32.xlu0 %v5963, 80
      %v6757 = vpop.permute.xlu0 %6756
      %6758 = vrot.lane.b32.xlu0 %v5968, 80
      %v6759 = vpop.permute.xlu0 %6758
      %6760 = vrot.lane.b32.xlu0 %v5973, 80
      %v6761 = vpop.permute.xlu0 %6760
      %6762 = vrot.lane.b32.xlu0 %v5978, 80
      %v6763 = vpop.permute.xlu0 %6762
      %6764 = vrot.lane.b32.xlu0 %v5983, 80
      %v6765 = vpop.permute.xlu0 %6764
      %6766 = vrot.lane.b32.xlu0 %v5988, 80
      %v6767 = vpop.permute.xlu0 %6766
      %6768 = vrot.lane.b32.xlu0 %v5993, 80
      %v6769 = vpop.permute.xlu0 %6768
      %v6798 = vadd.f32 %v6684, %v6715
      %v6799 = vadd.f32 %v6685, %v6717
      %v6800 = vadd.f32 %v6686, %v6719
      %v6801 = vadd.f32 %v6687, %v6721
      %v6802 = vadd.f32 %v6688, %v6723
      %v6803 = vadd.f32 %v6689, %v6725
      %v6804 = vadd.f32 %v6690, %v6727
      %v6805 = vadd.f32 %v6691, %v6729
      %v6806 = vadd.f32 %v6692, %v6731
      %v6807 = vadd.f32 %v6693, %v6733
      %v6808 = vadd.f32 %v6694, %v6735
      %v6809 = vadd.f32 %v6695, %v6737
      %v6810 = vadd.f32 %v6696, %v6739
      %v6811 = vadd.f32 %v6697, %v6741
      %v6812 = vadd.f32 %v6698, %v6743
      %v6813 = vadd.f32 %v6699, %v6745
      %v6814 = vadd.f32 %v6700, %v6747
      %v6815 = vadd.f32 %v6701, %v6749
      %v6816 = vadd.f32 %v6702, %v6751
      %v6817 = vadd.f32 %v6703, %v6753
      %v6818 = vadd.f32 %v6704, %v6755
      %v6819 = vadd.f32 %v6705, %v6757
      %v6820 = vadd.f32 %v6706, %v6759
      %v6821 = vadd.f32 %v6707, %v6761
      %v6822 = vadd.f32 %v6708, %v6763
      %v6823 = vadd.f32 %v6709, %v6765
      %v6824 = vadd.f32 %v6710, %v6767
      %v6825 = vadd.f32 %v6711, %v6769
      %v6826 = vrot.slane %v5988, 1
      %v6827 = vrot.slane %v5993, 1
      %v6828 = vsel %vm1120, %v6826, %v6827
      %6829 = vrot.lane.b32.xlu0 %v6068, 72
      %v6830 = vpop.permute.xlu0 %6829
      %6831 = vrot.lane.b32.xlu0 %v6067, 72
      %v6832 = vpop.permute.xlu0 %6831
      %6833 = vrot.lane.b32.xlu0 %v6071, 72
      %v6834 = vpop.permute.xlu0 %6833
      %6835 = vrot.lane.b32.xlu0 %v6070, 72
      %v6836 = vpop.permute.xlu0 %6835
      %6837 = vrot.lane.b32.xlu0 %v6074, 72
      %v6838 = vpop.permute.xlu0 %6837
      %6839 = vrot.lane.b32.xlu0 %v6073, 72
      %v6840 = vpop.permute.xlu0 %6839
      %6841 = vrot.lane.b32.xlu0 %v6077, 72
      %v6842 = vpop.permute.xlu0 %6841
      %6843 = vrot.lane.b32.xlu0 %v6076, 72
      %v6844 = vpop.permute.xlu0 %6843
      %6845 = vrot.lane.b32.xlu0 %v6080, 72
      %v6846 = vpop.permute.xlu0 %6845
      %6847 = vrot.lane.b32.xlu0 %v6079, 72
      %v6848 = vpop.permute.xlu0 %6847
      %6849 = vrot.lane.b32.xlu0 %v6083, 72
      %v6850 = vpop.permute.xlu0 %6849
      %6851 = vrot.lane.b32.xlu0 %v6082, 72
      %v6852 = vpop.permute.xlu0 %6851
      %6853 = vrot.lane.b32.xlu0 %v6086, 72
      %v6854 = vpop.permute.xlu0 %6853
      %6855 = vrot.lane.b32.xlu0 %v6085, 72
      %v6856 = vpop.permute.xlu0 %6855
      %6857 = vrot.lane.b32.xlu0 %v6089, 72
      %v6858 = vpop.permute.xlu0 %6857
      %6859 = vrot.lane.b32.xlu0 %v6088, 72
      %v6860 = vpop.permute.xlu0 %6859
      %6861 = vrot.lane.b32.xlu0 %v6092, 72
      %v6862 = vpop.permute.xlu0 %6861
      %6863 = vrot.lane.b32.xlu0 %v6091, 72
      %v6864 = vpop.permute.xlu0 %6863
      %6865 = vrot.lane.b32.xlu0 %v6095, 72
      %v6866 = vpop.permute.xlu0 %6865
      %6867 = vrot.lane.b32.xlu0 %v6094, 72
      %v6868 = vpop.permute.xlu0 %6867
      %6869 = vrot.lane.b32.xlu0 %v6098, 72
      %v6870 = vpop.permute.xlu0 %6869
      %6871 = vrot.lane.b32.xlu0 %v6097, 72
      %v6872 = vpop.permute.xlu0 %6871
      %6873 = vrot.lane.b32.xlu0 %v6101, 72
      %v6874 = vpop.permute.xlu0 %6873
      %6875 = vrot.lane.b32.xlu0 %v6100, 72
      %v6876 = vpop.permute.xlu0 %6875
      %6877 = vrot.lane.b32.xlu0 %v6484, 72
      %v6878 = vpop.permute.xlu0 %6877
      %6879 = vrot.lane.b32.xlu0 %v6483, 72
      %v6880 = vpop.permute.xlu0 %6879
      %6881 = vrot.lane.b32.xlu0 %v6828, 72
      %v6882 = vpop.permute.xlu0 %6881
      %6883 = vrot.lane.b32.xlu0 %v6827, 72
      %v6884 = vpop.permute.xlu0 %6883
      %v6913 = vadd.f32 %v6798, %v6830
      %v6914 = vadd.f32 %v6799, %v6832
      %v6915 = vadd.f32 %v6800, %v6834
      %v6916 = vadd.f32 %v6801, %v6836
      %v6917 = vadd.f32 %v6802, %v6838
      %v6918 = vadd.f32 %v6803, %v6840
      %v6919 = vadd.f32 %v6804, %v6842
      %v6920 = vadd.f32 %v6805, %v6844
      %v6921 = vadd.f32 %v6806, %v6846
      %v6922 = vadd.f32 %v6807, %v6848
      %v6923 = vadd.f32 %v6808, %v6850
      %v6924 = vadd.f32 %v6809, %v6852
      %v6925 = vadd.f32 %v6810, %v6854
      %v6926 = vadd.f32 %v6811, %v6856
      %v6927 = vadd.f32 %v6812, %v6858
      %v6928 = vadd.f32 %v6813, %v6860
      %v6929 = vadd.f32 %v6814, %v6862
      %v6930 = vadd.f32 %v6815, %v6864
      %v6931 = vadd.f32 %v6816, %v6866
      %v6932 = vadd.f32 %v6817, %v6868
      %v6933 = vadd.f32 %v6818, %v6870
      %v6934 = vadd.f32 %v6819, %v6872
      %v6935 = vadd.f32 %v6820, %v6874
      %v6936 = vadd.f32 %v6821, %v6876
      %v6937 = vadd.f32 %v6822, %v6878
      %v6938 = vadd.f32 %v6823, %v6880
      %v6939 = vadd.f32 %v6824, %v6882
      %v6940 = vadd.f32 %v6825, %v6884
      %v6941 = vrot.slane %v5988, 2
      %v6942 = vrot.slane %v5993, 2
      %v6943 = vsel %vm1275, %v6941, %v6942
      %6944 = vrot.lane.b32.xlu0 %v6222, 64
      %v6945 = vpop.permute.xlu0 %6944
      %6946 = vrot.lane.b32.xlu0 %v6221, 64
      %v6947 = vpop.permute.xlu0 %6946
      %6948 = vrot.lane.b32.xlu0 %v6225, 64
      %v6949 = vpop.permute.xlu0 %6948
      %6950 = vrot.lane.b32.xlu0 %v6224, 64
      %v6951 = vpop.permute.xlu0 %6950
      %6952 = vrot.lane.b32.xlu0 %v6228, 64
      %v6953 = vpop.permute.xlu0 %6952
      %6954 = vrot.lane.b32.xlu0 %v6227, 64
      %v6955 = vpop.permute.xlu0 %6954
      %6956 = vrot.lane.b32.xlu0 %v6231, 64
      %v6957 = vpop.permute.xlu0 %6956
      %6958 = vrot.lane.b32.xlu0 %v6230, 64
      %v6959 = vpop.permute.xlu0 %6958
      %6960 = vrot.lane.b32.xlu0 %v6234, 64
      %v6961 = vpop.permute.xlu0 %6960
      %6962 = vrot.lane.b32.xlu0 %v6233, 64
      %v6963 = vpop.permute.xlu0 %6962
      %6964 = vrot.lane.b32.xlu0 %v6237, 64
      %v6965 = vpop.permute.xlu0 %6964
      %6966 = vrot.lane.b32.xlu0 %v6236, 64
      %v6967 = vpop.permute.xlu0 %6966
      %6968 = vrot.lane.b32.xlu0 %v6240, 64
      %v6969 = vpop.permute.xlu0 %6968
      %6970 = vrot.lane.b32.xlu0 %v6239, 64
      %v6971 = vpop.permute.xlu0 %6970
      %6972 = vrot.lane.b32.xlu0 %v6243, 64
      %v6973 = vpop.permute.xlu0 %6972
      %6974 = vrot.lane.b32.xlu0 %v6242, 64
      %v6975 = vpop.permute.xlu0 %6974
      %6976 = vrot.lane.b32.xlu0 %v6246, 64
      %v6977 = vpop.permute.xlu0 %6976
      %6978 = vrot.lane.b32.xlu0 %v6245, 64
      %v6979 = vpop.permute.xlu0 %6978
      %6980 = vrot.lane.b32.xlu0 %v6249, 64
      %v6981 = vpop.permute.xlu0 %6980
      %6982 = vrot.lane.b32.xlu0 %v6248, 64
      %v6983 = vpop.permute.xlu0 %6982
      %6984 = vrot.lane.b32.xlu0 %v6252, 64
      %v6985 = vpop.permute.xlu0 %6984
      %6986 = vrot.lane.b32.xlu0 %v6251, 64
      %v6987 = vpop.permute.xlu0 %6986
      %6988 = vrot.lane.b32.xlu0 %v6255, 64
      %v6989 = vpop.permute.xlu0 %6988
      %6990 = vrot.lane.b32.xlu0 %v6254, 64
      %v6991 = vpop.permute.xlu0 %6990
      %6992 = vrot.lane.b32.xlu0 %v6599, 64
      %v6993 = vpop.permute.xlu0 %6992
      %6994 = vrot.lane.b32.xlu0 %v6598, 64
      %v6995 = vpop.permute.xlu0 %6994
      %6996 = vrot.lane.b32.xlu0 %v6943, 64
      %v6997 = vpop.permute.xlu0 %6996
      %6998 = vrot.lane.b32.xlu0 %v6942, 64
      %v6999 = vpop.permute.xlu0 %6998
      %v7028 = vadd.f32 %v6913, %v6945
      %v7029 = vadd.f32 %v6914, %v6947
      %v7030 = vadd.f32 %v6915, %v6949
      %v7031 = vadd.f32 %v6916, %v6951
      %v7032 = vadd.f32 %v6917, %v6953
      %v7033 = vadd.f32 %v6918, %v6955
      %v7034 = vadd.f32 %v6919, %v6957
      %v7035 = vadd.f32 %v6920, %v6959
      %v7036 = vadd.f32 %v6921, %v6961
      %v7037 = vadd.f32 %v6922, %v6963
      %v7038 = vadd.f32 %v6923, %v6965
      %v7039 = vadd.f32 %v6924, %v6967
      %v7040 = vadd.f32 %v6925, %v6969
      %v7041 = vadd.f32 %v6926, %v6971
      %v7042 = vadd.f32 %v6927, %v6973
      %v7043 = vadd.f32 %v6928, %v6975
      %v7044 = vadd.f32 %v6929, %v6977
      %v7045 = vadd.f32 %v6930, %v6979
      %v7046 = vadd.f32 %v6931, %v6981
      %v7047 = vadd.f32 %v6932, %v6983
      %v7048 = vadd.f32 %v6933, %v6985
      %v7049 = vadd.f32 %v6934, %v6987
      %v7050 = vadd.f32 %v6935, %v6989
      %v7051 = vadd.f32 %v6936, %v6991
      %v7052 = vadd.f32 %v6937, %v6993
      %v7053 = vadd.f32 %v6938, %v6995
      %v7054 = vadd.f32 %v6939, %v6997
      %v7055 = vadd.f32 %v6940, %v6999
      %vm7056 = vcmp.ge.f32.partialorder %v7028, 0.0
      %vm7057 = vcmp.ge.f32.partialorder %v7029, 0.0
      %vm7058 = vcmp.ge.f32.partialorder %v7030, 0.0
      %vm7059 = vcmp.ge.f32.partialorder %v7031, 0.0
      %vm7060 = vcmp.ge.f32.partialorder %v7032, 0.0
      %vm7061 = vcmp.ge.f32.partialorder %v7033, 0.0
      %vm7062 = vcmp.ge.f32.partialorder %v7034, 0.0
      %vm7063 = vcmp.ge.f32.partialorder %v7035, 0.0
      %vm7064 = vcmp.ge.f32.partialorder %v7036, 0.0
      %vm7065 = vcmp.ge.f32.partialorder %v7037, 0.0
      %vm7066 = vcmp.ge.f32.partialorder %v7038, 0.0
      %vm7067 = vcmp.ge.f32.partialorder %v7039, 0.0
      %vm7068 = vcmp.ge.f32.partialorder %v7040, 0.0
      %vm7069 = vcmp.ge.f32.partialorder %v7041, 0.0
      %vm7070 = vcmp.ge.f32.partialorder %v7042, 0.0
      %vm7071 = vcmp.ge.f32.partialorder %v7043, 0.0
      %vm7072 = vcmp.ge.f32.partialorder %v7044, 0.0
      %vm7073 = vcmp.ge.f32.partialorder %v7045, 0.0
      %vm7074 = vcmp.ge.f32.partialorder %v7046, 0.0
      %vm7075 = vcmp.ge.f32.partialorder %v7047, 0.0
      %vm7076 = vcmp.ge.f32.partialorder %v7048, 0.0
      %vm7077 = vcmp.ge.f32.partialorder %v7049, 0.0
      %vm7078 = vcmp.ge.f32.partialorder %v7050, 0.0
      %vm7079 = vcmp.ge.f32.partialorder %v7051, 0.0
      %vm7080 = vcmp.ge.f32.partialorder %v7052, 0.0
      %vm7081 = vcmp.ge.f32.partialorder %v7053, 0.0
      %vm7082 = vcmp.ge.f32.partialorder %v7054, 0.0
      %vm7083 = vcmp.ge.f32.partialorder %v7055, 0.0
      %v7084 = vmul.f32 %v7028, 0.2
      %v7085 = vmul.f32 %v7029, 0.2
      %v7086 = vmul.f32 %v7030, 0.2
      %v7087 = vmul.f32 %v7031, 0.2
      %v7088 = vmul.f32 %v7032, 0.2
      %v7089 = vmul.f32 %v7033, 0.2
      %v7090 = vmul.f32 %v7034, 0.2
      %v7091 = vmul.f32 %v7035, 0.2
      %v7092 = vmul.f32 %v7036, 0.2
      %v7093 = vmul.f32 %v7037, 0.2
      %v7094 = vmul.f32 %v7038, 0.2
      %v7095 = vmul.f32 %v7039, 0.2
      %v7096 = vmul.f32 %v7040, 0.2
      %v7097 = vmul.f32 %v7041, 0.2
      %v7098 = vmul.f32 %v7042, 0.2
      %v7099 = vmul.f32 %v7043, 0.2
      %v7100 = vmul.f32 %v7044, 0.2
      %v7101 = vmul.f32 %v7045, 0.2
      %v7102 = vmul.f32 %v7046, 0.2
      %v7103 = vmul.f32 %v7047, 0.2
      %v7104 = vmul.f32 %v7048, 0.2
      %v7105 = vmul.f32 %v7049, 0.2
      %v7106 = vmul.f32 %v7050, 0.2
      %v7107 = vmul.f32 %v7051, 0.2
      %v7108 = vmul.f32 %v7052, 0.2
      %v7109 = vmul.f32 %v7053, 0.2
      %v7110 = vmul.f32 %v7054, 0.2
      %v7111 = vmul.f32 %v7055, 0.2
      %v7112 = vsel %vm7056, %v7028, %v7084
      %v7113 = vsel %vm7057, %v7029, %v7085
      %v7114 = vsel %vm7058, %v7030, %v7086
      %v7115 = vsel %vm7059, %v7031, %v7087
      %v7116 = vsel %vm7060, %v7032, %v7088
      %v7117 = vsel %vm7061, %v7033, %v7089
      %v7118 = vsel %vm7062, %v7034, %v7090
      %v7119 = vsel %vm7063, %v7035, %v7091
      %v7120 = vsel %vm7064, %v7036, %v7092
      %v7121 = vsel %vm7065, %v7037, %v7093
      %v7122 = vsel %vm7066, %v7038, %v7094
      %v7123 = vsel %vm7067, %v7039, %v7095
      %v7124 = vsel %vm7068, %v7040, %v7096
      %v7125 = vsel %vm7069, %v7041, %v7097
      %v7126 = vsel %vm7070, %v7042, %v7098
      %v7127 = vsel %vm7071, %v7043, %v7099
      %v7128 = vsel %vm7072, %v7044, %v7100
      %v7129 = vsel %vm7073, %v7045, %v7101
      %v7130 = vsel %vm7074, %v7046, %v7102
      %v7131 = vsel %vm7075, %v7047, %v7103
      %v7132 = vsel %vm7076, %v7048, %v7104
      %v7133 = vsel %vm7077, %v7049, %v7105
      %v7134 = vsel %vm7078, %v7050, %v7106
      %v7135 = vsel %vm7079, %v7051, %v7107
      %v7136 = vsel %vm7080, %v7052, %v7108
      %v7137 = vsel %vm7081, %v7053, %v7109
      %v7138 = vsel %vm7082, %v7054, %v7110
      %v7139 = vsel %vm7083, %v7055, %v7111
      %7168 = vrot.lane.b32.xlu0 %v7112, 40
      %v7169 = vpop.permute.xlu0 %7168
      %7170 = vrot.lane.b32.xlu0 %v7113, 40
      %v7171 = vpop.permute.xlu0 %7170
      %7172 = vrot.lane.b32.xlu0 %v7114, 40
      %v7173 = vpop.permute.xlu0 %7172
      %7174 = vrot.lane.b32.xlu0 %v7115, 40
      %v7175 = vpop.permute.xlu0 %7174
      %7176 = vrot.lane.b32.xlu0 %v7116, 40
      %v7177 = vpop.permute.xlu0 %7176
      %7178 = vrot.lane.b32.xlu0 %v7117, 40
      %v7179 = vpop.permute.xlu0 %7178
      %7180 = vrot.lane.b32.xlu0 %v7118, 40
      %v7181 = vpop.permute.xlu0 %7180
      %7182 = vrot.lane.b32.xlu0 %v7119, 40
      %v7183 = vpop.permute.xlu0 %7182
      %7184 = vrot.lane.b32.xlu0 %v7120, 40
      %v7185 = vpop.permute.xlu0 %7184
      %7186 = vrot.lane.b32.xlu0 %v7121, 40
      %v7187 = vpop.permute.xlu0 %7186
      %7188 = vrot.lane.b32.xlu0 %v7122, 40
      %v7189 = vpop.permute.xlu0 %7188
      %7190 = vrot.lane.b32.xlu0 %v7123, 40
      %v7191 = vpop.permute.xlu0 %7190
      %7192 = vrot.lane.b32.xlu0 %v7124, 40
      %v7193 = vpop.permute.xlu0 %7192
      %7194 = vrot.lane.b32.xlu0 %v7125, 40
      %v7195 = vpop.permute.xlu0 %7194
      %7196 = vrot.lane.b32.xlu0 %v7126, 40
      %v7197 = vpop.permute.xlu0 %7196
      %7198 = vrot.lane.b32.xlu0 %v7127, 40
      %v7199 = vpop.permute.xlu0 %7198
      %7200 = vrot.lane.b32.xlu0 %v7128, 40
      %v7201 = vpop.permute.xlu0 %7200
      %7202 = vrot.lane.b32.xlu0 %v7129, 40
      %v7203 = vpop.permute.xlu0 %7202
      %7204 = vrot.lane.b32.xlu0 %v7130, 40
      %v7205 = vpop.permute.xlu0 %7204
      %7206 = vrot.lane.b32.xlu0 %v7131, 40
      %v7207 = vpop.permute.xlu0 %7206
      %7208 = vrot.lane.b32.xlu0 %v7132, 40
      %v7209 = vpop.permute.xlu0 %7208
      %7210 = vrot.lane.b32.xlu0 %v7133, 40
      %v7211 = vpop.permute.xlu0 %7210
      %7212 = vrot.lane.b32.xlu0 %v7134, 40
      %v7213 = vpop.permute.xlu0 %7212
      %7214 = vrot.lane.b32.xlu0 %v7135, 40
      %v7215 = vpop.permute.xlu0 %7214
      %7216 = vrot.lane.b32.xlu0 %v7136, 40
      %v7217 = vpop.permute.xlu0 %7216
      %7218 = vrot.lane.b32.xlu0 %v7137, 40
      %v7219 = vpop.permute.xlu0 %7218
      %7220 = vrot.lane.b32.xlu0 %v7138, 40
      %v7221 = vpop.permute.xlu0 %7220
      %7222 = vrot.lane.b32.xlu0 %v7139, 40
      %v7223 = vpop.permute.xlu0 %7222
      %vm7252 = vcmask 392512
      %7253 = vst.msk [vmem:[%s495 + $0x1] sm:$0xff] %vm7252, %v7169
      %vm7254 = vcmask 390464
      %7255 = vst.msk [vmem:[%s495 + $0x9] sm:$0x3f] %vm7254, %v7171
      %7256 = vst.msk [vmem:[%s495 + $0x11] sm:$0xff] %vm7252, %v7173
      %7257 = vst.msk [vmem:[%s495 + $0x19] sm:$0x3f] %vm7254, %v7175
      %7258 = vst.msk [vmem:[%s495 + $0x21] sm:$0xff] %vm7252, %v7177
      %7259 = vst.msk [vmem:[%s495 + $0x29] sm:$0x3f] %vm7254, %v7179
      %7260 = vst.msk [vmem:[%s495 + $0x31] sm:$0xff] %vm7252, %v7181
      %7261 = vst.msk [vmem:[%s495 + $0x39] sm:$0x3f] %vm7254, %v7183
      %7262 = vst.msk [vmem:[%s495 + $0x41] sm:$0xff] %vm7252, %v7185
      %7263 = vst.msk [vmem:[%s495 + $0x49] sm:$0x3f] %vm7254, %v7187
      %7264 = vst.msk [vmem:[%s495 + $0x51] sm:$0xff] %vm7252, %v7189
      %7265 = vst.msk [vmem:[%s495 + $0x59] sm:$0x3f] %vm7254, %v7191
      %7266 = vst.msk [vmem:[%s495 + $0x61] sm:$0xff] %vm7252, %v7193
      %7267 = vst.msk [vmem:[%s495 + $0x69] sm:$0x3f] %vm7254, %v7195
      %7268 = vst.msk [vmem:[%s495 + $0x71] sm:$0xff] %vm7252, %v7197
      %7269 = vst.msk [vmem:[%s495 + $0x79] sm:$0x3f] %vm7254, %v7199
      %7270 = vst.msk [vmem:[%s495 + $0x81] sm:$0xff] %vm7252, %v7201
      %7271 = vst.msk [vmem:[%s495 + $0x89] sm:$0x3f] %vm7254, %v7203
      %7272 = vst.msk [vmem:[%s495 + $0x91] sm:$0xff] %vm7252, %v7205
      %7273 = vst.msk [vmem:[%s495 + $0x99] sm:$0x3f] %vm7254, %v7207
      %7274 = vst.msk [vmem:[%s495 + $0xa1] sm:$0xff] %vm7252, %v7209
      %7275 = vst.msk [vmem:[%s495 + $0xa9] sm:$0x3f] %vm7254, %v7211
      %7276 = vst.msk [vmem:[%s495 + $0xb1] sm:$0xff] %vm7252, %v7213
      %7277 = vst.msk [vmem:[%s495 + $0xb9] sm:$0x3f] %vm7254, %v7215
      %7278 = vst.msk [vmem:[%s495 + $0xc1] sm:$0xff] %vm7252, %v7217
      %7279 = vst.msk [vmem:[%s495 + $0xc9] sm:$0x3f] %vm7254, %v7219
      %7280 = vst.msk [vmem:[%s495 + $0xd1] sm:$0xff] %vm7252, %v7221
      %7281 = vst.msk [vmem:[%s495 + $0xd9] sm:$0x3f] %vm7254, %v7223
      %v7282 = vld [vmem:[#allocation2] sm:$0xff]
      %v7283 = vld [vmem:[#allocation2 + $0x8] sm:$0xff]
      %v7284 = vld [vmem:[#allocation2 + $0x10] sm:$0xff]
      %v7285 = vld [vmem:[#allocation2 + $0x18] sm:$0xff]
      %v7286 = vld [vmem:[#allocation2 + $0x20] sm:$0xff]
      %v7287 = vld [vmem:[#allocation2 + $0x28] sm:$0xff]
      %v7288 = vld [vmem:[#allocation2 + $0x30] sm:$0xff]
      %v7289 = vld [vmem:[#allocation2 + $0x38] sm:$0xff]
      %v7290 = vld [vmem:[#allocation2 + $0x40] sm:$0xff]
      %v7291 = vld [vmem:[#allocation2 + $0x48] sm:$0xff]
      %v7292 = vld [vmem:[#allocation2 + $0x50] sm:$0xff]
      %v7293 = vld [vmem:[#allocation2 + $0x58] sm:$0xff]
      %v7294 = vld [vmem:[#allocation2 + $0x60] sm:$0xff]
      %v7295 = vld [vmem:[#allocation2 + $0x68] sm:$0xff]
      %v7296 = vld [vmem:[#allocation2 + $0x70] sm:$0xff]
      %v7297 = vld [vmem:[#allocation2 + $0x78] sm:$0xff]
      %v7298 = vld [vmem:[#allocation2 + $0x80] sm:$0xff]
      %v7299 = vld [vmem:[#allocation2 + $0x88] sm:$0xff]
      %v7300 = vld [vmem:[#allocation2 + $0x90] sm:$0xff]
      %v7301 = vld [vmem:[#allocation2 + $0x98] sm:$0xff]
      %v7302 = vld [vmem:[#allocation2 + $0xa0] sm:$0xff]
      %v7303 = vld [vmem:[#allocation2 + $0xa8] sm:$0xff]
      %v7304 = vld [vmem:[#allocation2 + $0xb0] sm:$0xff]
      %v7305 = vld [vmem:[#allocation2 + $0xb8] sm:$0xff]
      %v7306 = vld [vmem:[#allocation2 + $0xc0] sm:$0xff]
      %v7307 = vld [vmem:[#allocation2 + $0xc8] sm:$0xff]
      %v7308 = vld [vmem:[#allocation2 + $0xd0] sm:$0xff]
      %v7309 = vld [vmem:[#allocation2 + $0xd8] sm:$0xff]
      %v7310 = vld [vmem:[#allocation2 + $0xe0] sm:$0xff]
      %v7311 = vld [vmem:[#allocation2 + $0xe8] sm:$0xff]
      %v7312 = vld [vmem:[#allocation2 + $0xf0] sm:$0xff]
      %v7313 = vld [vmem:[#allocation2 + $0xf8] sm:$0xff]
      %v7314 = vld [vmem:[%s10] sm:$0xff]
      %v7315 = vld [vmem:[%s10 + $0x8] sm:$0xff]
      %v7316 = vld [vmem:[%s10 + $0x10] sm:$0xff]
      %v7317 = vld [vmem:[%s10 + $0x18] sm:$0xff]
      %v7318 = vld [vmem:[%s10 + $0x20] sm:$0xff]
      %v7319 = vld [vmem:[%s10 + $0x28] sm:$0xff]
      %v7320 = vld [vmem:[%s10 + $0x30] sm:$0xff]
      %v7321 = vld [vmem:[%s10 + $0x38] sm:$0xff]
      %v7322 = vld [vmem:[%s10 + $0x40] sm:$0xff]
      %v7323 = vld [vmem:[%s10 + $0x48] sm:$0xff]
      %v7324 = vld [vmem:[%s10 + $0x50] sm:$0xff]
      %v7325 = vld [vmem:[%s10 + $0x58] sm:$0xff]
      %v7326 = vld [vmem:[%s10 + $0x60] sm:$0xff]
      %v7327 = vld [vmem:[%s10 + $0x68] sm:$0xff]
      %v7329 = vsel %vm434, %v7282, 0
      %v7332 = vsel %vm434, %v7283, 0
      %v7335 = vsel %vm434, %v7284, 0
      %v7338 = vsel %vm434, %v7285, 0
      %v7341 = vsel %vm434, %v7286, 0
      %v7344 = vsel %vm434, %v7287, 0
      %v7347 = vsel %vm434, %v7288, 0
      %v7350 = vsel %vm434, %v7289, 0
      %v7353 = vsel %vm434, %v7290, 0
      %v7356 = vsel %vm434, %v7291, 0
      %v7359 = vsel %vm434, %v7292, 0
      %v7362 = vsel %vm434, %v7293, 0
      %v7365 = vsel %vm434, %v7294, 0
      %v7368 = vsel %vm434, %v7295, 0
      %v7371 = vsel %vm434, %v7296, 0
      %v7374 = vsel %vm434, %v7297, 0
      %v7377 = vsel %vm434, %v7298, 0
      %v7380 = vsel %vm434, %v7299, 0
      %v7383 = vsel %vm434, %v7300, 0
      %v7386 = vsel %vm434, %v7301, 0
      %v7389 = vsel %vm434, %v7302, 0
      %v7392 = vsel %vm434, %v7303, 0
      %v7395 = vsel %vm434, %v7304, 0
      %v7398 = vsel %vm434, %v7305, 0
      %v7401 = vsel %vm434, %v7306, 0
      %v7404 = vsel %vm434, %v7307, 0
      %v7407 = vsel %vm434, %v7308, 0
      %v7410 = vsel %vm434, %v7309, 0
      %v7413 = vsel %vm434, %v7310, 0
      %v7416 = vsel %vm434, %v7311, 0
      %v7419 = vsel %vm434, %v7312, 0
      %v7422 = vsel %vm434, %v7313, 0
      %7424 = vmatprep.subr.mxu0 %v7315
      %7425 = vmatpush1.msra.mxu0 %v7314
      %7426 = vmatprep.subr.mxu0 %v7317
      %7427 = vmatpush1.msra.mxu0 %v7316
      %7428 = vmatprep.subr.mxu0 %v7319
      %7429 = vmatpush1.msra.mxu0 %v7318
      %7430 = vmatprep.subr.mxu0 %v7321
      %7431 = vmatpush1.msra.mxu0 %v7320
      %7432 = vmatprep.subr.mxu0 %v7323
      %7433 = vmatpush1.msra.mxu0 %v7322
      %7434 = vmatprep.subr.mxu0 %v7325
      %7435 = vmatpush1.msra.mxu0 %v7324
      %7436 = vmatprep.subr.mxu0 %v7327
      %7437 = vmatpush1.msra.mxu0 %v7326
      %7438 = vmatprep.subr.mxu0 0.0
      %7439 = vmatpush1.msra.mxu0 0.0
      %7440 = vmatprep.subr.mxu0 0.0
      %7441 = vmatpush1.msra.mxu0 0.0
      %7442 = vmatprep.subr.mxu0 0.0
      %7443 = vmatpush1.msra.mxu0 0.0
      %7444 = vmatprep.subr.mxu0 0.0
      %7445 = vmatpush1.msra.mxu0 0.0
      %7446 = vmatprep.subr.mxu0 0.0
      %7447 = vmatpush1.msra.mxu0 0.0
      %7448 = vmatprep.subr.mxu0 0.0
      %7449 = vmatpush1.msra.mxu0 0.0
      %7450 = vmatprep.subr.mxu0 0.0
      %7451 = vmatpush1.msra.mxu0 0.0
      %7452 = vmatprep.subr.mxu0 0.0
      %7453 = vmatpush1.msra.mxu0 0.0
      %7454 = vmatprep.subr.mxu0 0.0
      %7455 = vmatpush1.msra.mxu0 0.0
      %7456 = vmatprep.subr.mxu0 0.0
      %7457 = vmatpush1.msra.mxu0 0.0
      %7458 = vmatprep.subr.mxu0 0.0
      %7459 = vmatpush1.msra.mxu0 0.0
      %7460 = vmatprep.subr.mxu0 0.0
      %7461 = vmatpush1.msra.mxu0 0.0
      %7462 = vmatprep.subr.mxu0 0.0
      %7463 = vmatpush1.msra.mxu0 0.0
      %7464 = vmatprep.subr.mxu0 0.0
      %7465 = vmatpush1.msra.mxu0 0.0
      %7466 = vmatprep.subr.mxu0 0.0
      %7467 = vmatpush1.msra.mxu0 0.0
      %7468 = vmatprep.subr.mxu0 0.0
      %7469 = vmatpush1.msra.mxu0 0.0
      %7470 = vmatprep.subr.mxu0 0.0
      %7471 = vmatpush1.msra.mxu0 0.0
      %7472 = vmatprep.subr.mxu0 0.0
      %7473 = vmatpush1.msra.mxu0 0.0
      %7474 = vmatprep.subr.mxu0 0.0
      %7475 = vmatpush1.msra.mxu0 0.0
      %7476 = vmatprep.subr.mxu0 0.0
      %7477 = vmatpush1.msra.mxu0 0.0
      %7478 = vmatprep.subr.mxu0 0.0
      %7479 = vmatpush1.msra.mxu0 0.0
      %7480 = vmatprep.subr.mxu0 0.0
      %7481 = vmatpush1.msra.mxu0 0.0
      %7482 = vmatprep.subr.mxu0 0.0
      %7483 = vmatpush1.msra.mxu0 0.0
      %7484 = vmatprep.subr.mxu0 0.0
      %7485 = vmatpush1.msra.mxu0 0.0
      %7486 = vmatprep.subr.mxu0 0.0
      %7487 = vmatpush1.msra.mxu0 0.0
      %7488 = vmatprep.mubr.f32.mxu0 0.0
      %7489 = vmatmul.mubr.f32.gmra.mrb[0].mxu0 %v7329
      %v7490 = vpop.f32.mrb[0].mxu0
      %v7491 = vadd.f32 0.0, %v7490
      %v7492 = vpop.f32.mrb[0].mxu0
      %7493 = vmatprep.mubr.f32.mxu0 0.0
      %7494 = vmatmul.mubr.f32.gmra.mrb[0].mxu0 %v7332
      %v7495 = vpop.f32.mrb[0].mxu0
      %v7496 = vadd.f32 0.0, %v7495
      %v7497 = vpop.f32.mrb[0].mxu0
      %7498 = vmatprep.mubr.f32.mxu0 0.0
      %7499 = vmatmul.mubr.f32.gmra.mrb[0].mxu0 %v7335
      %v7500 = vpop.f32.mrb[0].mxu0
      %v7501 = vadd.f32 0.0, %v7500
      %v7502 = vpop.f32.mrb[0].mxu0
      %7503 = vmatprep.mubr.f32.mxu0 0.0
      %7504 = vmatmul.mubr.f32.gmra.mrb[0].mxu0 %v7338
      %v7505 = vpop.f32.mrb[0].mxu0
      %v7506 = vadd.f32 0.0, %v7505
      %v7507 = vpop.f32.mrb[0].mxu0
      %7508 = vmatprep.mubr.f32.mxu0 0.0
      %7509 = vmatmul.mubr.f32.gmra.mrb[0].mxu0 %v7341
      %v7510 = vpop.f32.mrb[0].mxu0
      %v7511 = vadd.f32 0.0, %v7510
      %v7512 = vpop.f32.mrb[0].mxu0
      %v7513 = vadd.f32 0.0, %v7512
      %7514 = vmatprep.mubr.f32.mxu0 0.0
      %7515 = vmatmul.mubr.f32.gmra.mrb[0].mxu0 %v7344
      %v7516 = vpop.f32.mrb[0].mxu0
      %v7517 = vadd.f32 0.0, %v7516
      %v7518 = vpop.f32.mrb[0].mxu0
      %v7519 = vadd.f32 0.0, %v7518
      %7520 = vmatprep.mubr.f32.mxu0 0.0
      %7521 = vmatmul.mubr.f32.gmra.mrb[0].mxu0 %v7347
      %v7522 = vpop.f32.mrb[0].mxu0
      %v7523 = vadd.f32 0.0, %v7522
      %v7524 = vpop.f32.mrb[0].mxu0
      %v7525 = vadd.f32 0.0, %v7524
      %7526 = vmatprep.mubr.f32.mxu0 0.0
      %7527 = vmatmul.mubr.f32.gmra.mrb[0].mxu0 %v7350
      %v7528 = vpop.f32.mrb[0].mxu0
      %v7529 = vadd.f32 0.0, %v7528
      %v7530 = vpop.f32.mrb[0].mxu0
      %v7531 = vadd.f32 0.0, %v7530
      %7532 = vmatprep.mubr.f32.mxu0 0.0
      %7533 = vmatmul.mubr.f32.gmra.mrb[0].mxu0 %v7353
      %v7534 = vpop.f32.mrb[0].mxu0
      %v7535 = vadd.f32 0.0, %v7534
      %v7536 = vpop.f32.mrb[0].mxu0
      %v7537 = vadd.f32 0.0, %v7536
      %7538 = vmatprep.mubr.f32.mxu0 0.0
      %7539 = vmatmul.mubr.f32.gmra.mrb[0].mxu0 %v7356
      %v7540 = vpop.f32.mrb[0].mxu0
      %v7541 = vadd.f32 0.0, %v7540
      %v7542 = vpop.f32.mrb[0].mxu0
      %v7543 = vadd.f32 0.0, %v7542
      %7544 = vmatprep.mubr.f32.mxu0 0.0
      %7545 = vmatmul.mubr.f32.gmra.mrb[0].mxu0 %v7359
      %v7546 = vpop.f32.mrb[0].mxu0
      %v7547 = vadd.f32 0.0, %v7546
      %v7548 = vpop.f32.mrb[0].mxu0
      %v7549 = vadd.f32 0.0, %v7548
      %7550 = vmatprep.mubr.f32.mxu0 0.0
      %7551 = vmatmul.mubr.f32.gmra.mrb[0].mxu0 %v7362
      %v7552 = vpop.f32.mrb[0].mxu0
      %v7553 = vadd.f32 0.0, %v7552
      %v7554 = vpop.f32.mrb[0].mxu0
      %v7555 = vadd.f32 0.0, %v7554
      %7556 = vmatprep.mubr.f32.mxu0 0.0
      %7557 = vmatmul.mubr.f32.gmra.mrb[0].mxu0 %v7365
      %v7558 = vpop.f32.mrb[0].mxu0
      %v7559 = vadd.f32 0.0, %v7558
      %v7560 = vpop.f32.mrb[0].mxu0
      %v7561 = vadd.f32 0.0, %v7560
      %7562 = vmatprep.mubr.f32.mxu0 0.0
      %7563 = vmatmul.mubr.f32.gmra.mrb[0].mxu0 %v7368
      %v7564 = vpop.f32.mrb[0].mxu0
      %v7565 = vadd.f32 0.0, %v7564
      %v7566 = vpop.f32.mrb[0].mxu0
      %v7567 = vadd.f32 0.0, %v7566
      %7568 = vmatprep.mubr.f32.mxu0 0.0
      %7569 = vmatmul.mubr.f32.gmra.mrb[0].mxu0 %v7371
      %v7570 = vpop.f32.mrb[0].mxu0
      %v7571 = vadd.f32 0.0, %v7570
      %v7572 = vpop.f32.mrb[0].mxu0
      %v7573 = vadd.f32 0.0, %v7572
      %7574 = vmatprep.mubr.f32.mxu0 0.0
      %7575 = vmatmul.mubr.f32.gmra.mrb[0].mxu0 %v7374
      %v7576 = vpop.f32.mrb[0].mxu0
      %v7577 = vadd.f32 0.0, %v7576
      %v7578 = vpop.f32.mrb[0].mxu0
      %v7579 = vadd.f32 0.0, %v7578
      %7580 = vmatprep.mubr.f32.mxu0 0.0
      %7581 = vmatmul.mubr.f32.gmra.mrb[0].mxu0 %v7377
      %v7582 = vpop.f32.mrb[0].mxu0
      %v7583 = vadd.f32 0.0, %v7582
      %v7584 = vpop.f32.mrb[0].mxu0
      %v7585 = vadd.f32 0.0, %v7584
      %7586 = vmatprep.mubr.f32.mxu0 0.0
      %7587 = vmatmul.mubr.f32.gmra.mrb[0].mxu0 %v7380
      %v7588 = vpop.f32.mrb[0].mxu0
      %v7589 = vadd.f32 0.0, %v7588
      %v7590 = vpop.f32.mrb[0].mxu0
      %v7591 = vadd.f32 0.0, %v7590
      %7592 = vmatprep.mubr.f32.mxu0 0.0
      %7593 = vmatmul.mubr.f32.gmra.mrb[0].mxu0 %v7383
      %v7594 = vpop.f32.mrb[0].mxu0
      %v7595 = vadd.f32 0.0, %v7594
      %v7596 = vpop.f32.mrb[0].mxu0
      %v7597 = vadd.f32 0.0, %v7596
      %7598 = vmatprep.mubr.f32.mxu0 0.0
      %7599 = vmatmul.mubr.f32.gmra.mrb[0].mxu0 %v7386
      %v7600 = vpop.f32.mrb[0].mxu0
      %v7601 = vadd.f32 0.0, %v7600
      %v7602 = vpop.f32.mrb[0].mxu0
      %v7603 = vadd.f32 0.0, %v7602
      %7604 = vmatprep.mubr.f32.mxu0 0.0
      %7605 = vmatmul.mubr.f32.gmra.mrb[0].mxu0 %v7389
      %v7606 = vpop.f32.mrb[0].mxu0
      %v7607 = vadd.f32 0.0, %v7606
      %v7608 = vpop.f32.mrb[0].mxu0
      %v7609 = vadd.f32 0.0, %v7608
      %7610 = vmatprep.mubr.f32.mxu0 0.0
      %7611 = vmatmul.mubr.f32.gmra.mrb[0].mxu0 %v7392
      %v7612 = vpop.f32.mrb[0].mxu0
      %v7613 = vadd.f32 0.0, %v7612
      %v7614 = vpop.f32.mrb[0].mxu0
      %v7615 = vadd.f32 0.0, %v7614
      %7616 = vmatprep.mubr.f32.mxu0 0.0
      %7617 = vmatmul.mubr.f32.gmra.mrb[0].mxu0 %v7395
      %v7618 = vpop.f32.mrb[0].mxu0
      %v7619 = vadd.f32 0.0, %v7618
      %v7620 = vpop.f32.mrb[0].mxu0
      %v7621 = vadd.f32 0.0, %v7620
      %7622 = vmatprep.mubr.f32.mxu0 0.0
      %7623 = vmatmul.mubr.f32.gmra.mrb[0].mxu0 %v7398
      %v7624 = vpop.f32.mrb[0].mxu0
      %v7625 = vadd.f32 0.0, %v7624
      %v7626 = vpop.f32.mrb[0].mxu0
      %v7627 = vadd.f32 0.0, %v7626
      %7628 = vmatprep.mubr.f32.mxu0 0.0
      %7629 = vmatmul.mubr.f32.gmra.mrb[0].mxu0 %v7401
      %v7630 = vpop.f32.mrb[0].mxu0
      %v7631 = vadd.f32 0.0, %v7630
      %v7632 = vpop.f32.mrb[0].mxu0
      %v7633 = vadd.f32 0.0, %v7632
      %7634 = vmatprep.mubr.f32.mxu0 0.0
      %7635 = vmatmul.mubr.f32.gmra.mrb[0].mxu0 %v7404
      %v7636 = vpop.f32.mrb[0].mxu0
      %v7637 = vadd.f32 0.0, %v7636
      %v7638 = vpop.f32.mrb[0].mxu0
      %v7639 = vadd.f32 0.0, %v7638
      %7640 = vmatprep.mubr.f32.mxu0 0.0
      %7641 = vmatmul.mubr.f32.gmra.mrb[0].mxu0 %v7407
      %v7642 = vpop.f32.mrb[0].mxu0
      %v7643 = vadd.f32 0.0, %v7642
      %v7644 = vpop.f32.mrb[0].mxu0
      %v7645 = vadd.f32 0.0, %v7644
      %7646 = vmatprep.mubr.f32.mxu0 0.0
      %7647 = vmatmul.mubr.f32.gmra.mrb[0].mxu0 %v7410
      %v7648 = vpop.f32.mrb[0].mxu0
      %v7649 = vadd.f32 0.0, %v7648
      %v7650 = vpop.f32.mrb[0].mxu0
      %v7651 = vadd.f32 0.0, %v7650
      %7652 = vmatprep.mubr.f32.mxu0 0.0
      %7653 = vmatmul.mubr.f32.gmra.mrb[0].mxu0 %v7413
      %v7654 = vpop.f32.mrb[0].mxu0
      %v7655 = vadd.f32 0.0, %v7654
      %v7656 = vpop.f32.mrb[0].mxu0
      %v7657 = vadd.f32 0.0, %v7656
      %7658 = vmatprep.mubr.f32.mxu0 0.0
      %7659 = vmatmul.mubr.f32.gmra.mrb[0].mxu0 %v7416
      %v7660 = vpop.f32.mrb[0].mxu0
      %v7661 = vadd.f32 0.0, %v7660
      %v7662 = vpop.f32.mrb[0].mxu0
      %v7663 = vadd.f32 0.0, %v7662
      %7664 = vmatprep.mubr.f32.mxu0 0.0
      %7665 = vmatmul.mubr.f32.gmra.mrb[0].mxu0 %v7419
      %v7666 = vpop.f32.mrb[0].mxu0
      %v7667 = vadd.f32 0.0, %v7666
      %v7668 = vpop.f32.mrb[0].mxu0
      %v7669 = vadd.f32 0.0, %v7668
      %7670 = vmatprep.mubr.f32.mxu0 0.0
      %7671 = vmatmul.mubr.f32.gmra.mrb[0].mxu0 %v7422
      %v7672 = vpop.f32.mrb[0].mxu0
      %v7673 = vadd.f32 0.0, %v7672
      %v7674 = vpop.f32.mrb[0].mxu0
      %v7675 = vadd.f32 0.0, %v7674
      %7676 = vdwg.mxu0
      %v7677 = vld [vmem:[%s11] sm:$0x1]
      %v7679 = vlaneseq
      %v7680 = vshrl.u32 %v7679, 7
      %v7681 = vsub.s32 0, %v7680
      %v7682 = vrot.slane %v7677, %v7681
      %v7684 = vadd.f32 %v7682, 0.0
      %v7685 = vadd.f32 %v7684, %v7491
      %v7686 = vadd.f32 %v7684, %v7496
      %v7687 = vadd.f32 %v7684, %v7501
      %v7688 = vadd.f32 %v7684, %v7506
      %v7689 = vadd.f32 %v7684, %v7511
      %v7690 = vadd.f32 %v7684, %v7517
      %v7691 = vadd.f32 %v7684, %v7523
      %v7692 = vadd.f32 %v7684, %v7529
      %v7693 = vadd.f32 %v7684, %v7535
      %v7694 = vadd.f32 %v7684, %v7541
      %v7695 = vadd.f32 %v7684, %v7547
      %v7696 = vadd.f32 %v7684, %v7553
      %v7697 = vadd.f32 %v7684, %v7559
      %v7698 = vadd.f32 %v7684, %v7565
      %v7699 = vadd.f32 %v7684, %v7571
      %v7700 = vadd.f32 %v7684, %v7577
      %v7701 = vadd.f32 %v7684, %v7583
      %v7702 = vadd.f32 %v7684, %v7589
      %v7703 = vadd.f32 %v7684, %v7595
      %v7704 = vadd.f32 %v7684, %v7601
      %v7705 = vadd.f32 %v7684, %v7607
      %v7706 = vadd.f32 %v7684, %v7613
      %v7707 = vadd.f32 %v7684, %v7619
      %v7708 = vadd.f32 %v7684, %v7625
      %v7709 = vadd.f32 %v7684, %v7631
      %v7710 = vadd.f32 %v7684, %v7637
      %v7711 = vadd.f32 %v7684, %v7643
      %v7712 = vadd.f32 %v7684, %v7649
      %v7741 = vrot.slane %v7491, 1
      %v7742 = vrot.slane %v7496, 1
      %v7743 = vsel %vm1120, %v7741, %v7742
      %v7744 = vrot.slane %v7501, 1
      %v7745 = vrot.slane %v7506, 1
      %v7746 = vsel %vm1120, %v7744, %v7745
      %v7747 = vrot.slane %v7511, 1
      %v7748 = vrot.slane %v7517, 1
      %v7749 = vsel %vm1120, %v7747, %v7748
      %v7750 = vrot.slane %v7523, 1
      %v7751 = vrot.slane %v7529, 1
      %v7752 = vsel %vm1120, %v7750, %v7751
      %v7753 = vrot.slane %v7535, 1
      %v7754 = vrot.slane %v7541, 1
      %v7755 = vsel %vm1120, %v7753, %v7754
      %v7756 = vrot.slane %v7547, 1
      %v7757 = vrot.slane %v7553, 1
      %v7758 = vsel %vm1120, %v7756, %v7757
      %v7759 = vrot.slane %v7559, 1
      %v7760 = vrot.slane %v7565, 1
      %v7761 = vsel %vm1120, %v7759, %v7760
      %v7762 = vrot.slane %v7571, 1
      %v7763 = vrot.slane %v7577, 1
      %v7764 = vsel %vm1120, %v7762, %v7763
      %v7765 = vrot.slane %v7583, 1
      %v7766 = vrot.slane %v7589, 1
      %v7767 = vsel %vm1120, %v7765, %v7766
      %v7768 = vrot.slane %v7595, 1
      %v7769 = vrot.slane %v7601, 1
      %v7770 = vsel %vm1120, %v7768, %v7769
      %v7771 = vrot.slane %v7607, 1
      %v7772 = vrot.slane %v7613, 1
      %v7773 = vsel %vm1120, %v7771, %v7772
      %v7774 = vrot.slane %v7619, 1
      %v7775 = vrot.slane %v7625, 1
      %v7776 = vsel %vm1120, %v7774, %v7775
      %v7777 = vrot.slane %v7631, 1
      %v7778 = vrot.slane %v7637, 1
      %v7779 = vsel %vm1120, %v7777, %v7778
      %v7780 = vrot.slane %v7643, 1
      %v7781 = vrot.slane %v7649, 1
      %v7782 = vsel %vm1120, %v7780, %v7781
      %7783 = vrot.lane.b32.xlu0 %v7743, 112
      %v7784 = vpop.permute.xlu0 %7783
      %7785 = vrot.lane.b32.xlu0 %v7742, 112
      %v7786 = vpop.permute.xlu0 %7785
      %7787 = vrot.lane.b32.xlu0 %v7746, 112
      %v7788 = vpop.permute.xlu0 %7787
      %7789 = vrot.lane.b32.xlu0 %v7745, 112
      %v7790 = vpop.permute.xlu0 %7789
      %7791 = vrot.lane.b32.xlu0 %v7749, 112
      %v7792 = vpop.permute.xlu0 %7791
      %7793 = vrot.lane.b32.xlu0 %v7748, 112
      %v7794 = vpop.permute.xlu0 %7793
      %7795 = vrot.lane.b32.xlu0 %v7752, 112
      %v7796 = vpop.permute.xlu0 %7795
      %7797 = vrot.lane.b32.xlu0 %v7751, 112
      %v7798 = vpop.permute.xlu0 %7797
      %7799 = vrot.lane.b32.xlu0 %v7755, 112
      %v7800 = vpop.permute.xlu0 %7799
      %7801 = vrot.lane.b32.xlu0 %v7754, 112
      %v7802 = vpop.permute.xlu0 %7801
      %7803 = vrot.lane.b32.xlu0 %v7758, 112
      %v7804 = vpop.permute.xlu0 %7803
      %7805 = vrot.lane.b32.xlu0 %v7757, 112
      %v7806 = vpop.permute.xlu0 %7805
      %7807 = vrot.lane.b32.xlu0 %v7761, 112
      %v7808 = vpop.permute.xlu0 %7807
      %7809 = vrot.lane.b32.xlu0 %v7760, 112
      %v7810 = vpop.permute.xlu0 %7809
      %7811 = vrot.lane.b32.xlu0 %v7764, 112
      %v7812 = vpop.permute.xlu0 %7811
      %7813 = vrot.lane.b32.xlu0 %v7763, 112
      %v7814 = vpop.permute.xlu0 %7813
      %7815 = vrot.lane.b32.xlu0 %v7767, 112
      %v7816 = vpop.permute.xlu0 %7815
      %7817 = vrot.lane.b32.xlu0 %v7766, 112
      %v7818 = vpop.permute.xlu0 %7817
      %7819 = vrot.lane.b32.xlu0 %v7770, 112
      %v7820 = vpop.permute.xlu0 %7819
      %7821 = vrot.lane.b32.xlu0 %v7769, 112
      %v7822 = vpop.permute.xlu0 %7821
      %7823 = vrot.lane.b32.xlu0 %v7773, 112
      %v7824 = vpop.permute.xlu0 %7823
      %7825 = vrot.lane.b32.xlu0 %v7772, 112
      %v7826 = vpop.permute.xlu0 %7825
      %7827 = vrot.lane.b32.xlu0 %v7776, 112
      %v7828 = vpop.permute.xlu0 %7827
      %7829 = vrot.lane.b32.xlu0 %v7775, 112
      %v7830 = vpop.permute.xlu0 %7829
      %7831 = vrot.lane.b32.xlu0 %v7779, 112
      %v7832 = vpop.permute.xlu0 %7831
      %7833 = vrot.lane.b32.xlu0 %v7778, 112
      %v7834 = vpop.permute.xlu0 %7833
      %7835 = vrot.lane.b32.xlu0 %v7782, 112
      %v7836 = vpop.permute.xlu0 %7835
      %7837 = vrot.lane.b32.xlu0 %v7781, 112
      %v7838 = vpop.permute.xlu0 %7837
      %v7867 = vadd.f32 %v7685, %v7784
      %v7868 = vadd.f32 %v7686, %v7786
      %v7869 = vadd.f32 %v7687, %v7788
      %v7870 = vadd.f32 %v7688, %v7790
      %v7871 = vadd.f32 %v7689, %v7792
      %v7872 = vadd.f32 %v7690, %v7794
      %v7873 = vadd.f32 %v7691, %v7796
      %v7874 = vadd.f32 %v7692, %v7798
      %v7875 = vadd.f32 %v7693, %v7800
      %v7876 = vadd.f32 %v7694, %v7802
      %v7877 = vadd.f32 %v7695, %v7804
      %v7878 = vadd.f32 %v7696, %v7806
      %v7879 = vadd.f32 %v7697, %v7808
      %v7880 = vadd.f32 %v7698, %v7810
      %v7881 = vadd.f32 %v7699, %v7812
      %v7882 = vadd.f32 %v7700, %v7814
      %v7883 = vadd.f32 %v7701, %v7816
      %v7884 = vadd.f32 %v7702, %v7818
      %v7885 = vadd.f32 %v7703, %v7820
      %v7886 = vadd.f32 %v7704, %v7822
      %v7887 = vadd.f32 %v7705, %v7824
      %v7888 = vadd.f32 %v7706, %v7826
      %v7889 = vadd.f32 %v7707, %v7828
      %v7890 = vadd.f32 %v7708, %v7830
      %v7891 = vadd.f32 %v7709, %v7832
      %v7892 = vadd.f32 %v7710, %v7834
      %v7893 = vadd.f32 %v7711, %v7836
      %v7894 = vadd.f32 %v7712, %v7838
      %v7895 = vrot.slane %v7491, 2
      %v7896 = vrot.slane %v7496, 2
      %v7897 = vsel %vm1275, %v7895, %v7896
      %v7898 = vrot.slane %v7501, 2
      %v7899 = vrot.slane %v7506, 2
      %v7900 = vsel %vm1275, %v7898, %v7899
      %v7901 = vrot.slane %v7511, 2
      %v7902 = vrot.slane %v7517, 2
      %v7903 = vsel %vm1275, %v7901, %v7902
      %v7904 = vrot.slane %v7523, 2
      %v7905 = vrot.slane %v7529, 2
      %v7906 = vsel %vm1275, %v7904, %v7905
      %v7907 = vrot.slane %v7535, 2
      %v7908 = vrot.slane %v7541, 2
      %v7909 = vsel %vm1275, %v7907, %v7908
      %v7910 = vrot.slane %v7547, 2
      %v7911 = vrot.slane %v7553, 2
      %v7912 = vsel %vm1275, %v7910, %v7911
      %v7913 = vrot.slane %v7559, 2
      %v7914 = vrot.slane %v7565, 2
      %v7915 = vsel %vm1275, %v7913, %v7914
      %v7916 = vrot.slane %v7571, 2
      %v7917 = vrot.slane %v7577, 2
      %v7918 = vsel %vm1275, %v7916, %v7917
      %v7919 = vrot.slane %v7583, 2
      %v7920 = vrot.slane %v7589, 2
      %v7921 = vsel %vm1275, %v7919, %v7920
      %v7922 = vrot.slane %v7595, 2
      %v7923 = vrot.slane %v7601, 2
      %v7924 = vsel %vm1275, %v7922, %v7923
      %v7925 = vrot.slane %v7607, 2
      %v7926 = vrot.slane %v7613, 2
      %v7927 = vsel %vm1275, %v7925, %v7926
      %v7928 = vrot.slane %v7619, 2
      %v7929 = vrot.slane %v7625, 2
      %v7930 = vsel %vm1275, %v7928, %v7929
      %v7931 = vrot.slane %v7631, 2
      %v7932 = vrot.slane %v7637, 2
      %v7933 = vsel %vm1275, %v7931, %v7932
      %v7934 = vrot.slane %v7643, 2
      %v7935 = vrot.slane %v7649, 2
      %v7936 = vsel %vm1275, %v7934, %v7935
      %7937 = vrot.lane.b32.xlu0 %v7897, 96
      %v7938 = vpop.permute.xlu0 %7937
      %7939 = vrot.lane.b32.xlu0 %v7896, 96
      %v7940 = vpop.permute.xlu0 %7939
      %7941 = vrot.lane.b32.xlu0 %v7900, 96
      %v7942 = vpop.permute.xlu0 %7941
      %7943 = vrot.lane.b32.xlu0 %v7899, 96
      %v7944 = vpop.permute.xlu0 %7943
      %7945 = vrot.lane.b32.xlu0 %v7903, 96
      %v7946 = vpop.permute.xlu0 %7945
      %7947 = vrot.lane.b32.xlu0 %v7902, 96
      %v7948 = vpop.permute.xlu0 %7947
      %7949 = vrot.lane.b32.xlu0 %v7906, 96
      %v7950 = vpop.permute.xlu0 %7949
      %7951 = vrot.lane.b32.xlu0 %v7905, 96
      %v7952 = vpop.permute.xlu0 %7951
      %7953 = vrot.lane.b32.xlu0 %v7909, 96
      %v7954 = vpop.permute.xlu0 %7953
      %7955 = vrot.lane.b32.xlu0 %v7908, 96
      %v7956 = vpop.permute.xlu0 %7955
      %7957 = vrot.lane.b32.xlu0 %v7912, 96
      %v7958 = vpop.permute.xlu0 %7957
      %7959 = vrot.lane.b32.xlu0 %v7911, 96
      %v7960 = vpop.permute.xlu0 %7959
      %7961 = vrot.lane.b32.xlu0 %v7915, 96
      %v7962 = vpop.permute.xlu0 %7961
      %7963 = vrot.lane.b32.xlu0 %v7914, 96
      %v7964 = vpop.permute.xlu0 %7963
      %7965 = vrot.lane.b32.xlu0 %v7918, 96
      %v7966 = vpop.permute.xlu0 %7965
      %7967 = vrot.lane.b32.xlu0 %v7917, 96
      %v7968 = vpop.permute.xlu0 %7967
      %7969 = vrot.lane.b32.xlu0 %v7921, 96
      %v7970 = vpop.permute.xlu0 %7969
      %7971 = vrot.lane.b32.xlu0 %v7920, 96
      %v7972 = vpop.permute.xlu0 %7971
      %7973 = vrot.lane.b32.xlu0 %v7924, 96
      %v7974 = vpop.permute.xlu0 %7973
      %7975 = vrot.lane.b32.xlu0 %v7923, 96
      %v7976 = vpop.permute.xlu0 %7975
      %7977 = vrot.lane.b32.xlu0 %v7927, 96
      %v7978 = vpop.permute.xlu0 %7977
      %7979 = vrot.lane.b32.xlu0 %v7926, 96
      %v7980 = vpop.permute.xlu0 %7979
      %7981 = vrot.lane.b32.xlu0 %v7930, 96
      %v7982 = vpop.permute.xlu0 %7981
      %7983 = vrot.lane.b32.xlu0 %v7929, 96
      %v7984 = vpop.permute.xlu0 %7983
      %7985 = vrot.lane.b32.xlu0 %v7933, 96
      %v7986 = vpop.permute.xlu0 %7985
      %7987 = vrot.lane.b32.xlu0 %v7932, 96
      %v7988 = vpop.permute.xlu0 %7987
      %7989 = vrot.lane.b32.xlu0 %v7936, 96
      %v7990 = vpop.permute.xlu0 %7989
      %7991 = vrot.lane.b32.xlu0 %v7935, 96
      %v7992 = vpop.permute.xlu0 %7991
      %v8021 = vadd.f32 %v7867, %v7938
      %v8022 = vadd.f32 %v7868, %v7940
      %v8023 = vadd.f32 %v7869, %v7942
      %v8024 = vadd.f32 %v7870, %v7944
      %v8025 = vadd.f32 %v7871, %v7946
      %v8026 = vadd.f32 %v7872, %v7948
      %v8027 = vadd.f32 %v7873, %v7950
      %v8028 = vadd.f32 %v7874, %v7952
      %v8029 = vadd.f32 %v7875, %v7954
      %v8030 = vadd.f32 %v7876, %v7956
      %v8031 = vadd.f32 %v7877, %v7958
      %v8032 = vadd.f32 %v7878, %v7960
      %v8033 = vadd.f32 %v7879, %v7962
      %v8034 = vadd.f32 %v7880, %v7964
      %v8035 = vadd.f32 %v7881, %v7966
      %v8036 = vadd.f32 %v7882, %v7968
      %v8037 = vadd.f32 %v7883, %v7970
      %v8038 = vadd.f32 %v7884, %v7972
      %v8039 = vadd.f32 %v7885, %v7974
      %v8040 = vadd.f32 %v7886, %v7976
      %v8041 = vadd.f32 %v7887, %v7978
      %v8042 = vadd.f32 %v7888, %v7980
      %v8043 = vadd.f32 %v7889, %v7982
      %v8044 = vadd.f32 %v7890, %v7984
      %v8045 = vadd.f32 %v7891, %v7986
      %v8046 = vadd.f32 %v7892, %v7988
      %v8047 = vadd.f32 %v7893, %v7990
      %v8048 = vadd.f32 %v7894, %v7992
      %8051 = vrot.lane.b32.xlu0 %v7501, 80
      %v8052 = vpop.permute.xlu0 %8051
      %8053 = vrot.lane.b32.xlu0 %v7506, 80
      %v8054 = vpop.permute.xlu0 %8053
      %8055 = vrot.lane.b32.xlu0 %v7511, 80
      %v8056 = vpop.permute.xlu0 %8055
      %8057 = vrot.lane.b32.xlu0 %v7517, 80
      %v8058 = vpop.permute.xlu0 %8057
      %8059 = vrot.lane.b32.xlu0 %v7523, 80
      %v8060 = vpop.permute.xlu0 %8059
      %8061 = vrot.lane.b32.xlu0 %v7529, 80
      %v8062 = vpop.permute.xlu0 %8061
      %8063 = vrot.lane.b32.xlu0 %v7535, 80
      %v8064 = vpop.permute.xlu0 %8063
      %8065 = vrot.lane.b32.xlu0 %v7541, 80
      %v8066 = vpop.permute.xlu0 %8065
      %8067 = vrot.lane.b32.xlu0 %v7547, 80
      %v8068 = vpop.permute.xlu0 %8067
      %8069 = vrot.lane.b32.xlu0 %v7553, 80
      %v8070 = vpop.permute.xlu0 %8069
      %8071 = vrot.lane.b32.xlu0 %v7559, 80
      %v8072 = vpop.permute.xlu0 %8071
      %8073 = vrot.lane.b32.xlu0 %v7565, 80
      %v8074 = vpop.permute.xlu0 %8073
      %8075 = vrot.lane.b32.xlu0 %v7571, 80
      %v8076 = vpop.permute.xlu0 %8075
      %8077 = vrot.lane.b32.xlu0 %v7577, 80
      %v8078 = vpop.permute.xlu0 %8077
      %8079 = vrot.lane.b32.xlu0 %v7583, 80
      %v8080 = vpop.permute.xlu0 %8079
      %8081 = vrot.lane.b32.xlu0 %v7589, 80
      %v8082 = vpop.permute.xlu0 %8081
      %8083 = vrot.lane.b32.xlu0 %v7595, 80
      %v8084 = vpop.permute.xlu0 %8083
      %8085 = vrot.lane.b32.xlu0 %v7601, 80
      %v8086 = vpop.permute.xlu0 %8085
      %8087 = vrot.lane.b32.xlu0 %v7607, 80
      %v8088 = vpop.permute.xlu0 %8087
      %8089 = vrot.lane.b32.xlu0 %v7613, 80
      %v8090 = vpop.permute.xlu0 %8089
      %8091 = vrot.lane.b32.xlu0 %v7619, 80
      %v8092 = vpop.permute.xlu0 %8091
      %8093 = vrot.lane.b32.xlu0 %v7625, 80
      %v8094 = vpop.permute.xlu0 %8093
      %8095 = vrot.lane.b32.xlu0 %v7631, 80
      %v8096 = vpop.permute.xlu0 %8095
      %8097 = vrot.lane.b32.xlu0 %v7637, 80
      %v8098 = vpop.permute.xlu0 %8097
      %8099 = vrot.lane.b32.xlu0 %v7643, 80
      %v8100 = vpop.permute.xlu0 %8099
      %8101 = vrot.lane.b32.xlu0 %v7649, 80
      %v8102 = vpop.permute.xlu0 %8101
      %8103 = vrot.lane.b32.xlu0 %v7655, 80
      %v8104 = vpop.permute.xlu0 %8103
      %8105 = vrot.lane.b32.xlu0 %v7661, 80
      %v8106 = vpop.permute.xlu0 %8105
      %v8135 = vadd.f32 %v8021, %v8052
      %v8136 = vadd.f32 %v8022, %v8054
      %v8137 = vadd.f32 %v8023, %v8056
      %v8138 = vadd.f32 %v8024, %v8058
      %v8139 = vadd.f32 %v8025, %v8060
      %v8140 = vadd.f32 %v8026, %v8062
      %v8141 = vadd.f32 %v8027, %v8064
      %v8142 = vadd.f32 %v8028, %v8066
      %v8143 = vadd.f32 %v8029, %v8068
      %v8144 = vadd.f32 %v8030, %v8070
      %v8145 = vadd.f32 %v8031, %v8072
      %v8146 = vadd.f32 %v8032, %v8074
      %v8147 = vadd.f32 %v8033, %v8076
      %v8148 = vadd.f32 %v8034, %v8078
      %v8149 = vadd.f32 %v8035, %v8080
      %v8150 = vadd.f32 %v8036, %v8082
      %v8151 = vadd.f32 %v8037, %v8084
      %v8152 = vadd.f32 %v8038, %v8086
      %v8153 = vadd.f32 %v8039, %v8088
      %v8154 = vadd.f32 %v8040, %v8090
      %v8155 = vadd.f32 %v8041, %v8092
      %v8156 = vadd.f32 %v8042, %v8094
      %v8157 = vadd.f32 %v8043, %v8096
      %v8158 = vadd.f32 %v8044, %v8098
      %v8159 = vadd.f32 %v8045, %v8100
      %v8160 = vadd.f32 %v8046, %v8102
      %v8161 = vadd.f32 %v8047, %v8104
      %v8162 = vadd.f32 %v8048, %v8106
      %v8163 = vrot.slane %v7655, 1
      %v8164 = vrot.slane %v7661, 1
      %v8165 = vsel %vm1120, %v8163, %v8164
      %8166 = vrot.lane.b32.xlu0 %v7746, 64
      %v8167 = vpop.permute.xlu0 %8166
      %8168 = vrot.lane.b32.xlu0 %v7745, 64
      %v8169 = vpop.permute.xlu0 %8168
      %8170 = vrot.lane.b32.xlu0 %v7749, 64
      %v8171 = vpop.permute.xlu0 %8170
      %8172 = vrot.lane.b32.xlu0 %v7748, 64
      %v8173 = vpop.permute.xlu0 %8172
      %8174 = vrot.lane.b32.xlu0 %v7752, 64
      %v8175 = vpop.permute.xlu0 %8174
      %8176 = vrot.lane.b32.xlu0 %v7751, 64
      %v8177 = vpop.permute.xlu0 %8176
      %8178 = vrot.lane.b32.xlu0 %v7755, 64
      %v8179 = vpop.permute.xlu0 %8178
      %8180 = vrot.lane.b32.xlu0 %v7754, 64
      %v8181 = vpop.permute.xlu0 %8180
      %8182 = vrot.lane.b32.xlu0 %v7758, 64
      %v8183 = vpop.permute.xlu0 %8182
      %8184 = vrot.lane.b32.xlu0 %v7757, 64
      %v8185 = vpop.permute.xlu0 %8184
      %8186 = vrot.lane.b32.xlu0 %v7761, 64
      %v8187 = vpop.permute.xlu0 %8186
      %8188 = vrot.lane.b32.xlu0 %v7760, 64
      %v8189 = vpop.permute.xlu0 %8188
      %8190 = vrot.lane.b32.xlu0 %v7764, 64
      %v8191 = vpop.permute.xlu0 %8190
      %8192 = vrot.lane.b32.xlu0 %v7763, 64
      %v8193 = vpop.permute.xlu0 %8192
      %8194 = vrot.lane.b32.xlu0 %v7767, 64
      %v8195 = vpop.permute.xlu0 %8194
      %8196 = vrot.lane.b32.xlu0 %v7766, 64
      %v8197 = vpop.permute.xlu0 %8196
      %8198 = vrot.lane.b32.xlu0 %v7770, 64
      %v8199 = vpop.permute.xlu0 %8198
      %8200 = vrot.lane.b32.xlu0 %v7769, 64
      %v8201 = vpop.permute.xlu0 %8200
      %8202 = vrot.lane.b32.xlu0 %v7773, 64
      %v8203 = vpop.permute.xlu0 %8202
      %8204 = vrot.lane.b32.xlu0 %v7772, 64
      %v8205 = vpop.permute.xlu0 %8204
      %8206 = vrot.lane.b32.xlu0 %v7776, 64
      %v8207 = vpop.permute.xlu0 %8206
      %8208 = vrot.lane.b32.xlu0 %v7775, 64
      %v8209 = vpop.permute.xlu0 %8208
      %8210 = vrot.lane.b32.xlu0 %v7779, 64
      %v8211 = vpop.permute.xlu0 %8210
      %8212 = vrot.lane.b32.xlu0 %v7778, 64
      %v8213 = vpop.permute.xlu0 %8212
      %8214 = vrot.lane.b32.xlu0 %v7782, 64
      %v8215 = vpop.permute.xlu0 %8214
      %8216 = vrot.lane.b32.xlu0 %v7781, 64
      %v8217 = vpop.permute.xlu0 %8216
      %8218 = vrot.lane.b32.xlu0 %v8165, 64
      %v8219 = vpop.permute.xlu0 %8218
      %8220 = vrot.lane.b32.xlu0 %v8164, 64
      %v8221 = vpop.permute.xlu0 %8220
      %v8250 = vadd.f32 %v8135, %v8167
      %v8251 = vadd.f32 %v8136, %v8169
      %v8252 = vadd.f32 %v8137, %v8171
      %v8253 = vadd.f32 %v8138, %v8173
      %v8254 = vadd.f32 %v8139, %v8175
      %v8255 = vadd.f32 %v8140, %v8177
      %v8256 = vadd.f32 %v8141, %v8179
      %v8257 = vadd.f32 %v8142, %v8181
      %v8258 = vadd.f32 %v8143, %v8183
      %v8259 = vadd.f32 %v8144, %v8185
      %v8260 = vadd.f32 %v8145, %v8187
      %v8261 = vadd.f32 %v8146, %v8189
      %v8262 = vadd.f32 %v8147, %v8191
      %v8263 = vadd.f32 %v8148, %v8193
      %v8264 = vadd.f32 %v8149, %v8195
      %v8265 = vadd.f32 %v8150, %v8197
      %v8266 = vadd.f32 %v8151, %v8199
      %v8267 = vadd.f32 %v8152, %v8201
      %v8268 = vadd.f32 %v8153, %v8203
      %v8269 = vadd.f32 %v8154, %v8205
      %v8270 = vadd.f32 %v8155, %v8207
      %v8271 = vadd.f32 %v8156, %v8209
      %v8272 = vadd.f32 %v8157, %v8211
      %v8273 = vadd.f32 %v8158, %v8213
      %v8274 = vadd.f32 %v8159, %v8215
      %v8275 = vadd.f32 %v8160, %v8217
      %v8276 = vadd.f32 %v8161, %v8219
      %v8277 = vadd.f32 %v8162, %v8221
      %v8278 = vrot.slane %v7655, 2
      %v8279 = vrot.slane %v7661, 2
      %v8280 = vsel %vm1275, %v8278, %v8279
      %8281 = vrot.lane.b32.xlu0 %v7900, 48
      %v8282 = vpop.permute.xlu0 %8281
      %8283 = vrot.lane.b32.xlu0 %v7899, 48
      %v8284 = vpop.permute.xlu0 %8283
      %8285 = vrot.lane.b32.xlu0 %v7903, 48
      %v8286 = vpop.permute.xlu0 %8285
      %8287 = vrot.lane.b32.xlu0 %v7902, 48
      %v8288 = vpop.permute.xlu0 %8287
      %8289 = vrot.lane.b32.xlu0 %v7906, 48
      %v8290 = vpop.permute.xlu0 %8289
      %8291 = vrot.lane.b32.xlu0 %v7905, 48
      %v8292 = vpop.permute.xlu0 %8291
      %8293 = vrot.lane.b32.xlu0 %v7909, 48
      %v8294 = vpop.permute.xlu0 %8293
      %8295 = vrot.lane.b32.xlu0 %v7908, 48
      %v8296 = vpop.permute.xlu0 %8295
      %8297 = vrot.lane.b32.xlu0 %v7912, 48
      %v8298 = vpop.permute.xlu0 %8297
      %8299 = vrot.lane.b32.xlu0 %v7911, 48
      %v8300 = vpop.permute.xlu0 %8299
      %8301 = vrot.lane.b32.xlu0 %v7915, 48
      %v8302 = vpop.permute.xlu0 %8301
      %8303 = vrot.lane.b32.xlu0 %v7914, 48
      %v8304 = vpop.permute.xlu0 %8303
      %8305 = vrot.lane.b32.xlu0 %v7918, 48
      %v8306 = vpop.permute.xlu0 %8305
      %8307 = vrot.lane.b32.xlu0 %v7917, 48
      %v8308 = vpop.permute.xlu0 %8307
      %8309 = vrot.lane.b32.xlu0 %v7921, 48
      %v8310 = vpop.permute.xlu0 %8309
      %8311 = vrot.lane.b32.xlu0 %v7920, 48
      %v8312 = vpop.permute.xlu0 %8311
      %8313 = vrot.lane.b32.xlu0 %v7924, 48
      %v8314 = vpop.permute.xlu0 %8313
      %8315 = vrot.lane.b32.xlu0 %v7923, 48
      %v8316 = vpop.permute.xlu0 %8315
      %8317 = vrot.lane.b32.xlu0 %v7927, 48
      %v8318 = vpop.permute.xlu0 %8317
      %8319 = vrot.lane.b32.xlu0 %v7926, 48
      %v8320 = vpop.permute.xlu0 %8319
      %8321 = vrot.lane.b32.xlu0 %v7930, 48
      %v8322 = vpop.permute.xlu0 %8321
      %8323 = vrot.lane.b32.xlu0 %v7929, 48
      %v8324 = vpop.permute.xlu0 %8323
      %8325 = vrot.lane.b32.xlu0 %v7933, 48
      %v8326 = vpop.permute.xlu0 %8325
      %8327 = vrot.lane.b32.xlu0 %v7932, 48
      %v8328 = vpop.permute.xlu0 %8327
      %8329 = vrot.lane.b32.xlu0 %v7936, 48
      %v8330 = vpop.permute.xlu0 %8329
      %8331 = vrot.lane.b32.xlu0 %v7935, 48
      %v8332 = vpop.permute.xlu0 %8331
      %8333 = vrot.lane.b32.xlu0 %v8280, 48
      %v8334 = vpop.permute.xlu0 %8333
      %8335 = vrot.lane.b32.xlu0 %v8279, 48
      %v8336 = vpop.permute.xlu0 %8335
      %v8365 = vadd.f32 %v8250, %v8282
      %v8366 = vadd.f32 %v8251, %v8284
      %v8367 = vadd.f32 %v8252, %v8286
      %v8368 = vadd.f32 %v8253, %v8288
      %v8369 = vadd.f32 %v8254, %v8290
      %v8370 = vadd.f32 %v8255, %v8292
      %v8371 = vadd.f32 %v8256, %v8294
      %v8372 = vadd.f32 %v8257, %v8296
      %v8373 = vadd.f32 %v8258, %v8298
      %v8374 = vadd.f32 %v8259, %v8300
      %v8375 = vadd.f32 %v8260, %v8302
      %v8376 = vadd.f32 %v8261, %v8304
      %v8377 = vadd.f32 %v8262, %v8306
      %v8378 = vadd.f32 %v8263, %v8308
      %v8379 = vadd.f32 %v8264, %v8310
      %v8380 = vadd.f32 %v8265, %v8312
      %v8381 = vadd.f32 %v8266, %v8314
      %v8382 = vadd.f32 %v8267, %v8316
      %v8383 = vadd.f32 %v8268, %v8318
      %v8384 = vadd.f32 %v8269, %v8320
      %v8385 = vadd.f32 %v8270, %v8322
      %v8386 = vadd.f32 %v8271, %v8324
      %v8387 = vadd.f32 %v8272, %v8326
      %v8388 = vadd.f32 %v8273, %v8328
      %v8389 = vadd.f32 %v8274, %v8330
      %v8390 = vadd.f32 %v8275, %v8332
      %v8391 = vadd.f32 %v8276, %v8334
      %v8392 = vadd.f32 %v8277, %v8336
      %8395 = vrot.lane.b32.xlu0 %v7511, 32
      %v8396 = vpop.permute.xlu0 %8395
      %8397 = vrot.lane.b32.xlu0 %v7517, 32
      %v8398 = vpop.permute.xlu0 %8397
      %8399 = vrot.lane.b32.xlu0 %v7523, 32
      %v8400 = vpop.permute.xlu0 %8399
      %8401 = vrot.lane.b32.xlu0 %v7529, 32
      %v8402 = vpop.permute.xlu0 %8401
      %8403 = vrot.lane.b32.xlu0 %v7535, 32
      %v8404 = vpop.permute.xlu0 %8403
      %8405 = vrot.lane.b32.xlu0 %v7541, 32
      %v8406 = vpop.permute.xlu0 %8405
      %8407 = vrot.lane.b32.xlu0 %v7547, 32
      %v8408 = vpop.permute.xlu0 %8407
      %8409 = vrot.lane.b32.xlu0 %v7553, 32
      %v8410 = vpop.permute.xlu0 %8409
      %8411 = vrot.lane.b32.xlu0 %v7559, 32
      %v8412 = vpop.permute.xlu0 %8411
      %8413 = vrot.lane.b32.xlu0 %v7565, 32
      %v8414 = vpop.permute.xlu0 %8413
      %8415 = vrot.lane.b32.xlu0 %v7571, 32
      %v8416 = vpop.permute.xlu0 %8415
      %8417 = vrot.lane.b32.xlu0 %v7577, 32
      %v8418 = vpop.permute.xlu0 %8417
      %8419 = vrot.lane.b32.xlu0 %v7583, 32
      %v8420 = vpop.permute.xlu0 %8419
      %8421 = vrot.lane.b32.xlu0 %v7589, 32
      %v8422 = vpop.permute.xlu0 %8421
      %8423 = vrot.lane.b32.xlu0 %v7595, 32
      %v8424 = vpop.permute.xlu0 %8423
      %8425 = vrot.lane.b32.xlu0 %v7601, 32
      %v8426 = vpop.permute.xlu0 %8425
      %8427 = vrot.lane.b32.xlu0 %v7607, 32
      %v8428 = vpop.permute.xlu0 %8427
      %8429 = vrot.lane.b32.xlu0 %v7613, 32
      %v8430 = vpop.permute.xlu0 %8429
      %8431 = vrot.lane.b32.xlu0 %v7619, 32
      %v8432 = vpop.permute.xlu0 %8431
      %8433 = vrot.lane.b32.xlu0 %v7625, 32
      %v8434 = vpop.permute.xlu0 %8433
      %8435 = vrot.lane.b32.xlu0 %v7631, 32
      %v8436 = vpop.permute.xlu0 %8435
      %8437 = vrot.lane.b32.xlu0 %v7637, 32
      %v8438 = vpop.permute.xlu0 %8437
      %8439 = vrot.lane.b32.xlu0 %v7643, 32
      %v8440 = vpop.permute.xlu0 %8439
      %8441 = vrot.lane.b32.xlu0 %v7649, 32
      %v8442 = vpop.permute.xlu0 %8441
      %8443 = vrot.lane.b32.xlu0 %v7655, 32
      %v8444 = vpop.permute.xlu0 %8443
      %8445 = vrot.lane.b32.xlu0 %v7661, 32
      %v8446 = vpop.permute.xlu0 %8445
      %8447 = vrot.lane.b32.xlu0 %v7667, 32
      %v8448 = vpop.permute.xlu0 %8447
      %8449 = vrot.lane.b32.xlu0 %v7673, 32
      %v8450 = vpop.permute.xlu0 %8449
      %v8479 = vadd.f32 %v8365, %v8396
      %v8480 = vadd.f32 %v8366, %v8398
      %v8481 = vadd.f32 %v8367, %v8400
      %v8482 = vadd.f32 %v8368, %v8402
      %v8483 = vadd.f32 %v8369, %v8404
      %v8484 = vadd.f32 %v8370, %v8406
      %v8485 = vadd.f32 %v8371, %v8408
      %v8486 = vadd.f32 %v8372, %v8410
      %v8487 = vadd.f32 %v8373, %v8412
      %v8488 = vadd.f32 %v8374, %v8414
      %v8489 = vadd.f32 %v8375, %v8416
      %v8490 = vadd.f32 %v8376, %v8418
      %v8491 = vadd.f32 %v8377, %v8420
      %v8492 = vadd.f32 %v8378, %v8422
      %v8493 = vadd.f32 %v8379, %v8424
      %v8494 = vadd.f32 %v8380, %v8426
      %v8495 = vadd.f32 %v8381, %v8428
      %v8496 = vadd.f32 %v8382, %v8430
      %v8497 = vadd.f32 %v8383, %v8432
      %v8498 = vadd.f32 %v8384, %v8434
      %v8499 = vadd.f32 %v8385, %v8436
      %v8500 = vadd.f32 %v8386, %v8438
      %v8501 = vadd.f32 %v8387, %v8440
      %v8502 = vadd.f32 %v8388, %v8442
      %v8503 = vadd.f32 %v8389, %v8444
      %v8504 = vadd.f32 %v8390, %v8446
      %v8505 = vadd.f32 %v8391, %v8448
      %v8506 = vadd.f32 %v8392, %v8450
      %v8507 = vrot.slane %v7667, 1
      %v8508 = vrot.slane %v7673, 1
      %v8509 = vsel %vm1120, %v8507, %v8508
      %8510 = vrot.lane.b32.xlu0 %v7749, 16
      %v8511 = vpop.permute.xlu0 %8510
      %8512 = vrot.lane.b32.xlu0 %v7748, 16
      %v8513 = vpop.permute.xlu0 %8512
      %8514 = vrot.lane.b32.xlu0 %v7752, 16
      %v8515 = vpop.permute.xlu0 %8514
      %8516 = vrot.lane.b32.xlu0 %v7751, 16
      %v8517 = vpop.permute.xlu0 %8516
      %8518 = vrot.lane.b32.xlu0 %v7755, 16
      %v8519 = vpop.permute.xlu0 %8518
      %8520 = vrot.lane.b32.xlu0 %v7754, 16
      %v8521 = vpop.permute.xlu0 %8520
      %8522 = vrot.lane.b32.xlu0 %v7758, 16
      %v8523 = vpop.permute.xlu0 %8522
      %8524 = vrot.lane.b32.xlu0 %v7757, 16
      %v8525 = vpop.permute.xlu0 %8524
      %8526 = vrot.lane.b32.xlu0 %v7761, 16
      %v8527 = vpop.permute.xlu0 %8526
      %8528 = vrot.lane.b32.xlu0 %v7760, 16
      %v8529 = vpop.permute.xlu0 %8528
      %8530 = vrot.lane.b32.xlu0 %v7764, 16
      %v8531 = vpop.permute.xlu0 %8530
      %8532 = vrot.lane.b32.xlu0 %v7763, 16
      %v8533 = vpop.permute.xlu0 %8532
      %8534 = vrot.lane.b32.xlu0 %v7767, 16
      %v8535 = vpop.permute.xlu0 %8534
      %8536 = vrot.lane.b32.xlu0 %v7766, 16
      %v8537 = vpop.permute.xlu0 %8536
      %8538 = vrot.lane.b32.xlu0 %v7770, 16
      %v8539 = vpop.permute.xlu0 %8538
      %8540 = vrot.lane.b32.xlu0 %v7769, 16
      %v8541 = vpop.permute.xlu0 %8540
      %8542 = vrot.lane.b32.xlu0 %v7773, 16
      %v8543 = vpop.permute.xlu0 %8542
      %8544 = vrot.lane.b32.xlu0 %v7772, 16
      %v8545 = vpop.permute.xlu0 %8544
      %8546 = vrot.lane.b32.xlu0 %v7776, 16
      %v8547 = vpop.permute.xlu0 %8546
      %8548 = vrot.lane.b32.xlu0 %v7775, 16
      %v8549 = vpop.permute.xlu0 %8548
      %8550 = vrot.lane.b32.xlu0 %v7779, 16
      %v8551 = vpop.permute.xlu0 %8550
      %8552 = vrot.lane.b32.xlu0 %v7778, 16
      %v8553 = vpop.permute.xlu0 %8552
      %8554 = vrot.lane.b32.xlu0 %v7782, 16
      %v8555 = vpop.permute.xlu0 %8554
      %8556 = vrot.lane.b32.xlu0 %v7781, 16
      %v8557 = vpop.permute.xlu0 %8556
      %8558 = vrot.lane.b32.xlu0 %v8165, 16
      %v8559 = vpop.permute.xlu0 %8558
      %8560 = vrot.lane.b32.xlu0 %v8164, 16
      %v8561 = vpop.permute.xlu0 %8560
      %8562 = vrot.lane.b32.xlu0 %v8509, 16
      %v8563 = vpop.permute.xlu0 %8562
      %8564 = vrot.lane.b32.xlu0 %v8508, 16
      %v8565 = vpop.permute.xlu0 %8564
      %v8594 = vadd.f32 %v8479, %v8511
      %v8595 = vadd.f32 %v8480, %v8513
      %v8596 = vadd.f32 %v8481, %v8515
      %v8597 = vadd.f32 %v8482, %v8517
      %v8598 = vadd.f32 %v8483, %v8519
      %v8599 = vadd.f32 %v8484, %v8521
      %v8600 = vadd.f32 %v8485, %v8523
      %v8601 = vadd.f32 %v8486, %v8525
      %v8602 = vadd.f32 %v8487, %v8527
      %v8603 = vadd.f32 %v8488, %v8529
      %v8604 = vadd.f32 %v8489, %v8531
      %v8605 = vadd.f32 %v8490, %v8533
      %v8606 = vadd.f32 %v8491, %v8535
      %v8607 = vadd.f32 %v8492, %v8537
      %v8608 = vadd.f32 %v8493, %v8539
      %v8609 = vadd.f32 %v8494, %v8541
      %v8610 = vadd.f32 %v8495, %v8543
      %v8611 = vadd.f32 %v8496, %v8545
      %v8612 = vadd.f32 %v8497, %v8547
      %v8613 = vadd.f32 %v8498, %v8549
      %v8614 = vadd.f32 %v8499, %v8551
      %v8615 = vadd.f32 %v8500, %v8553
      %v8616 = vadd.f32 %v8501, %v8555
      %v8617 = vadd.f32 %v8502, %v8557
      %v8618 = vadd.f32 %v8503, %v8559
      %v8619 = vadd.f32 %v8504, %v8561
      %v8620 = vadd.f32 %v8505, %v8563
      %v8621 = vadd.f32 %v8506, %v8565
      %v8650 = vrot.slane %v7513, 2
      %v8651 = vrot.slane %v7519, 2
      %v8652 = vsel %vm1275, %v8650, %v8651
      %v8653 = vrot.slane %v7525, 2
      %v8654 = vrot.slane %v7531, 2
      %v8655 = vsel %vm1275, %v8653, %v8654
      %v8656 = vrot.slane %v7537, 2
      %v8657 = vrot.slane %v7543, 2
      %v8658 = vsel %vm1275, %v8656, %v8657
      %v8659 = vrot.slane %v7549, 2
      %v8660 = vrot.slane %v7555, 2
      %v8661 = vsel %vm1275, %v8659, %v8660
      %v8662 = vrot.slane %v7561, 2
      %v8663 = vrot.slane %v7567, 2
      %v8664 = vsel %vm1275, %v8662, %v8663
      %v8665 = vrot.slane %v7573, 2
      %v8666 = vrot.slane %v7579, 2
      %v8667 = vsel %vm1275, %v8665, %v8666
      %v8668 = vrot.slane %v7585, 2
      %v8669 = vrot.slane %v7591, 2
      %v8670 = vsel %vm1275, %v8668, %v8669
      %v8671 = vrot.slane %v7597, 2
      %v8672 = vrot.slane %v7603, 2
      %v8673 = vsel %vm1275, %v8671, %v8672
      %v8674 = vrot.slane %v7609, 2
      %v8675 = vrot.slane %v7615, 2
      %v8676 = vsel %vm1275, %v8674, %v8675
      %v8677 = vrot.slane %v7621, 2
      %v8678 = vrot.slane %v7627, 2
      %v8679 = vsel %vm1275, %v8677, %v8678
      %v8680 = vrot.slane %v7633, 2
      %v8681 = vrot.slane %v7639, 2
      %v8682 = vsel %vm1275, %v8680, %v8681
      %v8683 = vrot.slane %v7645, 2
      %v8684 = vrot.slane %v7651, 2
      %v8685 = vsel %vm1275, %v8683, %v8684
      %v8686 = vrot.slane %v7657, 2
      %v8687 = vrot.slane %v7663, 2
      %v8688 = vsel %vm1275, %v8686, %v8687
      %v8689 = vrot.slane %v7669, 2
      %v8690 = vrot.slane %v7675, 2
      %v8691 = vsel %vm1275, %v8689, %v8690
      %v8720 = vadd.f32 %v8594, %v8652
      %v8721 = vadd.f32 %v8595, %v8651
      %v8722 = vadd.f32 %v8596, %v8655
      %v8723 = vadd.f32 %v8597, %v8654
      %v8724 = vadd.f32 %v8598, %v8658
      %v8725 = vadd.f32 %v8599, %v8657
      %v8726 = vadd.f32 %v8600, %v8661
      %v8727 = vadd.f32 %v8601, %v8660
      %v8728 = vadd.f32 %v8602, %v8664
      %v8729 = vadd.f32 %v8603, %v8663
      %v8730 = vadd.f32 %v8604, %v8667
      %v8731 = vadd.f32 %v8605, %v8666
      %v8732 = vadd.f32 %v8606, %v8670
      %v8733 = vadd.f32 %v8607, %v8669
      %v8734 = vadd.f32 %v8608, %v8673
      %v8735 = vadd.f32 %v8609, %v8672
      %v8736 = vadd.f32 %v8610, %v8676
      %v8737 = vadd.f32 %v8611, %v8675
      %v8738 = vadd.f32 %v8612, %v8679
      %v8739 = vadd.f32 %v8613, %v8678
      %v8740 = vadd.f32 %v8614, %v8682
      %v8741 = vadd.f32 %v8615, %v8681
      %v8742 = vadd.f32 %v8616, %v8685
      %v8743 = vadd.f32 %v8617, %v8684
      %v8744 = vadd.f32 %v8618, %v8688
      %v8745 = vadd.f32 %v8619, %v8687
      %v8746 = vadd.f32 %v8620, %v8691
      %v8747 = vadd.f32 %v8621, %v8690
      %v8748 = vmul.f32 %v8720, 0.166
      %v8749 = vmul.f32 %v8721, 0.166
      %v8750 = vmul.f32 %v8722, 0.166
      %v8751 = vmul.f32 %v8723, 0.166
      %v8752 = vmul.f32 %v8724, 0.166
      %v8753 = vmul.f32 %v8725, 0.166
      %v8754 = vmul.f32 %v8726, 0.166
      %v8755 = vmul.f32 %v8727, 0.166
      %v8756 = vmul.f32 %v8728, 0.166
      %v8757 = vmul.f32 %v8729, 0.166
      %v8758 = vmul.f32 %v8730, 0.166
      %v8759 = vmul.f32 %v8731, 0.166
      %v8760 = vmul.f32 %v8732, 0.166
      %v8761 = vmul.f32 %v8733, 0.166
      %v8762 = vmul.f32 %v8734, 0.166
      %v8763 = vmul.f32 %v8735, 0.166
      %v8764 = vmul.f32 %v8736, 0.166
      %v8765 = vmul.f32 %v8737, 0.166
      %v8766 = vmul.f32 %v8738, 0.166
      %v8767 = vmul.f32 %v8739, 0.166
      %v8768 = vmul.f32 %v8740, 0.166
      %v8769 = vmul.f32 %v8741, 0.166
      %v8770 = vmul.f32 %v8742, 0.166
      %v8771 = vmul.f32 %v8743, 0.166
      %v8772 = vmul.f32 %v8744, 0.166
      %v8773 = vmul.f32 %v8745, 0.166
      %v8774 = vmul.f32 %v8746, 0.166
      %v8775 = vmul.f32 %v8747, 0.166
      %v8776 = vld [vmem:[%s495 + $0x1] sm:$0xff]
      %v8777 = vld [vmem:[%s495 + $0x9] sm:$0x3f]
      %v8778 = vld [vmem:[%s495 + $0x11] sm:$0xff]
      %v8779 = vld [vmem:[%s495 + $0x19] sm:$0x3f]
      %v8780 = vld [vmem:[%s495 + $0x21] sm:$0xff]
      %v8781 = vld [vmem:[%s495 + $0x29] sm:$0x3f]
      %v8782 = vld [vmem:[%s495 + $0x31] sm:$0xff]
      %v8783 = vld [vmem:[%s495 + $0x39] sm:$0x3f]
      %v8784 = vld [vmem:[%s495 + $0x41] sm:$0xff]
      %v8785 = vld [vmem:[%s495 + $0x49] sm:$0x3f]
      %v8786 = vld [vmem:[%s495 + $0x51] sm:$0xff]
      %v8787 = vld [vmem:[%s495 + $0x59] sm:$0x3f]
      %v8788 = vld [vmem:[%s495 + $0x61] sm:$0xff]
      %v8789 = vld [vmem:[%s495 + $0x69] sm:$0x3f]
      %v8790 = vld [vmem:[%s495 + $0x71] sm:$0xff]
      %v8791 = vld [vmem:[%s495 + $0x79] sm:$0x3f]
      %v8792 = vld [vmem:[%s495 + $0x81] sm:$0xff]
      %v8793 = vld [vmem:[%s495 + $0x89] sm:$0x3f]
      %v8794 = vld [vmem:[%s495 + $0x91] sm:$0xff]
      %v8795 = vld [vmem:[%s495 + $0x99] sm:$0x3f]
      %v8796 = vld [vmem:[%s495 + $0xa1] sm:$0xff]
      %v8797 = vld [vmem:[%s495 + $0xa9] sm:$0x3f]
      %v8798 = vld [vmem:[%s495 + $0xb1] sm:$0xff]
      %v8799 = vld [vmem:[%s495 + $0xb9] sm:$0x3f]
      %v8800 = vld [vmem:[%s495 + $0xc1] sm:$0xff]
      %v8801 = vld [vmem:[%s495 + $0xc9] sm:$0x3f]
      %v8802 = vld [vmem:[%s495 + $0xd1] sm:$0xff]
      %v8803 = vld [vmem:[%s495 + $0xd9] sm:$0x3f]
      %v8804 = vadd.f32 %v8748, %v8776
      %v8805 = vadd.f32 %v8749, %v8777
      %v8806 = vadd.f32 %v8750, %v8778
      %v8807 = vadd.f32 %v8751, %v8779
      %v8808 = vadd.f32 %v8752, %v8780
      %v8809 = vadd.f32 %v8753, %v8781
      %v8810 = vadd.f32 %v8754, %v8782
      %v8811 = vadd.f32 %v8755, %v8783
      %v8812 = vadd.f32 %v8756, %v8784
      %v8813 = vadd.f32 %v8757, %v8785
      %v8814 = vadd.f32 %v8758, %v8786
      %v8815 = vadd.f32 %v8759, %v8787
      %v8816 = vadd.f32 %v8760, %v8788
      %v8817 = vadd.f32 %v8761, %v8789
      %v8818 = vadd.f32 %v8762, %v8790
      %v8819 = vadd.f32 %v8763, %v8791
      %v8820 = vadd.f32 %v8764, %v8792
      %v8821 = vadd.f32 %v8765, %v8793
      %v8822 = vadd.f32 %v8766, %v8794
      %v8823 = vadd.f32 %v8767, %v8795
      %v8824 = vadd.f32 %v8768, %v8796
      %v8825 = vadd.f32 %v8769, %v8797
      %v8826 = vadd.f32 %v8770, %v8798
      %v8827 = vadd.f32 %v8771, %v8799
      %v8828 = vadd.f32 %v8772, %v8800
      %v8829 = vadd.f32 %v8773, %v8801
      %v8830 = vadd.f32 %v8774, %v8802
      %v8831 = vadd.f32 %v8775, %v8803
      %8832 = vst.msk [vmem:[%s433] sm:$0xff] %vm496, %v8804
      %8833 = vst.msk [vmem:[%s433 + $0x8] sm:$0x3f] %vm498, %v8805
      %8834 = vst.msk [vmem:[%s433 + $0x10] sm:$0xff] %vm496, %v8806
      %8835 = vst.msk [vmem:[%s433 + $0x18] sm:$0x3f] %vm498, %v8807
      %8836 = vst.msk [vmem:[%s433 + $0x20] sm:$0xff] %vm496, %v8808
      %8837 = vst.msk [vmem:[%s433 + $0x28] sm:$0x3f] %vm498, %v8809
      %8838 = vst.msk [vmem:[%s433 + $0x30] sm:$0xff] %vm496, %v8810
      %8839 = vst.msk [vmem:[%s433 + $0x38] sm:$0x3f] %vm498, %v8811
      %8840 = vst.msk [vmem:[%s433 + $0x40] sm:$0xff] %vm496, %v8812
      %8841 = vst.msk [vmem:[%s433 + $0x48] sm:$0x3f] %vm498, %v8813
      %8842 = vst.msk [vmem:[%s433 + $0x50] sm:$0xff] %vm496, %v8814
      %8843 = vst.msk [vmem:[%s433 + $0x58] sm:$0x3f] %vm498, %v8815
      %8844 = vst.msk [vmem:[%s433 + $0x60] sm:$0xff] %vm496, %v8816
      %8845 = vst.msk [vmem:[%s433 + $0x68] sm:$0x3f] %vm498, %v8817
      %8846 = vst.msk [vmem:[%s433 + $0x70] sm:$0xff] %vm496, %v8818
      %8847 = vst.msk [vmem:[%s433 + $0x78] sm:$0x3f] %vm498, %v8819
      %8848 = vst.msk [vmem:[%s433 + $0x80] sm:$0xff] %vm496, %v8820
      %8849 = vst.msk [vmem:[%s433 + $0x88] sm:$0x3f] %vm498, %v8821
      %8850 = vst.msk [vmem:[%s433 + $0x90] sm:$0xff] %vm496, %v8822
      %8851 = vst.msk [vmem:[%s433 + $0x98] sm:$0x3f] %vm498, %v8823
      %8852 = vst.msk [vmem:[%s433 + $0xa0] sm:$0xff] %vm496, %v8824
      %8853 = vst.msk [vmem:[%s433 + $0xa8] sm:$0x3f] %vm498, %v8825
      %8854 = vst.msk [vmem:[%s433 + $0xb0] sm:$0xff] %vm496, %v8826
      %8855 = vst.msk [vmem:[%s433 + $0xb8] sm:$0x3f] %vm498, %v8827
      %8856 = vst.msk [vmem:[%s433 + $0xc0] sm:$0xff] %vm496, %v8828
      %8857 = vst.msk [vmem:[%s433 + $0xc8] sm:$0x3f] %vm498, %v8829
      %8858 = vst.msk [vmem:[%s433 + $0xd0] sm:$0xff] %vm496, %v8830
      %8859 = vst.msk [vmem:[%s433 + $0xd8] sm:$0x3f] %vm498, %v8831
      %p8860 = scmp.lt.s32.totalorder %s23, 1
      %s8861 = scalar_select %p8860, %s23, 1
      %s8862 = smul.addr %s8861, 28
      %s8863 = smul.addr %s8862, 8
      %s8864 = scalar_lea.vmem %s12, %s8863
      // Predicated region
      $region69: #{tpu_custom_call.1} parent=67 // pred_check
        %p8865 = pneg %p303
      $region70: #{tpu_custom_call.1} parent=67 // pred_check_branch
        %8867 = sbr.rel (%p8865) target = $region72
      $region71: #{tpu_custom_call.1} parent=67 // pred_region
        _
      $region72: #{tpu_custom_call.1} parent=67 // pred_fallthru
        _
    $region68: #{tpu_custom_call.1} parent=5 // pred_fallthru
      _
    %p8868 = scmp.le.s32.totalorder 2, %s18
    // Predicated region
    $region73: #{tpu_custom_call.1} parent=5 // pred_check
      %p8869 = pneg %p8868
    $region74: #{tpu_custom_call.1} parent=5 // pred_check_branch
      %8871 = sbr.rel (%p8869) target = $region76
    $region75: #{tpu_custom_call.1} parent=5 // pred_region
      %s8872 = ssub.s32 %s18, 2
      // Predicated region
      $region77: #{tpu_custom_call.1} parent=75 // pred_check
        %p8873 = pneg %p309
      $region78: #{tpu_custom_call.1} parent=75 // pred_check_branch
        %8875 = sbr.rel (%p8873) target = $region80
      $region79: #{tpu_custom_call.1} parent=75 // pred_region
        %p8876 = scmp.lt.s32.totalorder %s24, 1
        %s8877 = scalar_select %p8876, %s24, 1
        %s8878 = smul.addr %s8877, 28
        %s8879 = smul.addr %s8878, 8
        %s8880 = scalar_lea.vmem %s12, %s8879
      $region80: #{tpu_custom_call.1} parent=75 // pred_fallthru
        _
    $region76: #{tpu_custom_call.1} parent=5 // pred_fallthru
      _
  $region6: #{tpu_custom_call.1} parent=0 // loop_footer
    %s22 = sadd.s32 1, %s18
  $region7: #{tpu_custom_call.1} parent=0 // loop_footer_branch
    %17 = sbr.rel target = $region3
  $region8: #{tpu_custom_call.1} parent=0 // loop_exit
    _

</llo_original>
